<compile_context>
chip_gen: v7x
topology: tpu7x:2x2x1
jax: 0.10.0
libtpu: 0.0.40
codegen_flags: <defaults>
</compile_context>

<pallas_src>
import functools

import jax
import jax.numpy as jnp
from jax.experimental import pallas as pl
from jax.experimental.pallas import tpu as pltpu


def _round_up(x, m):
    return (x + m - 1) // m * m


# ----------------------------------------------------------------------------
# Per-generation sizing (v5e/v6e: 128 MiB VMEM -> big tiles; v7x: 64 MiB -> smaller)
# ----------------------------------------------------------------------------
def _vmem_capacity_bytes():
    try:
        return int(pltpu.get_tpu_info().vmem_capacity_bytes)
    except Exception:
        return 64 << 20          # conservative fallback (v7x-like)


_VMEM_CAP = _vmem_capacity_bytes()
_BIG_VMEM = _VMEM_CAP >= (100 << 20)
_VMEM_LIMIT = (96 << 20) if _BIG_VMEM else (44 << 20)
_MM_TILE = 512 if _BIG_VMEM else 256        # row tile for the 1x1 / projection matmuls
_ATTN_TQ = 512 if _BIG_VMEM else 256        # query tile
_ATTN_TK = 1024 if _BIG_VMEM else 512       # key tile (online-softmax inner axis)
# TODO(synk): pipeline_mode=pl.Buffered(3) on the streamed matmul operands would help
# v5e's slower HBM; left out to keep one code path across generations.


def _mosaic_params(semantics):
    return pltpu.CompilerParams(dimension_semantics=semantics,
                                vmem_limit_bytes=_VMEM_LIMIT)


# ----------------------------------------------------------------------------
# Pallas kernels
# ----------------------------------------------------------------------------
def _matmul_bias_kernel(x_ref, w_ref, b_ref, o_ref, *, relu):
    # out = x @ w + bias (no per-channel scale) — fast path for plain conv1x1+bias.
    acc = jnp.dot(x_ref[...], w_ref[...], preferred_element_type=jnp.float32)
    out = acc + b_ref[...]
    if relu:
        out = jnp.maximum(out, 0.0)
    o_ref[...] = out.astype(o_ref.dtype)


def _matmul_scale_bias_kernel(x_ref, w_ref, s_ref, b_ref, o_ref, *, relu):
    # out = (x @ w) * scale + bias (folded BN), optional ReLU.
    acc = jnp.dot(x_ref[...], w_ref[...], preferred_element_type=jnp.float32)
    out = acc * s_ref[...] + b_ref[...]
    if relu:
        out = jnp.maximum(out, 0.0)
    o_ref[...] = out.astype(o_ref.dtype)


def matmul_affine(x, w, scale, bias, *, relu=False, out_dtype=jnp.bfloat16, tm=None):
    M, K = x.shape
    Kw, N = w.shape
    assert K == Kw and N % 128 == 0, (K, Kw, N)
    if tm is None:
        tm = _MM_TILE
    tm = min(tm, _round_up(M, 8))
    Mp = _round_up(M, tm)
    xb = x.astype(jnp.bfloat16)
    if Mp != M:
        xb = jnp.pad(xb, ((0, Mp - M), (0, 0)))
    bias2 = bias.reshape(1, N).astype(jnp.float32)
    in_specs = [pl.BlockSpec((tm, K), lambda i: (i, 0)),
                pl.BlockSpec((K, N), lambda i: (0, 0))]
    if scale is None:
        kernel = functools.partial(_matmul_bias_kernel, relu=relu)
        in_specs += [pl.BlockSpec((1, N), lambda i: (0, 0))]
        args = (xb, w.astype(jnp.bfloat16), bias2)
    else:
        kernel = functools.partial(_matmul_scale_bias_kernel, relu=relu)
        in_specs += [pl.BlockSpec((1, N), lambda i: (0, 0)),
                     pl.BlockSpec((1, N), lambda i: (0, 0))]
        args = (xb, w.astype(jnp.bfloat16),
                scale.reshape(1, N).astype(jnp.float32), bias2)
    out = pl.pallas_call(
        kernel,
        out_shape=jax.ShapeDtypeStruct((Mp, N), out_dtype),
        grid_spec=pltpu.PrefetchScalarGridSpec(
            num_scalar_prefetch=0,
            grid=(Mp // tm,),
            in_specs=in_specs,
            out_specs=pl.BlockSpec((tm, N), lambda i: (i, 0)),
        ),
        compiler_params=_mosaic_params(("parallel",)),
    )(*args)
    return out[:M] if Mp != M else out


def _conv3x3_bn_kernel(x_ref, w_ref, s_ref, b_ref, o_ref, *, ho, wo, relu):
    # Direct 3x3 conv (stride 1) on one padded image whose kw taps were pre-concatenated
    # along channels (K = 3*Cin).  Three matmuls; each LHS is a contiguous leading-dim
    # view (slice along kh only) -> no misaligned VMEM copies; output is lane-dense.
    xt = x_ref[0]                                        # (ho+2, wo, 3*Cin) bf16
    k3 = xt.shape[-1]
    acc = jnp.dot(xt[0:ho].reshape(ho * wo, k3), w_ref[0],
                  preferred_element_type=jnp.float32)
    acc = acc + jnp.dot(xt[1:ho + 1].reshape(ho * wo, k3), w_ref[1],
                        preferred_element_type=jnp.float32)
    acc = acc + jnp.dot(xt[2:ho + 2].reshape(ho * wo, k3), w_ref[2],
                        preferred_element_type=jnp.float32)
    out = acc * s_ref[...] + b_ref[...]
    if relu:
        out = jnp.maximum(out, 0.0)
    o_ref[0] = out.astype(o_ref.dtype)


def conv3x3_bn(x, w_k3, scale, bias, *, relu, out_dtype=jnp.bfloat16):
    # x: (B, H, W, Cp) channel-padded NHWC, stride=1, padding=1.
    # w_k3: (3, 3*Cp, Coutp) — kw taps concatenated along K (kw-major within each kh).
    B, H, W, Cp = x.shape
    Coutp = w_k3.shape[-1]
    xb = x.astype(jnp.bfloat16)
    xp = jnp.pad(xb, ((0, 0), (1, 1), (1, 1), (0, 0)))                # (B, H+2, W+2, Cp)
    # width-3 im2col: 3x the conv-input HBM traffic, but all in-kernel matmul operands
    # become contiguous views and K = 3*Cp fills the 256-deep MXU on v6e/v7x.
    xw3 = jnp.concatenate(
        [xp[:, :, 0:W, :], xp[:, :, 1:W + 1, :], xp[:, :, 2:W + 2, :]], axis=-1)
    # TODO(synk): for feature maps too large to hold one padded image per grid step in
    # VMEM, add a row-tiled path with a manual haloed DMA (memory_space=pl.ANY).
    kernel = functools.partial(_conv3x3_bn_kernel, ho=H, wo=W, relu=relu)
    out = pl.pallas_call(
        kernel,
        out_shape=jax.ShapeDtypeStruct((B, H * W, Coutp), out_dtype),
        grid_spec=pltpu.PrefetchScalarGridSpec(
            num_scalar_prefetch=0,
            grid=(B,),
            in_specs=[
                pl.BlockSpec((1, H + 2, W, 3 * Cp), lambda i: (i, 0, 0, 0)),
                pl.BlockSpec((3, 3 * Cp, Coutp), lambda i: (0, 0, 0)),
                pl.BlockSpec((1, Coutp), lambda i: (0, 0)),
                pl.BlockSpec((1, Coutp), lambda i: (0, 0)),
            ],
            out_specs=pl.BlockSpec((1, H * W, Coutp), lambda i: (i, 0, 0)),
        ),
        compiler_params=_mosaic_params(("parallel",)),
    )(xw3, w_k3.astype(jnp.bfloat16),
      scale.reshape(1, Coutp).astype(jnp.float32),
      bias.reshape(1, Coutp).astype(jnp.float32))
    return out.reshape(B, H, W, Coutp)


def _nl_attn_kernel(th_ref, ph_ref, g_ref, o_ref, m_sc, l_sc, acc_sc,
                    *, tk, nk_valid, mask_tail):
    # Flash-style embedded-Gaussian attention over Nk tiles:
    #   f = theta @ phi^T ; y = softmax(f) @ g   (online softmax, deferred normalise)
    k = pl.program_id(2)

    @pl.when(k == 0)
    def _():
        m_sc[...] = jnp.full(m_sc.shape, -jnp.inf, jnp.float32)
        l_sc[...] = jnp.zeros(l_sc.shape, jnp.float32)
        acc_sc[...] = jnp.zeros(acc_sc.shape, jnp.float32)

    s = jax.lax.dot_general(th_ref[...], ph_ref[...],
                            dimension_numbers=(((1,), (1,)), ((), ())),
                            preferred_element_type=jnp.float32)        # (tq, tk)
    if mask_tail:
        key_idx = k * tk + jax.lax.broadcasted_iota(jnp.int32, s.shape, 1)
        s = jnp.where(key_idx < nk_valid, s, -jnp.inf)
    m_new = jnp.maximum(m_sc[...], jnp.max(s, axis=-1, keepdims=True))
    alpha = jnp.exp(m_sc[...] - m_new)
    p = jnp.exp(s - m_new)
    l_sc[...] = alpha * l_sc[...] + jnp.sum(p, axis=-1, keepdims=True)
    acc_sc[...] = alpha * acc_sc[...] + jnp.dot(
        p.astype(jnp.bfloat16), g_ref[...], preferred_element_type=jnp.float32)
    m_sc[...] = m_new

    @pl.when(k == pl.num_programs(2) - 1)
    def _():
        # approx reciprocal runs on the EUP slot; ~1e-3 rel. error vs exact division.
        o_ref[...] = (acc_sc[...] * pl.reciprocal(l_sc[...], approx=True)
                      ).astype(o_ref.dtype)


def nonlocal_attention(theta, phi, g, *, out_dtype=jnp.bfloat16):
    B, Nq, Cip = theta.shape
    _, Nk, _ = phi.shape
    assert Cip % 128 == 0
    tq = min(_ATTN_TQ, _round_up(Nq, 8))
    tk = min(_ATTN_TK, _round_up(Nk, 8))
    Nqp, Nkp = _round_up(Nq, tq), _round_up(Nk, tk)
    thb = theta.astype(jnp.bfloat16)
    phb = phi.astype(jnp.bfloat16)
    gb = g.astype(jnp.bfloat16)
    if Nqp != Nq:
        thb = jnp.pad(thb, ((0, 0), (0, Nqp - Nq), (0, 0)))
    if Nkp != Nk:
        phb = jnp.pad(phb, ((0, 0), (0, Nkp - Nk), (0, 0)))
        gb = jnp.pad(gb, ((0, 0), (0, Nkp - Nk), (0, 0)))
    kernel = functools.partial(_nl_attn_kernel, tk=tk, nk_valid=Nk,
                               mask_tail=(Nkp != Nk))
    out = pl.pallas_call(
        kernel,
        out_shape=jax.ShapeDtypeStruct((B, Nqp, Cip), out_dtype),
        grid_spec=pltpu.PrefetchScalarGridSpec(
            num_scalar_prefetch=0,
            grid=(B, Nqp // tq, Nkp // tk),
            in_specs=[
                pl.BlockSpec((pl.Squeezed(), tq, Cip), lambda b, q, k: (b, q, 0)),
                pl.BlockSpec((pl.Squeezed(), tk, Cip), lambda b, q, k: (b, k, 0)),
                pl.BlockSpec((pl.Squeezed(), tk, Cip), lambda b, q, k: (b, k, 0)),
            ],
            out_specs=pl.BlockSpec((pl.Squeezed(), tq, Cip), lambda b, q, k: (b, q, 0)),
            scratch_shapes=[pltpu.VMEM((tq, 1), jnp.float32),
                            pltpu.VMEM((tq, 1), jnp.float32),
                            pltpu.VMEM((tq, Cip), jnp.float32)],
        ),
        compiler_params=_mosaic_params(("parallel", "parallel", "arbitrary")),
    )(thb, phb, gb)
    return out[:, :Nq] if Nqp != Nq else out


def _matmul_affine_add2_relu_kernel(x_ref, w_ref, s_ref, b_ref, r1_ref, r2_ref, o_ref):
    # out = relu((x @ w) * scale + bias + r1 + r2)
    # (W 1x1 conv + BN, + non-local residual, + BasicBlock shortcut, + final ReLU)
    acc = jnp.dot(x_ref[...], w_ref[...], preferred_element_type=jnp.float32)
    out = (acc * s_ref[...] + b_ref[...]
           + r1_ref[...].astype(jnp.float32) + r2_ref[...].astype(jnp.float32))
    o_ref[...] = jnp.maximum(out, 0.0).astype(o_ref.dtype)


def matmul_affine_add2_relu(x, w, scale, bias, r1, r2, *, tm=None,
                            out_dtype=jnp.bfloat16):
    M, K = x.shape
    _, N = w.shape
    assert N % 128 == 0
    if tm is None:
        tm = _MM_TILE
    tm = min(tm, _round_up(M, 8))
    Mp = _round_up(M, tm)

    def _pad_m(a):
        return jnp.pad(a, ((0, Mp - M), (0, 0))) if Mp != M else a

    xb = _pad_m(x.astype(jnp.bfloat16))
    r1b = _pad_m(r1.astype(jnp.bfloat16))
    r2b = _pad_m(r2.astype(jnp.bfloat16))
    out = pl.pallas_call(
        _matmul_affine_add2_relu_kernel,
        out_shape=jax.ShapeDtypeStruct((Mp, N), out_dtype),
        grid_spec=pltpu.PrefetchScalarGridSpec(
            num_scalar_prefetch=0,
            grid=(Mp // tm,),
            in_specs=[
                pl.BlockSpec((tm, K), lambda i: (i, 0)),
                pl.BlockSpec((K, N), lambda i: (0, 0)),
                pl.BlockSpec((1, N), lambda i: (0, 0)),
                pl.BlockSpec((1, N), lambda i: (0, 0)),
                pl.BlockSpec((tm, N), lambda i: (i, 0)),
                pl.BlockSpec((tm, N), lambda i: (i, 0)),
            ],
            out_specs=pl.BlockSpec((tm, N), lambda i: (i, 0)),
        ),
        compiler_params=_mosaic_params(("parallel",)),
    )(xb, w.astype(jnp.bfloat16),
      scale.reshape(1, N).astype(jnp.float32),
      bias.reshape(1, N).astype(jnp.float32), r1b, r2b)
    return out[:M] if Mp != M else out


# ----------------------------------------------------------------------------
# JAX glue (layout plumbing, channel padding, weight reshaping, BN folding, pooling)
# ----------------------------------------------------------------------------
def bn_fold(gamma, beta, mean, var, eps=1e-5):
    scale = gamma / jnp.sqrt(var + eps)
    return scale, beta - mean * scale


def _pad_vec(v, n):
    return jnp.pad(v, (0, n - v.shape[0])) if v.shape[0] != n else v


def conv3x3_to_k3(w, cin_p, cout_p):
    # torch (Cout, Cin, 3, 3) -> (3, 3*cin_p, cout_p), kw-major within each kh
    # (matches the width-3 channel-concat built in conv3x3_bn).
    wt = jnp.transpose(w, (2, 3, 1, 0))                   # (3, 3, Cin, Cout)
    wt = jnp.pad(wt, ((0, 0), (0, 0),
                      (0, cin_p - w.shape[1]), (0, cout_p - w.shape[0])))
    return wt.reshape(3, 3 * cin_p, cout_p)


def conv3x3_to_mat9(w, cin_p, cout_p):
    # torch (Cout, Cin, 3, 3) -> (9*cin_p, cout_p) in im2col (kh, kw) order.
    wt = jnp.transpose(w, (2, 3, 1, 0))
    wt = jnp.pad(wt, ((0, 0), (0, 0),
                      (0, cin_p - w.shape[1]), (0, cout_p - w.shape[0])))
    return wt.reshape(9 * cin_p, cout_p)


def conv1x1_to_mat(w, k_p, n_p):
    m = w[:, :, 0, 0].T                                   # (Cin, Cout)
    return jnp.pad(m, ((0, k_p - m.shape[0]), (0, n_p - m.shape[1])))


def im2col_3x3(x, stride):
    # fallback path for stride > 1 only (not used by the demo)
    B, H, W, C = x.shape
    Ho = (H - 1) // stride + 1
    Wo = (W - 1) // stride + 1
    xp = jnp.pad(x, ((0, 0), (1, 1), (1, 1), (0, 0)))
    cols = [xp[:, kh:kh + stride * (Ho - 1) + 1:stride,
               kw:kw + stride * (Wo - 1) + 1:stride, :]
            for kh in range(3) for kw in range(3)]
    return jnp.concatenate(cols, axis=-1), Ho, Wo


def maxpool2x2(x):
    # sub_sample 2x2 max-pool on NHWC (runs in XLA).
    # TODO(synk): fuse into the theta/phi/g projection kernel epilogue to drop the
    # full-resolution phi/g HBM round trip (row tiles aligned to image-row pairs).
    B, H, W, C = x.shape
    return jnp.max(x.reshape(B, H // 2, 2, W // 2, 2, C), axis=(2, 4))


# ----------------------------------------------------------------------------
# BasicBlock forward
# ----------------------------------------------------------------------------
def basic_block_forward(x_nchw, p, stride=1):
    x_nhwc = jnp.transpose(x_nchw, (0, 2, 3, 1)).astype(jnp.float32)   # NHWC
    B, H, W, Cin = x_nhwc.shape
    Cout = p["conv1_w"].shape[0]
    Ci = p["theta_w"].shape[0]
    Cin_p = _round_up(Cin, 128)
    Cout_p = _round_up(Cout, 128)
    Ci_p = _round_up(Ci, 128)

    # pad channels once; every Pallas output below stays lane-dense (>=128 lanes)
    x = jnp.pad(x_nhwc, ((0, 0), (0, 0), (0, 0), (0, Cin_p - Cin))).astype(jnp.bfloat16)

    Ho = (H - 1) // stride + 1
    Wo = (W - 1) // stride + 1
    assert Ho % 2 == 0 and Wo % 2 == 0, "non-local sub_sample needs even output maps"
    M = B * Ho * Wo

    # residual branch: conv3x3(stride) + BN + ReLU
    s1, b1 = bn_fold(*p["bn1"])
    s1, b1 = _pad_vec(s1, Cout_p), _pad_vec(b1, Cout_p)
    if stride == 1:
        r = conv3x3_bn(x, conv3x3_to_k3(p["conv1_w"], Cin_p, Cout_p), s1, b1, relu=True)
    else:
        # TODO(synk): direct strided 3x3 conv kernel; im2col+matmul fallback for stride>1.
        patches, Ho2, Wo2 = im2col_3x3(x, stride)
        r = matmul_affine(patches.reshape(B * Ho2 * Wo2, 9 * Cin_p),
                          conv3x3_to_mat9(p["conv1_w"], Cin_p, Cout_p),
                          s1, b1, relu=True).reshape(B, Ho, Wo, Cout_p)

    # residual branch: conv3x3(stride=1) + BN (no ReLU)
    s2, b2 = bn_fold(*p["bn2"])
    s2, b2 = _pad_vec(s2, Cout_p), _pad_vec(b2, Cout_p)
    r = conv3x3_bn(r, conv3x3_to_k3(p["conv2_w"], Cout_p, Cout_p), s2, b2, relu=False)
    r_flat = r.reshape(M, Cout_p)                                      # bf16

    # shortcut branch
    if stride != 1 or Cin != Cout:
        xs = x[:, ::stride, ::stride, :].reshape(M, Cin_p)
        ssc, bsc = bn_fold(*p["bn_sc"])
        sc = matmul_affine(xs, conv1x1_to_mat(p["sc_w"], Cin_p, Cout_p),
                           _pad_vec(ssc, Cout_p), _pad_vec(bsc, Cout_p))
    else:
        sc = x.reshape(M, Cout_p)

    # non-local block on r: fused theta/phi/g 1x1 projections (single lane-dense
    # matmul with concatenated weights, r read from HBM once, no-scale fast path)
    w_qkv = jnp.concatenate([conv1x1_to_mat(p["theta_w"], Cout_p, Ci_p),
                             conv1x1_to_mat(p["phi_w"], Cout_p, Ci_p),
                             conv1x1_to_mat(p["g_w"], Cout_p, Ci_p)], axis=1)
    b_qkv = jnp.concatenate([_pad_vec(p["theta_b"], Ci_p),
                             _pad_vec(p["phi_b"], Ci_p),
                             _pad_vec(p["g_b"], Ci_p)])
    qkv = matmul_affine(r_flat, w_qkv, None, b_qkv)                    # (M, 3*Ci_p)

    theta = qkv[:, :Ci_p].reshape(B, Ho * Wo, Ci_p)
    phig = qkv[:, Ci_p:].reshape(B, Ho, Wo, 2 * Ci_p)
    phig_pool = maxpool2x2(phig)                                       # (B, Ho/2, Wo/2, 2*Ci_p)
    Nk = (Ho // 2) * (Wo // 2)
    phi_p = phig_pool[..., :Ci_p].reshape(B, Nk, Ci_p)
    g_p = phig_pool[..., Ci_p:].reshape(B, Nk, Ci_p)

    y = nonlocal_attention(theta, phi_p, g_p).reshape(M, Ci_p)

    # W (1x1 conv + BN) + non-local residual r + shortcut sc, then final ReLU,
    # fused into one Pallas kernel (bf16 writeback).
    sW, bW = bn_fold(*p["W_bn"])
    b_tot = _pad_vec(p["W_b"] * sW + bW, Cout_p)
    sW = _pad_vec(sW, Cout_p)
    out = matmul_affine_add2_relu(y, conv1x1_to_mat(p["W_w"], Ci_p, Cout_p),
                                  sW, b_tot, r_flat, sc)

    out = out.reshape(B, Ho, Wo, Cout_p)[..., :Cout]                   # unpad channels
    return jnp.transpose(out, (0, 3, 1, 2)).astype(jnp.float32)        # back to NCHW


# ----------------------------------------------------------------------------
# Deterministic parameter init (matches the PyTorch module's shapes)
# ----------------------------------------------------------------------------
def init_params(key, in_channels, out_channels):
    Ci = out_channels // 2 if out_channels // 2 > 0 else 1
    ks = jax.random.split(key, 16)

    def w_init(k, shape, fan_in):
        return jax.random.normal(k, shape, jnp.float32) / jnp.sqrt(float(fan_in))

    def bn_rand(k, c):  # (gamma, beta, running_mean, running_var), non-trivial stats
        k1, k2, k3 = jax.random.split(k, 3)
        return (1.0 + 0.1 * jax.random.normal(k1, (c,), jnp.float32),
                0.1 * jax.random.normal(k2, (c,), jnp.float32),
                0.1 * jax.random.normal(k3, (c,), jnp.float32),
                jnp.ones((c,), jnp.float32))

    return {
        "conv1_w": w_init(ks[0], (out_channels, in_channels, 3, 3), 9 * in_channels),
        "bn1": bn_rand(ks[1], out_channels),
        "conv2_w": w_init(ks[2], (out_channels, out_channels, 3, 3), 9 * out_channels),
        "bn2": bn_rand(ks[3], out_channels),
        "sc_w": w_init(ks[4], (out_channels, in_channels, 1, 1), in_channels),
        "bn_sc": bn_rand(ks[5], out_channels),
        # non-local 1x1 convs (with bias)
        "theta_w": w_init(ks[6], (Ci, out_channels, 1, 1), out_channels),
        "theta_b": 0.01 * jax.random.normal(ks[7], (Ci,), jnp.float32),
        "phi_w": w_init(ks[8], (Ci, out_channels, 1, 1), out_channels),
        "phi_b": 0.01 * jax.random.normal(ks[9], (Ci,), jnp.float32),
        "g_w": w_init(ks[10], (Ci, out_channels, 1, 1), out_channels),
        "g_b": 0.01 * jax.random.normal(ks[11], (Ci,), jnp.float32),
        # W: 1x1 conv (+bias) followed by BN.  NOTE: PyTorch initialises this BN with
        # gamma=beta=0 (silencing the attention branch at init); we use non-trivial BN
        # parameters so the demo numerically exercises the attention/W path —
        # forward semantics are unchanged.
        "W_w": w_init(ks[12], (out_channels, Ci, 1, 1), Ci),
        "W_b": 0.01 * jax.random.normal(ks[13], (out_channels,), jnp.float32),
        "W_bn": bn_rand(ks[14], out_channels),
    }


if __name__ == "__main__":
    key = jax.random.PRNGKey(0)
    kx, kp = jax.random.split(key)
    B, Cin, H, W = 2, 4, 16, 16
    Cout = 8
    stride = 1

    x = jax.random.normal(kx, (B, Cin, H, W), jnp.float32)
    params = init_params(kp, Cin, Cout)

    fwd = jax.jit(functools.partial(basic_block_forward, stride=stride))
    out = fwd(x, params)
    jax.block_until_ready(out)
    assert out.shape == (B, Cout, H, W), out.shape
    assert bool(jnp.all(jnp.isfinite(out)))
    print("KERNEL_OK")
</pallas_src>

<mosaic_0001>
module attributes {stable_mosaic.version = 11 : i64} {
  func.func @_conv3x3_bn_kernel(%arg0: i32, %arg1: memref<1x18x16x384xbf16, #tpu.memory_space<vmem>>, %arg2: memref<3x384x128xbf16, #tpu.memory_space<vmem>>, %arg3: memref<1x128xf32, #tpu.memory_space<vmem>>, %arg4: memref<1x128xf32, #tpu.memory_space<vmem>>, %arg5: memref<1x256x128xbf16, #tpu.memory_space<vmem>>) attributes {dimension_semantics = [#tpu.dimension_semantics<parallel>], iteration_bounds = array<i64: 2>, scalar_prefetch = 0 : i64, scratch_operands = 0 : i64, tpu.core_type = #tpu.core_type<tc>, window_params = [{transform_indices = @transform_0, window_bounds = array<i64: 1, 18, 16, 384>}, {pipeline_mode = #tpu.pipeline_mode<synchronous>, transform_indices = @transform_1, window_bounds = array<i64: 3, 384, 128>}, {pipeline_mode = #tpu.pipeline_mode<synchronous>, transform_indices = @transform_2, window_bounds = array<i64: 1, 128>}, {pipeline_mode = #tpu.pipeline_mode<synchronous>, transform_indices = @transform_3, window_bounds = array<i64: 1, 128>}, {transform_indices = @transform_4, window_bounds = array<i64: 1, 256, 128>}]} {
    %c0 = arith.constant 0 : index
    %c0_0 = arith.constant 0 : index
    %c0_1 = arith.constant 0 : index
    %c0_2 = arith.constant 0 : index
    %0 = vector.load %arg1[%c0, %c0_0, %c0_1, %c0_2] : memref<1x18x16x384xbf16, #tpu.memory_space<vmem>>, vector<1x18x16x384xbf16>
    %1 = vector.shape_cast %0 : vector<1x18x16x384xbf16> to vector<18x16x384xbf16>
    %2 = vector.extract_strided_slice %1 {offsets = [0, 0, 0], sizes = [16, 16, 384], strides = [1, 1, 1]} : vector<18x16x384xbf16> to vector<16x16x384xbf16>
    %3 = vector.shape_cast %2 : vector<16x16x384xbf16> to vector<256x384xbf16>
    %c0_3 = arith.constant 0 : index
    %c0_4 = arith.constant 0 : index
    %c0_5 = arith.constant 0 : index
    %4 = vector.load %arg2[%c0_3, %c0_4, %c0_5] : memref<3x384x128xbf16, #tpu.memory_space<vmem>>, vector<1x384x128xbf16>
    %5 = vector.shape_cast %4 : vector<1x384x128xbf16> to vector<384x128xbf16>
    %cst = arith.constant dense<0.000000e+00> : vector<256x128xf32>
    %6 = tpu.matmul %3, %5, %cst {dimension_numbers = #tpu.dot_dimension_numbers<[1], [0], [0], [1], [0, 0, 1, 1], [], []>} : vector<256x384xbf16>, vector<384x128xbf16>, vector<256x128xf32> -> vector<256x128xf32>
    %7 = vector.extract_strided_slice %1 {offsets = [1, 0, 0], sizes = [16, 16, 384], strides = [1, 1, 1]} : vector<18x16x384xbf16> to vector<16x16x384xbf16>
    %8 = vector.shape_cast %7 : vector<16x16x384xbf16> to vector<256x384xbf16>
    %c1 = arith.constant 1 : index
    %c0_6 = arith.constant 0 : index
    %c0_7 = arith.constant 0 : index
    %9 = vector.load %arg2[%c1, %c0_6, %c0_7] : memref<3x384x128xbf16, #tpu.memory_space<vmem>>, vector<1x384x128xbf16>
    %10 = vector.shape_cast %9 : vector<1x384x128xbf16> to vector<384x128xbf16>
    %cst_8 = arith.constant dense<0.000000e+00> : vector<256x128xf32>
    %11 = tpu.matmul %8, %10, %cst_8 {dimension_numbers = #tpu.dot_dimension_numbers<[1], [0], [0], [1], [0, 0, 1, 1], [], []>} : vector<256x384xbf16>, vector<384x128xbf16>, vector<256x128xf32> -> vector<256x128xf32>
    %12 = arith.addf %6, %11 : vector<256x128xf32>
    %13 = vector.extract_strided_slice %1 {offsets = [2, 0, 0], sizes = [16, 16, 384], strides = [1, 1, 1]} : vector<18x16x384xbf16> to vector<16x16x384xbf16>
    %14 = vector.shape_cast %13 : vector<16x16x384xbf16> to vector<256x384xbf16>
    %c2 = arith.constant 2 : index
    %c0_9 = arith.constant 0 : index
    %c0_10 = arith.constant 0 : index
    %15 = vector.load %arg2[%c2, %c0_9, %c0_10] : memref<3x384x128xbf16, #tpu.memory_space<vmem>>, vector<1x384x128xbf16>
    %16 = vector.shape_cast %15 : vector<1x384x128xbf16> to vector<384x128xbf16>
    %cst_11 = arith.constant dense<0.000000e+00> : vector<256x128xf32>
    %17 = tpu.matmul %14, %16, %cst_11 {dimension_numbers = #tpu.dot_dimension_numbers<[1], [0], [0], [1], [0, 0, 1, 1], [], []>} : vector<256x384xbf16>, vector<384x128xbf16>, vector<256x128xf32> -> vector<256x128xf32>
    %18 = arith.addf %12, %17 : vector<256x128xf32>
    %c0_12 = arith.constant 0 : index
    %c0_13 = arith.constant 0 : index
    %19 = vector.load %arg3[%c0_12, %c0_13] : memref<1x128xf32, #tpu.memory_space<vmem>>, vector<1x128xf32>
    %20 = vector.broadcast %19 : vector<1x128xf32> to vector<256x128xf32>
    %21 = arith.mulf %18, %20 : vector<256x128xf32>
    %c0_14 = arith.constant 0 : index
    %c0_15 = arith.constant 0 : index
    %22 = vector.load %arg4[%c0_14, %c0_15] : memref<1x128xf32, #tpu.memory_space<vmem>>, vector<1x128xf32>
    %23 = vector.broadcast %22 : vector<1x128xf32> to vector<256x128xf32>
    %24 = arith.addf %21, %23 : vector<256x128xf32>
    %cst_16 = arith.constant 0.000000e+00 : f32
    %25 = vector.broadcast %cst_16 : f32 to vector<256x128xf32>
    %26 = arith.maximumf %24, %25 : vector<256x128xf32>
    %27 = arith.truncf %26 : vector<256x128xf32> to vector<256x128xbf16>
    %c0_17 = arith.constant 0 : index
    %c0_18 = arith.constant 0 : index
    %c0_19 = arith.constant 0 : index
    %28 = vector.load %arg5[%c0_17, %c0_18, %c0_19] : memref<1x256x128xbf16, #tpu.memory_space<vmem>>, vector<1x256x128xbf16>
    %29 = vector.shape_cast %28 : vector<1x256x128xbf16> to vector<256x128xbf16>
    %30 = vector.shape_cast %27 : vector<256x128xbf16> to vector<1x256x128xbf16>
    tpu.vector_store %arg5[%c0_17, %c0_18, %c0_19], %30 {strides = array<i32>} : memref<1x256x128xbf16, #tpu.memory_space<vmem>>, vector<1x256x128xbf16>,
    return
  }
  func.func @transform_0(%arg0: i32) -> (i32, i32, i32, i32) {
    %c0_i32 = arith.constant 0 : i32
    %c0_i32_0 = arith.constant 0 : i32
    %c0_i32_1 = arith.constant 0 : i32
    %c0_i32_2 = arith.constant 0 : i32
    return %arg0, %c0_i32, %c0_i32_0, %c0_i32_1 : i32, i32, i32, i32
  }
  func.func @transform_1(%arg0: i32) -> (i32, i32, i32) {
    %c0_i32 = arith.constant 0 : i32
    %c0_i32_0 = arith.constant 0 : i32
    %c0_i32_1 = arith.constant 0 : i32
    %c0_i32_2 = arith.constant 0 : i32
    return %c0_i32, %c0_i32_0, %c0_i32_1 : i32, i32, i32
  }
  func.func @transform_2(%arg0: i32) -> (i32, i32) {
    %c0_i32 = arith.constant 0 : i32
    %c0_i32_0 = arith.constant 0 : i32
    %c0_i32_1 = arith.constant 0 : i32
    return %c0_i32, %c0_i32_0 : i32, i32
  }
  func.func @transform_3(%arg0: i32) -> (i32, i32) {
    %c0_i32 = arith.constant 0 : i32
    %c0_i32_0 = arith.constant 0 : i32
    %c0_i32_1 = arith.constant 0 : i32
    return %c0_i32, %c0_i32_0 : i32, i32
  }
  func.func @transform_4(%arg0: i32) -> (i32, i32, i32) {
    %c0_i32 = arith.constant 0 : i32
    %c0_i32_0 = arith.constant 0 : i32
    %c0_i32_1 = arith.constant 0 : i32
    return %arg0, %c0_i32, %c0_i32_0 : i32, i32, i32
  }
}

module attributes {stable_mosaic.version = 11 : i64} {
  func.func @_conv3x3_bn_kernel(%arg0: i32, %arg1: memref<1x18x16x384xbf16, #tpu.memory_space<vmem>>, %arg2: memref<3x384x128xbf16, #tpu.memory_space<vmem>>, %arg3: memref<1x128xf32, #tpu.memory_space<vmem>>, %arg4: memref<1x128xf32, #tpu.memory_space<vmem>>, %arg5: memref<1x256x128xbf16, #tpu.memory_space<vmem>>) attributes {dimension_semantics = [#tpu.dimension_semantics<parallel>], iteration_bounds = array<i64: 2>, scalar_prefetch = 0 : i64, scratch_operands = 0 : i64, tpu.core_type = #tpu.core_type<tc>, window_params = [{transform_indices = @transform_0, window_bounds = array<i64: 1, 18, 16, 384>}, {pipeline_mode = #tpu.pipeline_mode<synchronous>, transform_indices = @transform_1, window_bounds = array<i64: 3, 384, 128>}, {pipeline_mode = #tpu.pipeline_mode<synchronous>, transform_indices = @transform_2, window_bounds = array<i64: 1, 128>}, {pipeline_mode = #tpu.pipeline_mode<synchronous>, transform_indices = @transform_3, window_bounds = array<i64: 1, 128>}, {transform_indices = @transform_4, window_bounds = array<i64: 1, 256, 128>}]} {
    %c0 = arith.constant 0 : index
    %c0_0 = arith.constant 0 : index
    %c0_1 = arith.constant 0 : index
    %c0_2 = arith.constant 0 : index
    %0 = vector.load %arg1[%c0, %c0_0, %c0_1, %c0_2] : memref<1x18x16x384xbf16, #tpu.memory_space<vmem>>, vector<1x18x16x384xbf16>
    %1 = vector.shape_cast %0 : vector<1x18x16x384xbf16> to vector<18x16x384xbf16>
    %2 = vector.extract_strided_slice %1 {offsets = [0, 0, 0], sizes = [16, 16, 384], strides = [1, 1, 1]} : vector<18x16x384xbf16> to vector<16x16x384xbf16>
    %3 = vector.shape_cast %2 : vector<16x16x384xbf16> to vector<256x384xbf16>
    %c0_3 = arith.constant 0 : index
    %c0_4 = arith.constant 0 : index
    %c0_5 = arith.constant 0 : index
    %4 = vector.load %arg2[%c0_3, %c0_4, %c0_5] : memref<3x384x128xbf16, #tpu.memory_space<vmem>>, vector<1x384x128xbf16>
    %5 = vector.shape_cast %4 : vector<1x384x128xbf16> to vector<384x128xbf16>
    %cst = arith.constant dense<0.000000e+00> : vector<256x128xf32>
    %6 = tpu.matmul %3, %5, %cst {dimension_numbers = #tpu.dot_dimension_numbers<[1], [0], [0], [1], [0, 0, 1, 1], [], []>} : vector<256x384xbf16>, vector<384x128xbf16>, vector<256x128xf32> -> vector<256x128xf32>
    %7 = vector.extract_strided_slice %1 {offsets = [1, 0, 0], sizes = [16, 16, 384], strides = [1, 1, 1]} : vector<18x16x384xbf16> to vector<16x16x384xbf16>
    %8 = vector.shape_cast %7 : vector<16x16x384xbf16> to vector<256x384xbf16>
    %c1 = arith.constant 1 : index
    %c0_6 = arith.constant 0 : index
    %c0_7 = arith.constant 0 : index
    %9 = vector.load %arg2[%c1, %c0_6, %c0_7] : memref<3x384x128xbf16, #tpu.memory_space<vmem>>, vector<1x384x128xbf16>
    %10 = vector.shape_cast %9 : vector<1x384x128xbf16> to vector<384x128xbf16>
    %cst_8 = arith.constant dense<0.000000e+00> : vector<256x128xf32>
    %11 = tpu.matmul %8, %10, %cst_8 {dimension_numbers = #tpu.dot_dimension_numbers<[1], [0], [0], [1], [0, 0, 1, 1], [], []>} : vector<256x384xbf16>, vector<384x128xbf16>, vector<256x128xf32> -> vector<256x128xf32>
    %12 = arith.addf %6, %11 : vector<256x128xf32>
    %13 = vector.extract_strided_slice %1 {offsets = [2, 0, 0], sizes = [16, 16, 384], strides = [1, 1, 1]} : vector<18x16x384xbf16> to vector<16x16x384xbf16>
    %14 = vector.shape_cast %13 : vector<16x16x384xbf16> to vector<256x384xbf16>
    %c2 = arith.constant 2 : index
    %c0_9 = arith.constant 0 : index
    %c0_10 = arith.constant 0 : index
    %15 = vector.load %arg2[%c2, %c0_9, %c0_10] : memref<3x384x128xbf16, #tpu.memory_space<vmem>>, vector<1x384x128xbf16>
    %16 = vector.shape_cast %15 : vector<1x384x128xbf16> to vector<384x128xbf16>
    %cst_11 = arith.constant dense<0.000000e+00> : vector<256x128xf32>
    %17 = tpu.matmul %14, %16, %cst_11 {dimension_numbers = #tpu.dot_dimension_numbers<[1], [0], [0], [1], [0, 0, 1, 1], [], []>} : vector<256x384xbf16>, vector<384x128xbf16>, vector<256x128xf32> -> vector<256x128xf32>
    %18 = arith.addf %12, %17 : vector<256x128xf32>
    %c0_12 = arith.constant 0 : index
    %c0_13 = arith.constant 0 : index
    %19 = vector.load %arg3[%c0_12, %c0_13] : memref<1x128xf32, #tpu.memory_space<vmem>>, vector<1x128xf32>
    %20 = vector.broadcast %19 : vector<1x128xf32> to vector<256x128xf32>
    %21 = arith.mulf %18, %20 : vector<256x128xf32>
    %c0_14 = arith.constant 0 : index
    %c0_15 = arith.constant 0 : index
    %22 = vector.load %arg4[%c0_14, %c0_15] : memref<1x128xf32, #tpu.memory_space<vmem>>, vector<1x128xf32>
    %23 = vector.broadcast %22 : vector<1x128xf32> to vector<256x128xf32>
    %24 = arith.addf %21, %23 : vector<256x128xf32>
    %25 = arith.truncf %24 : vector<256x128xf32> to vector<256x128xbf16>
    %c0_16 = arith.constant 0 : index
    %c0_17 = arith.constant 0 : index
    %c0_18 = arith.constant 0 : index
    %26 = vector.load %arg5[%c0_16, %c0_17, %c0_18] : memref<1x256x128xbf16, #tpu.memory_space<vmem>>, vector<1x256x128xbf16>
    %27 = vector.shape_cast %26 : vector<1x256x128xbf16> to vector<256x128xbf16>
    %28 = vector.shape_cast %25 : vector<256x128xbf16> to vector<1x256x128xbf16>
    tpu.vector_store %arg5[%c0_16, %c0_17, %c0_18], %28 {strides = array<i32>} : memref<1x256x128xbf16, #tpu.memory_space<vmem>>, vector<1x256x128xbf16>,
    return
  }
  func.func @transform_0(%arg0: i32) -> (i32, i32, i32, i32) {
    %c0_i32 = arith.constant 0 : i32
    %c0_i32_0 = arith.constant 0 : i32
    %c0_i32_1 = arith.constant 0 : i32
    %c0_i32_2 = arith.constant 0 : i32
    return %arg0, %c0_i32, %c0_i32_0, %c0_i32_1 : i32, i32, i32, i32
  }
  func.func @transform_1(%arg0: i32) -> (i32, i32, i32) {
    %c0_i32 = arith.constant 0 : i32
    %c0_i32_0 = arith.constant 0 : i32
    %c0_i32_1 = arith.constant 0 : i32
    %c0_i32_2 = arith.constant 0 : i32
    return %c0_i32, %c0_i32_0, %c0_i32_1 : i32, i32, i32
  }
  func.func @transform_2(%arg0: i32) -> (i32, i32) {
    %c0_i32 = arith.constant 0 : i32
    %c0_i32_0 = arith.constant 0 : i32
    %c0_i32_1 = arith.constant 0 : i32
    return %c0_i32, %c0_i32_0 : i32, i32
  }
  func.func @transform_3(%arg0: i32) -> (i32, i32) {
    %c0_i32 = arith.constant 0 : i32
    %c0_i32_0 = arith.constant 0 : i32
    %c0_i32_1 = arith.constant 0 : i32
    return %c0_i32, %c0_i32_0 : i32, i32
  }
  func.func @transform_4(%arg0: i32) -> (i32, i32, i32) {
    %c0_i32 = arith.constant 0 : i32
    %c0_i32_0 = arith.constant 0 : i32
    %c0_i32_1 = arith.constant 0 : i32
    return %arg0, %c0_i32, %c0_i32_0 : i32, i32, i32
  }
}

module attributes {stable_mosaic.version = 11 : i64} {
  func.func @_matmul_bias_kernel(%arg0: i32, %arg1: memref<256x128xbf16, #tpu.memory_space<vmem>>, %arg2: memref<128x384xbf16, #tpu.memory_space<vmem>>, %arg3: memref<1x384xf32, #tpu.memory_space<vmem>>, %arg4: memref<256x384xbf16, #tpu.memory_space<vmem>>) attributes {dimension_semantics = [#tpu.dimension_semantics<parallel>], iteration_bounds = array<i64: 2>, scalar_prefetch = 0 : i64, scratch_operands = 0 : i64, tpu.core_type = #tpu.core_type<tc>, window_params = [{transform_indices = @transform_0, window_bounds = array<i64: 256, 128>}, {pipeline_mode = #tpu.pipeline_mode<synchronous>, transform_indices = @transform_1, window_bounds = array<i64: 128, 384>}, {pipeline_mode = #tpu.pipeline_mode<synchronous>, transform_indices = @transform_2, window_bounds = array<i64: 1, 384>}, {transform_indices = @transform_3, window_bounds = array<i64: 256, 384>}]} {
    %c0 = arith.constant 0 : index
    %c0_0 = arith.constant 0 : index
    %0 = vector.load %arg1[%c0, %c0_0] : memref<256x128xbf16, #tpu.memory_space<vmem>>, vector<256x128xbf16>
    %c0_1 = arith.constant 0 : index
    %c0_2 = arith.constant 0 : index
    %1 = vector.load %arg2[%c0_1, %c0_2] : memref<128x384xbf16, #tpu.memory_space<vmem>>, vector<128x384xbf16>
    %cst = arith.constant dense<0.000000e+00> : vector<256x384xf32>
    %2 = tpu.matmul %0, %1, %cst {dimension_numbers = #tpu.dot_dimension_numbers<[1], [0], [0], [1], [0, 0, 1, 1], [], []>} : vector<256x128xbf16>, vector<128x384xbf16>, vector<256x384xf32> -> vector<256x384xf32>
    %c0_3 = arith.constant 0 : index
    %c0_4 = arith.constant 0 : index
    %3 = vector.load %arg3[%c0_3, %c0_4] : memref<1x384xf32, #tpu.memory_space<vmem>>, vector<1x384xf32>
    %4 = vector.broadcast %3 : vector<1x384xf32> to vector<256x384xf32>
    %5 = arith.addf %2, %4 : vector<256x384xf32>
    %6 = arith.truncf %5 : vector<256x384xf32> to vector<256x384xbf16>
    %c0_5 = arith.constant 0 : index
    %c0_6 = arith.constant 0 : index
    %7 = vector.load %arg4[%c0_5, %c0_6] : memref<256x384xbf16, #tpu.memory_space<vmem>>, vector<256x384xbf16>
    tpu.vector_store %arg4[%c0_5, %c0_6], %6 {strides = array<i32>} : memref<256x384xbf16, #tpu.memory_space<vmem>>, vector<256x384xbf16>,
    return
  }
  func.func @transform_0(%arg0: i32) -> (i32, i32) {
    %c0_i32 = arith.constant 0 : i32
    %c0_i32_0 = arith.constant 0 : i32
    return %arg0, %c0_i32 : i32, i32
  }
  func.func @transform_1(%arg0: i32) -> (i32, i32) {
    %c0_i32 = arith.constant 0 : i32
    %c0_i32_0 = arith.constant 0 : i32
    %c0_i32_1 = arith.constant 0 : i32
    return %c0_i32, %c0_i32_0 : i32, i32
  }
  func.func @transform_2(%arg0: i32) -> (i32, i32) {
    %c0_i32 = arith.constant 0 : i32
    %c0_i32_0 = arith.constant 0 : i32
    %c0_i32_1 = arith.constant 0 : i32
    return %c0_i32, %c0_i32_0 : i32, i32
  }
  func.func @transform_3(%arg0: i32) -> (i32, i32) {
    %c0_i32 = arith.constant 0 : i32
    %c0_i32_0 = arith.constant 0 : i32
    return %arg0, %c0_i32 : i32, i32
  }
}

module attributes {stable_mosaic.version = 11 : i64} {
  func.func @_nl_attn_kernel(%arg0: i32, %arg1: i32, %arg2: i32, %arg3: memref<1x256x128xbf16, #tpu.memory_space<vmem>>, %arg4: memref<1x64x128xbf16, #tpu.memory_space<vmem>>, %arg5: memref<1x64x128xbf16, #tpu.memory_space<vmem>>, %arg6: memref<1x256x128xbf16, #tpu.memory_space<vmem>>, %arg7: memref<256x1xf32, #tpu.memory_space<vmem>>, %arg8: memref<256x1xf32, #tpu.memory_space<vmem>>, %arg9: memref<256x128xf32, #tpu.memory_space<vmem>>) attributes {dimension_semantics = [#tpu.dimension_semantics<parallel>, #tpu.dimension_semantics<parallel>, #tpu.dimension_semantics<arbitrary>], iteration_bounds = array<i64: 2, 1, 1>, scalar_prefetch = 0 : i64, scratch_operands = 3 : i64, tpu.core_type = #tpu.core_type<tc>, window_params = [{transform_indices = @transform_0, window_bounds = array<i64: 1, 256, 128>}, {transform_indices = @transform_1, window_bounds = array<i64: 1, 64, 128>}, {transform_indices = @transform_2, window_bounds = array<i64: 1, 64, 128>}, {transform_indices = @transform_3, window_bounds = array<i64: 1, 256, 128>}]} {
    %c0_i32 = arith.constant 0 : i32
    %0 = arith.cmpi eq, %arg2, %c0_i32 : i32
    %1 = arith.extui %0 : i1 to i32
    %c0_i32_0 = arith.constant 0 : i32
    %2 = arith.cmpi ne, %1, %c0_i32_0 : i32
    scf.if %2 {
      %cst_28 = arith.constant 0xFF800000 : f32
      %37 = vector.broadcast %cst_28 : f32 to vector<256x1xf32>
      %c0_29 = arith.constant 0 : index
      %c0_30 = arith.constant 0 : index
      %38 = vector.load %arg7[%c0_29, %c0_30] : memref<256x1xf32, #tpu.memory_space<vmem>>, vector<256x1xf32>
      tpu.vector_store %arg7[%c0_29, %c0_30], %37 {strides = array<i32>} : memref<256x1xf32, #tpu.memory_space<vmem>>, vector<256x1xf32>,
      %cst_31 = arith.constant 0.000000e+00 : f32
      %39 = vector.broadcast %cst_31 : f32 to vector<256x1xf32>
      %c0_32 = arith.constant 0 : index
      %c0_33 = arith.constant 0 : index
      %40 = vector.load %arg8[%c0_32, %c0_33] : memref<256x1xf32, #tpu.memory_space<vmem>>, vector<256x1xf32>
      tpu.vector_store %arg8[%c0_32, %c0_33], %39 {strides = array<i32>} : memref<256x1xf32, #tpu.memory_space<vmem>>, vector<256x1xf32>,
      %cst_34 = arith.constant 0.000000e+00 : f32
      %41 = vector.broadcast %cst_34 : f32 to vector<256x128xf32>
      %c0_35 = arith.constant 0 : index
      %c0_36 = arith.constant 0 : index
      %42 = vector.load %arg9[%c0_35, %c0_36] : memref<256x128xf32, #tpu.memory_space<vmem>>, vector<256x128xf32>
      tpu.vector_store %arg9[%c0_35, %c0_36], %41 {strides = array<i32>} : memref<256x128xf32, #tpu.memory_space<vmem>>, vector<256x128xf32>,
    } else {
    }
    %c0 = arith.constant 0 : index
    %c0_1 = arith.constant 0 : index
    %c0_2 = arith.constant 0 : index
    %3 = vector.load %arg3[%c0, %c0_1, %c0_2] : memref<1x256x128xbf16, #tpu.memory_space<vmem>>, vector<1x256x128xbf16>
    %4 = vector.shape_cast %3 : vector<1x256x128xbf16> to vector<256x128xbf16>
    %c0_3 = arith.constant 0 : index
    %c0_4 = arith.constant 0 : index
    %c0_5 = arith.constant 0 : index
    %5 = vector.load %arg4[%c0_3, %c0_4, %c0_5] : memref<1x64x128xbf16, #tpu.memory_space<vmem>>, vector<1x64x128xbf16>
    %6 = vector.shape_cast %5 : vector<1x64x128xbf16> to vector<64x128xbf16>
    %cst = arith.constant dense<0.000000e+00> : vector<256x64xf32>
    %7 = tpu.matmul %4, %6, %cst {dimension_numbers = #tpu.dot_dimension_numbers<[1], [1], [0], [0], [0, 0, 1, 0], [], []>} : vector<256x128xbf16>, vector<64x128xbf16>, vector<256x64xf32> -> vector<256x64xf32>
    %c0_6 = arith.constant 0 : index
    %c0_7 = arith.constant 0 : index
    %8 = vector.load %arg7[%c0_6, %c0_7] : memref<256x1xf32, #tpu.memory_space<vmem>>, vector<256x1xf32>
    %cst_8 = arith.constant dense<0xFF800000> : vector<256xf32>
    %9 = vector.multi_reduction <maximumf>, %7, %cst_8 [1] : vector<256x64xf32> to vector<256xf32>
    %10 = vector.shape_cast %9 : vector<256xf32> to vector<256x1xf32>
    %11 = arith.maximumf %8, %10 : vector<256x1xf32>
    %c0_9 = arith.constant 0 : index
    %c0_10 = arith.constant 0 : index
    %12 = vector.load %arg7[%c0_9, %c0_10] : memref<256x1xf32, #tpu.memory_space<vmem>>, vector<256x1xf32>
    %13 = arith.subf %12, %11 : vector<256x1xf32>
    %14 = math.exp %13 : vector<256x1xf32>
    %15 = vector.broadcast %11 : vector<256x1xf32> to vector<256x64xf32>
    %16 = arith.subf %7, %15 : vector<256x64xf32>
    %17 = math.exp %16 : vector<256x64xf32>
    %c0_11 = arith.constant 0 : index
    %c0_12 = arith.constant 0 : index
    %18 = vector.load %arg8[%c0_11, %c0_12] : memref<256x1xf32, #tpu.memory_space<vmem>>, vector<256x1xf32>
    %19 = arith.mulf %14, %18 : vector<256x1xf32>
    %cst_13 = arith.constant dense<0.000000e+00> : vector<256xf32>
    %20 = vector.multi_reduction <add>, %17, %cst_13 [1] : vector<256x64xf32> to vector<256xf32>
    %21 = vector.shape_cast %20 : vector<256xf32> to vector<256x1xf32>
    %22 = arith.addf %19, %21 : vector<256x1xf32>
    %c0_14 = arith.constant 0 : index
    %c0_15 = arith.constant 0 : index
    %23 = vector.load %arg8[%c0_14, %c0_15] : memref<256x1xf32, #tpu.memory_space<vmem>>, vector<256x1xf32>
    tpu.vector_store %arg8[%c0_14, %c0_15], %22 {strides = array<i32>} : memref<256x1xf32, #tpu.memory_space<vmem>>, vector<256x1xf32>,
    %c0_16 = arith.constant 0 : index
    %c0_17 = arith.constant 0 : index
    %24 = vector.load %arg9[%c0_16, %c0_17] : memref<256x128xf32, #tpu.memory_space<vmem>>, vector<256x128xf32>
    %25 = vector.broadcast %14 : vector<256x1xf32> to vector<256x128xf32>
    %26 = arith.mulf %25, %24 : vector<256x128xf32>
    %27 = arith.truncf %17 : vector<256x64xf32> to vector<256x64xbf16>
    %c0_18 = arith.constant 0 : index
    %c0_19 = arith.constant 0 : index
    %c0_20 = arith.constant 0 : index
    %28 = vector.load %arg5[%c0_18, %c0_19, %c0_20] : memref<1x64x128xbf16, #tpu.memory_space<vmem>>, vector<1x64x128xbf16>
    %29 = vector.shape_cast %28 : vector<1x64x128xbf16> to vector<64x128xbf16>
    %cst_21 = arith.constant dense<0.000000e+00> : vector<256x128xf32>
    %30 = tpu.matmul %27, %29, %cst_21 {dimension_numbers = #tpu.dot_dimension_numbers<[1], [0], [0], [1], [0, 0, 1, 1], [], []>} : vector<256x64xbf16>, vector<64x128xbf16>, vector<256x128xf32> -> vector<256x128xf32>
    %31 = arith.addf %26, %30 : vector<256x128xf32>
    %c0_22 = arith.constant 0 : index
    %c0_23 = arith.constant 0 : index
    %32 = vector.load %arg9[%c0_22, %c0_23] : memref<256x128xf32, #tpu.memory_space<vmem>>, vector<256x128xf32>
    tpu.vector_store %arg9[%c0_22, %c0_23], %31 {strides = array<i32>} : memref<256x128xf32, #tpu.memory_space<vmem>>, vector<256x128xf32>,
    %c0_24 = arith.constant 0 : index
    %c0_25 = arith.constant 0 : index
    %33 = vector.load %arg7[%c0_24, %c0_25] : memref<256x1xf32, #tpu.memory_space<vmem>>, vector<256x1xf32>
    tpu.vector_store %arg7[%c0_24, %c0_25], %11 {strides = array<i32>} : memref<256x1xf32, #tpu.memory_space<vmem>>, vector<256x1xf32>,
    %c0_i32_26 = arith.constant 0 : i32
    %34 = arith.cmpi eq, %arg2, %c0_i32_26 : i32
    %35 = arith.extui %34 : i1 to i32
    %c0_i32_27 = arith.constant 0 : i32
    %36 = arith.cmpi ne, %35, %c0_i32_27 : i32
    scf.if %36 {
      %c0_28 = arith.constant 0 : index
      %c0_29 = arith.constant 0 : index
      %37 = vector.load %arg9[%c0_28, %c0_29] : memref<256x128xf32, #tpu.memory_space<vmem>>, vector<256x128xf32>
      %c0_30 = arith.constant 0 : index
      %c0_31 = arith.constant 0 : index
      %38 = vector.load %arg8[%c0_30, %c0_31] : memref<256x1xf32, #tpu.memory_space<vmem>>, vector<256x1xf32>
      %39 = tpu.reciprocal %38 {approx = true} : vector<256x1xf32> -> vector<256x1xf32>
      %40 = vector.broadcast %39 : vector<256x1xf32> to vector<256x128xf32>
      %41 = arith.mulf %37, %40 : vector<256x128xf32>
      %42 = arith.truncf %41 : vector<256x128xf32> to vector<256x128xbf16>
      %c0_32 = arith.constant 0 : index
      %c0_33 = arith.constant 0 : index
      %c0_34 = arith.constant 0 : index
      %43 = vector.load %arg6[%c0_32, %c0_33, %c0_34] : memref<1x256x128xbf16, #tpu.memory_space<vmem>>, vector<1x256x128xbf16>
      %44 = vector.shape_cast %43 : vector<1x256x128xbf16> to vector<256x128xbf16>
      %45 = vector.shape_cast %42 : vector<256x128xbf16> to vector<1x256x128xbf16>
      tpu.vector_store %arg6[%c0_32, %c0_33, %c0_34], %45 {strides = array<i32>} : memref<1x256x128xbf16, #tpu.memory_space<vmem>>, vector<1x256x128xbf16>,
    } else {
    }
    return
  }
  func.func @transform_0(%arg0: i32, %arg1: i32, %arg2: i32) -> (i32, i32, i32) {
    %c0_i32 = arith.constant 0 : i32
    %c0_i32_0 = arith.constant 0 : i32
    return %arg0, %arg1, %c0_i32 : i32, i32, i32
  }
  func.func @transform_1(%arg0: i32, %arg1: i32, %arg2: i32) -> (i32, i32, i32) {
    %c0_i32 = arith.constant 0 : i32
    %c0_i32_0 = arith.constant 0 : i32
    return %arg0, %arg2, %c0_i32 : i32, i32, i32
  }
  func.func @transform_2(%arg0: i32, %arg1: i32, %arg2: i32) -> (i32, i32, i32) {
    %c0_i32 = arith.constant 0 : i32
    %c0_i32_0 = arith.constant 0 : i32
    return %arg0, %arg2, %c0_i32 : i32, i32, i32
  }
  func.func @transform_3(%arg0: i32, %arg1: i32, %arg2: i32) -> (i32, i32, i32) {
    %c0_i32 = arith.constant 0 : i32
    %c0_i32_0 = arith.constant 0 : i32
    return %arg0, %arg1, %c0_i32 : i32, i32, i32
  }
}

module attributes {stable_mosaic.version = 11 : i64} {
  func.func @_matmul_scale_bias_kernel(%arg0: i32, %arg1: memref<256x128xbf16, #tpu.memory_space<vmem>>, %arg2: memref<128x128xbf16, #tpu.memory_space<vmem>>, %arg3: memref<1x128xf32, #tpu.memory_space<vmem>>, %arg4: memref<1x128xf32, #tpu.memory_space<vmem>>, %arg5: memref<256x128xbf16, #tpu.memory_space<vmem>>) attributes {dimension_semantics = [#tpu.dimension_semantics<parallel>], iteration_bounds = array<i64: 2>, scalar_prefetch = 0 : i64, scratch_operands = 0 : i64, tpu.core_type = #tpu.core_type<tc>, window_params = [{transform_indices = @transform_0, window_bounds = array<i64: 256, 128>}, {pipeline_mode = #tpu.pipeline_mode<synchronous>, transform_indices = @transform_1, window_bounds = array<i64: 128, 128>}, {pipeline_mode = #tpu.pipeline_mode<synchronous>, transform_indices = @transform_2, window_bounds = array<i64: 1, 128>}, {pipeline_mode = #tpu.pipeline_mode<synchronous>, transform_indices = @transform_3, window_bounds = array<i64: 1, 128>}, {transform_indices = @transform_4, window_bounds = array<i64: 256, 128>}]} {
    %c0 = arith.constant 0 : index
    %c0_0 = arith.constant 0 : index
    %0 = vector.load %arg1[%c0, %c0_0] : memref<256x128xbf16, #tpu.memory_space<vmem>>, vector<256x128xbf16>
    %c0_1 = arith.constant 0 : index
    %c0_2 = arith.constant 0 : index
    %1 = vector.load %arg2[%c0_1, %c0_2] : memref<128x128xbf16, #tpu.memory_space<vmem>>, vector<128x128xbf16>
    %cst = arith.constant dense<0.000000e+00> : vector<256x128xf32>
    %2 = tpu.matmul %0, %1, %cst {dimension_numbers = #tpu.dot_dimension_numbers<[1], [0], [0], [1], [0, 0, 1, 1], [], []>} : vector<256x128xbf16>, vector<128x128xbf16>, vector<256x128xf32> -> vector<256x128xf32>
    %c0_3 = arith.constant 0 : index
    %c0_4 = arith.constant 0 : index
    %3 = vector.load %arg3[%c0_3, %c0_4] : memref<1x128xf32, #tpu.memory_space<vmem>>, vector<1x128xf32>
    %4 = vector.broadcast %3 : vector<1x128xf32> to vector<256x128xf32>
    %5 = arith.mulf %2, %4 : vector<256x128xf32>
    %c0_5 = arith.constant 0 : index
    %c0_6 = arith.constant 0 : index
    %6 = vector.load %arg4[%c0_5, %c0_6] : memref<1x128xf32, #tpu.memory_space<vmem>>, vector<1x128xf32>
    %7 = vector.broadcast %6 : vector<1x128xf32> to vector<256x128xf32>
    %8 = arith.addf %5, %7 : vector<256x128xf32>
    %9 = arith.truncf %8 : vector<256x128xf32> to vector<256x128xbf16>
    %c0_7 = arith.constant 0 : index
    %c0_8 = arith.constant 0 : index
    %10 = vector.load %arg5[%c0_7, %c0_8] : memref<256x128xbf16, #tpu.memory_space<vmem>>, vector<256x128xbf16>
    tpu.vector_store %arg5[%c0_7, %c0_8], %9 {strides = array<i32>} : memref<256x128xbf16, #tpu.memory_space<vmem>>, vector<256x128xbf16>,
    return
  }
  func.func @transform_0(%arg0: i32) -> (i32, i32) {
    %c0_i32 = arith.constant 0 : i32
    %c0_i32_0 = arith.constant 0 : i32
    return %arg0, %c0_i32 : i32, i32
  }
  func.func @transform_1(%arg0: i32) -> (i32, i32) {
    %c0_i32 = arith.constant 0 : i32
    %c0_i32_0 = arith.constant 0 : i32
    %c0_i32_1 = arith.constant 0 : i32
    return %c0_i32, %c0_i32_0 : i32, i32
  }
  func.func @transform_2(%arg0: i32) -> (i32, i32) {
    %c0_i32 = arith.constant 0 : i32
    %c0_i32_0 = arith.constant 0 : i32
    %c0_i32_1 = arith.constant 0 : i32
    return %c0_i32, %c0_i32_0 : i32, i32
  }
  func.func @transform_3(%arg0: i32) -> (i32, i32) {
    %c0_i32 = arith.constant 0 : i32
    %c0_i32_0 = arith.constant 0 : i32
    %c0_i32_1 = arith.constant 0 : i32
    return %c0_i32, %c0_i32_0 : i32, i32
  }
  func.func @transform_4(%arg0: i32) -> (i32, i32) {
    %c0_i32 = arith.constant 0 : i32
    %c0_i32_0 = arith.constant 0 : i32
    return %arg0, %c0_i32 : i32, i32
  }
}

module attributes {stable_mosaic.version = 11 : i64} {
  func.func @_matmul_affine_add2_relu_kernel(%arg0: i32, %arg1: memref<256x128xbf16, #tpu.memory_space<vmem>>, %arg2: memref<128x128xbf16, #tpu.memory_space<vmem>>, %arg3: memref<1x128xf32, #tpu.memory_space<vmem>>, %arg4: memref<1x128xf32, #tpu.memory_space<vmem>>, %arg5: memref<256x128xbf16, #tpu.memory_space<vmem>>, %arg6: memref<256x128xbf16, #tpu.memory_space<vmem>>, %arg7: memref<256x128xbf16, #tpu.memory_space<vmem>>) attributes {dimension_semantics = [#tpu.dimension_semantics<parallel>], iteration_bounds = array<i64: 2>, scalar_prefetch = 0 : i64, scratch_operands = 0 : i64, tpu.core_type = #tpu.core_type<tc>, window_params = [{transform_indices = @transform_0, window_bounds = array<i64: 256, 128>}, {pipeline_mode = #tpu.pipeline_mode<synchronous>, transform_indices = @transform_1, window_bounds = array<i64: 128, 128>}, {pipeline_mode = #tpu.pipeline_mode<synchronous>, transform_indices = @transform_2, window_bounds = array<i64: 1, 128>}, {pipeline_mode = #tpu.pipeline_mode<synchronous>, transform_indices = @transform_3, window_bounds = array<i64: 1, 128>}, {transform_indices = @transform_4, window_bounds = array<i64: 256, 128>}, {transform_indices = @transform_5, window_bounds = array<i64: 256, 128>}, {transform_indices = @transform_6, window_bounds = array<i64: 256, 128>}]} {
    %c0 = arith.constant 0 : index
    %c0_0 = arith.constant 0 : index
    %0 = vector.load %arg1[%c0, %c0_0] : memref<256x128xbf16, #tpu.memory_space<vmem>>, vector<256x128xbf16>
    %c0_1 = arith.constant 0 : index
    %c0_2 = arith.constant 0 : index
    %1 = vector.load %arg2[%c0_1, %c0_2] : memref<128x128xbf16, #tpu.memory_space<vmem>>, vector<128x128xbf16>
    %cst = arith.constant dense<0.000000e+00> : vector<256x128xf32>
    %2 = tpu.matmul %0, %1, %cst {dimension_numbers = #tpu.dot_dimension_numbers<[1], [0], [0], [1], [0, 0, 1, 1], [], []>} : vector<256x128xbf16>, vector<128x128xbf16>, vector<256x128xf32> -> vector<256x128xf32>
    %c0_3 = arith.constant 0 : index
    %c0_4 = arith.constant 0 : index
    %3 = vector.load %arg3[%c0_3, %c0_4] : memref<1x128xf32, #tpu.memory_space<vmem>>, vector<1x128xf32>
    %4 = vector.broadcast %3 : vector<1x128xf32> to vector<256x128xf32>
    %5 = arith.mulf %2, %4 : vector<256x128xf32>
    %c0_5 = arith.constant 0 : index
    %c0_6 = arith.constant 0 : index
    %6 = vector.load %arg4[%c0_5, %c0_6] : memref<1x128xf32, #tpu.memory_space<vmem>>, vector<1x128xf32>
    %7 = vector.broadcast %6 : vector<1x128xf32> to vector<256x128xf32>
    %8 = arith.addf %5, %7 : vector<256x128xf32>
    %c0_7 = arith.constant 0 : index
    %c0_8 = arith.constant 0 : index
    %9 = vector.load %arg5[%c0_7, %c0_8] : memref<256x128xbf16, #tpu.memory_space<vmem>>, vector<256x128xbf16>
    %10 = arith.extf %9 : vector<256x128xbf16> to vector<256x128xf32>
    %11 = arith.addf %8, %10 : vector<256x128xf32>
    %c0_9 = arith.constant 0 : index
    %c0_10 = arith.constant 0 : index
    %12 = vector.load %arg6[%c0_9, %c0_10] : memref<256x128xbf16, #tpu.memory_space<vmem>>, vector<256x128xbf16>
    %13 = arith.extf %12 : vector<256x128xbf16> to vector<256x128xf32>
    %14 = arith.addf %11, %13 : vector<256x128xf32>
    %cst_11 = arith.constant 0.000000e+00 : f32
    %15 = vector.broadcast %cst_11 : f32 to vector<256x128xf32>
    %16 = arith.maximumf %14, %15 : vector<256x128xf32>
    %17 = arith.truncf %16 : vector<256x128xf32> to vector<256x128xbf16>
    %c0_12 = arith.constant 0 : index
    %c0_13 = arith.constant 0 : index
    %18 = vector.load %arg7[%c0_12, %c0_13] : memref<256x128xbf16, #tpu.memory_space<vmem>>, vector<256x128xbf16>
    tpu.vector_store %arg7[%c0_12, %c0_13], %17 {strides = array<i32>} : memref<256x128xbf16, #tpu.memory_space<vmem>>, vector<256x128xbf16>,
    return
  }
  func.func @transform_0(%arg0: i32) -> (i32, i32) {
    %c0_i32 = arith.constant 0 : i32
    %c0_i32_0 = arith.constant 0 : i32
    return %arg0, %c0_i32 : i32, i32
  }
  func.func @transform_1(%arg0: i32) -> (i32, i32) {
    %c0_i32 = arith.constant 0 : i32
    %c0_i32_0 = arith.constant 0 : i32
    %c0_i32_1 = arith.constant 0 : i32
    return %c0_i32, %c0_i32_0 : i32, i32
  }
  func.func @transform_2(%arg0: i32) -> (i32, i32) {
    %c0_i32 = arith.constant 0 : i32
    %c0_i32_0 = arith.constant 0 : i32
    %c0_i32_1 = arith.constant 0 : i32
    return %c0_i32, %c0_i32_0 : i32, i32
  }
  func.func @transform_3(%arg0: i32) -> (i32, i32) {
    %c0_i32 = arith.constant 0 : i32
    %c0_i32_0 = arith.constant 0 : i32
    %c0_i32_1 = arith.constant 0 : i32
    return %c0_i32, %c0_i32_0 : i32, i32
  }
  func.func @transform_4(%arg0: i32) -> (i32, i32) {
    %c0_i32 = arith.constant 0 : i32
    %c0_i32_0 = arith.constant 0 : i32
    return %arg0, %c0_i32 : i32, i32
  }
  func.func @transform_5(%arg0: i32) -> (i32, i32) {
    %c0_i32 = arith.constant 0 : i32
    %c0_i32_0 = arith.constant 0 : i32
    return %arg0, %c0_i32 : i32, i32
  }
  func.func @transform_6(%arg0: i32) -> (i32, i32) {
    %c0_i32 = arith.constant 0 : i32
    %c0_i32_0 = arith.constant 0 : i32
    return %arg0, %c0_i32 : i32, i32
  }
}

</mosaic_0001>

<llo_original>
// kernel: basic_block_forward.9
$region0: #{basic_block_forward.9}
  #allocation0 [shape = 'u32[]', space=smem, size = 0x4, offset = 0x4, fixed_abs, tag = 'smem constant byte address 0x4 - core index']
  #allocation1 [shape = 'u32[144,128]{1,0:T(1,128)}', space=vmem, size = 0x12000, scoped, tag = 'internal scratch']
  %s0 = inlined_call_operand.vmem [shape: bf16[512,128], index: 0, kind: input, shape index: {}]
  %s1 = inlined_call_operand.vmem [shape: bf16[128,384], index: 1, kind: input, shape index: {}]
  %s2 = inlined_call_operand.vmem [shape: f32[1,384], index: 2, kind: input, shape index: {}]
  %s3 = inlined_call_operand.vmem [shape: bf16[512,384], index: 3, kind: output, shape index: {}]
  %s4 = sld [smem:[#allocation0]]
  $region45: #{basic_block_forward.9} parent=0
    _
  %s6 = ssub.s32 1, %s4
  %s7 = scalar_select 0, %s6, %s4
  loop: start=0, step=1, limit=4
  $region2: #{basic_block_forward.9} parent=0 // loop_pre_header
    _
  $region3: #{basic_block_forward.9} parent=0 // loop_header
    %s9 = sphi 0, %s13
    %p10 = scmp.ge.s32.totalorder %s9, 4
    %s19 = sphi 0, %s21
    %s22 = sphi 0, %s19
    %s23 = sphi 0, %s22
    %s39 = sphi 0, %s23
    %s43 = sphi 0, %s43
    %s45 = sphi 0, %s43
    %s46 = sphi 0, %s45
    %s60 = sphi 0, %s46
    %s64 = sphi 0, %s64
    %s66 = sphi 0, %s64
    %s67 = sphi 0, %s66
    %s81 = sphi 0, %s67
    %s87 = sphi 0, %s89
    %s90 = sphi 0, %s87
    %s91 = sphi 0, %s90
    %s107 = sphi 0, %s91
  $region4: #{basic_block_forward.9} parent=0 // loop_header_branch
    %12 = sbr.rel (%p10) target = $region8
  $region5: #{basic_block_forward.9} parent=0 // loop_body
    %s14 = ssub.s32 %s9, 1
    %s15 = ssub.s32 %s9, 2
    %s16 = sadd.s32 %s9, 1
    %s17 = ssub.s32 %s9, %s16
    %p18 = scmp.eq.s32.totalorder %s17, 0
    %s20 = sadd.s32 %s19, 1
    %s21 = scalar_select %p18, %s19, %s20
    %p24 = pneg %p18
    %p25 = scmp.eq.s32.totalorder %s9, 1
    %p26 = por %p24, %p25
    %p27 = scmp.ne.s32.totalorder %s19, %s22
    %p28 = scmp.eq.s32.totalorder %s9, 0
    %p29 = por %p27, %p28
    %p30 = scmp.ne.s32.totalorder %s19, %s22
    %p31 = scmp.eq.s32.totalorder %s14, 1
    %p32 = por %p30, %p31
    %p33 = scmp.ne.s32.totalorder %s22, %s23
    %p34 = scmp.eq.s32.totalorder %s14, 0
    %p35 = por %p33, %p34
    %p36 = scmp.ne.s32.totalorder %s22, %s23
    %p37 = scmp.eq.s32.totalorder %s15, 1
    %p38 = por %p36, %p37
    %p40 = scmp.ne.s32.totalorder %s23, %s39
    %p41 = scmp.eq.s32.totalorder %s15, 0
    %p42 = por %p40, %p41
    %s44 = sadd.s32 %s43, 1
    %p47 = scmp.eq.s32.totalorder %s9, 1
    %p48 = scmp.ne.s32.totalorder %s43, %s45
    %p49 = scmp.eq.s32.totalorder %s9, 0
    %p50 = por %p48, %p49
    %p51 = scmp.ne.s32.totalorder %s43, %s45
    %p52 = scmp.eq.s32.totalorder %s14, 1
    %p53 = por %p51, %p52
    %p54 = scmp.ne.s32.totalorder %s45, %s46
    %p55 = scmp.eq.s32.totalorder %s14, 0
    %p56 = por %p54, %p55
    %p57 = scmp.ne.s32.totalorder %s45, %s46
    %p58 = scmp.eq.s32.totalorder %s15, 1
    %p59 = por %p57, %p58
    %p61 = scmp.ne.s32.totalorder %s46, %s60
    %p62 = scmp.eq.s32.totalorder %s15, 0
    %p63 = por %p61, %p62
    %s65 = sadd.s32 %s64, 1
    %p68 = scmp.eq.s32.totalorder %s9, 1
    %p69 = scmp.ne.s32.totalorder %s64, %s66
    %p70 = scmp.eq.s32.totalorder %s9, 0
    %p71 = por %p69, %p70
    %p72 = scmp.ne.s32.totalorder %s64, %s66
    %p73 = scmp.eq.s32.totalorder %s14, 1
    %p74 = por %p72, %p73
    %p75 = scmp.ne.s32.totalorder %s66, %s67
    %p76 = scmp.eq.s32.totalorder %s14, 0
    %p77 = por %p75, %p76
    %p78 = scmp.ne.s32.totalorder %s66, %s67
    %p79 = scmp.eq.s32.totalorder %s15, 1
    %p80 = por %p78, %p79
    %p82 = scmp.ne.s32.totalorder %s67, %s81
    %p83 = scmp.eq.s32.totalorder %s15, 0
    %p84 = por %p82, %p83
    %s85 = ssub.s32 %s9, %s16
    %p86 = scmp.eq.s32.totalorder %s85, 0
    %s88 = sadd.s32 %s87, 1
    %s89 = scalar_select %p86, %s87, %s88
    %p92 = pneg %p86
    %p93 = scmp.eq.s32.totalorder %s9, 1
    %p94 = por %p92, %p93
    %p95 = scmp.ne.s32.totalorder %s87, %s90
    %p96 = scmp.eq.s32.totalorder %s9, 0
    %p97 = por %p95, %p96
    %p98 = scmp.ne.s32.totalorder %s87, %s90
    %p99 = scmp.eq.s32.totalorder %s14, 1
    %p100 = por %p98, %p99
    %p101 = scmp.ne.s32.totalorder %s90, %s91
    %p102 = scmp.eq.s32.totalorder %s14, 0
    %p103 = por %p101, %p102
    %p104 = scmp.ne.s32.totalorder %s90, %s91
    %p105 = scmp.eq.s32.totalorder %s15, 1
    %p106 = por %p104, %p105
    %p108 = scmp.ne.s32.totalorder %s91, %s107
    %p109 = scmp.eq.s32.totalorder %s15, 0
    %p110 = por %p108, %p109
    %p111 = scmp.le.s32.totalorder 1, %s9
    %p112 = scmp.lt.s32.totalorder %s9, 3
    %p113 = pnand %p111, %p112
    %p114 = pneg %p113
    // Predicated region
    $region9: #{basic_block_forward.9} parent=5 // pred_check
      _
    $region10: #{basic_block_forward.9} parent=5 // pred_check_branch
      %116 = sbr.rel (%p113) target = $region12
    $region11: #{basic_block_forward.9} parent=5 // pred_region
      %s117 = ssub.s32 %s9, 1
      // Predicated region
      $region13: #{basic_block_forward.9} parent=11 // pred_check
        %p118 = pneg %p56
      $region14: #{basic_block_forward.9} parent=11 // pred_check_branch
        %120 = sbr.rel (%p118) target = $region16
      $region15: #{basic_block_forward.9} parent=11 // pred_region
        _
      $region16: #{basic_block_forward.9} parent=11 // pred_fallthru
        _
      // Predicated region
      $region17: #{basic_block_forward.9} parent=11 // pred_check
        %p121 = pneg %p77
      $region18: #{basic_block_forward.9} parent=11 // pred_check_branch
        %123 = sbr.rel (%p121) target = $region20
      $region19: #{basic_block_forward.9} parent=11 // pred_region
        _
      $region20: #{basic_block_forward.9} parent=11 // pred_fallthru
        _
    $region12: #{basic_block_forward.9} parent=5 // pred_fallthru
      _
    %p124 = scmp.lt.s32.totalorder %s9, 2
    // Predicated region
    $region21: #{basic_block_forward.9} parent=5 // pred_check
      %p125 = pneg %p124
    $region22: #{basic_block_forward.9} parent=5 // pred_check_branch
      %127 = sbr.rel (%p125) target = $region24
    $region23: #{basic_block_forward.9} parent=5 // pred_region
      // Predicated region
      $region25: #{basic_block_forward.9} parent=23 // pred_check
        %p128 = pneg %p29
      $region26: #{basic_block_forward.9} parent=23 // pred_check_branch
        %130 = sbr.rel (%p128) target = $region28
      $region27: #{basic_block_forward.9} parent=23 // pred_region
        %s131 = smul.u32 32, %s9
        %p132 = scmp.lt.s32.totalorder %s131, 63
        %s133 = scalar_select %p132, %s131, 63
        %s134 = smul.addr %s133, 4
        %s135 = scalar_lea.vmem %s0, %s134
        %s136 = smul.u32 32, %s9
      $region28: #{basic_block_forward.9} parent=23 // pred_fallthru
        _
    $region24: #{basic_block_forward.9} parent=5 // pred_fallthru
      _
    %p137 = scmp.le.s32.totalorder 1, %s9
    %p138 = scmp.lt.s32.totalorder %s9, 3
    %p139 = pnand %p137, %p138
    %p140 = pneg %p139
    // Predicated region
    $region29: #{basic_block_forward.9} parent=5 // pred_check
      _
    $region30: #{basic_block_forward.9} parent=5 // pred_check_branch
      %142 = sbr.rel (%p139) target = $region32
    $region31: #{basic_block_forward.9} parent=5 // pred_region
      %s143 = ssub.s32 %s9, 1
      %s144 = smul.u32 32, %s14
      %p145 = scmp.lt.s32.totalorder %s144, 63
      %s146 = scalar_select %p145, %s144, 63
      %s147 = smul.addr %s146, 4
      %s148 = scalar_lea.vmem %s0, %s147
      %p149 = pneg %p35
      %p150 = pneg %p32
      %p151 = pneg %p56
      %p152 = pneg %p53
      %p153 = pneg %p77
      %p154 = pneg %p74
      %p155 = pneg %p103
      %p156 = pneg %p100
      %s157 = smul.u32 32, %s14
      %p158 = scmp.lt.s32.totalorder %s157, 63
      %s159 = scalar_select %p158, %s157, 63
      %s160 = smul.addr %s159, 3
      %s161 = smul.addr %s160, 4
      %s162 = scalar_lea.vmem %s3, %s161
      %s163 = smul.u32 32, %s14
      %p164 = scmp.lt.s32.totalorder %s163, 63
      %s165 = scalar_select %p164, %s163, 63
      %s166 = smul.addr %s165, 4
      %s167 = scalar_lea.vmem %s0, %s166
      %s168 = smul.u32 32, %s14
      %s169 = smul.u32 32, %s14
      %p170 = scmp.lt.s32.totalorder %s169, 63
      %s171 = scalar_select %p170, %s169, 63
      %s172 = smul.addr %s171, 3
      %s173 = smul.addr %s172, 4
      %s174 = scalar_lea.vmem %s3, %s173
      %s175 = smul.u32 32, %s14
      %v177 = vld [vmem:[%s167] sm:$0xf]
      %v178 = vld [vmem:[%s167 + $0x4] sm:$0xf]
      %v179 = vld [vmem:[%s167 + $0x8] sm:$0xf]
      %v180 = vld [vmem:[%s167 + $0xc] sm:$0xf]
      %v181 = vld [vmem:[%s167 + $0x10] sm:$0xf]
      %v182 = vld [vmem:[%s167 + $0x14] sm:$0xf]
      %v183 = vld [vmem:[%s167 + $0x18] sm:$0xf]
      %v184 = vld [vmem:[%s167 + $0x1c] sm:$0xf]
      %v185 = vld [vmem:[%s167 + $0x20] sm:$0xf]
      %v186 = vld [vmem:[%s167 + $0x24] sm:$0xf]
      %v187 = vld [vmem:[%s167 + $0x28] sm:$0xf]
      %v188 = vld [vmem:[%s167 + $0x2c] sm:$0xf]
      %v189 = vld [vmem:[%s167 + $0x30] sm:$0xf]
      %v190 = vld [vmem:[%s167 + $0x34] sm:$0xf]
      %v191 = vld [vmem:[%s167 + $0x38] sm:$0xf]
      %v192 = vld [vmem:[%s167 + $0x3c] sm:$0xf]
      %v193 = vld [vmem:[%s167 + $0x40] sm:$0xf]
      %v194 = vld [vmem:[%s167 + $0x44] sm:$0xf]
      %v195 = vld [vmem:[%s167 + $0x48] sm:$0xf]
      %v196 = vld [vmem:[%s167 + $0x4c] sm:$0xf]
      %v197 = vld [vmem:[%s167 + $0x50] sm:$0xf]
      %v198 = vld [vmem:[%s167 + $0x54] sm:$0xf]
      %v199 = vld [vmem:[%s167 + $0x58] sm:$0xf]
      %v200 = vld [vmem:[%s167 + $0x5c] sm:$0xf]
      %v201 = vld [vmem:[%s167 + $0x60] sm:$0xf]
      %v202 = vld [vmem:[%s167 + $0x64] sm:$0xf]
      %v203 = vld [vmem:[%s167 + $0x68] sm:$0xf]
      %v204 = vld [vmem:[%s167 + $0x6c] sm:$0xf]
      %v205 = vld [vmem:[%s167 + $0x70] sm:$0xf]
      %v206 = vld [vmem:[%s167 + $0x74] sm:$0xf]
      %v207 = vld [vmem:[%s167 + $0x78] sm:$0xf]
      %v208 = vld [vmem:[%s167 + $0x7c] sm:$0xf]
      %v209 = vld [vmem:[%s1] sm:$0xff]
      %v210 = vld [vmem:[%s1 + $0x8] sm:$0xf]
      %v211 = vld [vmem:[%s1 + $0xc] sm:$0xff]
      %v212 = vld [vmem:[%s1 + $0x14] sm:$0xf]
      %v213 = vld [vmem:[%s1 + $0x18] sm:$0xff]
      %v214 = vld [vmem:[%s1 + $0x20] sm:$0xf]
      %v215 = vld [vmem:[%s1 + $0x24] sm:$0xff]
      %v216 = vld [vmem:[%s1 + $0x2c] sm:$0xf]
      %v217 = vld [vmem:[%s1 + $0x30] sm:$0xff]
      %v218 = vld [vmem:[%s1 + $0x38] sm:$0xf]
      %v219 = vld [vmem:[%s1 + $0x3c] sm:$0xff]
      %v220 = vld [vmem:[%s1 + $0x44] sm:$0xf]
      %v221 = vld [vmem:[%s1 + $0x48] sm:$0xff]
      %v222 = vld [vmem:[%s1 + $0x50] sm:$0xf]
      %v223 = vld [vmem:[%s1 + $0x54] sm:$0xff]
      %v224 = vld [vmem:[%s1 + $0x5c] sm:$0xf]
      %v225 = vld [vmem:[%s1 + $0x60] sm:$0xff]
      %v226 = vld [vmem:[%s1 + $0x68] sm:$0xf]
      %v227 = vld [vmem:[%s1 + $0x6c] sm:$0xff]
      %v228 = vld [vmem:[%s1 + $0x74] sm:$0xf]
      %v229 = vld [vmem:[%s1 + $0x78] sm:$0xff]
      %v230 = vld [vmem:[%s1 + $0x80] sm:$0xf]
      %v231 = vld [vmem:[%s1 + $0x84] sm:$0xff]
      %v232 = vld [vmem:[%s1 + $0x8c] sm:$0xf]
      %v233 = vld [vmem:[%s1 + $0x90] sm:$0xff]
      %v234 = vld [vmem:[%s1 + $0x98] sm:$0xf]
      %v235 = vld [vmem:[%s1 + $0x9c] sm:$0xff]
      %v236 = vld [vmem:[%s1 + $0xa4] sm:$0xf]
      %v237 = vld [vmem:[%s1 + $0xa8] sm:$0xff]
      %v238 = vld [vmem:[%s1 + $0xb0] sm:$0xf]
      %v239 = vld [vmem:[%s1 + $0xb4] sm:$0xff]
      %v240 = vld [vmem:[%s1 + $0xbc] sm:$0xf]
      %v241 = vld [vmem:[%s2] sm:$0x7]
      %v243 = vlaneseq
      %v244 = vshrl.u32 %v243, 7
      %v245 = vsub.s32 0, %v244
      %v246 = vrot.slane %v241, %v245
      %v247 = vlaneseq
      %v248 = vshrl.u32 %v247, 7
      %v249 = vsub.s32 1, %v248
      %v250 = vrot.slane %v241, %v249
      %v251 = vlaneseq
      %v252 = vshrl.u32 %v251, 7
      %v253 = vsub.s32 2, %v252
      %v254 = vrot.slane %v241, %v253
      %v290 = vunpack.c.l.b16 %v177
      %v291 = vunpack.c.l.b16 %v178
      %v292 = vunpack.c.l.b16 %v179
      %v293 = vunpack.c.l.b16 %v180
      %v294 = vunpack.c.l.b16 %v181
      %v295 = vunpack.c.l.b16 %v182
      %v296 = vunpack.c.l.b16 %v183
      %v297 = vunpack.c.l.b16 %v184
      %v298 = vunpack.c.l.b16 %v185
      %v299 = vunpack.c.l.b16 %v186
      %v300 = vunpack.c.l.b16 %v187
      %v301 = vunpack.c.l.b16 %v188
      %v302 = vunpack.c.l.b16 %v189
      %v303 = vunpack.c.l.b16 %v190
      %v304 = vunpack.c.l.b16 %v191
      %v305 = vunpack.c.l.b16 %v192
      %v306 = vunpack.c.l.b16 %v193
      %v307 = vunpack.c.l.b16 %v194
      %v308 = vunpack.c.l.b16 %v195
      %v309 = vunpack.c.l.b16 %v196
      %v310 = vunpack.c.l.b16 %v197
      %v311 = vunpack.c.l.b16 %v198
      %v312 = vunpack.c.l.b16 %v199
      %v313 = vunpack.c.l.b16 %v200
      %v314 = vunpack.c.l.b16 %v201
      %v315 = vunpack.c.l.b16 %v202
      %v316 = vunpack.c.l.b16 %v203
      %v317 = vunpack.c.l.b16 %v204
      %v318 = vunpack.c.l.b16 %v205
      %v319 = vunpack.c.l.b16 %v206
      %v320 = vunpack.c.l.b16 %v207
      %v321 = vunpack.c.l.b16 %v208
      %v322 = vpack.c.b16 %v291, %v290
      %v323 = vpack.c.b16 %v293, %v292
      %v324 = vpack.c.b16 %v295, %v294
      %v325 = vpack.c.b16 %v297, %v296
      %v326 = vpack.c.b16 %v299, %v298
      %v327 = vpack.c.b16 %v301, %v300
      %v328 = vpack.c.b16 %v303, %v302
      %v329 = vpack.c.b16 %v305, %v304
      %v330 = vpack.c.b16 %v307, %v306
      %v331 = vpack.c.b16 %v309, %v308
      %v332 = vpack.c.b16 %v311, %v310
      %v333 = vpack.c.b16 %v313, %v312
      %v334 = vpack.c.b16 %v315, %v314
      %v335 = vpack.c.b16 %v317, %v316
      %v336 = vpack.c.b16 %v319, %v318
      %v337 = vpack.c.b16 %v321, %v320
      %v386 = vunpack.c.l.b16 %v209
      %v387 = vunpack.c.h.b16 %v209
      %v388 = vunpack.c.l.b16 %v210
      %v389 = vunpack.c.l.b16 %v211
      %v390 = vunpack.c.h.b16 %v211
      %v391 = vunpack.c.l.b16 %v212
      %v392 = vunpack.c.l.b16 %v213
      %v393 = vunpack.c.h.b16 %v213
      %v394 = vunpack.c.l.b16 %v214
      %v395 = vunpack.c.l.b16 %v215
      %v396 = vunpack.c.h.b16 %v215
      %v397 = vunpack.c.l.b16 %v216
      %v398 = vunpack.c.l.b16 %v217
      %v399 = vunpack.c.h.b16 %v217
      %v400 = vunpack.c.l.b16 %v218
      %v401 = vunpack.c.l.b16 %v219
      %v402 = vunpack.c.h.b16 %v219
      %v403 = vunpack.c.l.b16 %v220
      %v404 = vunpack.c.l.b16 %v221
      %v405 = vunpack.c.h.b16 %v221
      %v406 = vunpack.c.l.b16 %v222
      %v407 = vunpack.c.l.b16 %v223
      %v408 = vunpack.c.h.b16 %v223
      %v409 = vunpack.c.l.b16 %v224
      %v410 = vunpack.c.l.b16 %v225
      %v411 = vunpack.c.h.b16 %v225
      %v412 = vunpack.c.l.b16 %v226
      %v413 = vunpack.c.l.b16 %v227
      %v414 = vunpack.c.h.b16 %v227
      %v415 = vunpack.c.l.b16 %v228
      %v416 = vunpack.c.l.b16 %v229
      %v417 = vunpack.c.h.b16 %v229
      %v418 = vunpack.c.l.b16 %v230
      %v419 = vunpack.c.l.b16 %v231
      %v420 = vunpack.c.h.b16 %v231
      %v421 = vunpack.c.l.b16 %v232
      %v422 = vunpack.c.l.b16 %v233
      %v423 = vunpack.c.h.b16 %v233
      %v424 = vunpack.c.l.b16 %v234
      %v425 = vunpack.c.l.b16 %v235
      %v426 = vunpack.c.h.b16 %v235
      %v427 = vunpack.c.l.b16 %v236
      %v428 = vunpack.c.l.b16 %v237
      %v429 = vunpack.c.h.b16 %v237
      %v430 = vunpack.c.l.b16 %v238
      %v431 = vunpack.c.l.b16 %v239
      %v432 = vunpack.c.h.b16 %v239
      %v433 = vunpack.c.l.b16 %v240
      %v434 = vpack.c.b16 %v389, %v386
      %v435 = vpack.c.b16 %v390, %v387
      %v436 = vpack.c.b16 %v391, %v388
      %v437 = vpack.c.b16 %v395, %v392
      %v438 = vpack.c.b16 %v396, %v393
      %v439 = vpack.c.b16 %v397, %v394
      %v440 = vpack.c.b16 %v401, %v398
      %v441 = vpack.c.b16 %v402, %v399
      %v442 = vpack.c.b16 %v403, %v400
      %v443 = vpack.c.b16 %v407, %v404
      %v444 = vpack.c.b16 %v408, %v405
      %v445 = vpack.c.b16 %v409, %v406
      %v446 = vpack.c.b16 %v413, %v410
      %v447 = vpack.c.b16 %v414, %v411
      %v448 = vpack.c.b16 %v415, %v412
      %v449 = vpack.c.b16 %v419, %v416
      %v450 = vpack.c.b16 %v420, %v417
      %v451 = vpack.c.b16 %v421, %v418
      %v452 = vpack.c.b16 %v425, %v422
      %v453 = vpack.c.b16 %v426, %v423
      %v454 = vpack.c.b16 %v427, %v424
      %v455 = vpack.c.b16 %v431, %v428
      %v456 = vpack.c.b16 %v432, %v429
      %v457 = vpack.c.b16 %v433, %v430
      %482 = vmatprep.subr.bf16.mxu0 %v435
      %483 = vmatpush1.bf16.msra.mxu0 %v434
      %484 = vmatprep.subr.bf16.mxu0 %v438
      %485 = vmatpush1.bf16.msra.mxu0 %v437
      %486 = vmatprep.subr.bf16.mxu0 %v441
      %487 = vmatpush1.bf16.msra.mxu0 %v440
      %488 = vmatprep.subr.bf16.mxu0 %v444
      %489 = vmatpush1.bf16.msra.mxu0 %v443
      %490 = vmatprep.subr.bf16.mxu0 %v447
      %491 = vmatpush1.bf16.msra.mxu0 %v446
      %492 = vmatprep.subr.bf16.mxu0 %v450
      %493 = vmatpush1.bf16.msra.mxu0 %v449
      %494 = vmatprep.subr.bf16.mxu0 %v453
      %495 = vmatpush1.bf16.msra.mxu0 %v452
      %496 = vmatprep.subr.bf16.mxu0 %v456
      %497 = vmatpush1.bf16.msra.mxu0 %v455
      %498 = vmatprep.subr.bf16.mxu0 0
      %499 = vmatpush1.bf16.msra.mxu0 0
      %500 = vmatprep.subr.bf16.mxu0 0
      %501 = vmatpush1.bf16.msra.mxu0 0
      %502 = vmatprep.subr.bf16.mxu0 0
      %503 = vmatpush1.bf16.msra.mxu0 0
      %504 = vmatprep.subr.bf16.mxu0 0
      %505 = vmatpush1.bf16.msra.mxu0 0
      %506 = vmatprep.subr.bf16.mxu0 0
      %507 = vmatpush1.bf16.msra.mxu0 0
      %508 = vmatprep.subr.bf16.mxu0 0
      %509 = vmatpush1.bf16.msra.mxu0 0
      %510 = vmatprep.subr.bf16.mxu0 0
      %511 = vmatpush1.bf16.msra.mxu0 0
      %512 = vmatprep.subr.bf16.mxu0 0
      %513 = vmatpush1.bf16.msra.mxu0 0
      %514 = vmatprep.mubr.bf16.mxu0 0
      %515 = vmatmul.mubr.bf16.gmra.mrb[0].mxu0 %v322
      %v516 = vpop.f32.mrb[0].mxu0
      %v517 = vadd.f32 %v246, %v516
      %v518 = vpop.f32.mrb[0].mxu0
      %v519 = vadd.f32 %v250, %v518
      %v520 = vpop.f32.mrb[0].mxu0
      %v521 = vadd.f32 %v246, %v520
      %v522 = vpop.f32.mrb[0].mxu0
      %v523 = vadd.f32 %v250, %v522
      %524 = vmatprep.mubr.bf16.mxu0 0
      %525 = vmatmul.mubr.bf16.gmra.mrb[0].mxu0 %v323
      %v526 = vpop.f32.mrb[0].mxu0
      %v527 = vadd.f32 %v246, %v526
      %v528 = vpop.f32.mrb[0].mxu0
      %v529 = vadd.f32 %v250, %v528
      %v530 = vpop.f32.mrb[0].mxu0
      %v531 = vadd.f32 %v246, %v530
      %v532 = vpop.f32.mrb[0].mxu0
      %v533 = vadd.f32 %v250, %v532
      %534 = vmatprep.mubr.bf16.mxu0 0
      %535 = vmatmul.mubr.bf16.gmra.mrb[0].mxu0 %v324
      %v536 = vpop.f32.mrb[0].mxu0
      %v537 = vadd.f32 %v246, %v536
      %v538 = vpop.f32.mrb[0].mxu0
      %v539 = vadd.f32 %v250, %v538
      %v540 = vpop.f32.mrb[0].mxu0
      %v541 = vadd.f32 %v246, %v540
      %v542 = vpop.f32.mrb[0].mxu0
      %v543 = vadd.f32 %v250, %v542
      %544 = vmatprep.mubr.bf16.mxu0 0
      %545 = vmatmul.mubr.bf16.gmra.mrb[0].mxu0 %v325
      %v546 = vpop.f32.mrb[0].mxu0
      %v547 = vadd.f32 %v246, %v546
      %v548 = vpop.f32.mrb[0].mxu0
      %v549 = vadd.f32 %v250, %v548
      %v550 = vpop.f32.mrb[0].mxu0
      %v551 = vadd.f32 %v246, %v550
      %v552 = vpop.f32.mrb[0].mxu0
      %v553 = vadd.f32 %v250, %v552
      %554 = vmatprep.mubr.bf16.mxu0 0
      %555 = vmatmul.mubr.bf16.gmra.mrb[0].mxu0 %v326
      %v556 = vpop.f32.mrb[0].mxu0
      %v557 = vadd.f32 %v246, %v556
      %v558 = vpop.f32.mrb[0].mxu0
      %v559 = vadd.f32 %v250, %v558
      %v560 = vpop.f32.mrb[0].mxu0
      %v561 = vadd.f32 %v246, %v560
      %v562 = vpop.f32.mrb[0].mxu0
      %v563 = vadd.f32 %v250, %v562
      %564 = vmatprep.mubr.bf16.mxu0 0
      %565 = vmatmul.mubr.bf16.gmra.mrb[0].mxu0 %v327
      %v566 = vpop.f32.mrb[0].mxu0
      %v567 = vadd.f32 %v246, %v566
      %v568 = vpop.f32.mrb[0].mxu0
      %v569 = vadd.f32 %v250, %v568
      %v570 = vpop.f32.mrb[0].mxu0
      %v571 = vadd.f32 %v246, %v570
      %v572 = vpop.f32.mrb[0].mxu0
      %v573 = vadd.f32 %v250, %v572
      %574 = vmatprep.mubr.bf16.mxu0 0
      %575 = vmatmul.mubr.bf16.gmra.mrb[0].mxu0 %v328
      %v576 = vpop.f32.mrb[0].mxu0
      %v577 = vadd.f32 %v246, %v576
      %v578 = vpop.f32.mrb[0].mxu0
      %v579 = vadd.f32 %v250, %v578
      %v580 = vpop.f32.mrb[0].mxu0
      %v581 = vadd.f32 %v246, %v580
      %v582 = vpop.f32.mrb[0].mxu0
      %v583 = vadd.f32 %v250, %v582
      %584 = vmatprep.mubr.bf16.mxu0 0
      %585 = vmatmul.mubr.bf16.gmra.mrb[0].mxu0 %v329
      %v586 = vpop.f32.mrb[0].mxu0
      %v587 = vadd.f32 %v246, %v586
      %v588 = vpop.f32.mrb[0].mxu0
      %v589 = vadd.f32 %v250, %v588
      %v590 = vpop.f32.mrb[0].mxu0
      %v591 = vadd.f32 %v246, %v590
      %v592 = vpop.f32.mrb[0].mxu0
      %v593 = vadd.f32 %v250, %v592
      %594 = vmatprep.mubr.bf16.mxu0 0
      %595 = vmatmul.mubr.bf16.gmra.mrb[0].mxu0 %v330
      %v596 = vpop.f32.mrb[0].mxu0
      %v597 = vadd.f32 %v246, %v596
      %v598 = vpop.f32.mrb[0].mxu0
      %v599 = vadd.f32 %v250, %v598
      %v600 = vpop.f32.mrb[0].mxu0
      %v601 = vadd.f32 %v246, %v600
      %v602 = vpop.f32.mrb[0].mxu0
      %v603 = vadd.f32 %v250, %v602
      %604 = vmatprep.mubr.bf16.mxu0 0
      %605 = vmatmul.mubr.bf16.gmra.mrb[0].mxu0 %v331
      %v606 = vpop.f32.mrb[0].mxu0
      %v607 = vadd.f32 %v246, %v606
      %v608 = vpop.f32.mrb[0].mxu0
      %v609 = vadd.f32 %v250, %v608
      %v610 = vpop.f32.mrb[0].mxu0
      %v611 = vadd.f32 %v246, %v610
      %v612 = vpop.f32.mrb[0].mxu0
      %v613 = vadd.f32 %v250, %v612
      %614 = vmatprep.mubr.bf16.mxu0 0
      %615 = vmatmul.mubr.bf16.gmra.mrb[0].mxu0 %v332
      %v616 = vpop.f32.mrb[0].mxu0
      %v617 = vadd.f32 %v246, %v616
      %v618 = vpop.f32.mrb[0].mxu0
      %v619 = vadd.f32 %v250, %v618
      %v620 = vpop.f32.mrb[0].mxu0
      %v621 = vadd.f32 %v246, %v620
      %v622 = vpop.f32.mrb[0].mxu0
      %v623 = vadd.f32 %v250, %v622
      %624 = vmatprep.mubr.bf16.mxu0 0
      %625 = vmatmul.mubr.bf16.gmra.mrb[0].mxu0 %v333
      %v626 = vpop.f32.mrb[0].mxu0
      %v627 = vadd.f32 %v246, %v626
      %v628 = vpop.f32.mrb[0].mxu0
      %v629 = vadd.f32 %v250, %v628
      %v630 = vpop.f32.mrb[0].mxu0
      %v631 = vadd.f32 %v246, %v630
      %v632 = vpop.f32.mrb[0].mxu0
      %v633 = vadd.f32 %v250, %v632
      %634 = vmatprep.mubr.bf16.mxu0 0
      %635 = vmatmul.mubr.bf16.gmra.mrb[0].mxu0 %v334
      %v636 = vpop.f32.mrb[0].mxu0
      %v637 = vadd.f32 %v246, %v636
      %v638 = vpop.f32.mrb[0].mxu0
      %v639 = vadd.f32 %v250, %v638
      %v640 = vpop.f32.mrb[0].mxu0
      %v641 = vadd.f32 %v246, %v640
      %v642 = vpop.f32.mrb[0].mxu0
      %v643 = vadd.f32 %v250, %v642
      %644 = vmatprep.mubr.bf16.mxu0 0
      %645 = vmatmul.mubr.bf16.gmra.mrb[0].mxu0 %v335
      %v646 = vpop.f32.mrb[0].mxu0
      %v647 = vadd.f32 %v246, %v646
      %v648 = vpop.f32.mrb[0].mxu0
      %v649 = vadd.f32 %v250, %v648
      %v650 = vpop.f32.mrb[0].mxu0
      %v651 = vadd.f32 %v246, %v650
      %v652 = vpop.f32.mrb[0].mxu0
      %v653 = vadd.f32 %v250, %v652
      %654 = vmatprep.mubr.bf16.mxu0 0
      %655 = vmatmul.mubr.bf16.gmra.mrb[0].mxu0 %v336
      %v656 = vpop.f32.mrb[0].mxu0
      %v657 = vadd.f32 %v246, %v656
      %v658 = vpop.f32.mrb[0].mxu0
      %v659 = vadd.f32 %v250, %v658
      %v660 = vpop.f32.mrb[0].mxu0
      %v661 = vadd.f32 %v246, %v660
      %v662 = vpop.f32.mrb[0].mxu0
      %v663 = vadd.f32 %v250, %v662
      %664 = vmatprep.mubr.bf16.mxu0 0
      %665 = vmatmul.mubr.bf16.gmra.mrb[0].mxu0 %v337
      %v666 = vpop.f32.mrb[0].mxu0
      %v667 = vadd.f32 %v246, %v666
      %v668 = vpop.f32.mrb[0].mxu0
      %v669 = vadd.f32 %v250, %v668
      %v670 = vpop.f32.mrb[0].mxu0
      %v671 = vadd.f32 %v246, %v670
      %v672 = vpop.f32.mrb[0].mxu0
      %v673 = vadd.f32 %v250, %v672
      %674 = vdwg.mxu0
      %675 = vmatprep.subr.bf16.mxu0 0
      %676 = vmatpush1.bf16.msra.mxu0 %v436
      %677 = vmatprep.subr.bf16.mxu0 0
      %678 = vmatpush1.bf16.msra.mxu0 %v439
      %679 = vmatprep.subr.bf16.mxu0 0
      %680 = vmatpush1.bf16.msra.mxu0 %v442
      %681 = vmatprep.subr.bf16.mxu0 0
      %682 = vmatpush1.bf16.msra.mxu0 %v445
      %683 = vmatprep.subr.bf16.mxu0 0
      %684 = vmatpush1.bf16.msra.mxu0 %v448
      %685 = vmatprep.subr.bf16.mxu0 0
      %686 = vmatpush1.bf16.msra.mxu0 %v451
      %687 = vmatprep.subr.bf16.mxu0 0
      %688 = vmatpush1.bf16.msra.mxu0 %v454
      %689 = vmatprep.subr.bf16.mxu0 0
      %690 = vmatpush1.bf16.msra.mxu0 %v457
      %691 = vmatprep.subr.bf16.mxu0 0
      %692 = vmatpush1.bf16.msra.mxu0 0
      %693 = vmatprep.subr.bf16.mxu0 0
      %694 = vmatpush1.bf16.msra.mxu0 0
      %695 = vmatprep.subr.bf16.mxu0 0
      %696 = vmatpush1.bf16.msra.mxu0 0
      %697 = vmatprep.subr.bf16.mxu0 0
      %698 = vmatpush1.bf16.msra.mxu0 0
      %699 = vmatprep.subr.bf16.mxu0 0
      %700 = vmatpush1.bf16.msra.mxu0 0
      %701 = vmatprep.subr.bf16.mxu0 0
      %702 = vmatpush1.bf16.msra.mxu0 0
      %703 = vmatprep.subr.bf16.mxu0 0
      %704 = vmatpush1.bf16.msra.mxu0 0
      %705 = vmatprep.subr.bf16.mxu0 0
      %706 = vmatpush1.bf16.msra.mxu0 0
      %707 = vmatprep.mubr.bf16.mxu0 0
      %708 = vmatmul.mubr.bf16.gmra.mrb[0].mxu0 %v322
      %v709 = vpop.f32.mrb[0].mxu0
      %v710 = vadd.f32 %v254, %v709
      %v711 = vpop.f32.mrb[0].mxu0
      %v712 = vpop.f32.mrb[0].mxu0
      %v713 = vadd.f32 %v254, %v712
      %v714 = vpop.f32.mrb[0].mxu0
      %715 = vmatprep.mubr.bf16.mxu0 0
      %716 = vmatmul.mubr.bf16.gmra.mrb[0].mxu0 %v323
      %v717 = vpop.f32.mrb[0].mxu0
      %v718 = vadd.f32 %v254, %v717
      %v719 = vpop.f32.mrb[0].mxu0
      %v720 = vpop.f32.mrb[0].mxu0
      %v721 = vadd.f32 %v254, %v720
      %v722 = vpop.f32.mrb[0].mxu0
      %723 = vmatprep.mubr.bf16.mxu0 0
      %724 = vmatmul.mubr.bf16.gmra.mrb[0].mxu0 %v324
      %v725 = vpop.f32.mrb[0].mxu0
      %v726 = vadd.f32 %v254, %v725
      %v727 = vpop.f32.mrb[0].mxu0
      %v728 = vpop.f32.mrb[0].mxu0
      %v729 = vadd.f32 %v254, %v728
      %v730 = vpop.f32.mrb[0].mxu0
      %731 = vmatprep.mubr.bf16.mxu0 0
      %732 = vmatmul.mubr.bf16.gmra.mrb[0].mxu0 %v325
      %v733 = vpop.f32.mrb[0].mxu0
      %v734 = vadd.f32 %v254, %v733
      %v735 = vpop.f32.mrb[0].mxu0
      %v736 = vpop.f32.mrb[0].mxu0
      %v737 = vadd.f32 %v254, %v736
      %v738 = vpop.f32.mrb[0].mxu0
      %739 = vmatprep.mubr.bf16.mxu0 0
      %740 = vmatmul.mubr.bf16.gmra.mrb[0].mxu0 %v326
      %v741 = vpop.f32.mrb[0].mxu0
      %v742 = vadd.f32 %v254, %v741
      %v743 = vpop.f32.mrb[0].mxu0
      %v744 = vpop.f32.mrb[0].mxu0
      %v745 = vadd.f32 %v254, %v744
      %v746 = vpop.f32.mrb[0].mxu0
      %747 = vmatprep.mubr.bf16.mxu0 0
      %748 = vmatmul.mubr.bf16.gmra.mrb[0].mxu0 %v327
      %v749 = vpop.f32.mrb[0].mxu0
      %v750 = vadd.f32 %v254, %v749
      %v751 = vpop.f32.mrb[0].mxu0
      %v752 = vpop.f32.mrb[0].mxu0
      %v753 = vadd.f32 %v254, %v752
      %v754 = vpop.f32.mrb[0].mxu0
      %755 = vmatprep.mubr.bf16.mxu0 0
      %756 = vmatmul.mubr.bf16.gmra.mrb[0].mxu0 %v328
      %v757 = vpop.f32.mrb[0].mxu0
      %v758 = vadd.f32 %v254, %v757
      %v759 = vpop.f32.mrb[0].mxu0
      %v760 = vpop.f32.mrb[0].mxu0
      %v761 = vadd.f32 %v254, %v760
      %v762 = vpop.f32.mrb[0].mxu0
      %763 = vmatprep.mubr.bf16.mxu0 0
      %764 = vmatmul.mubr.bf16.gmra.mrb[0].mxu0 %v329
      %v765 = vpop.f32.mrb[0].mxu0
      %v766 = vadd.f32 %v254, %v765
      %v767 = vpop.f32.mrb[0].mxu0
      %v768 = vpop.f32.mrb[0].mxu0
      %v769 = vadd.f32 %v254, %v768
      %v770 = vpop.f32.mrb[0].mxu0
      %771 = vmatprep.mubr.bf16.mxu0 0
      %772 = vmatmul.mubr.bf16.gmra.mrb[0].mxu0 %v330
      %v773 = vpop.f32.mrb[0].mxu0
      %v774 = vadd.f32 %v254, %v773
      %v775 = vpop.f32.mrb[0].mxu0
      %v776 = vpop.f32.mrb[0].mxu0
      %v777 = vadd.f32 %v254, %v776
      %v778 = vpop.f32.mrb[0].mxu0
      %779 = vmatprep.mubr.bf16.mxu0 0
      %780 = vmatmul.mubr.bf16.gmra.mrb[0].mxu0 %v331
      %v781 = vpop.f32.mrb[0].mxu0
      %v782 = vadd.f32 %v254, %v781
      %v783 = vpop.f32.mrb[0].mxu0
      %v784 = vpop.f32.mrb[0].mxu0
      %v785 = vadd.f32 %v254, %v784
      %v786 = vpop.f32.mrb[0].mxu0
      %787 = vmatprep.mubr.bf16.mxu0 0
      %788 = vmatmul.mubr.bf16.gmra.mrb[0].mxu0 %v332
      %v789 = vpop.f32.mrb[0].mxu0
      %v790 = vadd.f32 %v254, %v789
      %v791 = vpop.f32.mrb[0].mxu0
      %v792 = vpop.f32.mrb[0].mxu0
      %v793 = vadd.f32 %v254, %v792
      %v794 = vpop.f32.mrb[0].mxu0
      %795 = vmatprep.mubr.bf16.mxu0 0
      %796 = vmatmul.mubr.bf16.gmra.mrb[0].mxu0 %v333
      %v797 = vpop.f32.mrb[0].mxu0
      %v798 = vadd.f32 %v254, %v797
      %v799 = vpop.f32.mrb[0].mxu0
      %v800 = vpop.f32.mrb[0].mxu0
      %v801 = vadd.f32 %v254, %v800
      %v802 = vpop.f32.mrb[0].mxu0
      %803 = vmatprep.mubr.bf16.mxu0 0
      %804 = vmatmul.mubr.bf16.gmra.mrb[0].mxu0 %v334
      %v805 = vpop.f32.mrb[0].mxu0
      %v806 = vadd.f32 %v254, %v805
      %v807 = vpop.f32.mrb[0].mxu0
      %v808 = vpop.f32.mrb[0].mxu0
      %v809 = vadd.f32 %v254, %v808
      %v810 = vpop.f32.mrb[0].mxu0
      %811 = vmatprep.mubr.bf16.mxu0 0
      %812 = vmatmul.mubr.bf16.gmra.mrb[0].mxu0 %v335
      %v813 = vpop.f32.mrb[0].mxu0
      %v814 = vadd.f32 %v254, %v813
      %v815 = vpop.f32.mrb[0].mxu0
      %v816 = vpop.f32.mrb[0].mxu0
      %v817 = vadd.f32 %v254, %v816
      %v818 = vpop.f32.mrb[0].mxu0
      %819 = vmatprep.mubr.bf16.mxu0 0
      %820 = vmatmul.mubr.bf16.gmra.mrb[0].mxu0 %v336
      %v821 = vpop.f32.mrb[0].mxu0
      %v822 = vadd.f32 %v254, %v821
      %v823 = vpop.f32.mrb[0].mxu0
      %v824 = vpop.f32.mrb[0].mxu0
      %v825 = vadd.f32 %v254, %v824
      %v826 = vpop.f32.mrb[0].mxu0
      %827 = vmatprep.mubr.bf16.mxu0 0
      %828 = vmatmul.mubr.bf16.gmra.mrb[0].mxu0 %v337
      %v829 = vpop.f32.mrb[0].mxu0
      %v830 = vadd.f32 %v254, %v829
      %v831 = vpop.f32.mrb[0].mxu0
      %v832 = vpop.f32.mrb[0].mxu0
      %v833 = vadd.f32 %v254, %v832
      %v834 = vpop.f32.mrb[0].mxu0
      %835 = vdwg.mxu0
      %v836 = vpack.c.bf16 %v521, %v517
      %v837 = vpack.c.bf16 %v523, %v519
      %v838 = vpack.c.bf16 %v713, %v710
      %v839 = vpack.c.bf16 %v531, %v527
      %v840 = vpack.c.bf16 %v533, %v529
      %v841 = vpack.c.bf16 %v721, %v718
      %v842 = vpack.c.bf16 %v541, %v537
      %v843 = vpack.c.bf16 %v543, %v539
      %v844 = vpack.c.bf16 %v729, %v726
      %v845 = vpack.c.bf16 %v551, %v547
      %v846 = vpack.c.bf16 %v553, %v549
      %v847 = vpack.c.bf16 %v737, %v734
      %v848 = vpack.c.bf16 %v561, %v557
      %v849 = vpack.c.bf16 %v563, %v559
      %v850 = vpack.c.bf16 %v745, %v742
      %v851 = vpack.c.bf16 %v571, %v567
      %v852 = vpack.c.bf16 %v573, %v569
      %v853 = vpack.c.bf16 %v753, %v750
      %v854 = vpack.c.bf16 %v581, %v577
      %v855 = vpack.c.bf16 %v583, %v579
      %v856 = vpack.c.bf16 %v761, %v758
      %v857 = vpack.c.bf16 %v591, %v587
      %v858 = vpack.c.bf16 %v593, %v589
      %v859 = vpack.c.bf16 %v769, %v766
      %v860 = vpack.c.bf16 %v601, %v597
      %v861 = vpack.c.bf16 %v603, %v599
      %v862 = vpack.c.bf16 %v777, %v774
      %v863 = vpack.c.bf16 %v611, %v607
      %v864 = vpack.c.bf16 %v613, %v609
      %v865 = vpack.c.bf16 %v785, %v782
      %v866 = vpack.c.bf16 %v621, %v617
      %v867 = vpack.c.bf16 %v623, %v619
      %v868 = vpack.c.bf16 %v793, %v790
      %v869 = vpack.c.bf16 %v631, %v627
      %v870 = vpack.c.bf16 %v633, %v629
      %v871 = vpack.c.bf16 %v801, %v798
      %v872 = vpack.c.bf16 %v641, %v637
      %v873 = vpack.c.bf16 %v643, %v639
      %v874 = vpack.c.bf16 %v809, %v806
      %v875 = vpack.c.bf16 %v651, %v647
      %v876 = vpack.c.bf16 %v653, %v649
      %v877 = vpack.c.bf16 %v817, %v814
      %v878 = vpack.c.bf16 %v661, %v657
      %v879 = vpack.c.bf16 %v663, %v659
      %v880 = vpack.c.bf16 %v825, %v822
      %v881 = vpack.c.bf16 %v671, %v667
      %v882 = vpack.c.bf16 %v673, %v669
      %v883 = vpack.c.bf16 %v833, %v830
      %v932 = vunpack.c.l.b16 %v836
      %v933 = vunpack.c.l.b16 %v837
      %v934 = vunpack.c.l.b16 %v838
      %v935 = vunpack.c.h.b16 %v836
      %v936 = vunpack.c.h.b16 %v837
      %v937 = vunpack.c.h.b16 %v838
      %v938 = vunpack.c.l.b16 %v839
      %v939 = vunpack.c.l.b16 %v840
      %v940 = vunpack.c.l.b16 %v841
      %v941 = vunpack.c.h.b16 %v839
      %v942 = vunpack.c.h.b16 %v840
      %v943 = vunpack.c.h.b16 %v841
      %v944 = vunpack.c.l.b16 %v842
      %v945 = vunpack.c.l.b16 %v843
      %v946 = vunpack.c.l.b16 %v844
      %v947 = vunpack.c.h.b16 %v842
      %v948 = vunpack.c.h.b16 %v843
      %v949 = vunpack.c.h.b16 %v844
      %v950 = vunpack.c.l.b16 %v845
      %v951 = vunpack.c.l.b16 %v846
      %v952 = vunpack.c.l.b16 %v847
      %v953 = vunpack.c.h.b16 %v845
      %v954 = vunpack.c.h.b16 %v846
      %v955 = vunpack.c.h.b16 %v847
      %v956 = vunpack.c.l.b16 %v848
      %v957 = vunpack.c.l.b16 %v849
      %v958 = vunpack.c.l.b16 %v850
      %v959 = vunpack.c.h.b16 %v848
      %v960 = vunpack.c.h.b16 %v849
      %v961 = vunpack.c.h.b16 %v850
      %v962 = vunpack.c.l.b16 %v851
      %v963 = vunpack.c.l.b16 %v852
      %v964 = vunpack.c.l.b16 %v853
      %v965 = vunpack.c.h.b16 %v851
      %v966 = vunpack.c.h.b16 %v852
      %v967 = vunpack.c.h.b16 %v853
      %v968 = vunpack.c.l.b16 %v854
      %v969 = vunpack.c.l.b16 %v855
      %v970 = vunpack.c.l.b16 %v856
      %v971 = vunpack.c.h.b16 %v854
      %v972 = vunpack.c.h.b16 %v855
      %v973 = vunpack.c.h.b16 %v856
      %v974 = vunpack.c.l.b16 %v857
      %v975 = vunpack.c.l.b16 %v858
      %v976 = vunpack.c.l.b16 %v859
      %v977 = vunpack.c.h.b16 %v857
      %v978 = vunpack.c.h.b16 %v858
      %v979 = vunpack.c.h.b16 %v859
      %v980 = vunpack.c.l.b16 %v860
      %v981 = vunpack.c.l.b16 %v861
      %v982 = vunpack.c.l.b16 %v862
      %v983 = vunpack.c.h.b16 %v860
      %v984 = vunpack.c.h.b16 %v861
      %v985 = vunpack.c.h.b16 %v862
      %v986 = vunpack.c.l.b16 %v863
      %v987 = vunpack.c.l.b16 %v864
      %v988 = vunpack.c.l.b16 %v865
      %v989 = vunpack.c.h.b16 %v863
      %v990 = vunpack.c.h.b16 %v864
      %v991 = vunpack.c.h.b16 %v865
      %v992 = vunpack.c.l.b16 %v866
      %v993 = vunpack.c.l.b16 %v867
      %v994 = vunpack.c.l.b16 %v868
      %v995 = vunpack.c.h.b16 %v866
      %v996 = vunpack.c.h.b16 %v867
      %v997 = vunpack.c.h.b16 %v868
      %v998 = vunpack.c.l.b16 %v869
      %v999 = vunpack.c.l.b16 %v870
      %v1000 = vunpack.c.l.b16 %v871
      %v1001 = vunpack.c.h.b16 %v869
      %v1002 = vunpack.c.h.b16 %v870
      %v1003 = vunpack.c.h.b16 %v871
      %v1004 = vunpack.c.l.b16 %v872
      %v1005 = vunpack.c.l.b16 %v873
      %v1006 = vunpack.c.l.b16 %v874
      %v1007 = vunpack.c.h.b16 %v872
      %v1008 = vunpack.c.h.b16 %v873
      %v1009 = vunpack.c.h.b16 %v874
      %v1010 = vunpack.c.l.b16 %v875
      %v1011 = vunpack.c.l.b16 %v876
      %v1012 = vunpack.c.l.b16 %v877
      %v1013 = vunpack.c.h.b16 %v875
      %v1014 = vunpack.c.h.b16 %v876
      %v1015 = vunpack.c.h.b16 %v877
      %v1016 = vunpack.c.l.b16 %v878
      %v1017 = vunpack.c.l.b16 %v879
      %v1018 = vunpack.c.l.b16 %v880
      %v1019 = vunpack.c.h.b16 %v878
      %v1020 = vunpack.c.h.b16 %v879
      %v1021 = vunpack.c.h.b16 %v880
      %v1022 = vunpack.c.l.b16 %v881
      %v1023 = vunpack.c.l.b16 %v882
      %v1024 = vunpack.c.l.b16 %v883
      %v1025 = vunpack.c.h.b16 %v881
      %v1026 = vunpack.c.h.b16 %v882
      %v1027 = vunpack.c.h.b16 %v883
      %v1028 = vpack.c.b16 %v933, %v932
      %v1029 = vpack.c.b16 %v934, %v934
      %v1030 = vpack.c.b16 %v936, %v935
      %v1031 = vpack.c.b16 %v937, %v937
      %v1032 = vpack.c.b16 %v939, %v938
      %v1033 = vpack.c.b16 %v940, %v940
      %v1034 = vpack.c.b16 %v942, %v941
      %v1035 = vpack.c.b16 %v943, %v943
      %v1036 = vpack.c.b16 %v945, %v944
      %v1037 = vpack.c.b16 %v946, %v946
      %v1038 = vpack.c.b16 %v948, %v947
      %v1039 = vpack.c.b16 %v949, %v949
      %v1040 = vpack.c.b16 %v951, %v950
      %v1041 = vpack.c.b16 %v952, %v952
      %v1042 = vpack.c.b16 %v954, %v953
      %v1043 = vpack.c.b16 %v955, %v955
      %v1044 = vpack.c.b16 %v957, %v956
      %v1045 = vpack.c.b16 %v958, %v958
      %v1046 = vpack.c.b16 %v960, %v959
      %v1047 = vpack.c.b16 %v961, %v961
      %v1048 = vpack.c.b16 %v963, %v962
      %v1049 = vpack.c.b16 %v964, %v964
      %v1050 = vpack.c.b16 %v966, %v965
      %v1051 = vpack.c.b16 %v967, %v967
      %v1052 = vpack.c.b16 %v969, %v968
      %v1053 = vpack.c.b16 %v970, %v970
      %v1054 = vpack.c.b16 %v972, %v971
      %v1055 = vpack.c.b16 %v973, %v973
      %v1056 = vpack.c.b16 %v975, %v974
      %v1057 = vpack.c.b16 %v976, %v976
      %v1058 = vpack.c.b16 %v978, %v977
      %v1059 = vpack.c.b16 %v979, %v979
      %v1060 = vpack.c.b16 %v981, %v980
      %v1061 = vpack.c.b16 %v982, %v982
      %v1062 = vpack.c.b16 %v984, %v983
      %v1063 = vpack.c.b16 %v985, %v985
      %v1064 = vpack.c.b16 %v987, %v986
      %v1065 = vpack.c.b16 %v988, %v988
      %v1066 = vpack.c.b16 %v990, %v989
      %v1067 = vpack.c.b16 %v991, %v991
      %v1068 = vpack.c.b16 %v993, %v992
      %v1069 = vpack.c.b16 %v994, %v994
      %v1070 = vpack.c.b16 %v996, %v995
      %v1071 = vpack.c.b16 %v997, %v997
      %v1072 = vpack.c.b16 %v999, %v998
      %v1073 = vpack.c.b16 %v1000, %v1000
      %v1074 = vpack.c.b16 %v1002, %v1001
      %v1075 = vpack.c.b16 %v1003, %v1003
      %v1076 = vpack.c.b16 %v1005, %v1004
      %v1077 = vpack.c.b16 %v1006, %v1006
      %v1078 = vpack.c.b16 %v1008, %v1007
      %v1079 = vpack.c.b16 %v1009, %v1009
      %v1080 = vpack.c.b16 %v1011, %v1010
      %v1081 = vpack.c.b16 %v1012, %v1012
      %v1082 = vpack.c.b16 %v1014, %v1013
      %v1083 = vpack.c.b16 %v1015, %v1015
      %v1084 = vpack.c.b16 %v1017, %v1016
      %v1085 = vpack.c.b16 %v1018, %v1018
      %v1086 = vpack.c.b16 %v1020, %v1019
      %v1087 = vpack.c.b16 %v1021, %v1021
      %v1088 = vpack.c.b16 %v1023, %v1022
      %v1089 = vpack.c.b16 %v1024, %v1024
      %v1090 = vpack.c.b16 %v1026, %v1025
      %v1091 = vpack.c.b16 %v1027, %v1027
      %1156 = vst [vmem:[%s174] sm:$0xff] %v1028
      %1157 = vst [vmem:[%s174 + $0x8] sm:$0xf] %v1029
      %1158 = vst [vmem:[%s174 + $0xc] sm:$0xff] %v1030
      %1159 = vst [vmem:[%s174 + $0x14] sm:$0xf] %v1031
      %1160 = vst [vmem:[%s174 + $0x18] sm:$0xff] %v1032
      %1161 = vst [vmem:[%s174 + $0x20] sm:$0xf] %v1033
      %1162 = vst [vmem:[%s174 + $0x24] sm:$0xff] %v1034
      %1163 = vst [vmem:[%s174 + $0x2c] sm:$0xf] %v1035
      %1164 = vst [vmem:[%s174 + $0x30] sm:$0xff] %v1036
      %1165 = vst [vmem:[%s174 + $0x38] sm:$0xf] %v1037
      %1166 = vst [vmem:[%s174 + $0x3c] sm:$0xff] %v1038
      %1167 = vst [vmem:[%s174 + $0x44] sm:$0xf] %v1039
      %1168 = vst [vmem:[%s174 + $0x48] sm:$0xff] %v1040
      %1169 = vst [vmem:[%s174 + $0x50] sm:$0xf] %v1041
      %1170 = vst [vmem:[%s174 + $0x54] sm:$0xff] %v1042
      %1171 = vst [vmem:[%s174 + $0x5c] sm:$0xf] %v1043
      %1172 = vst [vmem:[%s174 + $0x60] sm:$0xff] %v1044
      %1173 = vst [vmem:[%s174 + $0x68] sm:$0xf] %v1045
      %1174 = vst [vmem:[%s174 + $0x6c] sm:$0xff] %v1046
      %1175 = vst [vmem:[%s174 + $0x74] sm:$0xf] %v1047
      %1176 = vst [vmem:[%s174 + $0x78] sm:$0xff] %v1048
      %1177 = vst [vmem:[%s174 + $0x80] sm:$0xf] %v1049
      %1178 = vst [vmem:[%s174 + $0x84] sm:$0xff] %v1050
      %1179 = vst [vmem:[%s174 + $0x8c] sm:$0xf] %v1051
      %1180 = vst [vmem:[%s174 + $0x90] sm:$0xff] %v1052
      %1181 = vst [vmem:[%s174 + $0x98] sm:$0xf] %v1053
      %1182 = vst [vmem:[%s174 + $0x9c] sm:$0xff] %v1054
      %1183 = vst [vmem:[%s174 + $0xa4] sm:$0xf] %v1055
      %1184 = vst [vmem:[%s174 + $0xa8] sm:$0xff] %v1056
      %1185 = vst [vmem:[%s174 + $0xb0] sm:$0xf] %v1057
      %1186 = vst [vmem:[%s174 + $0xb4] sm:$0xff] %v1058
      %1187 = vst [vmem:[%s174 + $0xbc] sm:$0xf] %v1059
      %1188 = vst [vmem:[%s174 + $0xc0] sm:$0xff] %v1060
      %1189 = vst [vmem:[%s174 + $0xc8] sm:$0xf] %v1061
      %1190 = vst [vmem:[%s174 + $0xcc] sm:$0xff] %v1062
      %1191 = vst [vmem:[%s174 + $0xd4] sm:$0xf] %v1063
      %1192 = vst [vmem:[%s174 + $0xd8] sm:$0xff] %v1064
      %1193 = vst [vmem:[%s174 + $0xe0] sm:$0xf] %v1065
      %1194 = vst [vmem:[%s174 + $0xe4] sm:$0xff] %v1066
      %1195 = vst [vmem:[%s174 + $0xec] sm:$0xf] %v1067
      %1196 = vst [vmem:[%s174 + $0xf0] sm:$0xff] %v1068
      %1197 = vst [vmem:[%s174 + $0xf8] sm:$0xf] %v1069
      %1198 = vst [vmem:[%s174 + $0xfc] sm:$0xff] %v1070
      %1199 = vst [vmem:[%s174 + $0x104] sm:$0xf] %v1071
      %1200 = vst [vmem:[%s174 + $0x108] sm:$0xff] %v1072
      %1201 = vst [vmem:[%s174 + $0x110] sm:$0xf] %v1073
      %1202 = vst [vmem:[%s174 + $0x114] sm:$0xff] %v1074
      %1203 = vst [vmem:[%s174 + $0x11c] sm:$0xf] %v1075
      %1204 = vst [vmem:[%s174 + $0x120] sm:$0xff] %v1076
      %1205 = vst [vmem:[%s174 + $0x128] sm:$0xf] %v1077
      %1206 = vst [vmem:[%s174 + $0x12c] sm:$0xff] %v1078
      %1207 = vst [vmem:[%s174 + $0x134] sm:$0xf] %v1079
      %1208 = vst [vmem:[%s174 + $0x138] sm:$0xff] %v1080
      %1209 = vst [vmem:[%s174 + $0x140] sm:$0xf] %v1081
      %1210 = vst [vmem:[%s174 + $0x144] sm:$0xff] %v1082
      %1211 = vst [vmem:[%s174 + $0x14c] sm:$0xf] %v1083
      %1212 = vst [vmem:[%s174 + $0x150] sm:$0xff] %v1084
      %1213 = vst [vmem:[%s174 + $0x158] sm:$0xf] %v1085
      %1214 = vst [vmem:[%s174 + $0x15c] sm:$0xff] %v1086
      %1215 = vst [vmem:[%s174 + $0x164] sm:$0xf] %v1087
      %1216 = vst [vmem:[%s174 + $0x168] sm:$0xff] %v1088
      %1217 = vst [vmem:[%s174 + $0x170] sm:$0xf] %v1089
      %1218 = vst [vmem:[%s174 + $0x174] sm:$0xff] %v1090
      %1219 = vst [vmem:[%s174 + $0x17c] sm:$0xf] %v1091
      %s1220 = smul.u32 32, %s14
      %p1221 = scmp.lt.s32.totalorder %s1220, 63
      %s1222 = scalar_select %p1221, %s1220, 63
      %s1223 = smul.addr %s1222, 3
      %s1224 = smul.addr %s1223, 4
      %s1225 = scalar_lea.vmem %s3, %s1224
      // Predicated region
      $region33: #{basic_block_forward.9} parent=31 // pred_check
        %p1226 = pneg %p100
      $region34: #{basic_block_forward.9} parent=31 // pred_check_branch
        %1228 = sbr.rel (%p1226) target = $region36
      $region35: #{basic_block_forward.9} parent=31 // pred_region
        %s1229 = smul.u32 32, %s14
      $region36: #{basic_block_forward.9} parent=31 // pred_fallthru
        _
    $region32: #{basic_block_forward.9} parent=5 // pred_fallthru
      _
    %p1230 = scmp.le.s32.totalorder 2, %s9
    // Predicated region
    $region37: #{basic_block_forward.9} parent=5 // pred_check
      %p1231 = pneg %p1230
    $region38: #{basic_block_forward.9} parent=5 // pred_check_branch
      %1233 = sbr.rel (%p1231) target = $region40
    $region39: #{basic_block_forward.9} parent=5 // pred_region
      %s1234 = ssub.s32 %s9, 2
      // Predicated region
      $region41: #{basic_block_forward.9} parent=39 // pred_check
        %p1235 = pneg %p106
      $region42: #{basic_block_forward.9} parent=39 // pred_check_branch
        %1237 = sbr.rel (%p1235) target = $region44
      $region43: #{basic_block_forward.9} parent=39 // pred_region
        %s1238 = smul.u32 32, %s15
        %p1239 = scmp.lt.s32.totalorder %s1238, 63
        %s1240 = scalar_select %p1239, %s1238, 63
        %s1241 = smul.addr %s1240, 3
        %s1242 = smul.addr %s1241, 4
        %s1243 = scalar_lea.vmem %s3, %s1242
      $region44: #{basic_block_forward.9} parent=39 // pred_fallthru
        _
    $region40: #{basic_block_forward.9} parent=5 // pred_fallthru
      _
  $region6: #{basic_block_forward.9} parent=0 // loop_footer
    %s13 = sadd.s32 1, %s9
  $region7: #{basic_block_forward.9} parent=0 // loop_footer_branch
    %8 = sbr.rel target = $region3
  $region8: #{basic_block_forward.9} parent=0 // loop_exit
    _

// kernel: basic_block_forward.6
$region0: #{basic_block_forward.6}
  #allocation0 [shape = 'u32[]', space=smem, size = 0x4, offset = 0x4, fixed_abs, tag = 'smem constant byte address 0x4 - core index']
  #allocation1 [shape = 'u32[144,128]{1,0:T(1,128)}', space=vmem, size = 0x12000, scoped, tag = 'internal scratch']
  %s0 = inlined_call_operand.vmem [shape: bf16[2,18,16,384], index: 0, kind: input, shape index: {}]
  %s1 = inlined_call_operand.vmem [shape: bf16[3,384,128], index: 1, kind: input, shape index: {}]
  %s2 = inlined_call_operand.vmem [shape: f32[1,128], index: 2, kind: input, shape index: {}]
  %s3 = inlined_call_operand.vmem [shape: f32[1,128], index: 3, kind: input, shape index: {}]
  %s4 = inlined_call_operand.vmem [shape: bf16[2,256,128], index: 4, kind: output, shape index: {}]
  %s5 = sld [smem:[#allocation0]]
  $region49: #{basic_block_forward.6} parent=0
    _
  %s7 = ssub.s32 1, %s5
  %s8 = scalar_select 0, %s7, %s5
  loop: start=0, step=1, limit=4
  $region2: #{basic_block_forward.6} parent=0 // loop_pre_header
    _
  $region3: #{basic_block_forward.6} parent=0 // loop_header
    %s10 = sphi 0, %s14
    %p11 = scmp.ge.s32.totalorder %s10, 4
    %s20 = sphi 0, %s22
    %s23 = sphi 0, %s20
    %s24 = sphi 0, %s23
    %s40 = sphi 0, %s24
    %s44 = sphi 0, %s44
    %s46 = sphi 0, %s44
    %s47 = sphi 0, %s46
    %s61 = sphi 0, %s47
    %s65 = sphi 0, %s65
    %s67 = sphi 0, %s65
    %s68 = sphi 0, %s67
    %s82 = sphi 0, %s68
    %s86 = sphi 0, %s86
    %s88 = sphi 0, %s86
    %s89 = sphi 0, %s88
    %s103 = sphi 0, %s89
    %s109 = sphi 0, %s111
    %s112 = sphi 0, %s109
    %s113 = sphi 0, %s112
    %s129 = sphi 0, %s113
  $region4: #{basic_block_forward.6} parent=0 // loop_header_branch
    %13 = sbr.rel (%p11) target = $region8
  $region5: #{basic_block_forward.6} parent=0 // loop_body
    %s15 = ssub.s32 %s10, 1
    %s16 = ssub.s32 %s10, 2
    %s17 = sadd.s32 %s10, 1
    %s18 = ssub.s32 %s10, %s17
    %p19 = scmp.eq.s32.totalorder %s18, 0
    %s21 = sadd.s32 %s20, 1
    %s22 = scalar_select %p19, %s20, %s21
    %p25 = pneg %p19
    %p26 = scmp.eq.s32.totalorder %s10, 1
    %p27 = por %p25, %p26
    %p28 = scmp.ne.s32.totalorder %s20, %s23
    %p29 = scmp.eq.s32.totalorder %s10, 0
    %p30 = por %p28, %p29
    %p31 = scmp.ne.s32.totalorder %s20, %s23
    %p32 = scmp.eq.s32.totalorder %s15, 1
    %p33 = por %p31, %p32
    %p34 = scmp.ne.s32.totalorder %s23, %s24
    %p35 = scmp.eq.s32.totalorder %s15, 0
    %p36 = por %p34, %p35
    %p37 = scmp.ne.s32.totalorder %s23, %s24
    %p38 = scmp.eq.s32.totalorder %s16, 1
    %p39 = por %p37, %p38
    %p41 = scmp.ne.s32.totalorder %s24, %s40
    %p42 = scmp.eq.s32.totalorder %s16, 0
    %p43 = por %p41, %p42
    %s45 = sadd.s32 %s44, 1
    %p48 = scmp.eq.s32.totalorder %s10, 1
    %p49 = scmp.ne.s32.totalorder %s44, %s46
    %p50 = scmp.eq.s32.totalorder %s10, 0
    %p51 = por %p49, %p50
    %p52 = scmp.ne.s32.totalorder %s44, %s46
    %p53 = scmp.eq.s32.totalorder %s15, 1
    %p54 = por %p52, %p53
    %p55 = scmp.ne.s32.totalorder %s46, %s47
    %p56 = scmp.eq.s32.totalorder %s15, 0
    %p57 = por %p55, %p56
    %p58 = scmp.ne.s32.totalorder %s46, %s47
    %p59 = scmp.eq.s32.totalorder %s16, 1
    %p60 = por %p58, %p59
    %p62 = scmp.ne.s32.totalorder %s47, %s61
    %p63 = scmp.eq.s32.totalorder %s16, 0
    %p64 = por %p62, %p63
    %s66 = sadd.s32 %s65, 1
    %p69 = scmp.eq.s32.totalorder %s10, 1
    %p70 = scmp.ne.s32.totalorder %s65, %s67
    %p71 = scmp.eq.s32.totalorder %s10, 0
    %p72 = por %p70, %p71
    %p73 = scmp.ne.s32.totalorder %s65, %s67
    %p74 = scmp.eq.s32.totalorder %s15, 1
    %p75 = por %p73, %p74
    %p76 = scmp.ne.s32.totalorder %s67, %s68
    %p77 = scmp.eq.s32.totalorder %s15, 0
    %p78 = por %p76, %p77
    %p79 = scmp.ne.s32.totalorder %s67, %s68
    %p80 = scmp.eq.s32.totalorder %s16, 1
    %p81 = por %p79, %p80
    %p83 = scmp.ne.s32.totalorder %s68, %s82
    %p84 = scmp.eq.s32.totalorder %s16, 0
    %p85 = por %p83, %p84
    %s87 = sadd.s32 %s86, 1
    %p90 = scmp.eq.s32.totalorder %s10, 1
    %p91 = scmp.ne.s32.totalorder %s86, %s88
    %p92 = scmp.eq.s32.totalorder %s10, 0
    %p93 = por %p91, %p92
    %p94 = scmp.ne.s32.totalorder %s86, %s88
    %p95 = scmp.eq.s32.totalorder %s15, 1
    %p96 = por %p94, %p95
    %p97 = scmp.ne.s32.totalorder %s88, %s89
    %p98 = scmp.eq.s32.totalorder %s15, 0
    %p99 = por %p97, %p98
    %p100 = scmp.ne.s32.totalorder %s88, %s89
    %p101 = scmp.eq.s32.totalorder %s16, 1
    %p102 = por %p100, %p101
    %p104 = scmp.ne.s32.totalorder %s89, %s103
    %p105 = scmp.eq.s32.totalorder %s16, 0
    %p106 = por %p104, %p105
    %s107 = ssub.s32 %s10, %s17
    %p108 = scmp.eq.s32.totalorder %s107, 0
    %s110 = sadd.s32 %s109, 1
    %s111 = scalar_select %p108, %s109, %s110
    %p114 = pneg %p108
    %p115 = scmp.eq.s32.totalorder %s10, 1
    %p116 = por %p114, %p115
    %p117 = scmp.ne.s32.totalorder %s109, %s112
    %p118 = scmp.eq.s32.totalorder %s10, 0
    %p119 = por %p117, %p118
    %p120 = scmp.ne.s32.totalorder %s109, %s112
    %p121 = scmp.eq.s32.totalorder %s15, 1
    %p122 = por %p120, %p121
    %p123 = scmp.ne.s32.totalorder %s112, %s113
    %p124 = scmp.eq.s32.totalorder %s15, 0
    %p125 = por %p123, %p124
    %p126 = scmp.ne.s32.totalorder %s112, %s113
    %p127 = scmp.eq.s32.totalorder %s16, 1
    %p128 = por %p126, %p127
    %p130 = scmp.ne.s32.totalorder %s113, %s129
    %p131 = scmp.eq.s32.totalorder %s16, 0
    %p132 = por %p130, %p131
    %p133 = scmp.le.s32.totalorder 1, %s10
    %p134 = scmp.lt.s32.totalorder %s10, 3
    %p135 = pnand %p133, %p134
    %p136 = pneg %p135
    // Predicated region
    $region9: #{basic_block_forward.6} parent=5 // pred_check
      _
    $region10: #{basic_block_forward.6} parent=5 // pred_check_branch
      %138 = sbr.rel (%p135) target = $region12
    $region11: #{basic_block_forward.6} parent=5 // pred_region
      %s139 = ssub.s32 %s10, 1
      // Predicated region
      $region13: #{basic_block_forward.6} parent=11 // pred_check
        %p140 = pneg %p57
      $region14: #{basic_block_forward.6} parent=11 // pred_check_branch
        %142 = sbr.rel (%p140) target = $region16
      $region15: #{basic_block_forward.6} parent=11 // pred_region
        _
      $region16: #{basic_block_forward.6} parent=11 // pred_fallthru
        _
      // Predicated region
      $region17: #{basic_block_forward.6} parent=11 // pred_check
        %p143 = pneg %p78
      $region18: #{basic_block_forward.6} parent=11 // pred_check_branch
        %145 = sbr.rel (%p143) target = $region20
      $region19: #{basic_block_forward.6} parent=11 // pred_region
        _
      $region20: #{basic_block_forward.6} parent=11 // pred_fallthru
        _
      // Predicated region
      $region21: #{basic_block_forward.6} parent=11 // pred_check
        %p146 = pneg %p99
      $region22: #{basic_block_forward.6} parent=11 // pred_check_branch
        %148 = sbr.rel (%p146) target = $region24
      $region23: #{basic_block_forward.6} parent=11 // pred_region
        _
      $region24: #{basic_block_forward.6} parent=11 // pred_fallthru
        _
    $region12: #{basic_block_forward.6} parent=5 // pred_fallthru
      _
    %p149 = scmp.lt.s32.totalorder %s10, 2
    // Predicated region
    $region25: #{basic_block_forward.6} parent=5 // pred_check
      %p150 = pneg %p149
    $region26: #{basic_block_forward.6} parent=5 // pred_check_branch
      %152 = sbr.rel (%p150) target = $region28
    $region27: #{basic_block_forward.6} parent=5 // pred_region
      // Predicated region
      $region29: #{basic_block_forward.6} parent=27 // pred_check
        %p153 = pneg %p30
      $region30: #{basic_block_forward.6} parent=27 // pred_check_branch
        %155 = sbr.rel (%p153) target = $region32
      $region31: #{basic_block_forward.6} parent=27 // pred_region
        %p156 = scmp.lt.s32.totalorder %s10, 1
        %s157 = scalar_select %p156, %s10, 1
        %s158 = smul.addr %s157, 108
        %s159 = smul.addr %s158, 4
        %s160 = scalar_lea.vmem %s0, %s159
      $region32: #{basic_block_forward.6} parent=27 // pred_fallthru
        _
    $region28: #{basic_block_forward.6} parent=5 // pred_fallthru
      _
    %p161 = scmp.le.s32.totalorder 1, %s10
    %p162 = scmp.lt.s32.totalorder %s10, 3
    %p163 = pnand %p161, %p162
    %p164 = pneg %p163
    // Predicated region
    $region33: #{basic_block_forward.6} parent=5 // pred_check
      _
    $region34: #{basic_block_forward.6} parent=5 // pred_check_branch
      %166 = sbr.rel (%p163) target = $region36
    $region35: #{basic_block_forward.6} parent=5 // pred_region
      %s167 = ssub.s32 %s10, 1
      %p168 = scmp.lt.s32.totalorder %s15, 1
      %s169 = scalar_select %p168, %s15, 1
      %s170 = smul.addr %s169, 108
      %s171 = smul.addr %s170, 4
      %s172 = scalar_lea.vmem %s0, %s171
      %p173 = pneg %p36
      %p174 = pneg %p33
      %p175 = pneg %p57
      %p176 = pneg %p54
      %p177 = pneg %p78
      %p178 = pneg %p75
      %p179 = pneg %p99
      %p180 = pneg %p96
      %p181 = pneg %p125
      %p182 = pneg %p122
      %p183 = scmp.lt.s32.totalorder %s15, 1
      %s184 = scalar_select %p183, %s15, 1
      %s185 = smul.addr %s184, 32
      %s186 = smul.addr %s185, 4
      %s187 = scalar_lea.vmem %s4, %s186
      %p188 = scmp.lt.s32.totalorder %s15, 1
      %s189 = scalar_select %p188, %s15, 1
      %s190 = smul.addr %s189, 108
      %s191 = smul.addr %s190, 4
      %s192 = scalar_lea.vmem %s0, %s191
      %p193 = scmp.lt.s32.totalorder %s15, 1
      %s194 = scalar_select %p193, %s15, 1
      %s195 = smul.addr %s194, 32
      %s196 = smul.addr %s195, 4
      %s197 = scalar_lea.vmem %s4, %s196
      %v199 = vld [vmem:[%s192] sm:$0xff]
      %v200 = vld [vmem:[%s192 + $0x8] sm:$0xf]
      %v201 = vld [vmem:[%s192 + $0xc] sm:$0xff]
      %v202 = vld [vmem:[%s192 + $0x14] sm:$0xf]
      %v203 = vld [vmem:[%s192 + $0x18] sm:$0xff]
      %v204 = vld [vmem:[%s192 + $0x20] sm:$0xf]
      %v205 = vld [vmem:[%s192 + $0x24] sm:$0xff]
      %v206 = vld [vmem:[%s192 + $0x2c] sm:$0xf]
      %v207 = vld [vmem:[%s192 + $0x30] sm:$0xff]
      %v208 = vld [vmem:[%s192 + $0x38] sm:$0xf]
      %v209 = vld [vmem:[%s192 + $0x3c] sm:$0xff]
      %v210 = vld [vmem:[%s192 + $0x44] sm:$0xf]
      %v211 = vld [vmem:[%s192 + $0x48] sm:$0xff]
      %v212 = vld [vmem:[%s192 + $0x50] sm:$0xf]
      %v213 = vld [vmem:[%s192 + $0x54] sm:$0xff]
      %v214 = vld [vmem:[%s192 + $0x5c] sm:$0xf]
      %v215 = vld [vmem:[%s192 + $0x60] sm:$0xff]
      %v216 = vld [vmem:[%s192 + $0x68] sm:$0xf]
      %v217 = vld [vmem:[%s192 + $0x6c] sm:$0xff]
      %v218 = vld [vmem:[%s192 + $0x74] sm:$0xf]
      %v219 = vld [vmem:[%s192 + $0x78] sm:$0xff]
      %v220 = vld [vmem:[%s192 + $0x80] sm:$0xf]
      %v221 = vld [vmem:[%s192 + $0x84] sm:$0xff]
      %v222 = vld [vmem:[%s192 + $0x8c] sm:$0xf]
      %v223 = vld [vmem:[%s192 + $0x90] sm:$0xff]
      %v224 = vld [vmem:[%s192 + $0x98] sm:$0xf]
      %v225 = vld [vmem:[%s192 + $0x9c] sm:$0xff]
      %v226 = vld [vmem:[%s192 + $0xa4] sm:$0xf]
      %v227 = vld [vmem:[%s192 + $0xa8] sm:$0xff]
      %v228 = vld [vmem:[%s192 + $0xb0] sm:$0xf]
      %v229 = vld [vmem:[%s192 + $0xb4] sm:$0xff]
      %v230 = vld [vmem:[%s192 + $0xbc] sm:$0xf]
      %v231 = vld [vmem:[%s192 + $0xc0] sm:$0xff]
      %v232 = vld [vmem:[%s192 + $0xc8] sm:$0xf]
      %v233 = vld [vmem:[%s192 + $0xcc] sm:$0xff]
      %v234 = vld [vmem:[%s192 + $0xd4] sm:$0xf]
      %v235 = vld [vmem:[%s192 + $0xd8] sm:$0xff]
      %v236 = vld [vmem:[%s192 + $0xe0] sm:$0xf]
      %v237 = vld [vmem:[%s192 + $0xe4] sm:$0xff]
      %v238 = vld [vmem:[%s192 + $0xec] sm:$0xf]
      %v239 = vld [vmem:[%s192 + $0xf0] sm:$0xff]
      %v240 = vld [vmem:[%s192 + $0xf8] sm:$0xf]
      %v241 = vld [vmem:[%s192 + $0xfc] sm:$0xff]
      %v242 = vld [vmem:[%s192 + $0x104] sm:$0xf]
      %v243 = vld [vmem:[%s192 + $0x108] sm:$0xff]
      %v244 = vld [vmem:[%s192 + $0x110] sm:$0xf]
      %v245 = vld [vmem:[%s192 + $0x114] sm:$0xff]
      %v246 = vld [vmem:[%s192 + $0x11c] sm:$0xf]
      %v247 = vld [vmem:[%s192 + $0x120] sm:$0xff]
      %v248 = vld [vmem:[%s192 + $0x128] sm:$0xf]
      %v249 = vld [vmem:[%s192 + $0x12c] sm:$0xff]
      %v250 = vld [vmem:[%s192 + $0x134] sm:$0xf]
      %v251 = vld [vmem:[%s192 + $0x138] sm:$0xff]
      %v252 = vld [vmem:[%s192 + $0x140] sm:$0xf]
      %v253 = vld [vmem:[%s192 + $0x144] sm:$0xff]
      %v254 = vld [vmem:[%s192 + $0x14c] sm:$0xf]
      %v255 = vld [vmem:[%s192 + $0x150] sm:$0xff]
      %v256 = vld [vmem:[%s192 + $0x158] sm:$0xf]
      %v257 = vld [vmem:[%s192 + $0x15c] sm:$0xff]
      %v258 = vld [vmem:[%s192 + $0x164] sm:$0xf]
      %v259 = vld [vmem:[%s192 + $0x168] sm:$0xff]
      %v260 = vld [vmem:[%s192 + $0x170] sm:$0xf]
      %v261 = vld [vmem:[%s192 + $0x174] sm:$0xff]
      %v262 = vld [vmem:[%s192 + $0x17c] sm:$0xf]
      %v263 = vld [vmem:[%s192 + $0x180] sm:$0xff]
      %v264 = vld [vmem:[%s192 + $0x188] sm:$0xf]
      %v265 = vld [vmem:[%s192 + $0x18c] sm:$0xff]
      %v266 = vld [vmem:[%s192 + $0x194] sm:$0xf]
      %v267 = vld [vmem:[%s192 + $0x198] sm:$0xff]
      %v268 = vld [vmem:[%s192 + $0x1a0] sm:$0xf]
      %v269 = vld [vmem:[%s192 + $0x1a4] sm:$0xff]
      %v270 = vld [vmem:[%s192 + $0x1ac] sm:$0xf]
      %v271 = vld [vmem:[%s1] sm:$0xf]
      %v272 = vld [vmem:[%s1 + $0x4] sm:$0xf]
      %v273 = vld [vmem:[%s1 + $0x8] sm:$0xf]
      %v274 = vld [vmem:[%s1 + $0xc] sm:$0xf]
      %v275 = vld [vmem:[%s1 + $0x10] sm:$0xf]
      %v276 = vld [vmem:[%s1 + $0x14] sm:$0xf]
      %v277 = vld [vmem:[%s1 + $0x18] sm:$0xf]
      %v278 = vld [vmem:[%s1 + $0x1c] sm:$0xf]
      %v279 = vld [vmem:[%s1 + $0x20] sm:$0xf]
      %v280 = vld [vmem:[%s1 + $0x24] sm:$0xf]
      %v281 = vld [vmem:[%s1 + $0x28] sm:$0xf]
      %v282 = vld [vmem:[%s1 + $0x2c] sm:$0xf]
      %v283 = vld [vmem:[%s1 + $0x30] sm:$0xf]
      %v284 = vld [vmem:[%s1 + $0x34] sm:$0xf]
      %v285 = vld [vmem:[%s1 + $0x38] sm:$0xf]
      %v286 = vld [vmem:[%s1 + $0x3c] sm:$0xf]
      %v287 = vld [vmem:[%s1 + $0x40] sm:$0xf]
      %v288 = vld [vmem:[%s1 + $0x44] sm:$0xf]
      %v289 = vld [vmem:[%s1 + $0x48] sm:$0xf]
      %v290 = vld [vmem:[%s1 + $0x4c] sm:$0xf]
      %v291 = vld [vmem:[%s1 + $0x50] sm:$0xf]
      %v292 = vld [vmem:[%s1 + $0x54] sm:$0xf]
      %v293 = vld [vmem:[%s1 + $0x58] sm:$0xf]
      %v294 = vld [vmem:[%s1 + $0x5c] sm:$0xf]
      %v295 = vld [vmem:[%s1 + $0x60] sm:$0xf]
      %v296 = vld [vmem:[%s1 + $0x64] sm:$0xf]
      %v297 = vld [vmem:[%s1 + $0x68] sm:$0xf]
      %v298 = vld [vmem:[%s1 + $0x6c] sm:$0xf]
      %v299 = vld [vmem:[%s1 + $0x70] sm:$0xf]
      %v300 = vld [vmem:[%s1 + $0x74] sm:$0xf]
      %v301 = vld [vmem:[%s1 + $0x78] sm:$0xf]
      %v302 = vld [vmem:[%s1 + $0x7c] sm:$0xf]
      %v303 = vld [vmem:[%s1 + $0x80] sm:$0xf]
      %v304 = vld [vmem:[%s1 + $0x84] sm:$0xf]
      %v305 = vld [vmem:[%s1 + $0x88] sm:$0xf]
      %v306 = vld [vmem:[%s1 + $0x8c] sm:$0xf]
      %v307 = vld [vmem:[%s1 + $0x90] sm:$0xf]
      %v308 = vld [vmem:[%s1 + $0x94] sm:$0xf]
      %v309 = vld [vmem:[%s1 + $0x98] sm:$0xf]
      %v310 = vld [vmem:[%s1 + $0x9c] sm:$0xf]
      %v311 = vld [vmem:[%s1 + $0xa0] sm:$0xf]
      %v312 = vld [vmem:[%s1 + $0xa4] sm:$0xf]
      %v313 = vld [vmem:[%s1 + $0xa8] sm:$0xf]
      %v314 = vld [vmem:[%s1 + $0xac] sm:$0xf]
      %v315 = vld [vmem:[%s1 + $0xb0] sm:$0xf]
      %v316 = vld [vmem:[%s1 + $0xb4] sm:$0xf]
      %v317 = vld [vmem:[%s1 + $0xb8] sm:$0xf]
      %v318 = vld [vmem:[%s1 + $0xbc] sm:$0xf]
      %s319 = scalar_lea.vmem %s1, 192
      %v320 = vld [vmem:[%s319] sm:$0xf]
      %v321 = vld [vmem:[%s319 + $0x4] sm:$0xf]
      %v322 = vld [vmem:[%s319 + $0x8] sm:$0xf]
      %v323 = vld [vmem:[%s319 + $0xc] sm:$0xf]
      %v324 = vld [vmem:[%s319 + $0x10] sm:$0xf]
      %v325 = vld [vmem:[%s319 + $0x14] sm:$0xf]
      %v326 = vld [vmem:[%s319 + $0x18] sm:$0xf]
      %v327 = vld [vmem:[%s319 + $0x1c] sm:$0xf]
      %v328 = vld [vmem:[%s319 + $0x20] sm:$0xf]
      %v329 = vld [vmem:[%s319 + $0x24] sm:$0xf]
      %v330 = vld [vmem:[%s319 + $0x28] sm:$0xf]
      %v331 = vld [vmem:[%s319 + $0x2c] sm:$0xf]
      %v332 = vld [vmem:[%s319 + $0x30] sm:$0xf]
      %v333 = vld [vmem:[%s319 + $0x34] sm:$0xf]
      %v334 = vld [vmem:[%s319 + $0x38] sm:$0xf]
      %v335 = vld [vmem:[%s319 + $0x3c] sm:$0xf]
      %v336 = vld [vmem:[%s319 + $0x40] sm:$0xf]
      %v337 = vld [vmem:[%s319 + $0x44] sm:$0xf]
      %v338 = vld [vmem:[%s319 + $0x48] sm:$0xf]
      %v339 = vld [vmem:[%s319 + $0x4c] sm:$0xf]
      %v340 = vld [vmem:[%s319 + $0x50] sm:$0xf]
      %v341 = vld [vmem:[%s319 + $0x54] sm:$0xf]
      %v342 = vld [vmem:[%s319 + $0x58] sm:$0xf]
      %v343 = vld [vmem:[%s319 + $0x5c] sm:$0xf]
      %v344 = vld [vmem:[%s319 + $0x60] sm:$0xf]
      %v345 = vld [vmem:[%s319 + $0x64] sm:$0xf]
      %v346 = vld [vmem:[%s319 + $0x68] sm:$0xf]
      %v347 = vld [vmem:[%s319 + $0x6c] sm:$0xf]
      %v348 = vld [vmem:[%s319 + $0x70] sm:$0xf]
      %v349 = vld [vmem:[%s319 + $0x74] sm:$0xf]
      %v350 = vld [vmem:[%s319 + $0x78] sm:$0xf]
      %v351 = vld [vmem:[%s319 + $0x7c] sm:$0xf]
      %v352 = vld [vmem:[%s319 + $0x80] sm:$0xf]
      %v353 = vld [vmem:[%s319 + $0x84] sm:$0xf]
      %v354 = vld [vmem:[%s319 + $0x88] sm:$0xf]
      %v355 = vld [vmem:[%s319 + $0x8c] sm:$0xf]
      %v356 = vld [vmem:[%s319 + $0x90] sm:$0xf]
      %v357 = vld [vmem:[%s319 + $0x94] sm:$0xf]
      %v358 = vld [vmem:[%s319 + $0x98] sm:$0xf]
      %v359 = vld [vmem:[%s319 + $0x9c] sm:$0xf]
      %v360 = vld [vmem:[%s319 + $0xa0] sm:$0xf]
      %v361 = vld [vmem:[%s319 + $0xa4] sm:$0xf]
      %v362 = vld [vmem:[%s319 + $0xa8] sm:$0xf]
      %v363 = vld [vmem:[%s319 + $0xac] sm:$0xf]
      %v364 = vld [vmem:[%s319 + $0xb0] sm:$0xf]
      %v365 = vld [vmem:[%s319 + $0xb4] sm:$0xf]
      %v366 = vld [vmem:[%s319 + $0xb8] sm:$0xf]
      %v367 = vld [vmem:[%s319 + $0xbc] sm:$0xf]
      %v432 = vunpack.c.l.b16 %v203
      %v433 = vunpack.c.h.b16 %v203
      %v434 = vunpack.c.l.b16 %v204
      %v435 = vunpack.c.l.b16 %v205
      %v436 = vunpack.c.h.b16 %v205
      %v437 = vunpack.c.l.b16 %v206
      %v438 = vunpack.c.l.b16 %v207
      %v439 = vunpack.c.h.b16 %v207
      %v440 = vunpack.c.l.b16 %v208
      %v441 = vunpack.c.l.b16 %v209
      %v442 = vunpack.c.h.b16 %v209
      %v443 = vunpack.c.l.b16 %v210
      %v444 = vunpack.c.l.b16 %v211
      %v445 = vunpack.c.h.b16 %v211
      %v446 = vunpack.c.l.b16 %v212
      %v447 = vunpack.c.l.b16 %v213
      %v448 = vunpack.c.h.b16 %v213
      %v449 = vunpack.c.l.b16 %v214
      %v450 = vunpack.c.l.b16 %v215
      %v451 = vunpack.c.h.b16 %v215
      %v452 = vunpack.c.l.b16 %v216
      %v453 = vunpack.c.l.b16 %v217
      %v454 = vunpack.c.h.b16 %v217
      %v455 = vunpack.c.l.b16 %v218
      %v456 = vunpack.c.l.b16 %v219
      %v457 = vunpack.c.h.b16 %v219
      %v458 = vunpack.c.l.b16 %v220
      %v459 = vunpack.c.l.b16 %v221
      %v460 = vunpack.c.h.b16 %v221
      %v461 = vunpack.c.l.b16 %v222
      %v462 = vunpack.c.l.b16 %v223
      %v463 = vunpack.c.h.b16 %v223
      %v464 = vunpack.c.l.b16 %v224
      %v465 = vunpack.c.l.b16 %v225
      %v466 = vunpack.c.h.b16 %v225
      %v467 = vunpack.c.l.b16 %v226
      %v468 = vunpack.c.l.b16 %v227
      %v469 = vunpack.c.h.b16 %v227
      %v470 = vunpack.c.l.b16 %v228
      %v471 = vunpack.c.l.b16 %v229
      %v472 = vunpack.c.h.b16 %v229
      %v473 = vunpack.c.l.b16 %v230
      %v474 = vunpack.c.l.b16 %v231
      %v475 = vunpack.c.h.b16 %v231
      %v476 = vunpack.c.l.b16 %v232
      %v477 = vunpack.c.l.b16 %v233
      %v478 = vunpack.c.h.b16 %v233
      %v479 = vunpack.c.l.b16 %v234
      %v480 = vunpack.c.l.b16 %v235
      %v481 = vunpack.c.h.b16 %v235
      %v482 = vunpack.c.l.b16 %v236
      %v483 = vunpack.c.l.b16 %v237
      %v484 = vunpack.c.h.b16 %v237
      %v485 = vunpack.c.l.b16 %v238
      %v486 = vunpack.c.l.b16 %v239
      %v487 = vunpack.c.h.b16 %v239
      %v488 = vunpack.c.l.b16 %v240
      %v489 = vunpack.c.l.b16 %v241
      %v490 = vunpack.c.h.b16 %v241
      %v491 = vunpack.c.l.b16 %v242
      %v492 = vunpack.c.l.b16 %v243
      %v493 = vunpack.c.h.b16 %v243
      %v494 = vunpack.c.l.b16 %v244
      %v495 = vunpack.c.l.b16 %v245
      %v496 = vunpack.c.h.b16 %v245
      %v497 = vunpack.c.l.b16 %v246
      %v498 = vunpack.c.l.b16 %v247
      %v499 = vunpack.c.h.b16 %v247
      %v500 = vunpack.c.l.b16 %v248
      %v501 = vunpack.c.l.b16 %v249
      %v502 = vunpack.c.h.b16 %v249
      %v503 = vunpack.c.l.b16 %v250
      %v504 = vunpack.c.l.b16 %v251
      %v505 = vunpack.c.h.b16 %v251
      %v506 = vunpack.c.l.b16 %v252
      %v507 = vunpack.c.l.b16 %v253
      %v508 = vunpack.c.h.b16 %v253
      %v509 = vunpack.c.l.b16 %v254
      %v510 = vunpack.c.l.b16 %v255
      %v511 = vunpack.c.h.b16 %v255
      %v512 = vunpack.c.l.b16 %v256
      %v513 = vunpack.c.l.b16 %v257
      %v514 = vunpack.c.h.b16 %v257
      %v515 = vunpack.c.l.b16 %v258
      %v516 = vunpack.c.l.b16 %v259
      %v517 = vunpack.c.h.b16 %v259
      %v518 = vunpack.c.l.b16 %v260
      %v519 = vunpack.c.l.b16 %v261
      %v520 = vunpack.c.h.b16 %v261
      %v521 = vunpack.c.l.b16 %v262
      %v522 = vunpack.c.l.b16 %v263
      %v523 = vunpack.c.h.b16 %v263
      %v524 = vunpack.c.l.b16 %v264
      %v525 = vunpack.c.l.b16 %v265
      %v526 = vunpack.c.h.b16 %v265
      %v527 = vunpack.c.l.b16 %v266
      %v528 = vpack.c.b16 %v435, %v432
      %v529 = vpack.c.b16 %v436, %v433
      %v530 = vpack.c.b16 %v437, %v434
      %v531 = vpack.c.b16 %v441, %v438
      %v532 = vpack.c.b16 %v442, %v439
      %v533 = vpack.c.b16 %v443, %v440
      %v534 = vpack.c.b16 %v447, %v444
      %v535 = vpack.c.b16 %v448, %v445
      %v536 = vpack.c.b16 %v449, %v446
      %v537 = vpack.c.b16 %v453, %v450
      %v538 = vpack.c.b16 %v454, %v451
      %v539 = vpack.c.b16 %v455, %v452
      %v540 = vpack.c.b16 %v459, %v456
      %v541 = vpack.c.b16 %v460, %v457
      %v542 = vpack.c.b16 %v461, %v458
      %v543 = vpack.c.b16 %v465, %v462
      %v544 = vpack.c.b16 %v466, %v463
      %v545 = vpack.c.b16 %v467, %v464
      %v546 = vpack.c.b16 %v471, %v468
      %v547 = vpack.c.b16 %v472, %v469
      %v548 = vpack.c.b16 %v473, %v470
      %v549 = vpack.c.b16 %v477, %v474
      %v550 = vpack.c.b16 %v478, %v475
      %v551 = vpack.c.b16 %v479, %v476
      %v552 = vpack.c.b16 %v483, %v480
      %v553 = vpack.c.b16 %v484, %v481
      %v554 = vpack.c.b16 %v485, %v482
      %v555 = vpack.c.b16 %v489, %v486
      %v556 = vpack.c.b16 %v490, %v487
      %v557 = vpack.c.b16 %v491, %v488
      %v558 = vpack.c.b16 %v495, %v492
      %v559 = vpack.c.b16 %v496, %v493
      %v560 = vpack.c.b16 %v497, %v494
      %v561 = vpack.c.b16 %v501, %v498
      %v562 = vpack.c.b16 %v502, %v499
      %v563 = vpack.c.b16 %v503, %v500
      %v564 = vpack.c.b16 %v507, %v504
      %v565 = vpack.c.b16 %v508, %v505
      %v566 = vpack.c.b16 %v509, %v506
      %v567 = vpack.c.b16 %v513, %v510
      %v568 = vpack.c.b16 %v514, %v511
      %v569 = vpack.c.b16 %v515, %v512
      %v570 = vpack.c.b16 %v519, %v516
      %v571 = vpack.c.b16 %v520, %v517
      %v572 = vpack.c.b16 %v521, %v518
      %v573 = vpack.c.b16 %v525, %v522
      %v574 = vpack.c.b16 %v526, %v523
      %v575 = vpack.c.b16 %v527, %v524
      %v672 = vunpack.c.l.b16 %v320
      %v673 = vunpack.c.l.b16 %v321
      %v674 = vunpack.c.l.b16 %v322
      %v675 = vunpack.c.l.b16 %v323
      %v676 = vunpack.c.l.b16 %v324
      %v677 = vunpack.c.l.b16 %v325
      %v678 = vunpack.c.l.b16 %v326
      %v679 = vunpack.c.l.b16 %v327
      %v680 = vunpack.c.l.b16 %v328
      %v681 = vunpack.c.l.b16 %v329
      %v682 = vunpack.c.l.b16 %v330
      %v683 = vunpack.c.l.b16 %v331
      %v684 = vunpack.c.l.b16 %v332
      %v685 = vunpack.c.l.b16 %v333
      %v686 = vunpack.c.l.b16 %v334
      %v687 = vunpack.c.l.b16 %v335
      %v688 = vunpack.c.l.b16 %v336
      %v689 = vunpack.c.l.b16 %v337
      %v690 = vunpack.c.l.b16 %v338
      %v691 = vunpack.c.l.b16 %v339
      %v692 = vunpack.c.l.b16 %v340
      %v693 = vunpack.c.l.b16 %v341
      %v694 = vunpack.c.l.b16 %v342
      %v695 = vunpack.c.l.b16 %v343
      %v696 = vunpack.c.l.b16 %v344
      %v697 = vunpack.c.l.b16 %v345
      %v698 = vunpack.c.l.b16 %v346
      %v699 = vunpack.c.l.b16 %v347
      %v700 = vunpack.c.l.b16 %v348
      %v701 = vunpack.c.l.b16 %v349
      %v702 = vunpack.c.l.b16 %v350
      %v703 = vunpack.c.l.b16 %v351
      %v704 = vunpack.c.l.b16 %v352
      %v705 = vunpack.c.l.b16 %v353
      %v706 = vunpack.c.l.b16 %v354
      %v707 = vunpack.c.l.b16 %v355
      %v708 = vunpack.c.l.b16 %v356
      %v709 = vunpack.c.l.b16 %v357
      %v710 = vunpack.c.l.b16 %v358
      %v711 = vunpack.c.l.b16 %v359
      %v712 = vunpack.c.l.b16 %v360
      %v713 = vunpack.c.l.b16 %v361
      %v714 = vunpack.c.l.b16 %v362
      %v715 = vunpack.c.l.b16 %v363
      %v716 = vunpack.c.l.b16 %v364
      %v717 = vunpack.c.l.b16 %v365
      %v718 = vunpack.c.l.b16 %v366
      %v719 = vunpack.c.l.b16 %v367
      %v720 = vpack.c.b16 %v673, %v672
      %v721 = vpack.c.b16 %v675, %v674
      %v722 = vpack.c.b16 %v677, %v676
      %v723 = vpack.c.b16 %v679, %v678
      %v724 = vpack.c.b16 %v681, %v680
      %v725 = vpack.c.b16 %v683, %v682
      %v726 = vpack.c.b16 %v685, %v684
      %v727 = vpack.c.b16 %v687, %v686
      %v728 = vpack.c.b16 %v689, %v688
      %v729 = vpack.c.b16 %v691, %v690
      %v730 = vpack.c.b16 %v693, %v692
      %v731 = vpack.c.b16 %v695, %v694
      %v732 = vpack.c.b16 %v697, %v696
      %v733 = vpack.c.b16 %v699, %v698
      %v734 = vpack.c.b16 %v701, %v700
      %v735 = vpack.c.b16 %v703, %v702
      %v736 = vpack.c.b16 %v705, %v704
      %v737 = vpack.c.b16 %v707, %v706
      %v738 = vpack.c.b16 %v709, %v708
      %v739 = vpack.c.b16 %v711, %v710
      %v740 = vpack.c.b16 %v713, %v712
      %v741 = vpack.c.b16 %v715, %v714
      %v742 = vpack.c.b16 %v717, %v716
      %v743 = vpack.c.b16 %v719, %v718
      %768 = vmatprep.subr.bf16.mxu0 0
      %769 = vmatpush1.bf16.msra.mxu0 %v720
      %770 = vmatprep.subr.bf16.mxu0 0
      %771 = vmatpush1.bf16.msra.mxu0 %v721
      %772 = vmatprep.subr.bf16.mxu0 0
      %773 = vmatpush1.bf16.msra.mxu0 %v722
      %774 = vmatprep.subr.bf16.mxu0 0
      %775 = vmatpush1.bf16.msra.mxu0 %v723
      %776 = vmatprep.subr.bf16.mxu0 0
      %777 = vmatpush1.bf16.msra.mxu0 %v724
      %778 = vmatprep.subr.bf16.mxu0 0
      %779 = vmatpush1.bf16.msra.mxu0 %v725
      %780 = vmatprep.subr.bf16.mxu0 0
      %781 = vmatpush1.bf16.msra.mxu0 %v726
      %782 = vmatprep.subr.bf16.mxu0 0
      %783 = vmatpush1.bf16.msra.mxu0 %v727
      %784 = vmatprep.subr.bf16.mxu0 0
      %785 = vmatpush1.bf16.msra.mxu0 %v728
      %786 = vmatprep.subr.bf16.mxu0 0
      %787 = vmatpush1.bf16.msra.mxu0 %v729
      %788 = vmatprep.subr.bf16.mxu0 0
      %789 = vmatpush1.bf16.msra.mxu0 %v730
      %790 = vmatprep.subr.bf16.mxu0 0
      %791 = vmatpush1.bf16.msra.mxu0 %v731
      %792 = vmatprep.subr.bf16.mxu0 0
      %793 = vmatpush1.bf16.msra.mxu0 %v732
      %794 = vmatprep.subr.bf16.mxu0 0
      %795 = vmatpush1.bf16.msra.mxu0 %v733
      %796 = vmatprep.subr.bf16.mxu0 0
      %797 = vmatpush1.bf16.msra.mxu0 %v734
      %798 = vmatprep.subr.bf16.mxu0 0
      %799 = vmatpush1.bf16.msra.mxu0 %v735
      %800 = vmatprep.mubr.bf16.mxu0 %v529
      %801 = vmatmul.mubr.bf16.gmra.mrb[0].mxu0 %v528
      %v802 = vpop.f32.mrb[0].mxu0
      %v803 = vadd.f32 0.0, %v802
      %v804 = vpop.f32.mrb[0].mxu0
      %v805 = vpop.f32.mrb[0].mxu0
      %v806 = vadd.f32 0.0, %v805
      %v807 = vpop.f32.mrb[0].mxu0
      %808 = vmatprep.mubr.bf16.mxu0 %v532
      %809 = vmatmul.mubr.bf16.gmra.mrb[0].mxu0 %v531
      %v810 = vpop.f32.mrb[0].mxu0
      %v811 = vadd.f32 0.0, %v810
      %v812 = vpop.f32.mrb[0].mxu0
      %v813 = vpop.f32.mrb[0].mxu0
      %v814 = vadd.f32 0.0, %v813
      %v815 = vpop.f32.mrb[0].mxu0
      %816 = vmatprep.mubr.bf16.mxu0 %v535
      %817 = vmatmul.mubr.bf16.gmra.mrb[0].mxu0 %v534
      %v818 = vpop.f32.mrb[0].mxu0
      %v819 = vadd.f32 0.0, %v818
      %v820 = vpop.f32.mrb[0].mxu0
      %v821 = vpop.f32.mrb[0].mxu0
      %v822 = vadd.f32 0.0, %v821
      %v823 = vpop.f32.mrb[0].mxu0
      %824 = vmatprep.mubr.bf16.mxu0 %v538
      %825 = vmatmul.mubr.bf16.gmra.mrb[0].mxu0 %v537
      %v826 = vpop.f32.mrb[0].mxu0
      %v827 = vadd.f32 0.0, %v826
      %v828 = vpop.f32.mrb[0].mxu0
      %v829 = vpop.f32.mrb[0].mxu0
      %v830 = vadd.f32 0.0, %v829
      %v831 = vpop.f32.mrb[0].mxu0
      %832 = vmatprep.mubr.bf16.mxu0 %v541
      %833 = vmatmul.mubr.bf16.gmra.mrb[0].mxu0 %v540
      %v834 = vpop.f32.mrb[0].mxu0
      %v835 = vadd.f32 0.0, %v834
      %v836 = vpop.f32.mrb[0].mxu0
      %v837 = vpop.f32.mrb[0].mxu0
      %v838 = vadd.f32 0.0, %v837
      %v839 = vpop.f32.mrb[0].mxu0
      %840 = vmatprep.mubr.bf16.mxu0 %v544
      %841 = vmatmul.mubr.bf16.gmra.mrb[0].mxu0 %v543
      %v842 = vpop.f32.mrb[0].mxu0
      %v843 = vadd.f32 0.0, %v842
      %v844 = vpop.f32.mrb[0].mxu0
      %v845 = vpop.f32.mrb[0].mxu0
      %v846 = vadd.f32 0.0, %v845
      %v847 = vpop.f32.mrb[0].mxu0
      %848 = vmatprep.mubr.bf16.mxu0 %v547
      %849 = vmatmul.mubr.bf16.gmra.mrb[0].mxu0 %v546
      %v850 = vpop.f32.mrb[0].mxu0
      %v851 = vadd.f32 0.0, %v850
      %v852 = vpop.f32.mrb[0].mxu0
      %v853 = vpop.f32.mrb[0].mxu0
      %v854 = vadd.f32 0.0, %v853
      %v855 = vpop.f32.mrb[0].mxu0
      %856 = vmatprep.mubr.bf16.mxu0 %v550
      %857 = vmatmul.mubr.bf16.gmra.mrb[0].mxu0 %v549
      %v858 = vpop.f32.mrb[0].mxu0
      %v859 = vadd.f32 0.0, %v858
      %v860 = vpop.f32.mrb[0].mxu0
      %v861 = vpop.f32.mrb[0].mxu0
      %v862 = vadd.f32 0.0, %v861
      %v863 = vpop.f32.mrb[0].mxu0
      %864 = vmatprep.mubr.bf16.mxu0 %v553
      %865 = vmatmul.mubr.bf16.gmra.mrb[0].mxu0 %v552
      %v866 = vpop.f32.mrb[0].mxu0
      %v867 = vadd.f32 0.0, %v866
      %v868 = vpop.f32.mrb[0].mxu0
      %v869 = vpop.f32.mrb[0].mxu0
      %v870 = vadd.f32 0.0, %v869
      %v871 = vpop.f32.mrb[0].mxu0
      %872 = vmatprep.mubr.bf16.mxu0 %v556
      %873 = vmatmul.mubr.bf16.gmra.mrb[0].mxu0 %v555
      %v874 = vpop.f32.mrb[0].mxu0
      %v875 = vadd.f32 0.0, %v874
      %v876 = vpop.f32.mrb[0].mxu0
      %v877 = vpop.f32.mrb[0].mxu0
      %v878 = vadd.f32 0.0, %v877
      %v879 = vpop.f32.mrb[0].mxu0
      %880 = vmatprep.mubr.bf16.mxu0 %v559
      %881 = vmatmul.mubr.bf16.gmra.mrb[0].mxu0 %v558
      %v882 = vpop.f32.mrb[0].mxu0
      %v883 = vadd.f32 0.0, %v882
      %v884 = vpop.f32.mrb[0].mxu0
      %v885 = vpop.f32.mrb[0].mxu0
      %v886 = vadd.f32 0.0, %v885
      %v887 = vpop.f32.mrb[0].mxu0
      %888 = vmatprep.mubr.bf16.mxu0 %v562
      %889 = vmatmul.mubr.bf16.gmra.mrb[0].mxu0 %v561
      %v890 = vpop.f32.mrb[0].mxu0
      %v891 = vadd.f32 0.0, %v890
      %v892 = vpop.f32.mrb[0].mxu0
      %v893 = vpop.f32.mrb[0].mxu0
      %v894 = vadd.f32 0.0, %v893
      %v895 = vpop.f32.mrb[0].mxu0
      %896 = vmatprep.mubr.bf16.mxu0 %v565
      %897 = vmatmul.mubr.bf16.gmra.mrb[0].mxu0 %v564
      %v898 = vpop.f32.mrb[0].mxu0
      %v899 = vadd.f32 0.0, %v898
      %v900 = vpop.f32.mrb[0].mxu0
      %v901 = vpop.f32.mrb[0].mxu0
      %v902 = vadd.f32 0.0, %v901
      %v903 = vpop.f32.mrb[0].mxu0
      %904 = vmatprep.mubr.bf16.mxu0 %v568
      %905 = vmatmul.mubr.bf16.gmra.mrb[0].mxu0 %v567
      %v906 = vpop.f32.mrb[0].mxu0
      %v907 = vadd.f32 0.0, %v906
      %v908 = vpop.f32.mrb[0].mxu0
      %v909 = vpop.f32.mrb[0].mxu0
      %v910 = vadd.f32 0.0, %v909
      %v911 = vpop.f32.mrb[0].mxu0
      %912 = vmatprep.mubr.bf16.mxu0 %v571
      %913 = vmatmul.mubr.bf16.gmra.mrb[0].mxu0 %v570
      %v914 = vpop.f32.mrb[0].mxu0
      %v915 = vadd.f32 0.0, %v914
      %v916 = vpop.f32.mrb[0].mxu0
      %v917 = vpop.f32.mrb[0].mxu0
      %v918 = vadd.f32 0.0, %v917
      %v919 = vpop.f32.mrb[0].mxu0
      %920 = vmatprep.mubr.bf16.mxu0 %v574
      %921 = vmatmul.mubr.bf16.gmra.mrb[0].mxu0 %v573
      %v922 = vpop.f32.mrb[0].mxu0
      %v923 = vadd.f32 0.0, %v922
      %v924 = vpop.f32.mrb[0].mxu0
      %v925 = vpop.f32.mrb[0].mxu0
      %v926 = vadd.f32 0.0, %v925
      %v927 = vpop.f32.mrb[0].mxu0
      %928 = vdwg.mxu0
      %929 = vmatprep.subr.bf16.mxu0 0
      %930 = vmatpush1.bf16.msra.mxu0 %v736
      %931 = vmatprep.subr.bf16.mxu0 0
      %932 = vmatpush1.bf16.msra.mxu0 %v737
      %933 = vmatprep.subr.bf16.mxu0 0
      %934 = vmatpush1.bf16.msra.mxu0 %v738
      %935 = vmatprep.subr.bf16.mxu0 0
      %936 = vmatpush1.bf16.msra.mxu0 %v739
      %937 = vmatprep.subr.bf16.mxu0 0
      %938 = vmatpush1.bf16.msra.mxu0 %v740
      %939 = vmatprep.subr.bf16.mxu0 0
      %940 = vmatpush1.bf16.msra.mxu0 %v741
      %941 = vmatprep.subr.bf16.mxu0 0
      %942 = vmatpush1.bf16.msra.mxu0 %v742
      %943 = vmatprep.subr.bf16.mxu0 0
      %944 = vmatpush1.bf16.msra.mxu0 %v743
      %945 = vmatprep.subr.bf16.mxu0 0
      %946 = vmatpush1.bf16.msra.mxu0 0
      %947 = vmatprep.subr.bf16.mxu0 0
      %948 = vmatpush1.bf16.msra.mxu0 0
      %949 = vmatprep.subr.bf16.mxu0 0
      %950 = vmatpush1.bf16.msra.mxu0 0
      %951 = vmatprep.subr.bf16.mxu0 0
      %952 = vmatpush1.bf16.msra.mxu0 0
      %953 = vmatprep.subr.bf16.mxu0 0
      %954 = vmatpush1.bf16.msra.mxu0 0
      %955 = vmatprep.subr.bf16.mxu0 0
      %956 = vmatpush1.bf16.msra.mxu0 0
      %957 = vmatprep.subr.bf16.mxu0 0
      %958 = vmatpush1.bf16.msra.mxu0 0
      %959 = vmatprep.subr.bf16.mxu0 0
      %960 = vmatpush1.bf16.msra.mxu0 0
      %961 = vmatprep.mubr.bf16.mxu0 0
      %962 = vmatmul.mubr.bf16.gmra.mrb[0].mxu0 %v530
      %v963 = vpop.f32.mrb[0].mxu0
      %v964 = vadd.f32 %v803, %v963
      %v965 = vpop.f32.mrb[0].mxu0
      %v966 = vpop.f32.mrb[0].mxu0
      %v967 = vadd.f32 %v806, %v966
      %v968 = vpop.f32.mrb[0].mxu0
      %969 = vmatprep.mubr.bf16.mxu0 0
      %970 = vmatmul.mubr.bf16.gmra.mrb[0].mxu0 %v533
      %v971 = vpop.f32.mrb[0].mxu0
      %v972 = vadd.f32 %v811, %v971
      %v973 = vpop.f32.mrb[0].mxu0
      %v974 = vpop.f32.mrb[0].mxu0
      %v975 = vadd.f32 %v814, %v974
      %v976 = vpop.f32.mrb[0].mxu0
      %977 = vmatprep.mubr.bf16.mxu0 0
      %978 = vmatmul.mubr.bf16.gmra.mrb[0].mxu0 %v536
      %v979 = vpop.f32.mrb[0].mxu0
      %v980 = vadd.f32 %v819, %v979
      %v981 = vpop.f32.mrb[0].mxu0
      %v982 = vpop.f32.mrb[0].mxu0
      %v983 = vadd.f32 %v822, %v982
      %v984 = vpop.f32.mrb[0].mxu0
      %985 = vmatprep.mubr.bf16.mxu0 0
      %986 = vmatmul.mubr.bf16.gmra.mrb[0].mxu0 %v539
      %v987 = vpop.f32.mrb[0].mxu0
      %v988 = vadd.f32 %v827, %v987
      %v989 = vpop.f32.mrb[0].mxu0
      %v990 = vpop.f32.mrb[0].mxu0
      %v991 = vadd.f32 %v830, %v990
      %v992 = vpop.f32.mrb[0].mxu0
      %993 = vmatprep.mubr.bf16.mxu0 0
      %994 = vmatmul.mubr.bf16.gmra.mrb[0].mxu0 %v542
      %v995 = vpop.f32.mrb[0].mxu0
      %v996 = vadd.f32 %v835, %v995
      %v997 = vpop.f32.mrb[0].mxu0
      %v998 = vpop.f32.mrb[0].mxu0
      %v999 = vadd.f32 %v838, %v998
      %v1000 = vpop.f32.mrb[0].mxu0
      %1001 = vmatprep.mubr.bf16.mxu0 0
      %1002 = vmatmul.mubr.bf16.gmra.mrb[0].mxu0 %v545
      %v1003 = vpop.f32.mrb[0].mxu0
      %v1004 = vadd.f32 %v843, %v1003
      %v1005 = vpop.f32.mrb[0].mxu0
      %v1006 = vpop.f32.mrb[0].mxu0
      %v1007 = vadd.f32 %v846, %v1006
      %v1008 = vpop.f32.mrb[0].mxu0
      %1009 = vmatprep.mubr.bf16.mxu0 0
      %1010 = vmatmul.mubr.bf16.gmra.mrb[0].mxu0 %v548
      %v1011 = vpop.f32.mrb[0].mxu0
      %v1012 = vadd.f32 %v851, %v1011
      %v1013 = vpop.f32.mrb[0].mxu0
      %v1014 = vpop.f32.mrb[0].mxu0
      %v1015 = vadd.f32 %v854, %v1014
      %v1016 = vpop.f32.mrb[0].mxu0
      %1017 = vmatprep.mubr.bf16.mxu0 0
      %1018 = vmatmul.mubr.bf16.gmra.mrb[0].mxu0 %v551
      %v1019 = vpop.f32.mrb[0].mxu0
      %v1020 = vadd.f32 %v859, %v1019
      %v1021 = vpop.f32.mrb[0].mxu0
      %v1022 = vpop.f32.mrb[0].mxu0
      %v1023 = vadd.f32 %v862, %v1022
      %v1024 = vpop.f32.mrb[0].mxu0
      %1025 = vmatprep.mubr.bf16.mxu0 0
      %1026 = vmatmul.mubr.bf16.gmra.mrb[0].mxu0 %v554
      %v1027 = vpop.f32.mrb[0].mxu0
      %v1028 = vadd.f32 %v867, %v1027
      %v1029 = vpop.f32.mrb[0].mxu0
      %v1030 = vpop.f32.mrb[0].mxu0
      %v1031 = vadd.f32 %v870, %v1030
      %v1032 = vpop.f32.mrb[0].mxu0
      %1033 = vmatprep.mubr.bf16.mxu0 0
      %1034 = vmatmul.mubr.bf16.gmra.mrb[0].mxu0 %v557
      %v1035 = vpop.f32.mrb[0].mxu0
      %v1036 = vadd.f32 %v875, %v1035
      %v1037 = vpop.f32.mrb[0].mxu0
      %v1038 = vpop.f32.mrb[0].mxu0
      %v1039 = vadd.f32 %v878, %v1038
      %v1040 = vpop.f32.mrb[0].mxu0
      %1041 = vmatprep.mubr.bf16.mxu0 0
      %1042 = vmatmul.mubr.bf16.gmra.mrb[0].mxu0 %v560
      %v1043 = vpop.f32.mrb[0].mxu0
      %v1044 = vadd.f32 %v883, %v1043
      %v1045 = vpop.f32.mrb[0].mxu0
      %v1046 = vpop.f32.mrb[0].mxu0
      %v1047 = vadd.f32 %v886, %v1046
      %v1048 = vpop.f32.mrb[0].mxu0
      %1049 = vmatprep.mubr.bf16.mxu0 0
      %1050 = vmatmul.mubr.bf16.gmra.mrb[0].mxu0 %v563
      %v1051 = vpop.f32.mrb[0].mxu0
      %v1052 = vadd.f32 %v891, %v1051
      %v1053 = vpop.f32.mrb[0].mxu0
      %v1054 = vpop.f32.mrb[0].mxu0
      %v1055 = vadd.f32 %v894, %v1054
      %v1056 = vpop.f32.mrb[0].mxu0
      %1057 = vmatprep.mubr.bf16.mxu0 0
      %1058 = vmatmul.mubr.bf16.gmra.mrb[0].mxu0 %v566
      %v1059 = vpop.f32.mrb[0].mxu0
      %v1060 = vadd.f32 %v899, %v1059
      %v1061 = vpop.f32.mrb[0].mxu0
      %v1062 = vpop.f32.mrb[0].mxu0
      %v1063 = vadd.f32 %v902, %v1062
      %v1064 = vpop.f32.mrb[0].mxu0
      %1065 = vmatprep.mubr.bf16.mxu0 0
      %1066 = vmatmul.mubr.bf16.gmra.mrb[0].mxu0 %v569
      %v1067 = vpop.f32.mrb[0].mxu0
      %v1068 = vadd.f32 %v907, %v1067
      %v1069 = vpop.f32.mrb[0].mxu0
      %v1070 = vpop.f32.mrb[0].mxu0
      %v1071 = vadd.f32 %v910, %v1070
      %v1072 = vpop.f32.mrb[0].mxu0
      %1073 = vmatprep.mubr.bf16.mxu0 0
      %1074 = vmatmul.mubr.bf16.gmra.mrb[0].mxu0 %v572
      %v1075 = vpop.f32.mrb[0].mxu0
      %v1076 = vadd.f32 %v915, %v1075
      %v1077 = vpop.f32.mrb[0].mxu0
      %v1078 = vpop.f32.mrb[0].mxu0
      %v1079 = vadd.f32 %v918, %v1078
      %v1080 = vpop.f32.mrb[0].mxu0
      %1081 = vmatprep.mubr.bf16.mxu0 0
      %1082 = vmatmul.mubr.bf16.gmra.mrb[0].mxu0 %v575
      %v1083 = vpop.f32.mrb[0].mxu0
      %v1084 = vadd.f32 %v923, %v1083
      %v1085 = vpop.f32.mrb[0].mxu0
      %v1086 = vpop.f32.mrb[0].mxu0
      %v1087 = vadd.f32 %v926, %v1086
      %v1088 = vpop.f32.mrb[0].mxu0
      %1089 = vdwg.mxu0
      %v1094 = vunpack.c.l.b16 %v199
      %v1095 = vunpack.c.h.b16 %v199
      %v1096 = vunpack.c.l.b16 %v200
      %v1097 = vunpack.c.l.b16 %v201
      %v1098 = vunpack.c.h.b16 %v201
      %v1099 = vunpack.c.l.b16 %v202
      %v1100 = vpack.c.b16 %v1097, %v1094
      %v1101 = vpack.c.b16 %v1098, %v1095
      %v1102 = vpack.c.b16 %v1099, %v1096
      %v1154 = vunpack.c.l.b16 %v271
      %v1155 = vunpack.c.l.b16 %v272
      %v1156 = vunpack.c.l.b16 %v273
      %v1157 = vunpack.c.l.b16 %v274
      %v1158 = vunpack.c.l.b16 %v275
      %v1159 = vunpack.c.l.b16 %v276
      %v1160 = vunpack.c.l.b16 %v277
      %v1161 = vunpack.c.l.b16 %v278
      %v1162 = vunpack.c.l.b16 %v279
      %v1163 = vunpack.c.l.b16 %v280
      %v1164 = vunpack.c.l.b16 %v281
      %v1165 = vunpack.c.l.b16 %v282
      %v1166 = vunpack.c.l.b16 %v283
      %v1167 = vunpack.c.l.b16 %v284
      %v1168 = vunpack.c.l.b16 %v285
      %v1169 = vunpack.c.l.b16 %v286
      %v1170 = vunpack.c.l.b16 %v287
      %v1171 = vunpack.c.l.b16 %v288
      %v1172 = vunpack.c.l.b16 %v289
      %v1173 = vunpack.c.l.b16 %v290
      %v1174 = vunpack.c.l.b16 %v291
      %v1175 = vunpack.c.l.b16 %v292
      %v1176 = vunpack.c.l.b16 %v293
      %v1177 = vunpack.c.l.b16 %v294
      %v1178 = vunpack.c.l.b16 %v295
      %v1179 = vunpack.c.l.b16 %v296
      %v1180 = vunpack.c.l.b16 %v297
      %v1181 = vunpack.c.l.b16 %v298
      %v1182 = vunpack.c.l.b16 %v299
      %v1183 = vunpack.c.l.b16 %v300
      %v1184 = vunpack.c.l.b16 %v301
      %v1185 = vunpack.c.l.b16 %v302
      %v1186 = vunpack.c.l.b16 %v303
      %v1187 = vunpack.c.l.b16 %v304
      %v1188 = vunpack.c.l.b16 %v305
      %v1189 = vunpack.c.l.b16 %v306
      %v1190 = vunpack.c.l.b16 %v307
      %v1191 = vunpack.c.l.b16 %v308
      %v1192 = vunpack.c.l.b16 %v309
      %v1193 = vunpack.c.l.b16 %v310
      %v1194 = vunpack.c.l.b16 %v311
      %v1195 = vunpack.c.l.b16 %v312
      %v1196 = vunpack.c.l.b16 %v313
      %v1197 = vunpack.c.l.b16 %v314
      %v1198 = vunpack.c.l.b16 %v315
      %v1199 = vunpack.c.l.b16 %v316
      %v1200 = vunpack.c.l.b16 %v317
      %v1201 = vunpack.c.l.b16 %v318
      %v1202 = vpack.c.b16 %v1155, %v1154
      %v1203 = vpack.c.b16 %v1157, %v1156
      %v1204 = vpack.c.b16 %v1159, %v1158
      %v1205 = vpack.c.b16 %v1161, %v1160
      %v1206 = vpack.c.b16 %v1163, %v1162
      %v1207 = vpack.c.b16 %v1165, %v1164
      %v1208 = vpack.c.b16 %v1167, %v1166
      %v1209 = vpack.c.b16 %v1169, %v1168
      %v1210 = vpack.c.b16 %v1171, %v1170
      %v1211 = vpack.c.b16 %v1173, %v1172
      %v1212 = vpack.c.b16 %v1175, %v1174
      %v1213 = vpack.c.b16 %v1177, %v1176
      %v1214 = vpack.c.b16 %v1179, %v1178
      %v1215 = vpack.c.b16 %v1181, %v1180
      %v1216 = vpack.c.b16 %v1183, %v1182
      %v1217 = vpack.c.b16 %v1185, %v1184
      %v1218 = vpack.c.b16 %v1187, %v1186
      %v1219 = vpack.c.b16 %v1189, %v1188
      %v1220 = vpack.c.b16 %v1191, %v1190
      %v1221 = vpack.c.b16 %v1193, %v1192
      %v1222 = vpack.c.b16 %v1195, %v1194
      %v1223 = vpack.c.b16 %v1197, %v1196
      %v1224 = vpack.c.b16 %v1199, %v1198
      %v1225 = vpack.c.b16 %v1201, %v1200
      %1250 = vmatprep.subr.bf16.mxu0 0
      %1251 = vmatpush1.bf16.msra.mxu0 %v1202
      %1252 = vmatprep.subr.bf16.mxu0 0
      %1253 = vmatpush1.bf16.msra.mxu0 %v1203
      %1254 = vmatprep.subr.bf16.mxu0 0
      %1255 = vmatpush1.bf16.msra.mxu0 %v1204
      %1256 = vmatprep.subr.bf16.mxu0 0
      %1257 = vmatpush1.bf16.msra.mxu0 %v1205
      %1258 = vmatprep.subr.bf16.mxu0 0
      %1259 = vmatpush1.bf16.msra.mxu0 %v1206
      %1260 = vmatprep.subr.bf16.mxu0 0
      %1261 = vmatpush1.bf16.msra.mxu0 %v1207
      %1262 = vmatprep.subr.bf16.mxu0 0
      %1263 = vmatpush1.bf16.msra.mxu0 %v1208
      %1264 = vmatprep.subr.bf16.mxu0 0
      %1265 = vmatpush1.bf16.msra.mxu0 %v1209
      %1266 = vmatprep.subr.bf16.mxu0 0
      %1267 = vmatpush1.bf16.msra.mxu0 %v1210
      %1268 = vmatprep.subr.bf16.mxu0 0
      %1269 = vmatpush1.bf16.msra.mxu0 %v1211
      %1270 = vmatprep.subr.bf16.mxu0 0
      %1271 = vmatpush1.bf16.msra.mxu0 %v1212
      %1272 = vmatprep.subr.bf16.mxu0 0
      %1273 = vmatpush1.bf16.msra.mxu0 %v1213
      %1274 = vmatprep.subr.bf16.mxu0 0
      %1275 = vmatpush1.bf16.msra.mxu0 %v1214
      %1276 = vmatprep.subr.bf16.mxu0 0
      %1277 = vmatpush1.bf16.msra.mxu0 %v1215
      %1278 = vmatprep.subr.bf16.mxu0 0
      %1279 = vmatpush1.bf16.msra.mxu0 %v1216
      %1280 = vmatprep.subr.bf16.mxu0 0
      %1281 = vmatpush1.bf16.msra.mxu0 %v1217
      %1282 = vmatprep.mubr.bf16.mxu0 %v1101
      %1283 = vmatmul.mubr.bf16.gmra.mrb[0].mxu0 %v1100
      %v1284 = vpop.f32.mrb[0].mxu0
      %v1285 = vadd.f32 %v964, %v1284
      %v1286 = vpop.f32.mrb[0].mxu0
      %v1287 = vpop.f32.mrb[0].mxu0
      %v1288 = vadd.f32 %v967, %v1287
      %v1289 = vpop.f32.mrb[0].mxu0
      %1290 = vmatprep.mubr.bf16.mxu0 %v529
      %1291 = vmatmul.mubr.bf16.gmra.mrb[0].mxu0 %v528
      %v1292 = vpop.f32.mrb[0].mxu0
      %v1293 = vadd.f32 %v972, %v1292
      %v1294 = vpop.f32.mrb[0].mxu0
      %v1295 = vpop.f32.mrb[0].mxu0
      %v1296 = vadd.f32 %v975, %v1295
      %v1297 = vpop.f32.mrb[0].mxu0
      %1298 = vmatprep.mubr.bf16.mxu0 %v532
      %1299 = vmatmul.mubr.bf16.gmra.mrb[0].mxu0 %v531
      %v1300 = vpop.f32.mrb[0].mxu0
      %v1301 = vadd.f32 %v980, %v1300
      %v1302 = vpop.f32.mrb[0].mxu0
      %v1303 = vpop.f32.mrb[0].mxu0
      %v1304 = vadd.f32 %v983, %v1303
      %v1305 = vpop.f32.mrb[0].mxu0
      %1306 = vmatprep.mubr.bf16.mxu0 %v535
      %1307 = vmatmul.mubr.bf16.gmra.mrb[0].mxu0 %v534
      %v1308 = vpop.f32.mrb[0].mxu0
      %v1309 = vadd.f32 %v988, %v1308
      %v1310 = vpop.f32.mrb[0].mxu0
      %v1311 = vpop.f32.mrb[0].mxu0
      %v1312 = vadd.f32 %v991, %v1311
      %v1313 = vpop.f32.mrb[0].mxu0
      %1314 = vmatprep.mubr.bf16.mxu0 %v538
      %1315 = vmatmul.mubr.bf16.gmra.mrb[0].mxu0 %v537
      %v1316 = vpop.f32.mrb[0].mxu0
      %v1317 = vadd.f32 %v996, %v1316
      %v1318 = vpop.f32.mrb[0].mxu0
      %v1319 = vpop.f32.mrb[0].mxu0
      %v1320 = vadd.f32 %v999, %v1319
      %v1321 = vpop.f32.mrb[0].mxu0
      %1322 = vmatprep.mubr.bf16.mxu0 %v541
      %1323 = vmatmul.mubr.bf16.gmra.mrb[0].mxu0 %v540
      %v1324 = vpop.f32.mrb[0].mxu0
      %v1325 = vadd.f32 %v1004, %v1324
      %v1326 = vpop.f32.mrb[0].mxu0
      %v1327 = vpop.f32.mrb[0].mxu0
      %v1328 = vadd.f32 %v1007, %v1327
      %v1329 = vpop.f32.mrb[0].mxu0
      %1330 = vmatprep.mubr.bf16.mxu0 %v544
      %1331 = vmatmul.mubr.bf16.gmra.mrb[0].mxu0 %v543
      %v1332 = vpop.f32.mrb[0].mxu0
      %v1333 = vadd.f32 %v1012, %v1332
      %v1334 = vpop.f32.mrb[0].mxu0
      %v1335 = vpop.f32.mrb[0].mxu0
      %v1336 = vadd.f32 %v1015, %v1335
      %v1337 = vpop.f32.mrb[0].mxu0
      %1338 = vmatprep.mubr.bf16.mxu0 %v547
      %1339 = vmatmul.mubr.bf16.gmra.mrb[0].mxu0 %v546
      %v1340 = vpop.f32.mrb[0].mxu0
      %v1341 = vadd.f32 %v1020, %v1340
      %v1342 = vpop.f32.mrb[0].mxu0
      %v1343 = vpop.f32.mrb[0].mxu0
      %v1344 = vadd.f32 %v1023, %v1343
      %v1345 = vpop.f32.mrb[0].mxu0
      %1346 = vmatprep.mubr.bf16.mxu0 %v550
      %1347 = vmatmul.mubr.bf16.gmra.mrb[0].mxu0 %v549
      %v1348 = vpop.f32.mrb[0].mxu0
      %v1349 = vadd.f32 %v1028, %v1348
      %v1350 = vpop.f32.mrb[0].mxu0
      %v1351 = vpop.f32.mrb[0].mxu0
      %v1352 = vadd.f32 %v1031, %v1351
      %v1353 = vpop.f32.mrb[0].mxu0
      %1354 = vmatprep.mubr.bf16.mxu0 %v553
      %1355 = vmatmul.mubr.bf16.gmra.mrb[0].mxu0 %v552
      %v1356 = vpop.f32.mrb[0].mxu0
      %v1357 = vadd.f32 %v1036, %v1356
      %v1358 = vpop.f32.mrb[0].mxu0
      %v1359 = vpop.f32.mrb[0].mxu0
      %v1360 = vadd.f32 %v1039, %v1359
      %v1361 = vpop.f32.mrb[0].mxu0
      %1362 = vmatprep.mubr.bf16.mxu0 %v556
      %1363 = vmatmul.mubr.bf16.gmra.mrb[0].mxu0 %v555
      %v1364 = vpop.f32.mrb[0].mxu0
      %v1365 = vadd.f32 %v1044, %v1364
      %v1366 = vpop.f32.mrb[0].mxu0
      %v1367 = vpop.f32.mrb[0].mxu0
      %v1368 = vadd.f32 %v1047, %v1367
      %v1369 = vpop.f32.mrb[0].mxu0
      %1370 = vmatprep.mubr.bf16.mxu0 %v559
      %1371 = vmatmul.mubr.bf16.gmra.mrb[0].mxu0 %v558
      %v1372 = vpop.f32.mrb[0].mxu0
      %v1373 = vadd.f32 %v1052, %v1372
      %v1374 = vpop.f32.mrb[0].mxu0
      %v1375 = vpop.f32.mrb[0].mxu0
      %v1376 = vadd.f32 %v1055, %v1375
      %v1377 = vpop.f32.mrb[0].mxu0
      %1378 = vmatprep.mubr.bf16.mxu0 %v562
      %1379 = vmatmul.mubr.bf16.gmra.mrb[0].mxu0 %v561
      %v1380 = vpop.f32.mrb[0].mxu0
      %v1381 = vadd.f32 %v1060, %v1380
      %v1382 = vpop.f32.mrb[0].mxu0
      %v1383 = vpop.f32.mrb[0].mxu0
      %v1384 = vadd.f32 %v1063, %v1383
      %v1385 = vpop.f32.mrb[0].mxu0
      %1386 = vmatprep.mubr.bf16.mxu0 %v565
      %1387 = vmatmul.mubr.bf16.gmra.mrb[0].mxu0 %v564
      %v1388 = vpop.f32.mrb[0].mxu0
      %v1389 = vadd.f32 %v1068, %v1388
      %v1390 = vpop.f32.mrb[0].mxu0
      %v1391 = vpop.f32.mrb[0].mxu0
      %v1392 = vadd.f32 %v1071, %v1391
      %v1393 = vpop.f32.mrb[0].mxu0
      %1394 = vmatprep.mubr.bf16.mxu0 %v568
      %1395 = vmatmul.mubr.bf16.gmra.mrb[0].mxu0 %v567
      %v1396 = vpop.f32.mrb[0].mxu0
      %v1397 = vadd.f32 %v1076, %v1396
      %v1398 = vpop.f32.mrb[0].mxu0
      %v1399 = vpop.f32.mrb[0].mxu0
      %v1400 = vadd.f32 %v1079, %v1399
      %v1401 = vpop.f32.mrb[0].mxu0
      %1402 = vmatprep.mubr.bf16.mxu0 %v571
      %1403 = vmatmul.mubr.bf16.gmra.mrb[0].mxu0 %v570
      %v1404 = vpop.f32.mrb[0].mxu0
      %v1405 = vadd.f32 %v1084, %v1404
      %v1406 = vpop.f32.mrb[0].mxu0
      %v1407 = vpop.f32.mrb[0].mxu0
      %v1408 = vadd.f32 %v1087, %v1407
      %v1409 = vpop.f32.mrb[0].mxu0
      %1410 = vdwg.mxu0
      %1411 = vmatprep.subr.bf16.mxu0 0
      %1412 = vmatpush1.bf16.msra.mxu0 %v1218
      %1413 = vmatprep.subr.bf16.mxu0 0
      %1414 = vmatpush1.bf16.msra.mxu0 %v1219
      %1415 = vmatprep.subr.bf16.mxu0 0
      %1416 = vmatpush1.bf16.msra.mxu0 %v1220
      %1417 = vmatprep.subr.bf16.mxu0 0
      %1418 = vmatpush1.bf16.msra.mxu0 %v1221
      %1419 = vmatprep.subr.bf16.mxu0 0
      %1420 = vmatpush1.bf16.msra.mxu0 %v1222
      %1421 = vmatprep.subr.bf16.mxu0 0
      %1422 = vmatpush1.bf16.msra.mxu0 %v1223
      %1423 = vmatprep.subr.bf16.mxu0 0
      %1424 = vmatpush1.bf16.msra.mxu0 %v1224
      %1425 = vmatprep.subr.bf16.mxu0 0
      %1426 = vmatpush1.bf16.msra.mxu0 %v1225
      %1427 = vmatprep.subr.bf16.mxu0 0
      %1428 = vmatpush1.bf16.msra.mxu0 0
      %1429 = vmatprep.subr.bf16.mxu0 0
      %1430 = vmatpush1.bf16.msra.mxu0 0
      %1431 = vmatprep.subr.bf16.mxu0 0
      %1432 = vmatpush1.bf16.msra.mxu0 0
      %1433 = vmatprep.subr.bf16.mxu0 0
      %1434 = vmatpush1.bf16.msra.mxu0 0
      %1435 = vmatprep.subr.bf16.mxu0 0
      %1436 = vmatpush1.bf16.msra.mxu0 0
      %1437 = vmatprep.subr.bf16.mxu0 0
      %1438 = vmatpush1.bf16.msra.mxu0 0
      %1439 = vmatprep.subr.bf16.mxu0 0
      %1440 = vmatpush1.bf16.msra.mxu0 0
      %1441 = vmatprep.subr.bf16.mxu0 0
      %1442 = vmatpush1.bf16.msra.mxu0 0
      %1443 = vmatprep.mubr.bf16.mxu0 0
      %1444 = vmatmul.mubr.bf16.gmra.mrb[0].mxu0 %v1102
      %v1445 = vpop.f32.mrb[0].mxu0
      %v1446 = vadd.f32 %v1285, %v1445
      %v1447 = vpop.f32.mrb[0].mxu0
      %v1448 = vpop.f32.mrb[0].mxu0
      %v1449 = vadd.f32 %v1288, %v1448
      %v1450 = vpop.f32.mrb[0].mxu0
      %1451 = vmatprep.mubr.bf16.mxu0 0
      %1452 = vmatmul.mubr.bf16.gmra.mrb[0].mxu0 %v530
      %v1453 = vpop.f32.mrb[0].mxu0
      %v1454 = vadd.f32 %v1293, %v1453
      %v1455 = vpop.f32.mrb[0].mxu0
      %v1456 = vpop.f32.mrb[0].mxu0
      %v1457 = vadd.f32 %v1296, %v1456
      %v1458 = vpop.f32.mrb[0].mxu0
      %1459 = vmatprep.mubr.bf16.mxu0 0
      %1460 = vmatmul.mubr.bf16.gmra.mrb[0].mxu0 %v533
      %v1461 = vpop.f32.mrb[0].mxu0
      %v1462 = vadd.f32 %v1301, %v1461
      %v1463 = vpop.f32.mrb[0].mxu0
      %v1464 = vpop.f32.mrb[0].mxu0
      %v1465 = vadd.f32 %v1304, %v1464
      %v1466 = vpop.f32.mrb[0].mxu0
      %1467 = vmatprep.mubr.bf16.mxu0 0
      %1468 = vmatmul.mubr.bf16.gmra.mrb[0].mxu0 %v536
      %v1469 = vpop.f32.mrb[0].mxu0
      %v1470 = vadd.f32 %v1309, %v1469
      %v1471 = vpop.f32.mrb[0].mxu0
      %v1472 = vpop.f32.mrb[0].mxu0
      %v1473 = vadd.f32 %v1312, %v1472
      %v1474 = vpop.f32.mrb[0].mxu0
      %1475 = vmatprep.mubr.bf16.mxu0 0
      %1476 = vmatmul.mubr.bf16.gmra.mrb[0].mxu0 %v539
      %v1477 = vpop.f32.mrb[0].mxu0
      %v1478 = vadd.f32 %v1317, %v1477
      %v1479 = vpop.f32.mrb[0].mxu0
      %v1480 = vpop.f32.mrb[0].mxu0
      %v1481 = vadd.f32 %v1320, %v1480
      %v1482 = vpop.f32.mrb[0].mxu0
      %1483 = vmatprep.mubr.bf16.mxu0 0
      %1484 = vmatmul.mubr.bf16.gmra.mrb[0].mxu0 %v542
      %v1485 = vpop.f32.mrb[0].mxu0
      %v1486 = vadd.f32 %v1325, %v1485
      %v1487 = vpop.f32.mrb[0].mxu0
      %v1488 = vpop.f32.mrb[0].mxu0
      %v1489 = vadd.f32 %v1328, %v1488
      %v1490 = vpop.f32.mrb[0].mxu0
      %1491 = vmatprep.mubr.bf16.mxu0 0
      %1492 = vmatmul.mubr.bf16.gmra.mrb[0].mxu0 %v545
      %v1493 = vpop.f32.mrb[0].mxu0
      %v1494 = vadd.f32 %v1333, %v1493
      %v1495 = vpop.f32.mrb[0].mxu0
      %v1496 = vpop.f32.mrb[0].mxu0
      %v1497 = vadd.f32 %v1336, %v1496
      %v1498 = vpop.f32.mrb[0].mxu0
      %1499 = vmatprep.mubr.bf16.mxu0 0
      %1500 = vmatmul.mubr.bf16.gmra.mrb[0].mxu0 %v548
      %v1501 = vpop.f32.mrb[0].mxu0
      %v1502 = vadd.f32 %v1341, %v1501
      %v1503 = vpop.f32.mrb[0].mxu0
      %v1504 = vpop.f32.mrb[0].mxu0
      %v1505 = vadd.f32 %v1344, %v1504
      %v1506 = vpop.f32.mrb[0].mxu0
      %1507 = vmatprep.mubr.bf16.mxu0 0
      %1508 = vmatmul.mubr.bf16.gmra.mrb[0].mxu0 %v551
      %v1509 = vpop.f32.mrb[0].mxu0
      %v1510 = vadd.f32 %v1349, %v1509
      %v1511 = vpop.f32.mrb[0].mxu0
      %v1512 = vpop.f32.mrb[0].mxu0
      %v1513 = vadd.f32 %v1352, %v1512
      %v1514 = vpop.f32.mrb[0].mxu0
      %1515 = vmatprep.mubr.bf16.mxu0 0
      %1516 = vmatmul.mubr.bf16.gmra.mrb[0].mxu0 %v554
      %v1517 = vpop.f32.mrb[0].mxu0
      %v1518 = vadd.f32 %v1357, %v1517
      %v1519 = vpop.f32.mrb[0].mxu0
      %v1520 = vpop.f32.mrb[0].mxu0
      %v1521 = vadd.f32 %v1360, %v1520
      %v1522 = vpop.f32.mrb[0].mxu0
      %1523 = vmatprep.mubr.bf16.mxu0 0
      %1524 = vmatmul.mubr.bf16.gmra.mrb[0].mxu0 %v557
      %v1525 = vpop.f32.mrb[0].mxu0
      %v1526 = vadd.f32 %v1365, %v1525
      %v1527 = vpop.f32.mrb[0].mxu0
      %v1528 = vpop.f32.mrb[0].mxu0
      %v1529 = vadd.f32 %v1368, %v1528
      %v1530 = vpop.f32.mrb[0].mxu0
      %1531 = vmatprep.mubr.bf16.mxu0 0
      %1532 = vmatmul.mubr.bf16.gmra.mrb[0].mxu0 %v560
      %v1533 = vpop.f32.mrb[0].mxu0
      %v1534 = vadd.f32 %v1373, %v1533
      %v1535 = vpop.f32.mrb[0].mxu0
      %v1536 = vpop.f32.mrb[0].mxu0
      %v1537 = vadd.f32 %v1376, %v1536
      %v1538 = vpop.f32.mrb[0].mxu0
      %1539 = vmatprep.mubr.bf16.mxu0 0
      %1540 = vmatmul.mubr.bf16.gmra.mrb[0].mxu0 %v563
      %v1541 = vpop.f32.mrb[0].mxu0
      %v1542 = vadd.f32 %v1381, %v1541
      %v1543 = vpop.f32.mrb[0].mxu0
      %v1544 = vpop.f32.mrb[0].mxu0
      %v1545 = vadd.f32 %v1384, %v1544
      %v1546 = vpop.f32.mrb[0].mxu0
      %1547 = vmatprep.mubr.bf16.mxu0 0
      %1548 = vmatmul.mubr.bf16.gmra.mrb[0].mxu0 %v566
      %v1549 = vpop.f32.mrb[0].mxu0
      %v1550 = vadd.f32 %v1389, %v1549
      %v1551 = vpop.f32.mrb[0].mxu0
      %v1552 = vpop.f32.mrb[0].mxu0
      %v1553 = vadd.f32 %v1392, %v1552
      %v1554 = vpop.f32.mrb[0].mxu0
      %1555 = vmatprep.mubr.bf16.mxu0 0
      %1556 = vmatmul.mubr.bf16.gmra.mrb[0].mxu0 %v569
      %v1557 = vpop.f32.mrb[0].mxu0
      %v1558 = vadd.f32 %v1397, %v1557
      %v1559 = vpop.f32.mrb[0].mxu0
      %v1560 = vpop.f32.mrb[0].mxu0
      %v1561 = vadd.f32 %v1400, %v1560
      %v1562 = vpop.f32.mrb[0].mxu0
      %1563 = vmatprep.mubr.bf16.mxu0 0
      %1564 = vmatmul.mubr.bf16.gmra.mrb[0].mxu0 %v572
      %v1565 = vpop.f32.mrb[0].mxu0
      %v1566 = vadd.f32 %v1405, %v1565
      %v1567 = vpop.f32.mrb[0].mxu0
      %v1568 = vpop.f32.mrb[0].mxu0
      %v1569 = vadd.f32 %v1408, %v1568
      %v1570 = vpop.f32.mrb[0].mxu0
      %1571 = vdwg.mxu0
      %s1572 = scalar_lea.vmem %s1, 384
      %v1573 = vld [vmem:[%s1572] sm:$0xf]
      %v1574 = vld [vmem:[%s1572 + $0x4] sm:$0xf]
      %v1575 = vld [vmem:[%s1572 + $0x8] sm:$0xf]
      %v1576 = vld [vmem:[%s1572 + $0xc] sm:$0xf]
      %v1577 = vld [vmem:[%s1572 + $0x10] sm:$0xf]
      %v1578 = vld [vmem:[%s1572 + $0x14] sm:$0xf]
      %v1579 = vld [vmem:[%s1572 + $0x18] sm:$0xf]
      %v1580 = vld [vmem:[%s1572 + $0x1c] sm:$0xf]
      %v1581 = vld [vmem:[%s1572 + $0x20] sm:$0xf]
      %v1582 = vld [vmem:[%s1572 + $0x24] sm:$0xf]
      %v1583 = vld [vmem:[%s1572 + $0x28] sm:$0xf]
      %v1584 = vld [vmem:[%s1572 + $0x2c] sm:$0xf]
      %v1585 = vld [vmem:[%s1572 + $0x30] sm:$0xf]
      %v1586 = vld [vmem:[%s1572 + $0x34] sm:$0xf]
      %v1587 = vld [vmem:[%s1572 + $0x38] sm:$0xf]
      %v1588 = vld [vmem:[%s1572 + $0x3c] sm:$0xf]
      %v1589 = vld [vmem:[%s1572 + $0x40] sm:$0xf]
      %v1590 = vld [vmem:[%s1572 + $0x44] sm:$0xf]
      %v1591 = vld [vmem:[%s1572 + $0x48] sm:$0xf]
      %v1592 = vld [vmem:[%s1572 + $0x4c] sm:$0xf]
      %v1593 = vld [vmem:[%s1572 + $0x50] sm:$0xf]
      %v1594 = vld [vmem:[%s1572 + $0x54] sm:$0xf]
      %v1595 = vld [vmem:[%s1572 + $0x58] sm:$0xf]
      %v1596 = vld [vmem:[%s1572 + $0x5c] sm:$0xf]
      %v1597 = vld [vmem:[%s1572 + $0x60] sm:$0xf]
      %v1598 = vld [vmem:[%s1572 + $0x64] sm:$0xf]
      %v1599 = vld [vmem:[%s1572 + $0x68] sm:$0xf]
      %v1600 = vld [vmem:[%s1572 + $0x6c] sm:$0xf]
      %v1601 = vld [vmem:[%s1572 + $0x70] sm:$0xf]
      %v1602 = vld [vmem:[%s1572 + $0x74] sm:$0xf]
      %v1603 = vld [vmem:[%s1572 + $0x78] sm:$0xf]
      %v1604 = vld [vmem:[%s1572 + $0x7c] sm:$0xf]
      %v1605 = vld [vmem:[%s1572 + $0x80] sm:$0xf]
      %v1606 = vld [vmem:[%s1572 + $0x84] sm:$0xf]
      %v1607 = vld [vmem:[%s1572 + $0x88] sm:$0xf]
      %v1608 = vld [vmem:[%s1572 + $0x8c] sm:$0xf]
      %v1609 = vld [vmem:[%s1572 + $0x90] sm:$0xf]
      %v1610 = vld [vmem:[%s1572 + $0x94] sm:$0xf]
      %v1611 = vld [vmem:[%s1572 + $0x98] sm:$0xf]
      %v1612 = vld [vmem:[%s1572 + $0x9c] sm:$0xf]
      %v1613 = vld [vmem:[%s1572 + $0xa0] sm:$0xf]
      %v1614 = vld [vmem:[%s1572 + $0xa4] sm:$0xf]
      %v1615 = vld [vmem:[%s1572 + $0xa8] sm:$0xf]
      %v1616 = vld [vmem:[%s1572 + $0xac] sm:$0xf]
      %v1617 = vld [vmem:[%s1572 + $0xb0] sm:$0xf]
      %v1618 = vld [vmem:[%s1572 + $0xb4] sm:$0xf]
      %v1619 = vld [vmem:[%s1572 + $0xb8] sm:$0xf]
      %v1620 = vld [vmem:[%s1572 + $0xbc] sm:$0xf]
      %v1625 = vunpack.c.l.b16 %v267
      %v1626 = vunpack.c.h.b16 %v267
      %v1627 = vunpack.c.l.b16 %v268
      %v1628 = vunpack.c.l.b16 %v269
      %v1629 = vunpack.c.h.b16 %v269
      %v1630 = vunpack.c.l.b16 %v270
      %v1631 = vpack.c.b16 %v1628, %v1625
      %v1632 = vpack.c.b16 %v1629, %v1626
      %v1633 = vpack.c.b16 %v1630, %v1627
      %v1685 = vunpack.c.l.b16 %v1573
      %v1686 = vunpack.c.l.b16 %v1574
      %v1687 = vunpack.c.l.b16 %v1575
      %v1688 = vunpack.c.l.b16 %v1576
      %v1689 = vunpack.c.l.b16 %v1577
      %v1690 = vunpack.c.l.b16 %v1578
      %v1691 = vunpack.c.l.b16 %v1579
      %v1692 = vunpack.c.l.b16 %v1580
      %v1693 = vunpack.c.l.b16 %v1581
      %v1694 = vunpack.c.l.b16 %v1582
      %v1695 = vunpack.c.l.b16 %v1583
      %v1696 = vunpack.c.l.b16 %v1584
      %v1697 = vunpack.c.l.b16 %v1585
      %v1698 = vunpack.c.l.b16 %v1586
      %v1699 = vunpack.c.l.b16 %v1587
      %v1700 = vunpack.c.l.b16 %v1588
      %v1701 = vunpack.c.l.b16 %v1589
      %v1702 = vunpack.c.l.b16 %v1590
      %v1703 = vunpack.c.l.b16 %v1591
      %v1704 = vunpack.c.l.b16 %v1592
      %v1705 = vunpack.c.l.b16 %v1593
      %v1706 = vunpack.c.l.b16 %v1594
      %v1707 = vunpack.c.l.b16 %v1595
      %v1708 = vunpack.c.l.b16 %v1596
      %v1709 = vunpack.c.l.b16 %v1597
      %v1710 = vunpack.c.l.b16 %v1598
      %v1711 = vunpack.c.l.b16 %v1599
      %v1712 = vunpack.c.l.b16 %v1600
      %v1713 = vunpack.c.l.b16 %v1601
      %v1714 = vunpack.c.l.b16 %v1602
      %v1715 = vunpack.c.l.b16 %v1603
      %v1716 = vunpack.c.l.b16 %v1604
      %v1717 = vunpack.c.l.b16 %v1605
      %v1718 = vunpack.c.l.b16 %v1606
      %v1719 = vunpack.c.l.b16 %v1607
      %v1720 = vunpack.c.l.b16 %v1608
      %v1721 = vunpack.c.l.b16 %v1609
      %v1722 = vunpack.c.l.b16 %v1610
      %v1723 = vunpack.c.l.b16 %v1611
      %v1724 = vunpack.c.l.b16 %v1612
      %v1725 = vunpack.c.l.b16 %v1613
      %v1726 = vunpack.c.l.b16 %v1614
      %v1727 = vunpack.c.l.b16 %v1615
      %v1728 = vunpack.c.l.b16 %v1616
      %v1729 = vunpack.c.l.b16 %v1617
      %v1730 = vunpack.c.l.b16 %v1618
      %v1731 = vunpack.c.l.b16 %v1619
      %v1732 = vunpack.c.l.b16 %v1620
      %v1733 = vpack.c.b16 %v1686, %v1685
      %v1734 = vpack.c.b16 %v1688, %v1687
      %v1735 = vpack.c.b16 %v1690, %v1689
      %v1736 = vpack.c.b16 %v1692, %v1691
      %v1737 = vpack.c.b16 %v1694, %v1693
      %v1738 = vpack.c.b16 %v1696, %v1695
      %v1739 = vpack.c.b16 %v1698, %v1697
      %v1740 = vpack.c.b16 %v1700, %v1699
      %v1741 = vpack.c.b16 %v1702, %v1701
      %v1742 = vpack.c.b16 %v1704, %v1703
      %v1743 = vpack.c.b16 %v1706, %v1705
      %v1744 = vpack.c.b16 %v1708, %v1707
      %v1745 = vpack.c.b16 %v1710, %v1709
      %v1746 = vpack.c.b16 %v1712, %v1711
      %v1747 = vpack.c.b16 %v1714, %v1713
      %v1748 = vpack.c.b16 %v1716, %v1715
      %v1749 = vpack.c.b16 %v1718, %v1717
      %v1750 = vpack.c.b16 %v1720, %v1719
      %v1751 = vpack.c.b16 %v1722, %v1721
      %v1752 = vpack.c.b16 %v1724, %v1723
      %v1753 = vpack.c.b16 %v1726, %v1725
      %v1754 = vpack.c.b16 %v1728, %v1727
      %v1755 = vpack.c.b16 %v1730, %v1729
      %v1756 = vpack.c.b16 %v1732, %v1731
      %1781 = vmatprep.subr.bf16.mxu0 0
      %1782 = vmatpush1.bf16.msra.mxu0 %v1733
      %1783 = vmatprep.subr.bf16.mxu0 0
      %1784 = vmatpush1.bf16.msra.mxu0 %v1734
      %1785 = vmatprep.subr.bf16.mxu0 0
      %1786 = vmatpush1.bf16.msra.mxu0 %v1735
      %1787 = vmatprep.subr.bf16.mxu0 0
      %1788 = vmatpush1.bf16.msra.mxu0 %v1736
      %1789 = vmatprep.subr.bf16.mxu0 0
      %1790 = vmatpush1.bf16.msra.mxu0 %v1737
      %1791 = vmatprep.subr.bf16.mxu0 0
      %1792 = vmatpush1.bf16.msra.mxu0 %v1738
      %1793 = vmatprep.subr.bf16.mxu0 0
      %1794 = vmatpush1.bf16.msra.mxu0 %v1739
      %1795 = vmatprep.subr.bf16.mxu0 0
      %1796 = vmatpush1.bf16.msra.mxu0 %v1740
      %1797 = vmatprep.subr.bf16.mxu0 0
      %1798 = vmatpush1.bf16.msra.mxu0 %v1741
      %1799 = vmatprep.subr.bf16.mxu0 0
      %1800 = vmatpush1.bf16.msra.mxu0 %v1742
      %1801 = vmatprep.subr.bf16.mxu0 0
      %1802 = vmatpush1.bf16.msra.mxu0 %v1743
      %1803 = vmatprep.subr.bf16.mxu0 0
      %1804 = vmatpush1.bf16.msra.mxu0 %v1744
      %1805 = vmatprep.subr.bf16.mxu0 0
      %1806 = vmatpush1.bf16.msra.mxu0 %v1745
      %1807 = vmatprep.subr.bf16.mxu0 0
      %1808 = vmatpush1.bf16.msra.mxu0 %v1746
      %1809 = vmatprep.subr.bf16.mxu0 0
      %1810 = vmatpush1.bf16.msra.mxu0 %v1747
      %1811 = vmatprep.subr.bf16.mxu0 0
      %1812 = vmatpush1.bf16.msra.mxu0 %v1748
      %1813 = vmatprep.mubr.bf16.mxu0 %v532
      %1814 = vmatmul.mubr.bf16.gmra.mrb[0].mxu0 %v531
      %v1815 = vpop.f32.mrb[0].mxu0
      %v1816 = vadd.f32 0.0, %v1815
      %v1817 = vpop.f32.mrb[0].mxu0
      %v1818 = vpop.f32.mrb[0].mxu0
      %v1819 = vadd.f32 0.0, %v1818
      %v1820 = vpop.f32.mrb[0].mxu0
      %1821 = vmatprep.mubr.bf16.mxu0 %v535
      %1822 = vmatmul.mubr.bf16.gmra.mrb[0].mxu0 %v534
      %v1823 = vpop.f32.mrb[0].mxu0
      %v1824 = vadd.f32 0.0, %v1823
      %v1825 = vpop.f32.mrb[0].mxu0
      %v1826 = vpop.f32.mrb[0].mxu0
      %v1827 = vadd.f32 0.0, %v1826
      %v1828 = vpop.f32.mrb[0].mxu0
      %1829 = vmatprep.mubr.bf16.mxu0 %v538
      %1830 = vmatmul.mubr.bf16.gmra.mrb[0].mxu0 %v537
      %v1831 = vpop.f32.mrb[0].mxu0
      %v1832 = vadd.f32 0.0, %v1831
      %v1833 = vpop.f32.mrb[0].mxu0
      %v1834 = vpop.f32.mrb[0].mxu0
      %v1835 = vadd.f32 0.0, %v1834
      %v1836 = vpop.f32.mrb[0].mxu0
      %1837 = vmatprep.mubr.bf16.mxu0 %v541
      %1838 = vmatmul.mubr.bf16.gmra.mrb[0].mxu0 %v540
      %v1839 = vpop.f32.mrb[0].mxu0
      %v1840 = vadd.f32 0.0, %v1839
      %v1841 = vpop.f32.mrb[0].mxu0
      %v1842 = vpop.f32.mrb[0].mxu0
      %v1843 = vadd.f32 0.0, %v1842
      %v1844 = vpop.f32.mrb[0].mxu0
      %1845 = vmatprep.mubr.bf16.mxu0 %v544
      %1846 = vmatmul.mubr.bf16.gmra.mrb[0].mxu0 %v543
      %v1847 = vpop.f32.mrb[0].mxu0
      %v1848 = vadd.f32 0.0, %v1847
      %v1849 = vpop.f32.mrb[0].mxu0
      %v1850 = vpop.f32.mrb[0].mxu0
      %v1851 = vadd.f32 0.0, %v1850
      %v1852 = vpop.f32.mrb[0].mxu0
      %1853 = vmatprep.mubr.bf16.mxu0 %v547
      %1854 = vmatmul.mubr.bf16.gmra.mrb[0].mxu0 %v546
      %v1855 = vpop.f32.mrb[0].mxu0
      %v1856 = vadd.f32 0.0, %v1855
      %v1857 = vpop.f32.mrb[0].mxu0
      %v1858 = vpop.f32.mrb[0].mxu0
      %v1859 = vadd.f32 0.0, %v1858
      %v1860 = vpop.f32.mrb[0].mxu0
      %1861 = vmatprep.mubr.bf16.mxu0 %v550
      %1862 = vmatmul.mubr.bf16.gmra.mrb[0].mxu0 %v549
      %v1863 = vpop.f32.mrb[0].mxu0
      %v1864 = vadd.f32 0.0, %v1863
      %v1865 = vpop.f32.mrb[0].mxu0
      %v1866 = vpop.f32.mrb[0].mxu0
      %v1867 = vadd.f32 0.0, %v1866
      %v1868 = vpop.f32.mrb[0].mxu0
      %1869 = vmatprep.mubr.bf16.mxu0 %v553
      %1870 = vmatmul.mubr.bf16.gmra.mrb[0].mxu0 %v552
      %v1871 = vpop.f32.mrb[0].mxu0
      %v1872 = vadd.f32 0.0, %v1871
      %v1873 = vpop.f32.mrb[0].mxu0
      %v1874 = vpop.f32.mrb[0].mxu0
      %v1875 = vadd.f32 0.0, %v1874
      %v1876 = vpop.f32.mrb[0].mxu0
      %1877 = vmatprep.mubr.bf16.mxu0 %v556
      %1878 = vmatmul.mubr.bf16.gmra.mrb[0].mxu0 %v555
      %v1879 = vpop.f32.mrb[0].mxu0
      %v1880 = vadd.f32 0.0, %v1879
      %v1881 = vpop.f32.mrb[0].mxu0
      %v1882 = vpop.f32.mrb[0].mxu0
      %v1883 = vadd.f32 0.0, %v1882
      %v1884 = vpop.f32.mrb[0].mxu0
      %1885 = vmatprep.mubr.bf16.mxu0 %v559
      %1886 = vmatmul.mubr.bf16.gmra.mrb[0].mxu0 %v558
      %v1887 = vpop.f32.mrb[0].mxu0
      %v1888 = vadd.f32 0.0, %v1887
      %v1889 = vpop.f32.mrb[0].mxu0
      %v1890 = vpop.f32.mrb[0].mxu0
      %v1891 = vadd.f32 0.0, %v1890
      %v1892 = vpop.f32.mrb[0].mxu0
      %1893 = vmatprep.mubr.bf16.mxu0 %v562
      %1894 = vmatmul.mubr.bf16.gmra.mrb[0].mxu0 %v561
      %v1895 = vpop.f32.mrb[0].mxu0
      %v1896 = vadd.f32 0.0, %v1895
      %v1897 = vpop.f32.mrb[0].mxu0
      %v1898 = vpop.f32.mrb[0].mxu0
      %v1899 = vadd.f32 0.0, %v1898
      %v1900 = vpop.f32.mrb[0].mxu0
      %1901 = vmatprep.mubr.bf16.mxu0 %v565
      %1902 = vmatmul.mubr.bf16.gmra.mrb[0].mxu0 %v564
      %v1903 = vpop.f32.mrb[0].mxu0
      %v1904 = vadd.f32 0.0, %v1903
      %v1905 = vpop.f32.mrb[0].mxu0
      %v1906 = vpop.f32.mrb[0].mxu0
      %v1907 = vadd.f32 0.0, %v1906
      %v1908 = vpop.f32.mrb[0].mxu0
      %1909 = vmatprep.mubr.bf16.mxu0 %v568
      %1910 = vmatmul.mubr.bf16.gmra.mrb[0].mxu0 %v567
      %v1911 = vpop.f32.mrb[0].mxu0
      %v1912 = vadd.f32 0.0, %v1911
      %v1913 = vpop.f32.mrb[0].mxu0
      %v1914 = vpop.f32.mrb[0].mxu0
      %v1915 = vadd.f32 0.0, %v1914
      %v1916 = vpop.f32.mrb[0].mxu0
      %1917 = vmatprep.mubr.bf16.mxu0 %v571
      %1918 = vmatmul.mubr.bf16.gmra.mrb[0].mxu0 %v570
      %v1919 = vpop.f32.mrb[0].mxu0
      %v1920 = vadd.f32 0.0, %v1919
      %v1921 = vpop.f32.mrb[0].mxu0
      %v1922 = vpop.f32.mrb[0].mxu0
      %v1923 = vadd.f32 0.0, %v1922
      %v1924 = vpop.f32.mrb[0].mxu0
      %1925 = vmatprep.mubr.bf16.mxu0 %v574
      %1926 = vmatmul.mubr.bf16.gmra.mrb[0].mxu0 %v573
      %v1927 = vpop.f32.mrb[0].mxu0
      %v1928 = vadd.f32 0.0, %v1927
      %v1929 = vpop.f32.mrb[0].mxu0
      %v1930 = vpop.f32.mrb[0].mxu0
      %v1931 = vadd.f32 0.0, %v1930
      %v1932 = vpop.f32.mrb[0].mxu0
      %1933 = vmatprep.mubr.bf16.mxu0 %v1632
      %1934 = vmatmul.mubr.bf16.gmra.mrb[0].mxu0 %v1631
      %v1935 = vpop.f32.mrb[0].mxu0
      %v1936 = vadd.f32 0.0, %v1935
      %v1937 = vpop.f32.mrb[0].mxu0
      %v1938 = vpop.f32.mrb[0].mxu0
      %v1939 = vadd.f32 0.0, %v1938
      %v1940 = vpop.f32.mrb[0].mxu0
      %1941 = vdwg.mxu0
      %1942 = vmatprep.subr.bf16.mxu0 0
      %1943 = vmatpush1.bf16.msra.mxu0 %v1749
      %1944 = vmatprep.subr.bf16.mxu0 0
      %1945 = vmatpush1.bf16.msra.mxu0 %v1750
      %1946 = vmatprep.subr.bf16.mxu0 0
      %1947 = vmatpush1.bf16.msra.mxu0 %v1751
      %1948 = vmatprep.subr.bf16.mxu0 0
      %1949 = vmatpush1.bf16.msra.mxu0 %v1752
      %1950 = vmatprep.subr.bf16.mxu0 0
      %1951 = vmatpush1.bf16.msra.mxu0 %v1753
      %1952 = vmatprep.subr.bf16.mxu0 0
      %1953 = vmatpush1.bf16.msra.mxu0 %v1754
      %1954 = vmatprep.subr.bf16.mxu0 0
      %1955 = vmatpush1.bf16.msra.mxu0 %v1755
      %1956 = vmatprep.subr.bf16.mxu0 0
      %1957 = vmatpush1.bf16.msra.mxu0 %v1756
      %1958 = vmatprep.subr.bf16.mxu0 0
      %1959 = vmatpush1.bf16.msra.mxu0 0
      %1960 = vmatprep.subr.bf16.mxu0 0
      %1961 = vmatpush1.bf16.msra.mxu0 0
      %1962 = vmatprep.subr.bf16.mxu0 0
      %1963 = vmatpush1.bf16.msra.mxu0 0
      %1964 = vmatprep.subr.bf16.mxu0 0
      %1965 = vmatpush1.bf16.msra.mxu0 0
      %1966 = vmatprep.subr.bf16.mxu0 0
      %1967 = vmatpush1.bf16.msra.mxu0 0
      %1968 = vmatprep.subr.bf16.mxu0 0
      %1969 = vmatpush1.bf16.msra.mxu0 0
      %1970 = vmatprep.subr.bf16.mxu0 0
      %1971 = vmatpush1.bf16.msra.mxu0 0
      %1972 = vmatprep.subr.bf16.mxu0 0
      %1973 = vmatpush1.bf16.msra.mxu0 0
      %1974 = vmatprep.mubr.bf16.mxu0 0
      %1975 = vmatmul.mubr.bf16.gmra.mrb[0].mxu0 %v533
      %v1976 = vpop.f32.mrb[0].mxu0
      %v1977 = vadd.f32 %v1816, %v1976
      %v1978 = vpop.f32.mrb[0].mxu0
      %v1979 = vpop.f32.mrb[0].mxu0
      %v1980 = vadd.f32 %v1819, %v1979
      %v1981 = vpop.f32.mrb[0].mxu0
      %1982 = vmatprep.mubr.bf16.mxu0 0
      %1983 = vmatmul.mubr.bf16.gmra.mrb[0].mxu0 %v536
      %v1984 = vpop.f32.mrb[0].mxu0
      %v1985 = vadd.f32 %v1824, %v1984
      %v1986 = vpop.f32.mrb[0].mxu0
      %v1987 = vpop.f32.mrb[0].mxu0
      %v1988 = vadd.f32 %v1827, %v1987
      %v1989 = vpop.f32.mrb[0].mxu0
      %1990 = vmatprep.mubr.bf16.mxu0 0
      %1991 = vmatmul.mubr.bf16.gmra.mrb[0].mxu0 %v539
      %v1992 = vpop.f32.mrb[0].mxu0
      %v1993 = vadd.f32 %v1832, %v1992
      %v1994 = vpop.f32.mrb[0].mxu0
      %v1995 = vpop.f32.mrb[0].mxu0
      %v1996 = vadd.f32 %v1835, %v1995
      %v1997 = vpop.f32.mrb[0].mxu0
      %1998 = vmatprep.mubr.bf16.mxu0 0
      %1999 = vmatmul.mubr.bf16.gmra.mrb[0].mxu0 %v542
      %v2000 = vpop.f32.mrb[0].mxu0
      %v2001 = vadd.f32 %v1840, %v2000
      %v2002 = vpop.f32.mrb[0].mxu0
      %v2003 = vpop.f32.mrb[0].mxu0
      %v2004 = vadd.f32 %v1843, %v2003
      %v2005 = vpop.f32.mrb[0].mxu0
      %2006 = vmatprep.mubr.bf16.mxu0 0
      %2007 = vmatmul.mubr.bf16.gmra.mrb[0].mxu0 %v545
      %v2008 = vpop.f32.mrb[0].mxu0
      %v2009 = vadd.f32 %v1848, %v2008
      %v2010 = vpop.f32.mrb[0].mxu0
      %v2011 = vpop.f32.mrb[0].mxu0
      %v2012 = vadd.f32 %v1851, %v2011
      %v2013 = vpop.f32.mrb[0].mxu0
      %2014 = vmatprep.mubr.bf16.mxu0 0
      %2015 = vmatmul.mubr.bf16.gmra.mrb[0].mxu0 %v548
      %v2016 = vpop.f32.mrb[0].mxu0
      %v2017 = vadd.f32 %v1856, %v2016
      %v2018 = vpop.f32.mrb[0].mxu0
      %v2019 = vpop.f32.mrb[0].mxu0
      %v2020 = vadd.f32 %v1859, %v2019
      %v2021 = vpop.f32.mrb[0].mxu0
      %2022 = vmatprep.mubr.bf16.mxu0 0
      %2023 = vmatmul.mubr.bf16.gmra.mrb[0].mxu0 %v551
      %v2024 = vpop.f32.mrb[0].mxu0
      %v2025 = vadd.f32 %v1864, %v2024
      %v2026 = vpop.f32.mrb[0].mxu0
      %v2027 = vpop.f32.mrb[0].mxu0
      %v2028 = vadd.f32 %v1867, %v2027
      %v2029 = vpop.f32.mrb[0].mxu0
      %2030 = vmatprep.mubr.bf16.mxu0 0
      %2031 = vmatmul.mubr.bf16.gmra.mrb[0].mxu0 %v554
      %v2032 = vpop.f32.mrb[0].mxu0
      %v2033 = vadd.f32 %v1872, %v2032
      %v2034 = vpop.f32.mrb[0].mxu0
      %v2035 = vpop.f32.mrb[0].mxu0
      %v2036 = vadd.f32 %v1875, %v2035
      %v2037 = vpop.f32.mrb[0].mxu0
      %2038 = vmatprep.mubr.bf16.mxu0 0
      %2039 = vmatmul.mubr.bf16.gmra.mrb[0].mxu0 %v557
      %v2040 = vpop.f32.mrb[0].mxu0
      %v2041 = vadd.f32 %v1880, %v2040
      %v2042 = vpop.f32.mrb[0].mxu0
      %v2043 = vpop.f32.mrb[0].mxu0
      %v2044 = vadd.f32 %v1883, %v2043
      %v2045 = vpop.f32.mrb[0].mxu0
      %2046 = vmatprep.mubr.bf16.mxu0 0
      %2047 = vmatmul.mubr.bf16.gmra.mrb[0].mxu0 %v560
      %v2048 = vpop.f32.mrb[0].mxu0
      %v2049 = vadd.f32 %v1888, %v2048
      %v2050 = vpop.f32.mrb[0].mxu0
      %v2051 = vpop.f32.mrb[0].mxu0
      %v2052 = vadd.f32 %v1891, %v2051
      %v2053 = vpop.f32.mrb[0].mxu0
      %2054 = vmatprep.mubr.bf16.mxu0 0
      %2055 = vmatmul.mubr.bf16.gmra.mrb[0].mxu0 %v563
      %v2056 = vpop.f32.mrb[0].mxu0
      %v2057 = vadd.f32 %v1896, %v2056
      %v2058 = vpop.f32.mrb[0].mxu0
      %v2059 = vpop.f32.mrb[0].mxu0
      %v2060 = vadd.f32 %v1899, %v2059
      %v2061 = vpop.f32.mrb[0].mxu0
      %2062 = vmatprep.mubr.bf16.mxu0 0
      %2063 = vmatmul.mubr.bf16.gmra.mrb[0].mxu0 %v566
      %v2064 = vpop.f32.mrb[0].mxu0
      %v2065 = vadd.f32 %v1904, %v2064
      %v2066 = vpop.f32.mrb[0].mxu0
      %v2067 = vpop.f32.mrb[0].mxu0
      %v2068 = vadd.f32 %v1907, %v2067
      %v2069 = vpop.f32.mrb[0].mxu0
      %2070 = vmatprep.mubr.bf16.mxu0 0
      %2071 = vmatmul.mubr.bf16.gmra.mrb[0].mxu0 %v569
      %v2072 = vpop.f32.mrb[0].mxu0
      %v2073 = vadd.f32 %v1912, %v2072
      %v2074 = vpop.f32.mrb[0].mxu0
      %v2075 = vpop.f32.mrb[0].mxu0
      %v2076 = vadd.f32 %v1915, %v2075
      %v2077 = vpop.f32.mrb[0].mxu0
      %2078 = vmatprep.mubr.bf16.mxu0 0
      %2079 = vmatmul.mubr.bf16.gmra.mrb[0].mxu0 %v572
      %v2080 = vpop.f32.mrb[0].mxu0
      %v2081 = vadd.f32 %v1920, %v2080
      %v2082 = vpop.f32.mrb[0].mxu0
      %v2083 = vpop.f32.mrb[0].mxu0
      %v2084 = vadd.f32 %v1923, %v2083
      %v2085 = vpop.f32.mrb[0].mxu0
      %2086 = vmatprep.mubr.bf16.mxu0 0
      %2087 = vmatmul.mubr.bf16.gmra.mrb[0].mxu0 %v575
      %v2088 = vpop.f32.mrb[0].mxu0
      %v2089 = vadd.f32 %v1928, %v2088
      %v2090 = vpop.f32.mrb[0].mxu0
      %v2091 = vpop.f32.mrb[0].mxu0
      %v2092 = vadd.f32 %v1931, %v2091
      %v2093 = vpop.f32.mrb[0].mxu0
      %2094 = vmatprep.mubr.bf16.mxu0 0
      %2095 = vmatmul.mubr.bf16.gmra.mrb[0].mxu0 %v1633
      %v2096 = vpop.f32.mrb[0].mxu0
      %v2097 = vadd.f32 %v1936, %v2096
      %v2098 = vpop.f32.mrb[0].mxu0
      %v2099 = vpop.f32.mrb[0].mxu0
      %v2100 = vadd.f32 %v1939, %v2099
      %v2101 = vpop.f32.mrb[0].mxu0
      %2102 = vdwg.mxu0
      %v2103 = vadd.f32 %v1446, %v1977
      %v2104 = vadd.f32 %v1449, %v1980
      %v2105 = vadd.f32 %v1454, %v1985
      %v2106 = vadd.f32 %v1457, %v1988
      %v2107 = vadd.f32 %v1462, %v1993
      %v2108 = vadd.f32 %v1465, %v1996
      %v2109 = vadd.f32 %v1470, %v2001
      %v2110 = vadd.f32 %v1473, %v2004
      %v2111 = vadd.f32 %v1478, %v2009
      %v2112 = vadd.f32 %v1481, %v2012
      %v2113 = vadd.f32 %v1486, %v2017
      %v2114 = vadd.f32 %v1489, %v2020
      %v2115 = vadd.f32 %v1494, %v2025
      %v2116 = vadd.f32 %v1497, %v2028
      %v2117 = vadd.f32 %v1502, %v2033
      %v2118 = vadd.f32 %v1505, %v2036
      %v2119 = vadd.f32 %v1510, %v2041
      %v2120 = vadd.f32 %v1513, %v2044
      %v2121 = vadd.f32 %v1518, %v2049
      %v2122 = vadd.f32 %v1521, %v2052
      %v2123 = vadd.f32 %v1526, %v2057
      %v2124 = vadd.f32 %v1529, %v2060
      %v2125 = vadd.f32 %v1534, %v2065
      %v2126 = vadd.f32 %v1537, %v2068
      %v2127 = vadd.f32 %v1542, %v2073
      %v2128 = vadd.f32 %v1545, %v2076
      %v2129 = vadd.f32 %v1550, %v2081
      %v2130 = vadd.f32 %v1553, %v2084
      %v2131 = vadd.f32 %v1558, %v2089
      %v2132 = vadd.f32 %v1561, %v2092
      %v2133 = vadd.f32 %v1566, %v2097
      %v2134 = vadd.f32 %v1569, %v2100
      %v2135 = vld [vmem:[%s2] sm:$0x1]
      %v2137 = vlaneseq
      %v2138 = vshrl.u32 %v2137, 7
      %v2139 = vsub.s32 0, %v2138
      %v2140 = vrot.slane %v2135, %v2139
      %v2142 = vmul.f32 %v2103, %v2140
      %v2143 = vmul.f32 %v2104, %v2140
      %v2144 = vmul.f32 %v2105, %v2140
      %v2145 = vmul.f32 %v2106, %v2140
      %v2146 = vmul.f32 %v2107, %v2140
      %v2147 = vmul.f32 %v2108, %v2140
      %v2148 = vmul.f32 %v2109, %v2140
      %v2149 = vmul.f32 %v2110, %v2140
      %v2150 = vmul.f32 %v2111, %v2140
      %v2151 = vmul.f32 %v2112, %v2140
      %v2152 = vmul.f32 %v2113, %v2140
      %v2153 = vmul.f32 %v2114, %v2140
      %v2154 = vmul.f32 %v2115, %v2140
      %v2155 = vmul.f32 %v2116, %v2140
      %v2156 = vmul.f32 %v2117, %v2140
      %v2157 = vmul.f32 %v2118, %v2140
      %v2158 = vmul.f32 %v2119, %v2140
      %v2159 = vmul.f32 %v2120, %v2140
      %v2160 = vmul.f32 %v2121, %v2140
      %v2161 = vmul.f32 %v2122, %v2140
      %v2162 = vmul.f32 %v2123, %v2140
      %v2163 = vmul.f32 %v2124, %v2140
      %v2164 = vmul.f32 %v2125, %v2140
      %v2165 = vmul.f32 %v2126, %v2140
      %v2166 = vmul.f32 %v2127, %v2140
      %v2167 = vmul.f32 %v2128, %v2140
      %v2168 = vmul.f32 %v2129, %v2140
      %v2169 = vmul.f32 %v2130, %v2140
      %v2170 = vmul.f32 %v2131, %v2140
      %v2171 = vmul.f32 %v2132, %v2140
      %v2172 = vmul.f32 %v2133, %v2140
      %v2173 = vmul.f32 %v2134, %v2140
      %v2174 = vld [vmem:[%s3] sm:$0x1]
      %v2176 = vlaneseq
      %v2177 = vshrl.u32 %v2176, 7
      %v2178 = vsub.s32 0, %v2177
      %v2179 = vrot.slane %v2174, %v2178
      %v2181 = vadd.f32 %v2142, %v2179
      %v2182 = vadd.f32 %v2143, %v2179
      %v2183 = vadd.f32 %v2144, %v2179
      %v2184 = vadd.f32 %v2145, %v2179
      %v2185 = vadd.f32 %v2146, %v2179
      %v2186 = vadd.f32 %v2147, %v2179
      %v2187 = vadd.f32 %v2148, %v2179
      %v2188 = vadd.f32 %v2149, %v2179
      %v2189 = vadd.f32 %v2150, %v2179
      %v2190 = vadd.f32 %v2151, %v2179
      %v2191 = vadd.f32 %v2152, %v2179
      %v2192 = vadd.f32 %v2153, %v2179
      %v2193 = vadd.f32 %v2154, %v2179
      %v2194 = vadd.f32 %v2155, %v2179
      %v2195 = vadd.f32 %v2156, %v2179
      %v2196 = vadd.f32 %v2157, %v2179
      %v2197 = vadd.f32 %v2158, %v2179
      %v2198 = vadd.f32 %v2159, %v2179
      %v2199 = vadd.f32 %v2160, %v2179
      %v2200 = vadd.f32 %v2161, %v2179
      %v2201 = vadd.f32 %v2162, %v2179
      %v2202 = vadd.f32 %v2163, %v2179
      %v2203 = vadd.f32 %v2164, %v2179
      %v2204 = vadd.f32 %v2165, %v2179
      %v2205 = vadd.f32 %v2166, %v2179
      %v2206 = vadd.f32 %v2167, %v2179
      %v2207 = vadd.f32 %v2168, %v2179
      %v2208 = vadd.f32 %v2169, %v2179
      %v2209 = vadd.f32 %v2170, %v2179
      %v2210 = vadd.f32 %v2171, %v2179
      %v2211 = vadd.f32 %v2172, %v2179
      %v2212 = vadd.f32 %v2173, %v2179
      %v2213 = vmax.f32 %v2181, 0.0
      %v2214 = vmax.f32 %v2182, 0.0
      %v2215 = vmax.f32 %v2183, 0.0
      %v2216 = vmax.f32 %v2184, 0.0
      %v2217 = vmax.f32 %v2185, 0.0
      %v2218 = vmax.f32 %v2186, 0.0
      %v2219 = vmax.f32 %v2187, 0.0
      %v2220 = vmax.f32 %v2188, 0.0
      %v2221 = vmax.f32 %v2189, 0.0
      %v2222 = vmax.f32 %v2190, 0.0
      %v2223 = vmax.f32 %v2191, 0.0
      %v2224 = vmax.f32 %v2192, 0.0
      %v2225 = vmax.f32 %v2193, 0.0
      %v2226 = vmax.f32 %v2194, 0.0
      %v2227 = vmax.f32 %v2195, 0.0
      %v2228 = vmax.f32 %v2196, 0.0
      %v2229 = vmax.f32 %v2197, 0.0
      %v2230 = vmax.f32 %v2198, 0.0
      %v2231 = vmax.f32 %v2199, 0.0
      %v2232 = vmax.f32 %v2200, 0.0
      %v2233 = vmax.f32 %v2201, 0.0
      %v2234 = vmax.f32 %v2202, 0.0
      %v2235 = vmax.f32 %v2203, 0.0
      %v2236 = vmax.f32 %v2204, 0.0
      %v2237 = vmax.f32 %v2205, 0.0
      %v2238 = vmax.f32 %v2206, 0.0
      %v2239 = vmax.f32 %v2207, 0.0
      %v2240 = vmax.f32 %v2208, 0.0
      %v2241 = vmax.f32 %v2209, 0.0
      %v2242 = vmax.f32 %v2210, 0.0
      %v2243 = vmax.f32 %v2211, 0.0
      %v2244 = vmax.f32 %v2212, 0.0
      %v2245 = vpack.c.bf16 %v2214, %v2213
      %v2246 = vpack.c.bf16 %v2216, %v2215
      %v2247 = vpack.c.bf16 %v2218, %v2217
      %v2248 = vpack.c.bf16 %v2220, %v2219
      %v2249 = vpack.c.bf16 %v2222, %v2221
      %v2250 = vpack.c.bf16 %v2224, %v2223
      %v2251 = vpack.c.bf16 %v2226, %v2225
      %v2252 = vpack.c.bf16 %v2228, %v2227
      %v2253 = vpack.c.bf16 %v2230, %v2229
      %v2254 = vpack.c.bf16 %v2232, %v2231
      %v2255 = vpack.c.bf16 %v2234, %v2233
      %v2256 = vpack.c.bf16 %v2236, %v2235
      %v2257 = vpack.c.bf16 %v2238, %v2237
      %v2258 = vpack.c.bf16 %v2240, %v2239
      %v2259 = vpack.c.bf16 %v2242, %v2241
      %v2260 = vpack.c.bf16 %v2244, %v2243
      %v2277 = vunpack.c.l.b16 %v2245
      %v2278 = vunpack.c.h.b16 %v2245
      %v2279 = vunpack.c.l.b16 %v2246
      %v2280 = vunpack.c.h.b16 %v2246
      %v2281 = vunpack.c.l.b16 %v2247
      %v2282 = vunpack.c.h.b16 %v2247
      %v2283 = vunpack.c.l.b16 %v2248
      %v2284 = vunpack.c.h.b16 %v2248
      %v2285 = vunpack.c.l.b16 %v2249
      %v2286 = vunpack.c.h.b16 %v2249
      %v2287 = vunpack.c.l.b16 %v2250
      %v2288 = vunpack.c.h.b16 %v2250
      %v2289 = vunpack.c.l.b16 %v2251
      %v2290 = vunpack.c.h.b16 %v2251
      %v2291 = vunpack.c.l.b16 %v2252
      %v2292 = vunpack.c.h.b16 %v2252
      %v2293 = vunpack.c.l.b16 %v2253
      %v2294 = vunpack.c.h.b16 %v2253
      %v2295 = vunpack.c.l.b16 %v2254
      %v2296 = vunpack.c.h.b16 %v2254
      %v2297 = vunpack.c.l.b16 %v2255
      %v2298 = vunpack.c.h.b16 %v2255
      %v2299 = vunpack.c.l.b16 %v2256
      %v2300 = vunpack.c.h.b16 %v2256
      %v2301 = vunpack.c.l.b16 %v2257
      %v2302 = vunpack.c.h.b16 %v2257
      %v2303 = vunpack.c.l.b16 %v2258
      %v2304 = vunpack.c.h.b16 %v2258
      %v2305 = vunpack.c.l.b16 %v2259
      %v2306 = vunpack.c.h.b16 %v2259
      %v2307 = vunpack.c.l.b16 %v2260
      %v2308 = vunpack.c.h.b16 %v2260
      %v2309 = vpack.c.b16 %v2277, %v2277
      %v2310 = vpack.c.b16 %v2278, %v2278
      %v2311 = vpack.c.b16 %v2279, %v2279
      %v2312 = vpack.c.b16 %v2280, %v2280
      %v2313 = vpack.c.b16 %v2281, %v2281
      %v2314 = vpack.c.b16 %v2282, %v2282
      %v2315 = vpack.c.b16 %v2283, %v2283
      %v2316 = vpack.c.b16 %v2284, %v2284
      %v2317 = vpack.c.b16 %v2285, %v2285
      %v2318 = vpack.c.b16 %v2286, %v2286
      %v2319 = vpack.c.b16 %v2287, %v2287
      %v2320 = vpack.c.b16 %v2288, %v2288
      %v2321 = vpack.c.b16 %v2289, %v2289
      %v2322 = vpack.c.b16 %v2290, %v2290
      %v2323 = vpack.c.b16 %v2291, %v2291
      %v2324 = vpack.c.b16 %v2292, %v2292
      %v2325 = vpack.c.b16 %v2293, %v2293
      %v2326 = vpack.c.b16 %v2294, %v2294
      %v2327 = vpack.c.b16 %v2295, %v2295
      %v2328 = vpack.c.b16 %v2296, %v2296
      %v2329 = vpack.c.b16 %v2297, %v2297
      %v2330 = vpack.c.b16 %v2298, %v2298
      %v2331 = vpack.c.b16 %v2299, %v2299
      %v2332 = vpack.c.b16 %v2300, %v2300
      %v2333 = vpack.c.b16 %v2301, %v2301
      %v2334 = vpack.c.b16 %v2302, %v2302
      %v2335 = vpack.c.b16 %v2303, %v2303
      %v2336 = vpack.c.b16 %v2304, %v2304
      %v2337 = vpack.c.b16 %v2305, %v2305
      %v2338 = vpack.c.b16 %v2306, %v2306
      %v2339 = vpack.c.b16 %v2307, %v2307
      %v2340 = vpack.c.b16 %v2308, %v2308
      %2373 = vst [vmem:[%s197] sm:$0xf] %v2309
      %2374 = vst [vmem:[%s197 + $0x4] sm:$0xf] %v2310
      %2375 = vst [vmem:[%s197 + $0x8] sm:$0xf] %v2311
      %2376 = vst [vmem:[%s197 + $0xc] sm:$0xf] %v2312
      %2377 = vst [vmem:[%s197 + $0x10] sm:$0xf] %v2313
      %2378 = vst [vmem:[%s197 + $0x14] sm:$0xf] %v2314
      %2379 = vst [vmem:[%s197 + $0x18] sm:$0xf] %v2315
      %2380 = vst [vmem:[%s197 + $0x1c] sm:$0xf] %v2316
      %2381 = vst [vmem:[%s197 + $0x20] sm:$0xf] %v2317
      %2382 = vst [vmem:[%s197 + $0x24] sm:$0xf] %v2318
      %2383 = vst [vmem:[%s197 + $0x28] sm:$0xf] %v2319
      %2384 = vst [vmem:[%s197 + $0x2c] sm:$0xf] %v2320
      %2385 = vst [vmem:[%s197 + $0x30] sm:$0xf] %v2321
      %2386 = vst [vmem:[%s197 + $0x34] sm:$0xf] %v2322
      %2387 = vst [vmem:[%s197 + $0x38] sm:$0xf] %v2323
      %2388 = vst [vmem:[%s197 + $0x3c] sm:$0xf] %v2324
      %2389 = vst [vmem:[%s197 + $0x40] sm:$0xf] %v2325
      %2390 = vst [vmem:[%s197 + $0x44] sm:$0xf] %v2326
      %2391 = vst [vmem:[%s197 + $0x48] sm:$0xf] %v2327
      %2392 = vst [vmem:[%s197 + $0x4c] sm:$0xf] %v2328
      %2393 = vst [vmem:[%s197 + $0x50] sm:$0xf] %v2329
      %2394 = vst [vmem:[%s197 + $0x54] sm:$0xf] %v2330
      %2395 = vst [vmem:[%s197 + $0x58] sm:$0xf] %v2331
      %2396 = vst [vmem:[%s197 + $0x5c] sm:$0xf] %v2332
      %2397 = vst [vmem:[%s197 + $0x60] sm:$0xf] %v2333
      %2398 = vst [vmem:[%s197 + $0x64] sm:$0xf] %v2334
      %2399 = vst [vmem:[%s197 + $0x68] sm:$0xf] %v2335
      %2400 = vst [vmem:[%s197 + $0x6c] sm:$0xf] %v2336
      %2401 = vst [vmem:[%s197 + $0x70] sm:$0xf] %v2337
      %2402 = vst [vmem:[%s197 + $0x74] sm:$0xf] %v2338
      %2403 = vst [vmem:[%s197 + $0x78] sm:$0xf] %v2339
      %2404 = vst [vmem:[%s197 + $0x7c] sm:$0xf] %v2340
      %p2405 = scmp.lt.s32.totalorder %s15, 1
      %s2406 = scalar_select %p2405, %s15, 1
      %s2407 = smul.addr %s2406, 32
      %s2408 = smul.addr %s2407, 4
      %s2409 = scalar_lea.vmem %s4, %s2408
      // Predicated region
      $region37: #{basic_block_forward.6} parent=35 // pred_check
        %p2410 = pneg %p122
      $region38: #{basic_block_forward.6} parent=35 // pred_check_branch
        %2412 = sbr.rel (%p2410) target = $region40
      $region39: #{basic_block_forward.6} parent=35 // pred_region
        _
      $region40: #{basic_block_forward.6} parent=35 // pred_fallthru
        _
    $region36: #{basic_block_forward.6} parent=5 // pred_fallthru
      _
    %p2413 = scmp.le.s32.totalorder 2, %s10
    // Predicated region
    $region41: #{basic_block_forward.6} parent=5 // pred_check
      %p2414 = pneg %p2413
    $region42: #{basic_block_forward.6} parent=5 // pred_check_branch
      %2416 = sbr.rel (%p2414) target = $region44
    $region43: #{basic_block_forward.6} parent=5 // pred_region
      %s2417 = ssub.s32 %s10, 2
      // Predicated region
      $region45: #{basic_block_forward.6} parent=43 // pred_check
        %p2418 = pneg %p128
      $region46: #{basic_block_forward.6} parent=43 // pred_check_branch
        %2420 = sbr.rel (%p2418) target = $region48
      $region47: #{basic_block_forward.6} parent=43 // pred_region
        %p2421 = scmp.lt.s32.totalorder %s16, 1
        %s2422 = scalar_select %p2421, %s16, 1
        %s2423 = smul.addr %s2422, 32
        %s2424 = smul.addr %s2423, 4
        %s2425 = scalar_lea.vmem %s4, %s2424
      $region48: #{basic_block_forward.6} parent=43 // pred_fallthru
        _
    $region44: #{basic_block_forward.6} parent=5 // pred_fallthru
      _
  $region6: #{basic_block_forward.6} parent=0 // loop_footer
    %s14 = sadd.s32 1, %s10
  $region7: #{basic_block_forward.6} parent=0 // loop_footer_branch
    %9 = sbr.rel target = $region3
  $region8: #{basic_block_forward.6} parent=0 // loop_exit
    _

// kernel: basic_block_forward.7
$region0: #{basic_block_forward.7}
  #allocation0 [shape = 'u32[]', space=smem, size = 0x4, offset = 0x4, fixed_abs, tag = 'smem constant byte address 0x4 - core index']
  #allocation1 [shape = 'u32[144,128]{1,0:T(1,128)}', space=vmem, size = 0x12000, scoped, tag = 'internal scratch']
  %s0 = inlined_call_operand.vmem [shape: bf16[2,18,16,384], index: 0, kind: input, shape index: {}]
  %s1 = inlined_call_operand.vmem [shape: bf16[3,384,128], index: 1, kind: input, shape index: {}]
  %s2 = inlined_call_operand.vmem [shape: f32[1,128], index: 2, kind: input, shape index: {}]
  %s3 = inlined_call_operand.vmem [shape: f32[1,128], index: 3, kind: input, shape index: {}]
  %s4 = inlined_call_operand.vmem [shape: bf16[2,256,128], index: 4, kind: output, shape index: {}]
  %s5 = sld [smem:[#allocation0]]
  $region49: #{basic_block_forward.7} parent=0
    _
  %s7 = ssub.s32 1, %s5
  %s8 = scalar_select 0, %s7, %s5
  loop: start=0, step=1, limit=4
  $region2: #{basic_block_forward.7} parent=0 // loop_pre_header
    _
  $region3: #{basic_block_forward.7} parent=0 // loop_header
    %s10 = sphi 0, %s14
    %p11 = scmp.ge.s32.totalorder %s10, 4
    %s20 = sphi 0, %s22
    %s23 = sphi 0, %s20
    %s24 = sphi 0, %s23
    %s40 = sphi 0, %s24
    %s44 = sphi 0, %s44
    %s46 = sphi 0, %s44
    %s47 = sphi 0, %s46
    %s61 = sphi 0, %s47
    %s65 = sphi 0, %s65
    %s67 = sphi 0, %s65
    %s68 = sphi 0, %s67
    %s82 = sphi 0, %s68
    %s86 = sphi 0, %s86
    %s88 = sphi 0, %s86
    %s89 = sphi 0, %s88
    %s103 = sphi 0, %s89
    %s109 = sphi 0, %s111
    %s112 = sphi 0, %s109
    %s113 = sphi 0, %s112
    %s129 = sphi 0, %s113
  $region4: #{basic_block_forward.7} parent=0 // loop_header_branch
    %13 = sbr.rel (%p11) target = $region8
  $region5: #{basic_block_forward.7} parent=0 // loop_body
    %s15 = ssub.s32 %s10, 1
    %s16 = ssub.s32 %s10, 2
    %s17 = sadd.s32 %s10, 1
    %s18 = ssub.s32 %s10, %s17
    %p19 = scmp.eq.s32.totalorder %s18, 0
    %s21 = sadd.s32 %s20, 1
    %s22 = scalar_select %p19, %s20, %s21
    %p25 = pneg %p19
    %p26 = scmp.eq.s32.totalorder %s10, 1
    %p27 = por %p25, %p26
    %p28 = scmp.ne.s32.totalorder %s20, %s23
    %p29 = scmp.eq.s32.totalorder %s10, 0
    %p30 = por %p28, %p29
    %p31 = scmp.ne.s32.totalorder %s20, %s23
    %p32 = scmp.eq.s32.totalorder %s15, 1
    %p33 = por %p31, %p32
    %p34 = scmp.ne.s32.totalorder %s23, %s24
    %p35 = scmp.eq.s32.totalorder %s15, 0
    %p36 = por %p34, %p35
    %p37 = scmp.ne.s32.totalorder %s23, %s24
    %p38 = scmp.eq.s32.totalorder %s16, 1
    %p39 = por %p37, %p38
    %p41 = scmp.ne.s32.totalorder %s24, %s40
    %p42 = scmp.eq.s32.totalorder %s16, 0
    %p43 = por %p41, %p42
    %s45 = sadd.s32 %s44, 1
    %p48 = scmp.eq.s32.totalorder %s10, 1
    %p49 = scmp.ne.s32.totalorder %s44, %s46
    %p50 = scmp.eq.s32.totalorder %s10, 0
    %p51 = por %p49, %p50
    %p52 = scmp.ne.s32.totalorder %s44, %s46
    %p53 = scmp.eq.s32.totalorder %s15, 1
    %p54 = por %p52, %p53
    %p55 = scmp.ne.s32.totalorder %s46, %s47
    %p56 = scmp.eq.s32.totalorder %s15, 0
    %p57 = por %p55, %p56
    %p58 = scmp.ne.s32.totalorder %s46, %s47
    %p59 = scmp.eq.s32.totalorder %s16, 1
    %p60 = por %p58, %p59
    %p62 = scmp.ne.s32.totalorder %s47, %s61
    %p63 = scmp.eq.s32.totalorder %s16, 0
    %p64 = por %p62, %p63
    %s66 = sadd.s32 %s65, 1
    %p69 = scmp.eq.s32.totalorder %s10, 1
    %p70 = scmp.ne.s32.totalorder %s65, %s67
    %p71 = scmp.eq.s32.totalorder %s10, 0
    %p72 = por %p70, %p71
    %p73 = scmp.ne.s32.totalorder %s65, %s67
    %p74 = scmp.eq.s32.totalorder %s15, 1
    %p75 = por %p73, %p74
    %p76 = scmp.ne.s32.totalorder %s67, %s68
    %p77 = scmp.eq.s32.totalorder %s15, 0
    %p78 = por %p76, %p77
    %p79 = scmp.ne.s32.totalorder %s67, %s68
    %p80 = scmp.eq.s32.totalorder %s16, 1
    %p81 = por %p79, %p80
    %p83 = scmp.ne.s32.totalorder %s68, %s82
    %p84 = scmp.eq.s32.totalorder %s16, 0
    %p85 = por %p83, %p84
    %s87 = sadd.s32 %s86, 1
    %p90 = scmp.eq.s32.totalorder %s10, 1
    %p91 = scmp.ne.s32.totalorder %s86, %s88
    %p92 = scmp.eq.s32.totalorder %s10, 0
    %p93 = por %p91, %p92
    %p94 = scmp.ne.s32.totalorder %s86, %s88
    %p95 = scmp.eq.s32.totalorder %s15, 1
    %p96 = por %p94, %p95
    %p97 = scmp.ne.s32.totalorder %s88, %s89
    %p98 = scmp.eq.s32.totalorder %s15, 0
    %p99 = por %p97, %p98
    %p100 = scmp.ne.s32.totalorder %s88, %s89
    %p101 = scmp.eq.s32.totalorder %s16, 1
    %p102 = por %p100, %p101
    %p104 = scmp.ne.s32.totalorder %s89, %s103
    %p105 = scmp.eq.s32.totalorder %s16, 0
    %p106 = por %p104, %p105
    %s107 = ssub.s32 %s10, %s17
    %p108 = scmp.eq.s32.totalorder %s107, 0
    %s110 = sadd.s32 %s109, 1
    %s111 = scalar_select %p108, %s109, %s110
    %p114 = pneg %p108
    %p115 = scmp.eq.s32.totalorder %s10, 1
    %p116 = por %p114, %p115
    %p117 = scmp.ne.s32.totalorder %s109, %s112
    %p118 = scmp.eq.s32.totalorder %s10, 0
    %p119 = por %p117, %p118
    %p120 = scmp.ne.s32.totalorder %s109, %s112
    %p121 = scmp.eq.s32.totalorder %s15, 1
    %p122 = por %p120, %p121
    %p123 = scmp.ne.s32.totalorder %s112, %s113
    %p124 = scmp.eq.s32.totalorder %s15, 0
    %p125 = por %p123, %p124
    %p126 = scmp.ne.s32.totalorder %s112, %s113
    %p127 = scmp.eq.s32.totalorder %s16, 1
    %p128 = por %p126, %p127
    %p130 = scmp.ne.s32.totalorder %s113, %s129
    %p131 = scmp.eq.s32.totalorder %s16, 0
    %p132 = por %p130, %p131
    %p133 = scmp.le.s32.totalorder 1, %s10
    %p134 = scmp.lt.s32.totalorder %s10, 3
    %p135 = pnand %p133, %p134
    %p136 = pneg %p135
    // Predicated region
    $region9: #{basic_block_forward.7} parent=5 // pred_check
      _
    $region10: #{basic_block_forward.7} parent=5 // pred_check_branch
      %138 = sbr.rel (%p135) target = $region12
    $region11: #{basic_block_forward.7} parent=5 // pred_region
      %s139 = ssub.s32 %s10, 1
      // Predicated region
      $region13: #{basic_block_forward.7} parent=11 // pred_check
        %p140 = pneg %p57
      $region14: #{basic_block_forward.7} parent=11 // pred_check_branch
        %142 = sbr.rel (%p140) target = $region16
      $region15: #{basic_block_forward.7} parent=11 // pred_region
        _
      $region16: #{basic_block_forward.7} parent=11 // pred_fallthru
        _
      // Predicated region
      $region17: #{basic_block_forward.7} parent=11 // pred_check
        %p143 = pneg %p78
      $region18: #{basic_block_forward.7} parent=11 // pred_check_branch
        %145 = sbr.rel (%p143) target = $region20
      $region19: #{basic_block_forward.7} parent=11 // pred_region
        _
      $region20: #{basic_block_forward.7} parent=11 // pred_fallthru
        _
      // Predicated region
      $region21: #{basic_block_forward.7} parent=11 // pred_check
        %p146 = pneg %p99
      $region22: #{basic_block_forward.7} parent=11 // pred_check_branch
        %148 = sbr.rel (%p146) target = $region24
      $region23: #{basic_block_forward.7} parent=11 // pred_region
        _
      $region24: #{basic_block_forward.7} parent=11 // pred_fallthru
        _
    $region12: #{basic_block_forward.7} parent=5 // pred_fallthru
      _
    %p149 = scmp.lt.s32.totalorder %s10, 2
    // Predicated region
    $region25: #{basic_block_forward.7} parent=5 // pred_check
      %p150 = pneg %p149
    $region26: #{basic_block_forward.7} parent=5 // pred_check_branch
      %152 = sbr.rel (%p150) target = $region28
    $region27: #{basic_block_forward.7} parent=5 // pred_region
      // Predicated region
      $region29: #{basic_block_forward.7} parent=27 // pred_check
        %p153 = pneg %p30
      $region30: #{basic_block_forward.7} parent=27 // pred_check_branch
        %155 = sbr.rel (%p153) target = $region32
      $region31: #{basic_block_forward.7} parent=27 // pred_region
        %p156 = scmp.lt.s32.totalorder %s10, 1
        %s157 = scalar_select %p156, %s10, 1
        %s158 = smul.addr %s157, 108
        %s159 = smul.addr %s158, 4
        %s160 = scalar_lea.vmem %s0, %s159
      $region32: #{basic_block_forward.7} parent=27 // pred_fallthru
        _
    $region28: #{basic_block_forward.7} parent=5 // pred_fallthru
      _
    %p161 = scmp.le.s32.totalorder 1, %s10
    %p162 = scmp.lt.s32.totalorder %s10, 3
    %p163 = pnand %p161, %p162
    %p164 = pneg %p163
    // Predicated region
    $region33: #{basic_block_forward.7} parent=5 // pred_check
      _
    $region34: #{basic_block_forward.7} parent=5 // pred_check_branch
      %166 = sbr.rel (%p163) target = $region36
    $region35: #{basic_block_forward.7} parent=5 // pred_region
      %s167 = ssub.s32 %s10, 1
      %p168 = scmp.lt.s32.totalorder %s15, 1
      %s169 = scalar_select %p168, %s15, 1
      %s170 = smul.addr %s169, 108
      %s171 = smul.addr %s170, 4
      %s172 = scalar_lea.vmem %s0, %s171
      %p173 = pneg %p36
      %p174 = pneg %p33
      %p175 = pneg %p57
      %p176 = pneg %p54
      %p177 = pneg %p78
      %p178 = pneg %p75
      %p179 = pneg %p99
      %p180 = pneg %p96
      %p181 = pneg %p125
      %p182 = pneg %p122
      %p183 = scmp.lt.s32.totalorder %s15, 1
      %s184 = scalar_select %p183, %s15, 1
      %s185 = smul.addr %s184, 32
      %s186 = smul.addr %s185, 4
      %s187 = scalar_lea.vmem %s4, %s186
      %p188 = scmp.lt.s32.totalorder %s15, 1
      %s189 = scalar_select %p188, %s15, 1
      %s190 = smul.addr %s189, 108
      %s191 = smul.addr %s190, 4
      %s192 = scalar_lea.vmem %s0, %s191
      %p193 = scmp.lt.s32.totalorder %s15, 1
      %s194 = scalar_select %p193, %s15, 1
      %s195 = smul.addr %s194, 32
      %s196 = smul.addr %s195, 4
      %s197 = scalar_lea.vmem %s4, %s196
      %v199 = vld [vmem:[%s192] sm:$0xff]
      %v200 = vld [vmem:[%s192 + $0x8] sm:$0xf]
      %v201 = vld [vmem:[%s192 + $0xc] sm:$0xff]
      %v202 = vld [vmem:[%s192 + $0x14] sm:$0xf]
      %v203 = vld [vmem:[%s192 + $0x18] sm:$0xff]
      %v204 = vld [vmem:[%s192 + $0x20] sm:$0xf]
      %v205 = vld [vmem:[%s192 + $0x24] sm:$0xff]
      %v206 = vld [vmem:[%s192 + $0x2c] sm:$0xf]
      %v207 = vld [vmem:[%s192 + $0x30] sm:$0xff]
      %v208 = vld [vmem:[%s192 + $0x38] sm:$0xf]
      %v209 = vld [vmem:[%s192 + $0x3c] sm:$0xff]
      %v210 = vld [vmem:[%s192 + $0x44] sm:$0xf]
      %v211 = vld [vmem:[%s192 + $0x48] sm:$0xff]
      %v212 = vld [vmem:[%s192 + $0x50] sm:$0xf]
      %v213 = vld [vmem:[%s192 + $0x54] sm:$0xff]
      %v214 = vld [vmem:[%s192 + $0x5c] sm:$0xf]
      %v215 = vld [vmem:[%s192 + $0x60] sm:$0xff]
      %v216 = vld [vmem:[%s192 + $0x68] sm:$0xf]
      %v217 = vld [vmem:[%s192 + $0x6c] sm:$0xff]
      %v218 = vld [vmem:[%s192 + $0x74] sm:$0xf]
      %v219 = vld [vmem:[%s192 + $0x78] sm:$0xff]
      %v220 = vld [vmem:[%s192 + $0x80] sm:$0xf]
      %v221 = vld [vmem:[%s192 + $0x84] sm:$0xff]
      %v222 = vld [vmem:[%s192 + $0x8c] sm:$0xf]
      %v223 = vld [vmem:[%s192 + $0x90] sm:$0xff]
      %v224 = vld [vmem:[%s192 + $0x98] sm:$0xf]
      %v225 = vld [vmem:[%s192 + $0x9c] sm:$0xff]
      %v226 = vld [vmem:[%s192 + $0xa4] sm:$0xf]
      %v227 = vld [vmem:[%s192 + $0xa8] sm:$0xff]
      %v228 = vld [vmem:[%s192 + $0xb0] sm:$0xf]
      %v229 = vld [vmem:[%s192 + $0xb4] sm:$0xff]
      %v230 = vld [vmem:[%s192 + $0xbc] sm:$0xf]
      %v231 = vld [vmem:[%s192 + $0xc0] sm:$0xff]
      %v232 = vld [vmem:[%s192 + $0xc8] sm:$0xf]
      %v233 = vld [vmem:[%s192 + $0xcc] sm:$0xff]
      %v234 = vld [vmem:[%s192 + $0xd4] sm:$0xf]
      %v235 = vld [vmem:[%s192 + $0xd8] sm:$0xff]
      %v236 = vld [vmem:[%s192 + $0xe0] sm:$0xf]
      %v237 = vld [vmem:[%s192 + $0xe4] sm:$0xff]
      %v238 = vld [vmem:[%s192 + $0xec] sm:$0xf]
      %v239 = vld [vmem:[%s192 + $0xf0] sm:$0xff]
      %v240 = vld [vmem:[%s192 + $0xf8] sm:$0xf]
      %v241 = vld [vmem:[%s192 + $0xfc] sm:$0xff]
      %v242 = vld [vmem:[%s192 + $0x104] sm:$0xf]
      %v243 = vld [vmem:[%s192 + $0x108] sm:$0xff]
      %v244 = vld [vmem:[%s192 + $0x110] sm:$0xf]
      %v245 = vld [vmem:[%s192 + $0x114] sm:$0xff]
      %v246 = vld [vmem:[%s192 + $0x11c] sm:$0xf]
      %v247 = vld [vmem:[%s192 + $0x120] sm:$0xff]
      %v248 = vld [vmem:[%s192 + $0x128] sm:$0xf]
      %v249 = vld [vmem:[%s192 + $0x12c] sm:$0xff]
      %v250 = vld [vmem:[%s192 + $0x134] sm:$0xf]
      %v251 = vld [vmem:[%s192 + $0x138] sm:$0xff]
      %v252 = vld [vmem:[%s192 + $0x140] sm:$0xf]
      %v253 = vld [vmem:[%s192 + $0x144] sm:$0xff]
      %v254 = vld [vmem:[%s192 + $0x14c] sm:$0xf]
      %v255 = vld [vmem:[%s192 + $0x150] sm:$0xff]
      %v256 = vld [vmem:[%s192 + $0x158] sm:$0xf]
      %v257 = vld [vmem:[%s192 + $0x15c] sm:$0xff]
      %v258 = vld [vmem:[%s192 + $0x164] sm:$0xf]
      %v259 = vld [vmem:[%s192 + $0x168] sm:$0xff]
      %v260 = vld [vmem:[%s192 + $0x170] sm:$0xf]
      %v261 = vld [vmem:[%s192 + $0x174] sm:$0xff]
      %v262 = vld [vmem:[%s192 + $0x17c] sm:$0xf]
      %v263 = vld [vmem:[%s192 + $0x180] sm:$0xff]
      %v264 = vld [vmem:[%s192 + $0x188] sm:$0xf]
      %v265 = vld [vmem:[%s192 + $0x18c] sm:$0xff]
      %v266 = vld [vmem:[%s192 + $0x194] sm:$0xf]
      %v267 = vld [vmem:[%s192 + $0x198] sm:$0xff]
      %v268 = vld [vmem:[%s192 + $0x1a0] sm:$0xf]
      %v269 = vld [vmem:[%s192 + $0x1a4] sm:$0xff]
      %v270 = vld [vmem:[%s192 + $0x1ac] sm:$0xf]
      %v271 = vld [vmem:[%s1] sm:$0xf]
      %v272 = vld [vmem:[%s1 + $0x4] sm:$0xf]
      %v273 = vld [vmem:[%s1 + $0x8] sm:$0xf]
      %v274 = vld [vmem:[%s1 + $0xc] sm:$0xf]
      %v275 = vld [vmem:[%s1 + $0x10] sm:$0xf]
      %v276 = vld [vmem:[%s1 + $0x14] sm:$0xf]
      %v277 = vld [vmem:[%s1 + $0x18] sm:$0xf]
      %v278 = vld [vmem:[%s1 + $0x1c] sm:$0xf]
      %v279 = vld [vmem:[%s1 + $0x20] sm:$0xf]
      %v280 = vld [vmem:[%s1 + $0x24] sm:$0xf]
      %v281 = vld [vmem:[%s1 + $0x28] sm:$0xf]
      %v282 = vld [vmem:[%s1 + $0x2c] sm:$0xf]
      %v283 = vld [vmem:[%s1 + $0x30] sm:$0xf]
      %v284 = vld [vmem:[%s1 + $0x34] sm:$0xf]
      %v285 = vld [vmem:[%s1 + $0x38] sm:$0xf]
      %v286 = vld [vmem:[%s1 + $0x3c] sm:$0xf]
      %v287 = vld [vmem:[%s1 + $0x40] sm:$0xf]
      %v288 = vld [vmem:[%s1 + $0x44] sm:$0xf]
      %v289 = vld [vmem:[%s1 + $0x48] sm:$0xf]
      %v290 = vld [vmem:[%s1 + $0x4c] sm:$0xf]
      %v291 = vld [vmem:[%s1 + $0x50] sm:$0xf]
      %v292 = vld [vmem:[%s1 + $0x54] sm:$0xf]
      %v293 = vld [vmem:[%s1 + $0x58] sm:$0xf]
      %v294 = vld [vmem:[%s1 + $0x5c] sm:$0xf]
      %v295 = vld [vmem:[%s1 + $0x60] sm:$0xf]
      %v296 = vld [vmem:[%s1 + $0x64] sm:$0xf]
      %v297 = vld [vmem:[%s1 + $0x68] sm:$0xf]
      %v298 = vld [vmem:[%s1 + $0x6c] sm:$0xf]
      %v299 = vld [vmem:[%s1 + $0x70] sm:$0xf]
      %v300 = vld [vmem:[%s1 + $0x74] sm:$0xf]
      %v301 = vld [vmem:[%s1 + $0x78] sm:$0xf]
      %v302 = vld [vmem:[%s1 + $0x7c] sm:$0xf]
      %v303 = vld [vmem:[%s1 + $0x80] sm:$0xf]
      %v304 = vld [vmem:[%s1 + $0x84] sm:$0xf]
      %v305 = vld [vmem:[%s1 + $0x88] sm:$0xf]
      %v306 = vld [vmem:[%s1 + $0x8c] sm:$0xf]
      %v307 = vld [vmem:[%s1 + $0x90] sm:$0xf]
      %v308 = vld [vmem:[%s1 + $0x94] sm:$0xf]
      %v309 = vld [vmem:[%s1 + $0x98] sm:$0xf]
      %v310 = vld [vmem:[%s1 + $0x9c] sm:$0xf]
      %v311 = vld [vmem:[%s1 + $0xa0] sm:$0xf]
      %v312 = vld [vmem:[%s1 + $0xa4] sm:$0xf]
      %v313 = vld [vmem:[%s1 + $0xa8] sm:$0xf]
      %v314 = vld [vmem:[%s1 + $0xac] sm:$0xf]
      %v315 = vld [vmem:[%s1 + $0xb0] sm:$0xf]
      %v316 = vld [vmem:[%s1 + $0xb4] sm:$0xf]
      %v317 = vld [vmem:[%s1 + $0xb8] sm:$0xf]
      %v318 = vld [vmem:[%s1 + $0xbc] sm:$0xf]
      %s319 = scalar_lea.vmem %s1, 192
      %v320 = vld [vmem:[%s319] sm:$0xf]
      %v321 = vld [vmem:[%s319 + $0x4] sm:$0xf]
      %v322 = vld [vmem:[%s319 + $0x8] sm:$0xf]
      %v323 = vld [vmem:[%s319 + $0xc] sm:$0xf]
      %v324 = vld [vmem:[%s319 + $0x10] sm:$0xf]
      %v325 = vld [vmem:[%s319 + $0x14] sm:$0xf]
      %v326 = vld [vmem:[%s319 + $0x18] sm:$0xf]
      %v327 = vld [vmem:[%s319 + $0x1c] sm:$0xf]
      %v328 = vld [vmem:[%s319 + $0x20] sm:$0xf]
      %v329 = vld [vmem:[%s319 + $0x24] sm:$0xf]
      %v330 = vld [vmem:[%s319 + $0x28] sm:$0xf]
      %v331 = vld [vmem:[%s319 + $0x2c] sm:$0xf]
      %v332 = vld [vmem:[%s319 + $0x30] sm:$0xf]
      %v333 = vld [vmem:[%s319 + $0x34] sm:$0xf]
      %v334 = vld [vmem:[%s319 + $0x38] sm:$0xf]
      %v335 = vld [vmem:[%s319 + $0x3c] sm:$0xf]
      %v336 = vld [vmem:[%s319 + $0x40] sm:$0xf]
      %v337 = vld [vmem:[%s319 + $0x44] sm:$0xf]
      %v338 = vld [vmem:[%s319 + $0x48] sm:$0xf]
      %v339 = vld [vmem:[%s319 + $0x4c] sm:$0xf]
      %v340 = vld [vmem:[%s319 + $0x50] sm:$0xf]
      %v341 = vld [vmem:[%s319 + $0x54] sm:$0xf]
      %v342 = vld [vmem:[%s319 + $0x58] sm:$0xf]
      %v343 = vld [vmem:[%s319 + $0x5c] sm:$0xf]
      %v344 = vld [vmem:[%s319 + $0x60] sm:$0xf]
      %v345 = vld [vmem:[%s319 + $0x64] sm:$0xf]
      %v346 = vld [vmem:[%s319 + $0x68] sm:$0xf]
      %v347 = vld [vmem:[%s319 + $0x6c] sm:$0xf]
      %v348 = vld [vmem:[%s319 + $0x70] sm:$0xf]
      %v349 = vld [vmem:[%s319 + $0x74] sm:$0xf]
      %v350 = vld [vmem:[%s319 + $0x78] sm:$0xf]
      %v351 = vld [vmem:[%s319 + $0x7c] sm:$0xf]
      %v352 = vld [vmem:[%s319 + $0x80] sm:$0xf]
      %v353 = vld [vmem:[%s319 + $0x84] sm:$0xf]
      %v354 = vld [vmem:[%s319 + $0x88] sm:$0xf]
      %v355 = vld [vmem:[%s319 + $0x8c] sm:$0xf]
      %v356 = vld [vmem:[%s319 + $0x90] sm:$0xf]
      %v357 = vld [vmem:[%s319 + $0x94] sm:$0xf]
      %v358 = vld [vmem:[%s319 + $0x98] sm:$0xf]
      %v359 = vld [vmem:[%s319 + $0x9c] sm:$0xf]
      %v360 = vld [vmem:[%s319 + $0xa0] sm:$0xf]
      %v361 = vld [vmem:[%s319 + $0xa4] sm:$0xf]
      %v362 = vld [vmem:[%s319 + $0xa8] sm:$0xf]
      %v363 = vld [vmem:[%s319 + $0xac] sm:$0xf]
      %v364 = vld [vmem:[%s319 + $0xb0] sm:$0xf]
      %v365 = vld [vmem:[%s319 + $0xb4] sm:$0xf]
      %v366 = vld [vmem:[%s319 + $0xb8] sm:$0xf]
      %v367 = vld [vmem:[%s319 + $0xbc] sm:$0xf]
      %v432 = vunpack.c.l.b16 %v203
      %v433 = vunpack.c.h.b16 %v203
      %v434 = vunpack.c.l.b16 %v204
      %v435 = vunpack.c.l.b16 %v205
      %v436 = vunpack.c.h.b16 %v205
      %v437 = vunpack.c.l.b16 %v206
      %v438 = vunpack.c.l.b16 %v207
      %v439 = vunpack.c.h.b16 %v207
      %v440 = vunpack.c.l.b16 %v208
      %v441 = vunpack.c.l.b16 %v209
      %v442 = vunpack.c.h.b16 %v209
      %v443 = vunpack.c.l.b16 %v210
      %v444 = vunpack.c.l.b16 %v211
      %v445 = vunpack.c.h.b16 %v211
      %v446 = vunpack.c.l.b16 %v212
      %v447 = vunpack.c.l.b16 %v213
      %v448 = vunpack.c.h.b16 %v213
      %v449 = vunpack.c.l.b16 %v214
      %v450 = vunpack.c.l.b16 %v215
      %v451 = vunpack.c.h.b16 %v215
      %v452 = vunpack.c.l.b16 %v216
      %v453 = vunpack.c.l.b16 %v217
      %v454 = vunpack.c.h.b16 %v217
      %v455 = vunpack.c.l.b16 %v218
      %v456 = vunpack.c.l.b16 %v219
      %v457 = vunpack.c.h.b16 %v219
      %v458 = vunpack.c.l.b16 %v220
      %v459 = vunpack.c.l.b16 %v221
      %v460 = vunpack.c.h.b16 %v221
      %v461 = vunpack.c.l.b16 %v222
      %v462 = vunpack.c.l.b16 %v223
      %v463 = vunpack.c.h.b16 %v223
      %v464 = vunpack.c.l.b16 %v224
      %v465 = vunpack.c.l.b16 %v225
      %v466 = vunpack.c.h.b16 %v225
      %v467 = vunpack.c.l.b16 %v226
      %v468 = vunpack.c.l.b16 %v227
      %v469 = vunpack.c.h.b16 %v227
      %v470 = vunpack.c.l.b16 %v228
      %v471 = vunpack.c.l.b16 %v229
      %v472 = vunpack.c.h.b16 %v229
      %v473 = vunpack.c.l.b16 %v230
      %v474 = vunpack.c.l.b16 %v231
      %v475 = vunpack.c.h.b16 %v231
      %v476 = vunpack.c.l.b16 %v232
      %v477 = vunpack.c.l.b16 %v233
      %v478 = vunpack.c.h.b16 %v233
      %v479 = vunpack.c.l.b16 %v234
      %v480 = vunpack.c.l.b16 %v235
      %v481 = vunpack.c.h.b16 %v235
      %v482 = vunpack.c.l.b16 %v236
      %v483 = vunpack.c.l.b16 %v237
      %v484 = vunpack.c.h.b16 %v237
      %v485 = vunpack.c.l.b16 %v238
      %v486 = vunpack.c.l.b16 %v239
      %v487 = vunpack.c.h.b16 %v239
      %v488 = vunpack.c.l.b16 %v240
      %v489 = vunpack.c.l.b16 %v241
      %v490 = vunpack.c.h.b16 %v241
      %v491 = vunpack.c.l.b16 %v242
      %v492 = vunpack.c.l.b16 %v243
      %v493 = vunpack.c.h.b16 %v243
      %v494 = vunpack.c.l.b16 %v244
      %v495 = vunpack.c.l.b16 %v245
      %v496 = vunpack.c.h.b16 %v245
      %v497 = vunpack.c.l.b16 %v246
      %v498 = vunpack.c.l.b16 %v247
      %v499 = vunpack.c.h.b16 %v247
      %v500 = vunpack.c.l.b16 %v248
      %v501 = vunpack.c.l.b16 %v249
      %v502 = vunpack.c.h.b16 %v249
      %v503 = vunpack.c.l.b16 %v250
      %v504 = vunpack.c.l.b16 %v251
      %v505 = vunpack.c.h.b16 %v251
      %v506 = vunpack.c.l.b16 %v252
      %v507 = vunpack.c.l.b16 %v253
      %v508 = vunpack.c.h.b16 %v253
      %v509 = vunpack.c.l.b16 %v254
      %v510 = vunpack.c.l.b16 %v255
      %v511 = vunpack.c.h.b16 %v255
      %v512 = vunpack.c.l.b16 %v256
      %v513 = vunpack.c.l.b16 %v257
      %v514 = vunpack.c.h.b16 %v257
      %v515 = vunpack.c.l.b16 %v258
      %v516 = vunpack.c.l.b16 %v259
      %v517 = vunpack.c.h.b16 %v259
      %v518 = vunpack.c.l.b16 %v260
      %v519 = vunpack.c.l.b16 %v261
      %v520 = vunpack.c.h.b16 %v261
      %v521 = vunpack.c.l.b16 %v262
      %v522 = vunpack.c.l.b16 %v263
      %v523 = vunpack.c.h.b16 %v263
      %v524 = vunpack.c.l.b16 %v264
      %v525 = vunpack.c.l.b16 %v265
      %v526 = vunpack.c.h.b16 %v265
      %v527 = vunpack.c.l.b16 %v266
      %v528 = vpack.c.b16 %v435, %v432
      %v529 = vpack.c.b16 %v436, %v433
      %v530 = vpack.c.b16 %v437, %v434
      %v531 = vpack.c.b16 %v441, %v438
      %v532 = vpack.c.b16 %v442, %v439
      %v533 = vpack.c.b16 %v443, %v440
      %v534 = vpack.c.b16 %v447, %v444
      %v535 = vpack.c.b16 %v448, %v445
      %v536 = vpack.c.b16 %v449, %v446
      %v537 = vpack.c.b16 %v453, %v450
      %v538 = vpack.c.b16 %v454, %v451
      %v539 = vpack.c.b16 %v455, %v452
      %v540 = vpack.c.b16 %v459, %v456
      %v541 = vpack.c.b16 %v460, %v457
      %v542 = vpack.c.b16 %v461, %v458
      %v543 = vpack.c.b16 %v465, %v462
      %v544 = vpack.c.b16 %v466, %v463
      %v545 = vpack.c.b16 %v467, %v464
      %v546 = vpack.c.b16 %v471, %v468
      %v547 = vpack.c.b16 %v472, %v469
      %v548 = vpack.c.b16 %v473, %v470
      %v549 = vpack.c.b16 %v477, %v474
      %v550 = vpack.c.b16 %v478, %v475
      %v551 = vpack.c.b16 %v479, %v476
      %v552 = vpack.c.b16 %v483, %v480
      %v553 = vpack.c.b16 %v484, %v481
      %v554 = vpack.c.b16 %v485, %v482
      %v555 = vpack.c.b16 %v489, %v486
      %v556 = vpack.c.b16 %v490, %v487
      %v557 = vpack.c.b16 %v491, %v488
      %v558 = vpack.c.b16 %v495, %v492
      %v559 = vpack.c.b16 %v496, %v493
      %v560 = vpack.c.b16 %v497, %v494
      %v561 = vpack.c.b16 %v501, %v498
      %v562 = vpack.c.b16 %v502, %v499
      %v563 = vpack.c.b16 %v503, %v500
      %v564 = vpack.c.b16 %v507, %v504
      %v565 = vpack.c.b16 %v508, %v505
      %v566 = vpack.c.b16 %v509, %v506
      %v567 = vpack.c.b16 %v513, %v510
      %v568 = vpack.c.b16 %v514, %v511
      %v569 = vpack.c.b16 %v515, %v512
      %v570 = vpack.c.b16 %v519, %v516
      %v571 = vpack.c.b16 %v520, %v517
      %v572 = vpack.c.b16 %v521, %v518
      %v573 = vpack.c.b16 %v525, %v522
      %v574 = vpack.c.b16 %v526, %v523
      %v575 = vpack.c.b16 %v527, %v524
      %v672 = vunpack.c.l.b16 %v320
      %v673 = vunpack.c.l.b16 %v321
      %v674 = vunpack.c.l.b16 %v322
      %v675 = vunpack.c.l.b16 %v323
      %v676 = vunpack.c.l.b16 %v324
      %v677 = vunpack.c.l.b16 %v325
      %v678 = vunpack.c.l.b16 %v326
      %v679 = vunpack.c.l.b16 %v327
      %v680 = vunpack.c.l.b16 %v328
      %v681 = vunpack.c.l.b16 %v329
      %v682 = vunpack.c.l.b16 %v330
      %v683 = vunpack.c.l.b16 %v331
      %v684 = vunpack.c.l.b16 %v332
      %v685 = vunpack.c.l.b16 %v333
      %v686 = vunpack.c.l.b16 %v334
      %v687 = vunpack.c.l.b16 %v335
      %v688 = vunpack.c.l.b16 %v336
      %v689 = vunpack.c.l.b16 %v337
      %v690 = vunpack.c.l.b16 %v338
      %v691 = vunpack.c.l.b16 %v339
      %v692 = vunpack.c.l.b16 %v340
      %v693 = vunpack.c.l.b16 %v341
      %v694 = vunpack.c.l.b16 %v342
      %v695 = vunpack.c.l.b16 %v343
      %v696 = vunpack.c.l.b16 %v344
      %v697 = vunpack.c.l.b16 %v345
      %v698 = vunpack.c.l.b16 %v346
      %v699 = vunpack.c.l.b16 %v347
      %v700 = vunpack.c.l.b16 %v348
      %v701 = vunpack.c.l.b16 %v349
      %v702 = vunpack.c.l.b16 %v350
      %v703 = vunpack.c.l.b16 %v351
      %v704 = vunpack.c.l.b16 %v352
      %v705 = vunpack.c.l.b16 %v353
      %v706 = vunpack.c.l.b16 %v354
      %v707 = vunpack.c.l.b16 %v355
      %v708 = vunpack.c.l.b16 %v356
      %v709 = vunpack.c.l.b16 %v357
      %v710 = vunpack.c.l.b16 %v358
      %v711 = vunpack.c.l.b16 %v359
      %v712 = vunpack.c.l.b16 %v360
      %v713 = vunpack.c.l.b16 %v361
      %v714 = vunpack.c.l.b16 %v362
      %v715 = vunpack.c.l.b16 %v363
      %v716 = vunpack.c.l.b16 %v364
      %v717 = vunpack.c.l.b16 %v365
      %v718 = vunpack.c.l.b16 %v366
      %v719 = vunpack.c.l.b16 %v367
      %v720 = vpack.c.b16 %v673, %v672
      %v721 = vpack.c.b16 %v675, %v674
      %v722 = vpack.c.b16 %v677, %v676
      %v723 = vpack.c.b16 %v679, %v678
      %v724 = vpack.c.b16 %v681, %v680
      %v725 = vpack.c.b16 %v683, %v682
      %v726 = vpack.c.b16 %v685, %v684
      %v727 = vpack.c.b16 %v687, %v686
      %v728 = vpack.c.b16 %v689, %v688
      %v729 = vpack.c.b16 %v691, %v690
      %v730 = vpack.c.b16 %v693, %v692
      %v731 = vpack.c.b16 %v695, %v694
      %v732 = vpack.c.b16 %v697, %v696
      %v733 = vpack.c.b16 %v699, %v698
      %v734 = vpack.c.b16 %v701, %v700
      %v735 = vpack.c.b16 %v703, %v702
      %v736 = vpack.c.b16 %v705, %v704
      %v737 = vpack.c.b16 %v707, %v706
      %v738 = vpack.c.b16 %v709, %v708
      %v739 = vpack.c.b16 %v711, %v710
      %v740 = vpack.c.b16 %v713, %v712
      %v741 = vpack.c.b16 %v715, %v714
      %v742 = vpack.c.b16 %v717, %v716
      %v743 = vpack.c.b16 %v719, %v718
      %768 = vmatprep.subr.bf16.mxu0 0
      %769 = vmatpush1.bf16.msra.mxu0 %v720
      %770 = vmatprep.subr.bf16.mxu0 0
      %771 = vmatpush1.bf16.msra.mxu0 %v721
      %772 = vmatprep.subr.bf16.mxu0 0
      %773 = vmatpush1.bf16.msra.mxu0 %v722
      %774 = vmatprep.subr.bf16.mxu0 0
      %775 = vmatpush1.bf16.msra.mxu0 %v723
      %776 = vmatprep.subr.bf16.mxu0 0
      %777 = vmatpush1.bf16.msra.mxu0 %v724
      %778 = vmatprep.subr.bf16.mxu0 0
      %779 = vmatpush1.bf16.msra.mxu0 %v725
      %780 = vmatprep.subr.bf16.mxu0 0
      %781 = vmatpush1.bf16.msra.mxu0 %v726
      %782 = vmatprep.subr.bf16.mxu0 0
      %783 = vmatpush1.bf16.msra.mxu0 %v727
      %784 = vmatprep.subr.bf16.mxu0 0
      %785 = vmatpush1.bf16.msra.mxu0 %v728
      %786 = vmatprep.subr.bf16.mxu0 0
      %787 = vmatpush1.bf16.msra.mxu0 %v729
      %788 = vmatprep.subr.bf16.mxu0 0
      %789 = vmatpush1.bf16.msra.mxu0 %v730
      %790 = vmatprep.subr.bf16.mxu0 0
      %791 = vmatpush1.bf16.msra.mxu0 %v731
      %792 = vmatprep.subr.bf16.mxu0 0
      %793 = vmatpush1.bf16.msra.mxu0 %v732
      %794 = vmatprep.subr.bf16.mxu0 0
      %795 = vmatpush1.bf16.msra.mxu0 %v733
      %796 = vmatprep.subr.bf16.mxu0 0
      %797 = vmatpush1.bf16.msra.mxu0 %v734
      %798 = vmatprep.subr.bf16.mxu0 0
      %799 = vmatpush1.bf16.msra.mxu0 %v735
      %800 = vmatprep.mubr.bf16.mxu0 %v529
      %801 = vmatmul.mubr.bf16.gmra.mrb[0].mxu0 %v528
      %v802 = vpop.f32.mrb[0].mxu0
      %v803 = vadd.f32 0.0, %v802
      %v804 = vpop.f32.mrb[0].mxu0
      %v805 = vpop.f32.mrb[0].mxu0
      %v806 = vadd.f32 0.0, %v805
      %v807 = vpop.f32.mrb[0].mxu0
      %808 = vmatprep.mubr.bf16.mxu0 %v532
      %809 = vmatmul.mubr.bf16.gmra.mrb[0].mxu0 %v531
      %v810 = vpop.f32.mrb[0].mxu0
      %v811 = vadd.f32 0.0, %v810
      %v812 = vpop.f32.mrb[0].mxu0
      %v813 = vpop.f32.mrb[0].mxu0
      %v814 = vadd.f32 0.0, %v813
      %v815 = vpop.f32.mrb[0].mxu0
      %816 = vmatprep.mubr.bf16.mxu0 %v535
      %817 = vmatmul.mubr.bf16.gmra.mrb[0].mxu0 %v534
      %v818 = vpop.f32.mrb[0].mxu0
      %v819 = vadd.f32 0.0, %v818
      %v820 = vpop.f32.mrb[0].mxu0
      %v821 = vpop.f32.mrb[0].mxu0
      %v822 = vadd.f32 0.0, %v821
      %v823 = vpop.f32.mrb[0].mxu0
      %824 = vmatprep.mubr.bf16.mxu0 %v538
      %825 = vmatmul.mubr.bf16.gmra.mrb[0].mxu0 %v537
      %v826 = vpop.f32.mrb[0].mxu0
      %v827 = vadd.f32 0.0, %v826
      %v828 = vpop.f32.mrb[0].mxu0
      %v829 = vpop.f32.mrb[0].mxu0
      %v830 = vadd.f32 0.0, %v829
      %v831 = vpop.f32.mrb[0].mxu0
      %832 = vmatprep.mubr.bf16.mxu0 %v541
      %833 = vmatmul.mubr.bf16.gmra.mrb[0].mxu0 %v540
      %v834 = vpop.f32.mrb[0].mxu0
      %v835 = vadd.f32 0.0, %v834
      %v836 = vpop.f32.mrb[0].mxu0
      %v837 = vpop.f32.mrb[0].mxu0
      %v838 = vadd.f32 0.0, %v837
      %v839 = vpop.f32.mrb[0].mxu0
      %840 = vmatprep.mubr.bf16.mxu0 %v544
      %841 = vmatmul.mubr.bf16.gmra.mrb[0].mxu0 %v543
      %v842 = vpop.f32.mrb[0].mxu0
      %v843 = vadd.f32 0.0, %v842
      %v844 = vpop.f32.mrb[0].mxu0
      %v845 = vpop.f32.mrb[0].mxu0
      %v846 = vadd.f32 0.0, %v845
      %v847 = vpop.f32.mrb[0].mxu0
      %848 = vmatprep.mubr.bf16.mxu0 %v547
      %849 = vmatmul.mubr.bf16.gmra.mrb[0].mxu0 %v546
      %v850 = vpop.f32.mrb[0].mxu0
      %v851 = vadd.f32 0.0, %v850
      %v852 = vpop.f32.mrb[0].mxu0
      %v853 = vpop.f32.mrb[0].mxu0
      %v854 = vadd.f32 0.0, %v853
      %v855 = vpop.f32.mrb[0].mxu0
      %856 = vmatprep.mubr.bf16.mxu0 %v550
      %857 = vmatmul.mubr.bf16.gmra.mrb[0].mxu0 %v549
      %v858 = vpop.f32.mrb[0].mxu0
      %v859 = vadd.f32 0.0, %v858
      %v860 = vpop.f32.mrb[0].mxu0
      %v861 = vpop.f32.mrb[0].mxu0
      %v862 = vadd.f32 0.0, %v861
      %v863 = vpop.f32.mrb[0].mxu0
      %864 = vmatprep.mubr.bf16.mxu0 %v553
      %865 = vmatmul.mubr.bf16.gmra.mrb[0].mxu0 %v552
      %v866 = vpop.f32.mrb[0].mxu0
      %v867 = vadd.f32 0.0, %v866
      %v868 = vpop.f32.mrb[0].mxu0
      %v869 = vpop.f32.mrb[0].mxu0
      %v870 = vadd.f32 0.0, %v869
      %v871 = vpop.f32.mrb[0].mxu0
      %872 = vmatprep.mubr.bf16.mxu0 %v556
      %873 = vmatmul.mubr.bf16.gmra.mrb[0].mxu0 %v555
      %v874 = vpop.f32.mrb[0].mxu0
      %v875 = vadd.f32 0.0, %v874
      %v876 = vpop.f32.mrb[0].mxu0
      %v877 = vpop.f32.mrb[0].mxu0
      %v878 = vadd.f32 0.0, %v877
      %v879 = vpop.f32.mrb[0].mxu0
      %880 = vmatprep.mubr.bf16.mxu0 %v559
      %881 = vmatmul.mubr.bf16.gmra.mrb[0].mxu0 %v558
      %v882 = vpop.f32.mrb[0].mxu0
      %v883 = vadd.f32 0.0, %v882
      %v884 = vpop.f32.mrb[0].mxu0
      %v885 = vpop.f32.mrb[0].mxu0
      %v886 = vadd.f32 0.0, %v885
      %v887 = vpop.f32.mrb[0].mxu0
      %888 = vmatprep.mubr.bf16.mxu0 %v562
      %889 = vmatmul.mubr.bf16.gmra.mrb[0].mxu0 %v561
      %v890 = vpop.f32.mrb[0].mxu0
      %v891 = vadd.f32 0.0, %v890
      %v892 = vpop.f32.mrb[0].mxu0
      %v893 = vpop.f32.mrb[0].mxu0
      %v894 = vadd.f32 0.0, %v893
      %v895 = vpop.f32.mrb[0].mxu0
      %896 = vmatprep.mubr.bf16.mxu0 %v565
      %897 = vmatmul.mubr.bf16.gmra.mrb[0].mxu0 %v564
      %v898 = vpop.f32.mrb[0].mxu0
      %v899 = vadd.f32 0.0, %v898
      %v900 = vpop.f32.mrb[0].mxu0
      %v901 = vpop.f32.mrb[0].mxu0
      %v902 = vadd.f32 0.0, %v901
      %v903 = vpop.f32.mrb[0].mxu0
      %904 = vmatprep.mubr.bf16.mxu0 %v568
      %905 = vmatmul.mubr.bf16.gmra.mrb[0].mxu0 %v567
      %v906 = vpop.f32.mrb[0].mxu0
      %v907 = vadd.f32 0.0, %v906
      %v908 = vpop.f32.mrb[0].mxu0
      %v909 = vpop.f32.mrb[0].mxu0
      %v910 = vadd.f32 0.0, %v909
      %v911 = vpop.f32.mrb[0].mxu0
      %912 = vmatprep.mubr.bf16.mxu0 %v571
      %913 = vmatmul.mubr.bf16.gmra.mrb[0].mxu0 %v570
      %v914 = vpop.f32.mrb[0].mxu0
      %v915 = vadd.f32 0.0, %v914
      %v916 = vpop.f32.mrb[0].mxu0
      %v917 = vpop.f32.mrb[0].mxu0
      %v918 = vadd.f32 0.0, %v917
      %v919 = vpop.f32.mrb[0].mxu0
      %920 = vmatprep.mubr.bf16.mxu0 %v574
      %921 = vmatmul.mubr.bf16.gmra.mrb[0].mxu0 %v573
      %v922 = vpop.f32.mrb[0].mxu0
      %v923 = vadd.f32 0.0, %v922
      %v924 = vpop.f32.mrb[0].mxu0
      %v925 = vpop.f32.mrb[0].mxu0
      %v926 = vadd.f32 0.0, %v925
      %v927 = vpop.f32.mrb[0].mxu0
      %928 = vdwg.mxu0
      %929 = vmatprep.subr.bf16.mxu0 0
      %930 = vmatpush1.bf16.msra.mxu0 %v736
      %931 = vmatprep.subr.bf16.mxu0 0
      %932 = vmatpush1.bf16.msra.mxu0 %v737
      %933 = vmatprep.subr.bf16.mxu0 0
      %934 = vmatpush1.bf16.msra.mxu0 %v738
      %935 = vmatprep.subr.bf16.mxu0 0
      %936 = vmatpush1.bf16.msra.mxu0 %v739
      %937 = vmatprep.subr.bf16.mxu0 0
      %938 = vmatpush1.bf16.msra.mxu0 %v740
      %939 = vmatprep.subr.bf16.mxu0 0
      %940 = vmatpush1.bf16.msra.mxu0 %v741
      %941 = vmatprep.subr.bf16.mxu0 0
      %942 = vmatpush1.bf16.msra.mxu0 %v742
      %943 = vmatprep.subr.bf16.mxu0 0
      %944 = vmatpush1.bf16.msra.mxu0 %v743
      %945 = vmatprep.subr.bf16.mxu0 0
      %946 = vmatpush1.bf16.msra.mxu0 0
      %947 = vmatprep.subr.bf16.mxu0 0
      %948 = vmatpush1.bf16.msra.mxu0 0
      %949 = vmatprep.subr.bf16.mxu0 0
      %950 = vmatpush1.bf16.msra.mxu0 0
      %951 = vmatprep.subr.bf16.mxu0 0
      %952 = vmatpush1.bf16.msra.mxu0 0
      %953 = vmatprep.subr.bf16.mxu0 0
      %954 = vmatpush1.bf16.msra.mxu0 0
      %955 = vmatprep.subr.bf16.mxu0 0
      %956 = vmatpush1.bf16.msra.mxu0 0
      %957 = vmatprep.subr.bf16.mxu0 0
      %958 = vmatpush1.bf16.msra.mxu0 0
      %959 = vmatprep.subr.bf16.mxu0 0
      %960 = vmatpush1.bf16.msra.mxu0 0
      %961 = vmatprep.mubr.bf16.mxu0 0
      %962 = vmatmul.mubr.bf16.gmra.mrb[0].mxu0 %v530
      %v963 = vpop.f32.mrb[0].mxu0
      %v964 = vadd.f32 %v803, %v963
      %v965 = vpop.f32.mrb[0].mxu0
      %v966 = vpop.f32.mrb[0].mxu0
      %v967 = vadd.f32 %v806, %v966
      %v968 = vpop.f32.mrb[0].mxu0
      %969 = vmatprep.mubr.bf16.mxu0 0
      %970 = vmatmul.mubr.bf16.gmra.mrb[0].mxu0 %v533
      %v971 = vpop.f32.mrb[0].mxu0
      %v972 = vadd.f32 %v811, %v971
      %v973 = vpop.f32.mrb[0].mxu0
      %v974 = vpop.f32.mrb[0].mxu0
      %v975 = vadd.f32 %v814, %v974
      %v976 = vpop.f32.mrb[0].mxu0
      %977 = vmatprep.mubr.bf16.mxu0 0
      %978 = vmatmul.mubr.bf16.gmra.mrb[0].mxu0 %v536
      %v979 = vpop.f32.mrb[0].mxu0
      %v980 = vadd.f32 %v819, %v979
      %v981 = vpop.f32.mrb[0].mxu0
      %v982 = vpop.f32.mrb[0].mxu0
      %v983 = vadd.f32 %v822, %v982
      %v984 = vpop.f32.mrb[0].mxu0
      %985 = vmatprep.mubr.bf16.mxu0 0
      %986 = vmatmul.mubr.bf16.gmra.mrb[0].mxu0 %v539
      %v987 = vpop.f32.mrb[0].mxu0
      %v988 = vadd.f32 %v827, %v987
      %v989 = vpop.f32.mrb[0].mxu0
      %v990 = vpop.f32.mrb[0].mxu0
      %v991 = vadd.f32 %v830, %v990
      %v992 = vpop.f32.mrb[0].mxu0
      %993 = vmatprep.mubr.bf16.mxu0 0
      %994 = vmatmul.mubr.bf16.gmra.mrb[0].mxu0 %v542
      %v995 = vpop.f32.mrb[0].mxu0
      %v996 = vadd.f32 %v835, %v995
      %v997 = vpop.f32.mrb[0].mxu0
      %v998 = vpop.f32.mrb[0].mxu0
      %v999 = vadd.f32 %v838, %v998
      %v1000 = vpop.f32.mrb[0].mxu0
      %1001 = vmatprep.mubr.bf16.mxu0 0
      %1002 = vmatmul.mubr.bf16.gmra.mrb[0].mxu0 %v545
      %v1003 = vpop.f32.mrb[0].mxu0
      %v1004 = vadd.f32 %v843, %v1003
      %v1005 = vpop.f32.mrb[0].mxu0
      %v1006 = vpop.f32.mrb[0].mxu0
      %v1007 = vadd.f32 %v846, %v1006
      %v1008 = vpop.f32.mrb[0].mxu0
      %1009 = vmatprep.mubr.bf16.mxu0 0
      %1010 = vmatmul.mubr.bf16.gmra.mrb[0].mxu0 %v548
      %v1011 = vpop.f32.mrb[0].mxu0
      %v1012 = vadd.f32 %v851, %v1011
      %v1013 = vpop.f32.mrb[0].mxu0
      %v1014 = vpop.f32.mrb[0].mxu0
      %v1015 = vadd.f32 %v854, %v1014
      %v1016 = vpop.f32.mrb[0].mxu0
      %1017 = vmatprep.mubr.bf16.mxu0 0
      %1018 = vmatmul.mubr.bf16.gmra.mrb[0].mxu0 %v551
      %v1019 = vpop.f32.mrb[0].mxu0
      %v1020 = vadd.f32 %v859, %v1019
      %v1021 = vpop.f32.mrb[0].mxu0
      %v1022 = vpop.f32.mrb[0].mxu0
      %v1023 = vadd.f32 %v862, %v1022
      %v1024 = vpop.f32.mrb[0].mxu0
      %1025 = vmatprep.mubr.bf16.mxu0 0
      %1026 = vmatmul.mubr.bf16.gmra.mrb[0].mxu0 %v554
      %v1027 = vpop.f32.mrb[0].mxu0
      %v1028 = vadd.f32 %v867, %v1027
      %v1029 = vpop.f32.mrb[0].mxu0
      %v1030 = vpop.f32.mrb[0].mxu0
      %v1031 = vadd.f32 %v870, %v1030
      %v1032 = vpop.f32.mrb[0].mxu0
      %1033 = vmatprep.mubr.bf16.mxu0 0
      %1034 = vmatmul.mubr.bf16.gmra.mrb[0].mxu0 %v557
      %v1035 = vpop.f32.mrb[0].mxu0
      %v1036 = vadd.f32 %v875, %v1035
      %v1037 = vpop.f32.mrb[0].mxu0
      %v1038 = vpop.f32.mrb[0].mxu0
      %v1039 = vadd.f32 %v878, %v1038
      %v1040 = vpop.f32.mrb[0].mxu0
      %1041 = vmatprep.mubr.bf16.mxu0 0
      %1042 = vmatmul.mubr.bf16.gmra.mrb[0].mxu0 %v560
      %v1043 = vpop.f32.mrb[0].mxu0
      %v1044 = vadd.f32 %v883, %v1043
      %v1045 = vpop.f32.mrb[0].mxu0
      %v1046 = vpop.f32.mrb[0].mxu0
      %v1047 = vadd.f32 %v886, %v1046
      %v1048 = vpop.f32.mrb[0].mxu0
      %1049 = vmatprep.mubr.bf16.mxu0 0
      %1050 = vmatmul.mubr.bf16.gmra.mrb[0].mxu0 %v563
      %v1051 = vpop.f32.mrb[0].mxu0
      %v1052 = vadd.f32 %v891, %v1051
      %v1053 = vpop.f32.mrb[0].mxu0
      %v1054 = vpop.f32.mrb[0].mxu0
      %v1055 = vadd.f32 %v894, %v1054
      %v1056 = vpop.f32.mrb[0].mxu0
      %1057 = vmatprep.mubr.bf16.mxu0 0
      %1058 = vmatmul.mubr.bf16.gmra.mrb[0].mxu0 %v566
      %v1059 = vpop.f32.mrb[0].mxu0
      %v1060 = vadd.f32 %v899, %v1059
      %v1061 = vpop.f32.mrb[0].mxu0
      %v1062 = vpop.f32.mrb[0].mxu0
      %v1063 = vadd.f32 %v902, %v1062
      %v1064 = vpop.f32.mrb[0].mxu0
      %1065 = vmatprep.mubr.bf16.mxu0 0
      %1066 = vmatmul.mubr.bf16.gmra.mrb[0].mxu0 %v569
      %v1067 = vpop.f32.mrb[0].mxu0
      %v1068 = vadd.f32 %v907, %v1067
      %v1069 = vpop.f32.mrb[0].mxu0
      %v1070 = vpop.f32.mrb[0].mxu0
      %v1071 = vadd.f32 %v910, %v1070
      %v1072 = vpop.f32.mrb[0].mxu0
      %1073 = vmatprep.mubr.bf16.mxu0 0
      %1074 = vmatmul.mubr.bf16.gmra.mrb[0].mxu0 %v572
      %v1075 = vpop.f32.mrb[0].mxu0
      %v1076 = vadd.f32 %v915, %v1075
      %v1077 = vpop.f32.mrb[0].mxu0
      %v1078 = vpop.f32.mrb[0].mxu0
      %v1079 = vadd.f32 %v918, %v1078
      %v1080 = vpop.f32.mrb[0].mxu0
      %1081 = vmatprep.mubr.bf16.mxu0 0
      %1082 = vmatmul.mubr.bf16.gmra.mrb[0].mxu0 %v575
      %v1083 = vpop.f32.mrb[0].mxu0
      %v1084 = vadd.f32 %v923, %v1083
      %v1085 = vpop.f32.mrb[0].mxu0
      %v1086 = vpop.f32.mrb[0].mxu0
      %v1087 = vadd.f32 %v926, %v1086
      %v1088 = vpop.f32.mrb[0].mxu0
      %1089 = vdwg.mxu0
      %v1094 = vunpack.c.l.b16 %v199
      %v1095 = vunpack.c.h.b16 %v199
      %v1096 = vunpack.c.l.b16 %v200
      %v1097 = vunpack.c.l.b16 %v201
      %v1098 = vunpack.c.h.b16 %v201
      %v1099 = vunpack.c.l.b16 %v202
      %v1100 = vpack.c.b16 %v1097, %v1094
      %v1101 = vpack.c.b16 %v1098, %v1095
      %v1102 = vpack.c.b16 %v1099, %v1096
      %v1154 = vunpack.c.l.b16 %v271
      %v1155 = vunpack.c.l.b16 %v272
      %v1156 = vunpack.c.l.b16 %v273
      %v1157 = vunpack.c.l.b16 %v274
      %v1158 = vunpack.c.l.b16 %v275
      %v1159 = vunpack.c.l.b16 %v276
      %v1160 = vunpack.c.l.b16 %v277
      %v1161 = vunpack.c.l.b16 %v278
      %v1162 = vunpack.c.l.b16 %v279
      %v1163 = vunpack.c.l.b16 %v280
      %v1164 = vunpack.c.l.b16 %v281
      %v1165 = vunpack.c.l.b16 %v282
      %v1166 = vunpack.c.l.b16 %v283
      %v1167 = vunpack.c.l.b16 %v284
      %v1168 = vunpack.c.l.b16 %v285
      %v1169 = vunpack.c.l.b16 %v286
      %v1170 = vunpack.c.l.b16 %v287
      %v1171 = vunpack.c.l.b16 %v288
      %v1172 = vunpack.c.l.b16 %v289
      %v1173 = vunpack.c.l.b16 %v290
      %v1174 = vunpack.c.l.b16 %v291
      %v1175 = vunpack.c.l.b16 %v292
      %v1176 = vunpack.c.l.b16 %v293
      %v1177 = vunpack.c.l.b16 %v294
      %v1178 = vunpack.c.l.b16 %v295
      %v1179 = vunpack.c.l.b16 %v296
      %v1180 = vunpack.c.l.b16 %v297
      %v1181 = vunpack.c.l.b16 %v298
      %v1182 = vunpack.c.l.b16 %v299
      %v1183 = vunpack.c.l.b16 %v300
      %v1184 = vunpack.c.l.b16 %v301
      %v1185 = vunpack.c.l.b16 %v302
      %v1186 = vunpack.c.l.b16 %v303
      %v1187 = vunpack.c.l.b16 %v304
      %v1188 = vunpack.c.l.b16 %v305
      %v1189 = vunpack.c.l.b16 %v306
      %v1190 = vunpack.c.l.b16 %v307
      %v1191 = vunpack.c.l.b16 %v308
      %v1192 = vunpack.c.l.b16 %v309
      %v1193 = vunpack.c.l.b16 %v310
      %v1194 = vunpack.c.l.b16 %v311
      %v1195 = vunpack.c.l.b16 %v312
      %v1196 = vunpack.c.l.b16 %v313
      %v1197 = vunpack.c.l.b16 %v314
      %v1198 = vunpack.c.l.b16 %v315
      %v1199 = vunpack.c.l.b16 %v316
      %v1200 = vunpack.c.l.b16 %v317
      %v1201 = vunpack.c.l.b16 %v318
      %v1202 = vpack.c.b16 %v1155, %v1154
      %v1203 = vpack.c.b16 %v1157, %v1156
      %v1204 = vpack.c.b16 %v1159, %v1158
      %v1205 = vpack.c.b16 %v1161, %v1160
      %v1206 = vpack.c.b16 %v1163, %v1162
      %v1207 = vpack.c.b16 %v1165, %v1164
      %v1208 = vpack.c.b16 %v1167, %v1166
      %v1209 = vpack.c.b16 %v1169, %v1168
      %v1210 = vpack.c.b16 %v1171, %v1170
      %v1211 = vpack.c.b16 %v1173, %v1172
      %v1212 = vpack.c.b16 %v1175, %v1174
      %v1213 = vpack.c.b16 %v1177, %v1176
      %v1214 = vpack.c.b16 %v1179, %v1178
      %v1215 = vpack.c.b16 %v1181, %v1180
      %v1216 = vpack.c.b16 %v1183, %v1182
      %v1217 = vpack.c.b16 %v1185, %v1184
      %v1218 = vpack.c.b16 %v1187, %v1186
      %v1219 = vpack.c.b16 %v1189, %v1188
      %v1220 = vpack.c.b16 %v1191, %v1190
      %v1221 = vpack.c.b16 %v1193, %v1192
      %v1222 = vpack.c.b16 %v1195, %v1194
      %v1223 = vpack.c.b16 %v1197, %v1196
      %v1224 = vpack.c.b16 %v1199, %v1198
      %v1225 = vpack.c.b16 %v1201, %v1200
      %1250 = vmatprep.subr.bf16.mxu0 0
      %1251 = vmatpush1.bf16.msra.mxu0 %v1202
      %1252 = vmatprep.subr.bf16.mxu0 0
      %1253 = vmatpush1.bf16.msra.mxu0 %v1203
      %1254 = vmatprep.subr.bf16.mxu0 0
      %1255 = vmatpush1.bf16.msra.mxu0 %v1204
      %1256 = vmatprep.subr.bf16.mxu0 0
      %1257 = vmatpush1.bf16.msra.mxu0 %v1205
      %1258 = vmatprep.subr.bf16.mxu0 0
      %1259 = vmatpush1.bf16.msra.mxu0 %v1206
      %1260 = vmatprep.subr.bf16.mxu0 0
      %1261 = vmatpush1.bf16.msra.mxu0 %v1207
      %1262 = vmatprep.subr.bf16.mxu0 0
      %1263 = vmatpush1.bf16.msra.mxu0 %v1208
      %1264 = vmatprep.subr.bf16.mxu0 0
      %1265 = vmatpush1.bf16.msra.mxu0 %v1209
      %1266 = vmatprep.subr.bf16.mxu0 0
      %1267 = vmatpush1.bf16.msra.mxu0 %v1210
      %1268 = vmatprep.subr.bf16.mxu0 0
      %1269 = vmatpush1.bf16.msra.mxu0 %v1211
      %1270 = vmatprep.subr.bf16.mxu0 0
      %1271 = vmatpush1.bf16.msra.mxu0 %v1212
      %1272 = vmatprep.subr.bf16.mxu0 0
      %1273 = vmatpush1.bf16.msra.mxu0 %v1213
      %1274 = vmatprep.subr.bf16.mxu0 0
      %1275 = vmatpush1.bf16.msra.mxu0 %v1214
      %1276 = vmatprep.subr.bf16.mxu0 0
      %1277 = vmatpush1.bf16.msra.mxu0 %v1215
      %1278 = vmatprep.subr.bf16.mxu0 0
      %1279 = vmatpush1.bf16.msra.mxu0 %v1216
      %1280 = vmatprep.subr.bf16.mxu0 0
      %1281 = vmatpush1.bf16.msra.mxu0 %v1217
      %1282 = vmatprep.mubr.bf16.mxu0 %v1101
      %1283 = vmatmul.mubr.bf16.gmra.mrb[0].mxu0 %v1100
      %v1284 = vpop.f32.mrb[0].mxu0
      %v1285 = vadd.f32 %v964, %v1284
      %v1286 = vpop.f32.mrb[0].mxu0
      %v1287 = vpop.f32.mrb[0].mxu0
      %v1288 = vadd.f32 %v967, %v1287
      %v1289 = vpop.f32.mrb[0].mxu0
      %1290 = vmatprep.mubr.bf16.mxu0 %v529
      %1291 = vmatmul.mubr.bf16.gmra.mrb[0].mxu0 %v528
      %v1292 = vpop.f32.mrb[0].mxu0
      %v1293 = vadd.f32 %v972, %v1292
      %v1294 = vpop.f32.mrb[0].mxu0
      %v1295 = vpop.f32.mrb[0].mxu0
      %v1296 = vadd.f32 %v975, %v1295
      %v1297 = vpop.f32.mrb[0].mxu0
      %1298 = vmatprep.mubr.bf16.mxu0 %v532
      %1299 = vmatmul.mubr.bf16.gmra.mrb[0].mxu0 %v531
      %v1300 = vpop.f32.mrb[0].mxu0
      %v1301 = vadd.f32 %v980, %v1300
      %v1302 = vpop.f32.mrb[0].mxu0
      %v1303 = vpop.f32.mrb[0].mxu0
      %v1304 = vadd.f32 %v983, %v1303
      %v1305 = vpop.f32.mrb[0].mxu0
      %1306 = vmatprep.mubr.bf16.mxu0 %v535
      %1307 = vmatmul.mubr.bf16.gmra.mrb[0].mxu0 %v534
      %v1308 = vpop.f32.mrb[0].mxu0
      %v1309 = vadd.f32 %v988, %v1308
      %v1310 = vpop.f32.mrb[0].mxu0
      %v1311 = vpop.f32.mrb[0].mxu0
      %v1312 = vadd.f32 %v991, %v1311
      %v1313 = vpop.f32.mrb[0].mxu0
      %1314 = vmatprep.mubr.bf16.mxu0 %v538
      %1315 = vmatmul.mubr.bf16.gmra.mrb[0].mxu0 %v537
      %v1316 = vpop.f32.mrb[0].mxu0
      %v1317 = vadd.f32 %v996, %v1316
      %v1318 = vpop.f32.mrb[0].mxu0
      %v1319 = vpop.f32.mrb[0].mxu0
      %v1320 = vadd.f32 %v999, %v1319
      %v1321 = vpop.f32.mrb[0].mxu0
      %1322 = vmatprep.mubr.bf16.mxu0 %v541
      %1323 = vmatmul.mubr.bf16.gmra.mrb[0].mxu0 %v540
      %v1324 = vpop.f32.mrb[0].mxu0
      %v1325 = vadd.f32 %v1004, %v1324
      %v1326 = vpop.f32.mrb[0].mxu0
      %v1327 = vpop.f32.mrb[0].mxu0
      %v1328 = vadd.f32 %v1007, %v1327
      %v1329 = vpop.f32.mrb[0].mxu0
      %1330 = vmatprep.mubr.bf16.mxu0 %v544
      %1331 = vmatmul.mubr.bf16.gmra.mrb[0].mxu0 %v543
      %v1332 = vpop.f32.mrb[0].mxu0
      %v1333 = vadd.f32 %v1012, %v1332
      %v1334 = vpop.f32.mrb[0].mxu0
      %v1335 = vpop.f32.mrb[0].mxu0
      %v1336 = vadd.f32 %v1015, %v1335
      %v1337 = vpop.f32.mrb[0].mxu0
      %1338 = vmatprep.mubr.bf16.mxu0 %v547
      %1339 = vmatmul.mubr.bf16.gmra.mrb[0].mxu0 %v546
      %v1340 = vpop.f32.mrb[0].mxu0
      %v1341 = vadd.f32 %v1020, %v1340
      %v1342 = vpop.f32.mrb[0].mxu0
      %v1343 = vpop.f32.mrb[0].mxu0
      %v1344 = vadd.f32 %v1023, %v1343
      %v1345 = vpop.f32.mrb[0].mxu0
      %1346 = vmatprep.mubr.bf16.mxu0 %v550
      %1347 = vmatmul.mubr.bf16.gmra.mrb[0].mxu0 %v549
      %v1348 = vpop.f32.mrb[0].mxu0
      %v1349 = vadd.f32 %v1028, %v1348
      %v1350 = vpop.f32.mrb[0].mxu0
      %v1351 = vpop.f32.mrb[0].mxu0
      %v1352 = vadd.f32 %v1031, %v1351
      %v1353 = vpop.f32.mrb[0].mxu0
      %1354 = vmatprep.mubr.bf16.mxu0 %v553
      %1355 = vmatmul.mubr.bf16.gmra.mrb[0].mxu0 %v552
      %v1356 = vpop.f32.mrb[0].mxu0
      %v1357 = vadd.f32 %v1036, %v1356
      %v1358 = vpop.f32.mrb[0].mxu0
      %v1359 = vpop.f32.mrb[0].mxu0
      %v1360 = vadd.f32 %v1039, %v1359
      %v1361 = vpop.f32.mrb[0].mxu0
      %1362 = vmatprep.mubr.bf16.mxu0 %v556
      %1363 = vmatmul.mubr.bf16.gmra.mrb[0].mxu0 %v555
      %v1364 = vpop.f32.mrb[0].mxu0
      %v1365 = vadd.f32 %v1044, %v1364
      %v1366 = vpop.f32.mrb[0].mxu0
      %v1367 = vpop.f32.mrb[0].mxu0
      %v1368 = vadd.f32 %v1047, %v1367
      %v1369 = vpop.f32.mrb[0].mxu0
      %1370 = vmatprep.mubr.bf16.mxu0 %v559
      %1371 = vmatmul.mubr.bf16.gmra.mrb[0].mxu0 %v558
      %v1372 = vpop.f32.mrb[0].mxu0
      %v1373 = vadd.f32 %v1052, %v1372
      %v1374 = vpop.f32.mrb[0].mxu0
      %v1375 = vpop.f32.mrb[0].mxu0
      %v1376 = vadd.f32 %v1055, %v1375
      %v1377 = vpop.f32.mrb[0].mxu0
      %1378 = vmatprep.mubr.bf16.mxu0 %v562
      %1379 = vmatmul.mubr.bf16.gmra.mrb[0].mxu0 %v561
      %v1380 = vpop.f32.mrb[0].mxu0
      %v1381 = vadd.f32 %v1060, %v1380
      %v1382 = vpop.f32.mrb[0].mxu0
      %v1383 = vpop.f32.mrb[0].mxu0
      %v1384 = vadd.f32 %v1063, %v1383
      %v1385 = vpop.f32.mrb[0].mxu0
      %1386 = vmatprep.mubr.bf16.mxu0 %v565
      %1387 = vmatmul.mubr.bf16.gmra.mrb[0].mxu0 %v564
      %v1388 = vpop.f32.mrb[0].mxu0
      %v1389 = vadd.f32 %v1068, %v1388
      %v1390 = vpop.f32.mrb[0].mxu0
      %v1391 = vpop.f32.mrb[0].mxu0
      %v1392 = vadd.f32 %v1071, %v1391
      %v1393 = vpop.f32.mrb[0].mxu0
      %1394 = vmatprep.mubr.bf16.mxu0 %v568
      %1395 = vmatmul.mubr.bf16.gmra.mrb[0].mxu0 %v567
      %v1396 = vpop.f32.mrb[0].mxu0
      %v1397 = vadd.f32 %v1076, %v1396
      %v1398 = vpop.f32.mrb[0].mxu0
      %v1399 = vpop.f32.mrb[0].mxu0
      %v1400 = vadd.f32 %v1079, %v1399
      %v1401 = vpop.f32.mrb[0].mxu0
      %1402 = vmatprep.mubr.bf16.mxu0 %v571
      %1403 = vmatmul.mubr.bf16.gmra.mrb[0].mxu0 %v570
      %v1404 = vpop.f32.mrb[0].mxu0
      %v1405 = vadd.f32 %v1084, %v1404
      %v1406 = vpop.f32.mrb[0].mxu0
      %v1407 = vpop.f32.mrb[0].mxu0
      %v1408 = vadd.f32 %v1087, %v1407
      %v1409 = vpop.f32.mrb[0].mxu0
      %1410 = vdwg.mxu0
      %1411 = vmatprep.subr.bf16.mxu0 0
      %1412 = vmatpush1.bf16.msra.mxu0 %v1218
      %1413 = vmatprep.subr.bf16.mxu0 0
      %1414 = vmatpush1.bf16.msra.mxu0 %v1219
      %1415 = vmatprep.subr.bf16.mxu0 0
      %1416 = vmatpush1.bf16.msra.mxu0 %v1220
      %1417 = vmatprep.subr.bf16.mxu0 0
      %1418 = vmatpush1.bf16.msra.mxu0 %v1221
      %1419 = vmatprep.subr.bf16.mxu0 0
      %1420 = vmatpush1.bf16.msra.mxu0 %v1222
      %1421 = vmatprep.subr.bf16.mxu0 0
      %1422 = vmatpush1.bf16.msra.mxu0 %v1223
      %1423 = vmatprep.subr.bf16.mxu0 0
      %1424 = vmatpush1.bf16.msra.mxu0 %v1224
      %1425 = vmatprep.subr.bf16.mxu0 0
      %1426 = vmatpush1.bf16.msra.mxu0 %v1225
      %1427 = vmatprep.subr.bf16.mxu0 0
      %1428 = vmatpush1.bf16.msra.mxu0 0
      %1429 = vmatprep.subr.bf16.mxu0 0
      %1430 = vmatpush1.bf16.msra.mxu0 0
      %1431 = vmatprep.subr.bf16.mxu0 0
      %1432 = vmatpush1.bf16.msra.mxu0 0
      %1433 = vmatprep.subr.bf16.mxu0 0
      %1434 = vmatpush1.bf16.msra.mxu0 0
      %1435 = vmatprep.subr.bf16.mxu0 0
      %1436 = vmatpush1.bf16.msra.mxu0 0
      %1437 = vmatprep.subr.bf16.mxu0 0
      %1438 = vmatpush1.bf16.msra.mxu0 0
      %1439 = vmatprep.subr.bf16.mxu0 0
      %1440 = vmatpush1.bf16.msra.mxu0 0
      %1441 = vmatprep.subr.bf16.mxu0 0
      %1442 = vmatpush1.bf16.msra.mxu0 0
      %1443 = vmatprep.mubr.bf16.mxu0 0
      %1444 = vmatmul.mubr.bf16.gmra.mrb[0].mxu0 %v1102
      %v1445 = vpop.f32.mrb[0].mxu0
      %v1446 = vadd.f32 %v1285, %v1445
      %v1447 = vpop.f32.mrb[0].mxu0
      %v1448 = vpop.f32.mrb[0].mxu0
      %v1449 = vadd.f32 %v1288, %v1448
      %v1450 = vpop.f32.mrb[0].mxu0
      %1451 = vmatprep.mubr.bf16.mxu0 0
      %1452 = vmatmul.mubr.bf16.gmra.mrb[0].mxu0 %v530
      %v1453 = vpop.f32.mrb[0].mxu0
      %v1454 = vadd.f32 %v1293, %v1453
      %v1455 = vpop.f32.mrb[0].mxu0
      %v1456 = vpop.f32.mrb[0].mxu0
      %v1457 = vadd.f32 %v1296, %v1456
      %v1458 = vpop.f32.mrb[0].mxu0
      %1459 = vmatprep.mubr.bf16.mxu0 0
      %1460 = vmatmul.mubr.bf16.gmra.mrb[0].mxu0 %v533
      %v1461 = vpop.f32.mrb[0].mxu0
      %v1462 = vadd.f32 %v1301, %v1461
      %v1463 = vpop.f32.mrb[0].mxu0
      %v1464 = vpop.f32.mrb[0].mxu0
      %v1465 = vadd.f32 %v1304, %v1464
      %v1466 = vpop.f32.mrb[0].mxu0
      %1467 = vmatprep.mubr.bf16.mxu0 0
      %1468 = vmatmul.mubr.bf16.gmra.mrb[0].mxu0 %v536
      %v1469 = vpop.f32.mrb[0].mxu0
      %v1470 = vadd.f32 %v1309, %v1469
      %v1471 = vpop.f32.mrb[0].mxu0
      %v1472 = vpop.f32.mrb[0].mxu0
      %v1473 = vadd.f32 %v1312, %v1472
      %v1474 = vpop.f32.mrb[0].mxu0
      %1475 = vmatprep.mubr.bf16.mxu0 0
      %1476 = vmatmul.mubr.bf16.gmra.mrb[0].mxu0 %v539
      %v1477 = vpop.f32.mrb[0].mxu0
      %v1478 = vadd.f32 %v1317, %v1477
      %v1479 = vpop.f32.mrb[0].mxu0
      %v1480 = vpop.f32.mrb[0].mxu0
      %v1481 = vadd.f32 %v1320, %v1480
      %v1482 = vpop.f32.mrb[0].mxu0
      %1483 = vmatprep.mubr.bf16.mxu0 0
      %1484 = vmatmul.mubr.bf16.gmra.mrb[0].mxu0 %v542
      %v1485 = vpop.f32.mrb[0].mxu0
      %v1486 = vadd.f32 %v1325, %v1485
      %v1487 = vpop.f32.mrb[0].mxu0
      %v1488 = vpop.f32.mrb[0].mxu0
      %v1489 = vadd.f32 %v1328, %v1488
      %v1490 = vpop.f32.mrb[0].mxu0
      %1491 = vmatprep.mubr.bf16.mxu0 0
      %1492 = vmatmul.mubr.bf16.gmra.mrb[0].mxu0 %v545
      %v1493 = vpop.f32.mrb[0].mxu0
      %v1494 = vadd.f32 %v1333, %v1493
      %v1495 = vpop.f32.mrb[0].mxu0
      %v1496 = vpop.f32.mrb[0].mxu0
      %v1497 = vadd.f32 %v1336, %v1496
      %v1498 = vpop.f32.mrb[0].mxu0
      %1499 = vmatprep.mubr.bf16.mxu0 0
      %1500 = vmatmul.mubr.bf16.gmra.mrb[0].mxu0 %v548
      %v1501 = vpop.f32.mrb[0].mxu0
      %v1502 = vadd.f32 %v1341, %v1501
      %v1503 = vpop.f32.mrb[0].mxu0
      %v1504 = vpop.f32.mrb[0].mxu0
      %v1505 = vadd.f32 %v1344, %v1504
      %v1506 = vpop.f32.mrb[0].mxu0
      %1507 = vmatprep.mubr.bf16.mxu0 0
      %1508 = vmatmul.mubr.bf16.gmra.mrb[0].mxu0 %v551
      %v1509 = vpop.f32.mrb[0].mxu0
      %v1510 = vadd.f32 %v1349, %v1509
      %v1511 = vpop.f32.mrb[0].mxu0
      %v1512 = vpop.f32.mrb[0].mxu0
      %v1513 = vadd.f32 %v1352, %v1512
      %v1514 = vpop.f32.mrb[0].mxu0
      %1515 = vmatprep.mubr.bf16.mxu0 0
      %1516 = vmatmul.mubr.bf16.gmra.mrb[0].mxu0 %v554
      %v1517 = vpop.f32.mrb[0].mxu0
      %v1518 = vadd.f32 %v1357, %v1517
      %v1519 = vpop.f32.mrb[0].mxu0
      %v1520 = vpop.f32.mrb[0].mxu0
      %v1521 = vadd.f32 %v1360, %v1520
      %v1522 = vpop.f32.mrb[0].mxu0
      %1523 = vmatprep.mubr.bf16.mxu0 0
      %1524 = vmatmul.mubr.bf16.gmra.mrb[0].mxu0 %v557
      %v1525 = vpop.f32.mrb[0].mxu0
      %v1526 = vadd.f32 %v1365, %v1525
      %v1527 = vpop.f32.mrb[0].mxu0
      %v1528 = vpop.f32.mrb[0].mxu0
      %v1529 = vadd.f32 %v1368, %v1528
      %v1530 = vpop.f32.mrb[0].mxu0
      %1531 = vmatprep.mubr.bf16.mxu0 0
      %1532 = vmatmul.mubr.bf16.gmra.mrb[0].mxu0 %v560
      %v1533 = vpop.f32.mrb[0].mxu0
      %v1534 = vadd.f32 %v1373, %v1533
      %v1535 = vpop.f32.mrb[0].mxu0
      %v1536 = vpop.f32.mrb[0].mxu0
      %v1537 = vadd.f32 %v1376, %v1536
      %v1538 = vpop.f32.mrb[0].mxu0
      %1539 = vmatprep.mubr.bf16.mxu0 0
      %1540 = vmatmul.mubr.bf16.gmra.mrb[0].mxu0 %v563
      %v1541 = vpop.f32.mrb[0].mxu0
      %v1542 = vadd.f32 %v1381, %v1541
      %v1543 = vpop.f32.mrb[0].mxu0
      %v1544 = vpop.f32.mrb[0].mxu0
      %v1545 = vadd.f32 %v1384, %v1544
      %v1546 = vpop.f32.mrb[0].mxu0
      %1547 = vmatprep.mubr.bf16.mxu0 0
      %1548 = vmatmul.mubr.bf16.gmra.mrb[0].mxu0 %v566
      %v1549 = vpop.f32.mrb[0].mxu0
      %v1550 = vadd.f32 %v1389, %v1549
      %v1551 = vpop.f32.mrb[0].mxu0
      %v1552 = vpop.f32.mrb[0].mxu0
      %v1553 = vadd.f32 %v1392, %v1552
      %v1554 = vpop.f32.mrb[0].mxu0
      %1555 = vmatprep.mubr.bf16.mxu0 0
      %1556 = vmatmul.mubr.bf16.gmra.mrb[0].mxu0 %v569
      %v1557 = vpop.f32.mrb[0].mxu0
      %v1558 = vadd.f32 %v1397, %v1557
      %v1559 = vpop.f32.mrb[0].mxu0
      %v1560 = vpop.f32.mrb[0].mxu0
      %v1561 = vadd.f32 %v1400, %v1560
      %v1562 = vpop.f32.mrb[0].mxu0
      %1563 = vmatprep.mubr.bf16.mxu0 0
      %1564 = vmatmul.mubr.bf16.gmra.mrb[0].mxu0 %v572
      %v1565 = vpop.f32.mrb[0].mxu0
      %v1566 = vadd.f32 %v1405, %v1565
      %v1567 = vpop.f32.mrb[0].mxu0
      %v1568 = vpop.f32.mrb[0].mxu0
      %v1569 = vadd.f32 %v1408, %v1568
      %v1570 = vpop.f32.mrb[0].mxu0
      %1571 = vdwg.mxu0
      %s1572 = scalar_lea.vmem %s1, 384
      %v1573 = vld [vmem:[%s1572] sm:$0xf]
      %v1574 = vld [vmem:[%s1572 + $0x4] sm:$0xf]
      %v1575 = vld [vmem:[%s1572 + $0x8] sm:$0xf]
      %v1576 = vld [vmem:[%s1572 + $0xc] sm:$0xf]
      %v1577 = vld [vmem:[%s1572 + $0x10] sm:$0xf]
      %v1578 = vld [vmem:[%s1572 + $0x14] sm:$0xf]
      %v1579 = vld [vmem:[%s1572 + $0x18] sm:$0xf]
      %v1580 = vld [vmem:[%s1572 + $0x1c] sm:$0xf]
      %v1581 = vld [vmem:[%s1572 + $0x20] sm:$0xf]
      %v1582 = vld [vmem:[%s1572 + $0x24] sm:$0xf]
      %v1583 = vld [vmem:[%s1572 + $0x28] sm:$0xf]
      %v1584 = vld [vmem:[%s1572 + $0x2c] sm:$0xf]
      %v1585 = vld [vmem:[%s1572 + $0x30] sm:$0xf]
      %v1586 = vld [vmem:[%s1572 + $0x34] sm:$0xf]
      %v1587 = vld [vmem:[%s1572 + $0x38] sm:$0xf]
      %v1588 = vld [vmem:[%s1572 + $0x3c] sm:$0xf]
      %v1589 = vld [vmem:[%s1572 + $0x40] sm:$0xf]
      %v1590 = vld [vmem:[%s1572 + $0x44] sm:$0xf]
      %v1591 = vld [vmem:[%s1572 + $0x48] sm:$0xf]
      %v1592 = vld [vmem:[%s1572 + $0x4c] sm:$0xf]
      %v1593 = vld [vmem:[%s1572 + $0x50] sm:$0xf]
      %v1594 = vld [vmem:[%s1572 + $0x54] sm:$0xf]
      %v1595 = vld [vmem:[%s1572 + $0x58] sm:$0xf]
      %v1596 = vld [vmem:[%s1572 + $0x5c] sm:$0xf]
      %v1597 = vld [vmem:[%s1572 + $0x60] sm:$0xf]
      %v1598 = vld [vmem:[%s1572 + $0x64] sm:$0xf]
      %v1599 = vld [vmem:[%s1572 + $0x68] sm:$0xf]
      %v1600 = vld [vmem:[%s1572 + $0x6c] sm:$0xf]
      %v1601 = vld [vmem:[%s1572 + $0x70] sm:$0xf]
      %v1602 = vld [vmem:[%s1572 + $0x74] sm:$0xf]
      %v1603 = vld [vmem:[%s1572 + $0x78] sm:$0xf]
      %v1604 = vld [vmem:[%s1572 + $0x7c] sm:$0xf]
      %v1605 = vld [vmem:[%s1572 + $0x80] sm:$0xf]
      %v1606 = vld [vmem:[%s1572 + $0x84] sm:$0xf]
      %v1607 = vld [vmem:[%s1572 + $0x88] sm:$0xf]
      %v1608 = vld [vmem:[%s1572 + $0x8c] sm:$0xf]
      %v1609 = vld [vmem:[%s1572 + $0x90] sm:$0xf]
      %v1610 = vld [vmem:[%s1572 + $0x94] sm:$0xf]
      %v1611 = vld [vmem:[%s1572 + $0x98] sm:$0xf]
      %v1612 = vld [vmem:[%s1572 + $0x9c] sm:$0xf]
      %v1613 = vld [vmem:[%s1572 + $0xa0] sm:$0xf]
      %v1614 = vld [vmem:[%s1572 + $0xa4] sm:$0xf]
      %v1615 = vld [vmem:[%s1572 + $0xa8] sm:$0xf]
      %v1616 = vld [vmem:[%s1572 + $0xac] sm:$0xf]
      %v1617 = vld [vmem:[%s1572 + $0xb0] sm:$0xf]
      %v1618 = vld [vmem:[%s1572 + $0xb4] sm:$0xf]
      %v1619 = vld [vmem:[%s1572 + $0xb8] sm:$0xf]
      %v1620 = vld [vmem:[%s1572 + $0xbc] sm:$0xf]
      %v1625 = vunpack.c.l.b16 %v267
      %v1626 = vunpack.c.h.b16 %v267
      %v1627 = vunpack.c.l.b16 %v268
      %v1628 = vunpack.c.l.b16 %v269
      %v1629 = vunpack.c.h.b16 %v269
      %v1630 = vunpack.c.l.b16 %v270
      %v1631 = vpack.c.b16 %v1628, %v1625
      %v1632 = vpack.c.b16 %v1629, %v1626
      %v1633 = vpack.c.b16 %v1630, %v1627
      %v1685 = vunpack.c.l.b16 %v1573
      %v1686 = vunpack.c.l.b16 %v1574
      %v1687 = vunpack.c.l.b16 %v1575
      %v1688 = vunpack.c.l.b16 %v1576
      %v1689 = vunpack.c.l.b16 %v1577
      %v1690 = vunpack.c.l.b16 %v1578
      %v1691 = vunpack.c.l.b16 %v1579
      %v1692 = vunpack.c.l.b16 %v1580
      %v1693 = vunpack.c.l.b16 %v1581
      %v1694 = vunpack.c.l.b16 %v1582
      %v1695 = vunpack.c.l.b16 %v1583
      %v1696 = vunpack.c.l.b16 %v1584
      %v1697 = vunpack.c.l.b16 %v1585
      %v1698 = vunpack.c.l.b16 %v1586
      %v1699 = vunpack.c.l.b16 %v1587
      %v1700 = vunpack.c.l.b16 %v1588
      %v1701 = vunpack.c.l.b16 %v1589
      %v1702 = vunpack.c.l.b16 %v1590
      %v1703 = vunpack.c.l.b16 %v1591
      %v1704 = vunpack.c.l.b16 %v1592
      %v1705 = vunpack.c.l.b16 %v1593
      %v1706 = vunpack.c.l.b16 %v1594
      %v1707 = vunpack.c.l.b16 %v1595
      %v1708 = vunpack.c.l.b16 %v1596
      %v1709 = vunpack.c.l.b16 %v1597
      %v1710 = vunpack.c.l.b16 %v1598
      %v1711 = vunpack.c.l.b16 %v1599
      %v1712 = vunpack.c.l.b16 %v1600
      %v1713 = vunpack.c.l.b16 %v1601
      %v1714 = vunpack.c.l.b16 %v1602
      %v1715 = vunpack.c.l.b16 %v1603
      %v1716 = vunpack.c.l.b16 %v1604
      %v1717 = vunpack.c.l.b16 %v1605
      %v1718 = vunpack.c.l.b16 %v1606
      %v1719 = vunpack.c.l.b16 %v1607
      %v1720 = vunpack.c.l.b16 %v1608
      %v1721 = vunpack.c.l.b16 %v1609
      %v1722 = vunpack.c.l.b16 %v1610
      %v1723 = vunpack.c.l.b16 %v1611
      %v1724 = vunpack.c.l.b16 %v1612
      %v1725 = vunpack.c.l.b16 %v1613
      %v1726 = vunpack.c.l.b16 %v1614
      %v1727 = vunpack.c.l.b16 %v1615
      %v1728 = vunpack.c.l.b16 %v1616
      %v1729 = vunpack.c.l.b16 %v1617
      %v1730 = vunpack.c.l.b16 %v1618
      %v1731 = vunpack.c.l.b16 %v1619
      %v1732 = vunpack.c.l.b16 %v1620
      %v1733 = vpack.c.b16 %v1686, %v1685
      %v1734 = vpack.c.b16 %v1688, %v1687
      %v1735 = vpack.c.b16 %v1690, %v1689
      %v1736 = vpack.c.b16 %v1692, %v1691
      %v1737 = vpack.c.b16 %v1694, %v1693
      %v1738 = vpack.c.b16 %v1696, %v1695
      %v1739 = vpack.c.b16 %v1698, %v1697
      %v1740 = vpack.c.b16 %v1700, %v1699
      %v1741 = vpack.c.b16 %v1702, %v1701
      %v1742 = vpack.c.b16 %v1704, %v1703
      %v1743 = vpack.c.b16 %v1706, %v1705
      %v1744 = vpack.c.b16 %v1708, %v1707
      %v1745 = vpack.c.b16 %v1710, %v1709
      %v1746 = vpack.c.b16 %v1712, %v1711
      %v1747 = vpack.c.b16 %v1714, %v1713
      %v1748 = vpack.c.b16 %v1716, %v1715
      %v1749 = vpack.c.b16 %v1718, %v1717
      %v1750 = vpack.c.b16 %v1720, %v1719
      %v1751 = vpack.c.b16 %v1722, %v1721
      %v1752 = vpack.c.b16 %v1724, %v1723
      %v1753 = vpack.c.b16 %v1726, %v1725
      %v1754 = vpack.c.b16 %v1728, %v1727
      %v1755 = vpack.c.b16 %v1730, %v1729
      %v1756 = vpack.c.b16 %v1732, %v1731
      %1781 = vmatprep.subr.bf16.mxu0 0
      %1782 = vmatpush1.bf16.msra.mxu0 %v1733
      %1783 = vmatprep.subr.bf16.mxu0 0
      %1784 = vmatpush1.bf16.msra.mxu0 %v1734
      %1785 = vmatprep.subr.bf16.mxu0 0
      %1786 = vmatpush1.bf16.msra.mxu0 %v1735
      %1787 = vmatprep.subr.bf16.mxu0 0
      %1788 = vmatpush1.bf16.msra.mxu0 %v1736
      %1789 = vmatprep.subr.bf16.mxu0 0
      %1790 = vmatpush1.bf16.msra.mxu0 %v1737
      %1791 = vmatprep.subr.bf16.mxu0 0
      %1792 = vmatpush1.bf16.msra.mxu0 %v1738
      %1793 = vmatprep.subr.bf16.mxu0 0
      %1794 = vmatpush1.bf16.msra.mxu0 %v1739
      %1795 = vmatprep.subr.bf16.mxu0 0
      %1796 = vmatpush1.bf16.msra.mxu0 %v1740
      %1797 = vmatprep.subr.bf16.mxu0 0
      %1798 = vmatpush1.bf16.msra.mxu0 %v1741
      %1799 = vmatprep.subr.bf16.mxu0 0
      %1800 = vmatpush1.bf16.msra.mxu0 %v1742
      %1801 = vmatprep.subr.bf16.mxu0 0
      %1802 = vmatpush1.bf16.msra.mxu0 %v1743
      %1803 = vmatprep.subr.bf16.mxu0 0
      %1804 = vmatpush1.bf16.msra.mxu0 %v1744
      %1805 = vmatprep.subr.bf16.mxu0 0
      %1806 = vmatpush1.bf16.msra.mxu0 %v1745
      %1807 = vmatprep.subr.bf16.mxu0 0
      %1808 = vmatpush1.bf16.msra.mxu0 %v1746
      %1809 = vmatprep.subr.bf16.mxu0 0
      %1810 = vmatpush1.bf16.msra.mxu0 %v1747
      %1811 = vmatprep.subr.bf16.mxu0 0
      %1812 = vmatpush1.bf16.msra.mxu0 %v1748
      %1813 = vmatprep.mubr.bf16.mxu0 %v532
      %1814 = vmatmul.mubr.bf16.gmra.mrb[0].mxu0 %v531
      %v1815 = vpop.f32.mrb[0].mxu0
      %v1816 = vadd.f32 0.0, %v1815
      %v1817 = vpop.f32.mrb[0].mxu0
      %v1818 = vpop.f32.mrb[0].mxu0
      %v1819 = vadd.f32 0.0, %v1818
      %v1820 = vpop.f32.mrb[0].mxu0
      %1821 = vmatprep.mubr.bf16.mxu0 %v535
      %1822 = vmatmul.mubr.bf16.gmra.mrb[0].mxu0 %v534
      %v1823 = vpop.f32.mrb[0].mxu0
      %v1824 = vadd.f32 0.0, %v1823
      %v1825 = vpop.f32.mrb[0].mxu0
      %v1826 = vpop.f32.mrb[0].mxu0
      %v1827 = vadd.f32 0.0, %v1826
      %v1828 = vpop.f32.mrb[0].mxu0
      %1829 = vmatprep.mubr.bf16.mxu0 %v538
      %1830 = vmatmul.mubr.bf16.gmra.mrb[0].mxu0 %v537
      %v1831 = vpop.f32.mrb[0].mxu0
      %v1832 = vadd.f32 0.0, %v1831
      %v1833 = vpop.f32.mrb[0].mxu0
      %v1834 = vpop.f32.mrb[0].mxu0
      %v1835 = vadd.f32 0.0, %v1834
      %v1836 = vpop.f32.mrb[0].mxu0
      %1837 = vmatprep.mubr.bf16.mxu0 %v541
      %1838 = vmatmul.mubr.bf16.gmra.mrb[0].mxu0 %v540
      %v1839 = vpop.f32.mrb[0].mxu0
      %v1840 = vadd.f32 0.0, %v1839
      %v1841 = vpop.f32.mrb[0].mxu0
      %v1842 = vpop.f32.mrb[0].mxu0
      %v1843 = vadd.f32 0.0, %v1842
      %v1844 = vpop.f32.mrb[0].mxu0
      %1845 = vmatprep.mubr.bf16.mxu0 %v544
      %1846 = vmatmul.mubr.bf16.gmra.mrb[0].mxu0 %v543
      %v1847 = vpop.f32.mrb[0].mxu0
      %v1848 = vadd.f32 0.0, %v1847
      %v1849 = vpop.f32.mrb[0].mxu0
      %v1850 = vpop.f32.mrb[0].mxu0
      %v1851 = vadd.f32 0.0, %v1850
      %v1852 = vpop.f32.mrb[0].mxu0
      %1853 = vmatprep.mubr.bf16.mxu0 %v547
      %1854 = vmatmul.mubr.bf16.gmra.mrb[0].mxu0 %v546
      %v1855 = vpop.f32.mrb[0].mxu0
      %v1856 = vadd.f32 0.0, %v1855
      %v1857 = vpop.f32.mrb[0].mxu0
      %v1858 = vpop.f32.mrb[0].mxu0
      %v1859 = vadd.f32 0.0, %v1858
      %v1860 = vpop.f32.mrb[0].mxu0
      %1861 = vmatprep.mubr.bf16.mxu0 %v550
      %1862 = vmatmul.mubr.bf16.gmra.mrb[0].mxu0 %v549
      %v1863 = vpop.f32.mrb[0].mxu0
      %v1864 = vadd.f32 0.0, %v1863
      %v1865 = vpop.f32.mrb[0].mxu0
      %v1866 = vpop.f32.mrb[0].mxu0
      %v1867 = vadd.f32 0.0, %v1866
      %v1868 = vpop.f32.mrb[0].mxu0
      %1869 = vmatprep.mubr.bf16.mxu0 %v553
      %1870 = vmatmul.mubr.bf16.gmra.mrb[0].mxu0 %v552
      %v1871 = vpop.f32.mrb[0].mxu0
      %v1872 = vadd.f32 0.0, %v1871
      %v1873 = vpop.f32.mrb[0].mxu0
      %v1874 = vpop.f32.mrb[0].mxu0
      %v1875 = vadd.f32 0.0, %v1874
      %v1876 = vpop.f32.mrb[0].mxu0
      %1877 = vmatprep.mubr.bf16.mxu0 %v556
      %1878 = vmatmul.mubr.bf16.gmra.mrb[0].mxu0 %v555
      %v1879 = vpop.f32.mrb[0].mxu0
      %v1880 = vadd.f32 0.0, %v1879
      %v1881 = vpop.f32.mrb[0].mxu0
      %v1882 = vpop.f32.mrb[0].mxu0
      %v1883 = vadd.f32 0.0, %v1882
      %v1884 = vpop.f32.mrb[0].mxu0
      %1885 = vmatprep.mubr.bf16.mxu0 %v559
      %1886 = vmatmul.mubr.bf16.gmra.mrb[0].mxu0 %v558
      %v1887 = vpop.f32.mrb[0].mxu0
      %v1888 = vadd.f32 0.0, %v1887
      %v1889 = vpop.f32.mrb[0].mxu0
      %v1890 = vpop.f32.mrb[0].mxu0
      %v1891 = vadd.f32 0.0, %v1890
      %v1892 = vpop.f32.mrb[0].mxu0
      %1893 = vmatprep.mubr.bf16.mxu0 %v562
      %1894 = vmatmul.mubr.bf16.gmra.mrb[0].mxu0 %v561
      %v1895 = vpop.f32.mrb[0].mxu0
      %v1896 = vadd.f32 0.0, %v1895
      %v1897 = vpop.f32.mrb[0].mxu0
      %v1898 = vpop.f32.mrb[0].mxu0
      %v1899 = vadd.f32 0.0, %v1898
      %v1900 = vpop.f32.mrb[0].mxu0
      %1901 = vmatprep.mubr.bf16.mxu0 %v565
      %1902 = vmatmul.mubr.bf16.gmra.mrb[0].mxu0 %v564
      %v1903 = vpop.f32.mrb[0].mxu0
      %v1904 = vadd.f32 0.0, %v1903
      %v1905 = vpop.f32.mrb[0].mxu0
      %v1906 = vpop.f32.mrb[0].mxu0
      %v1907 = vadd.f32 0.0, %v1906
      %v1908 = vpop.f32.mrb[0].mxu0
      %1909 = vmatprep.mubr.bf16.mxu0 %v568
      %1910 = vmatmul.mubr.bf16.gmra.mrb[0].mxu0 %v567
      %v1911 = vpop.f32.mrb[0].mxu0
      %v1912 = vadd.f32 0.0, %v1911
      %v1913 = vpop.f32.mrb[0].mxu0
      %v1914 = vpop.f32.mrb[0].mxu0
      %v1915 = vadd.f32 0.0, %v1914
      %v1916 = vpop.f32.mrb[0].mxu0
      %1917 = vmatprep.mubr.bf16.mxu0 %v571
      %1918 = vmatmul.mubr.bf16.gmra.mrb[0].mxu0 %v570
      %v1919 = vpop.f32.mrb[0].mxu0
      %v1920 = vadd.f32 0.0, %v1919
      %v1921 = vpop.f32.mrb[0].mxu0
      %v1922 = vpop.f32.mrb[0].mxu0
      %v1923 = vadd.f32 0.0, %v1922
      %v1924 = vpop.f32.mrb[0].mxu0
      %1925 = vmatprep.mubr.bf16.mxu0 %v574
      %1926 = vmatmul.mubr.bf16.gmra.mrb[0].mxu0 %v573
      %v1927 = vpop.f32.mrb[0].mxu0
      %v1928 = vadd.f32 0.0, %v1927
      %v1929 = vpop.f32.mrb[0].mxu0
      %v1930 = vpop.f32.mrb[0].mxu0
      %v1931 = vadd.f32 0.0, %v1930
      %v1932 = vpop.f32.mrb[0].mxu0
      %1933 = vmatprep.mubr.bf16.mxu0 %v1632
      %1934 = vmatmul.mubr.bf16.gmra.mrb[0].mxu0 %v1631
      %v1935 = vpop.f32.mrb[0].mxu0
      %v1936 = vadd.f32 0.0, %v1935
      %v1937 = vpop.f32.mrb[0].mxu0
      %v1938 = vpop.f32.mrb[0].mxu0
      %v1939 = vadd.f32 0.0, %v1938
      %v1940 = vpop.f32.mrb[0].mxu0
      %1941 = vdwg.mxu0
      %1942 = vmatprep.subr.bf16.mxu0 0
      %1943 = vmatpush1.bf16.msra.mxu0 %v1749
      %1944 = vmatprep.subr.bf16.mxu0 0
      %1945 = vmatpush1.bf16.msra.mxu0 %v1750
      %1946 = vmatprep.subr.bf16.mxu0 0
      %1947 = vmatpush1.bf16.msra.mxu0 %v1751
      %1948 = vmatprep.subr.bf16.mxu0 0
      %1949 = vmatpush1.bf16.msra.mxu0 %v1752
      %1950 = vmatprep.subr.bf16.mxu0 0
      %1951 = vmatpush1.bf16.msra.mxu0 %v1753
      %1952 = vmatprep.subr.bf16.mxu0 0
      %1953 = vmatpush1.bf16.msra.mxu0 %v1754
      %1954 = vmatprep.subr.bf16.mxu0 0
      %1955 = vmatpush1.bf16.msra.mxu0 %v1755
      %1956 = vmatprep.subr.bf16.mxu0 0
      %1957 = vmatpush1.bf16.msra.mxu0 %v1756
      %1958 = vmatprep.subr.bf16.mxu0 0
      %1959 = vmatpush1.bf16.msra.mxu0 0
      %1960 = vmatprep.subr.bf16.mxu0 0
      %1961 = vmatpush1.bf16.msra.mxu0 0
      %1962 = vmatprep.subr.bf16.mxu0 0
      %1963 = vmatpush1.bf16.msra.mxu0 0
      %1964 = vmatprep.subr.bf16.mxu0 0
      %1965 = vmatpush1.bf16.msra.mxu0 0
      %1966 = vmatprep.subr.bf16.mxu0 0
      %1967 = vmatpush1.bf16.msra.mxu0 0
      %1968 = vmatprep.subr.bf16.mxu0 0
      %1969 = vmatpush1.bf16.msra.mxu0 0
      %1970 = vmatprep.subr.bf16.mxu0 0
      %1971 = vmatpush1.bf16.msra.mxu0 0
      %1972 = vmatprep.subr.bf16.mxu0 0
      %1973 = vmatpush1.bf16.msra.mxu0 0
      %1974 = vmatprep.mubr.bf16.mxu0 0
      %1975 = vmatmul.mubr.bf16.gmra.mrb[0].mxu0 %v533
      %v1976 = vpop.f32.mrb[0].mxu0
      %v1977 = vadd.f32 %v1816, %v1976
      %v1978 = vpop.f32.mrb[0].mxu0
      %v1979 = vpop.f32.mrb[0].mxu0
      %v1980 = vadd.f32 %v1819, %v1979
      %v1981 = vpop.f32.mrb[0].mxu0
      %1982 = vmatprep.mubr.bf16.mxu0 0
      %1983 = vmatmul.mubr.bf16.gmra.mrb[0].mxu0 %v536
      %v1984 = vpop.f32.mrb[0].mxu0
      %v1985 = vadd.f32 %v1824, %v1984
      %v1986 = vpop.f32.mrb[0].mxu0
      %v1987 = vpop.f32.mrb[0].mxu0
      %v1988 = vadd.f32 %v1827, %v1987
      %v1989 = vpop.f32.mrb[0].mxu0
      %1990 = vmatprep.mubr.bf16.mxu0 0
      %1991 = vmatmul.mubr.bf16.gmra.mrb[0].mxu0 %v539
      %v1992 = vpop.f32.mrb[0].mxu0
      %v1993 = vadd.f32 %v1832, %v1992
      %v1994 = vpop.f32.mrb[0].mxu0
      %v1995 = vpop.f32.mrb[0].mxu0
      %v1996 = vadd.f32 %v1835, %v1995
      %v1997 = vpop.f32.mrb[0].mxu0
      %1998 = vmatprep.mubr.bf16.mxu0 0
      %1999 = vmatmul.mubr.bf16.gmra.mrb[0].mxu0 %v542
      %v2000 = vpop.f32.mrb[0].mxu0
      %v2001 = vadd.f32 %v1840, %v2000
      %v2002 = vpop.f32.mrb[0].mxu0
      %v2003 = vpop.f32.mrb[0].mxu0
      %v2004 = vadd.f32 %v1843, %v2003
      %v2005 = vpop.f32.mrb[0].mxu0
      %2006 = vmatprep.mubr.bf16.mxu0 0
      %2007 = vmatmul.mubr.bf16.gmra.mrb[0].mxu0 %v545
      %v2008 = vpop.f32.mrb[0].mxu0
      %v2009 = vadd.f32 %v1848, %v2008
      %v2010 = vpop.f32.mrb[0].mxu0
      %v2011 = vpop.f32.mrb[0].mxu0
      %v2012 = vadd.f32 %v1851, %v2011
      %v2013 = vpop.f32.mrb[0].mxu0
      %2014 = vmatprep.mubr.bf16.mxu0 0
      %2015 = vmatmul.mubr.bf16.gmra.mrb[0].mxu0 %v548
      %v2016 = vpop.f32.mrb[0].mxu0
      %v2017 = vadd.f32 %v1856, %v2016
      %v2018 = vpop.f32.mrb[0].mxu0
      %v2019 = vpop.f32.mrb[0].mxu0
      %v2020 = vadd.f32 %v1859, %v2019
      %v2021 = vpop.f32.mrb[0].mxu0
      %2022 = vmatprep.mubr.bf16.mxu0 0
      %2023 = vmatmul.mubr.bf16.gmra.mrb[0].mxu0 %v551
      %v2024 = vpop.f32.mrb[0].mxu0
      %v2025 = vadd.f32 %v1864, %v2024
      %v2026 = vpop.f32.mrb[0].mxu0
      %v2027 = vpop.f32.mrb[0].mxu0
      %v2028 = vadd.f32 %v1867, %v2027
      %v2029 = vpop.f32.mrb[0].mxu0
      %2030 = vmatprep.mubr.bf16.mxu0 0
      %2031 = vmatmul.mubr.bf16.gmra.mrb[0].mxu0 %v554
      %v2032 = vpop.f32.mrb[0].mxu0
      %v2033 = vadd.f32 %v1872, %v2032
      %v2034 = vpop.f32.mrb[0].mxu0
      %v2035 = vpop.f32.mrb[0].mxu0
      %v2036 = vadd.f32 %v1875, %v2035
      %v2037 = vpop.f32.mrb[0].mxu0
      %2038 = vmatprep.mubr.bf16.mxu0 0
      %2039 = vmatmul.mubr.bf16.gmra.mrb[0].mxu0 %v557
      %v2040 = vpop.f32.mrb[0].mxu0
      %v2041 = vadd.f32 %v1880, %v2040
      %v2042 = vpop.f32.mrb[0].mxu0
      %v2043 = vpop.f32.mrb[0].mxu0
      %v2044 = vadd.f32 %v1883, %v2043
      %v2045 = vpop.f32.mrb[0].mxu0
      %2046 = vmatprep.mubr.bf16.mxu0 0
      %2047 = vmatmul.mubr.bf16.gmra.mrb[0].mxu0 %v560
      %v2048 = vpop.f32.mrb[0].mxu0
      %v2049 = vadd.f32 %v1888, %v2048
      %v2050 = vpop.f32.mrb[0].mxu0
      %v2051 = vpop.f32.mrb[0].mxu0
      %v2052 = vadd.f32 %v1891, %v2051
      %v2053 = vpop.f32.mrb[0].mxu0
      %2054 = vmatprep.mubr.bf16.mxu0 0
      %2055 = vmatmul.mubr.bf16.gmra.mrb[0].mxu0 %v563
      %v2056 = vpop.f32.mrb[0].mxu0
      %v2057 = vadd.f32 %v1896, %v2056
      %v2058 = vpop.f32.mrb[0].mxu0
      %v2059 = vpop.f32.mrb[0].mxu0
      %v2060 = vadd.f32 %v1899, %v2059
      %v2061 = vpop.f32.mrb[0].mxu0
      %2062 = vmatprep.mubr.bf16.mxu0 0
      %2063 = vmatmul.mubr.bf16.gmra.mrb[0].mxu0 %v566
      %v2064 = vpop.f32.mrb[0].mxu0
      %v2065 = vadd.f32 %v1904, %v2064
      %v2066 = vpop.f32.mrb[0].mxu0
      %v2067 = vpop.f32.mrb[0].mxu0
      %v2068 = vadd.f32 %v1907, %v2067
      %v2069 = vpop.f32.mrb[0].mxu0
      %2070 = vmatprep.mubr.bf16.mxu0 0
      %2071 = vmatmul.mubr.bf16.gmra.mrb[0].mxu0 %v569
      %v2072 = vpop.f32.mrb[0].mxu0
      %v2073 = vadd.f32 %v1912, %v2072
      %v2074 = vpop.f32.mrb[0].mxu0
      %v2075 = vpop.f32.mrb[0].mxu0
      %v2076 = vadd.f32 %v1915, %v2075
      %v2077 = vpop.f32.mrb[0].mxu0
      %2078 = vmatprep.mubr.bf16.mxu0 0
      %2079 = vmatmul.mubr.bf16.gmra.mrb[0].mxu0 %v572
      %v2080 = vpop.f32.mrb[0].mxu0
      %v2081 = vadd.f32 %v1920, %v2080
      %v2082 = vpop.f32.mrb[0].mxu0
      %v2083 = vpop.f32.mrb[0].mxu0
      %v2084 = vadd.f32 %v1923, %v2083
      %v2085 = vpop.f32.mrb[0].mxu0
      %2086 = vmatprep.mubr.bf16.mxu0 0
      %2087 = vmatmul.mubr.bf16.gmra.mrb[0].mxu0 %v575
      %v2088 = vpop.f32.mrb[0].mxu0
      %v2089 = vadd.f32 %v1928, %v2088
      %v2090 = vpop.f32.mrb[0].mxu0
      %v2091 = vpop.f32.mrb[0].mxu0
      %v2092 = vadd.f32 %v1931, %v2091
      %v2093 = vpop.f32.mrb[0].mxu0
      %2094 = vmatprep.mubr.bf16.mxu0 0
      %2095 = vmatmul.mubr.bf16.gmra.mrb[0].mxu0 %v1633
      %v2096 = vpop.f32.mrb[0].mxu0
      %v2097 = vadd.f32 %v1936, %v2096
      %v2098 = vpop.f32.mrb[0].mxu0
      %v2099 = vpop.f32.mrb[0].mxu0
      %v2100 = vadd.f32 %v1939, %v2099
      %v2101 = vpop.f32.mrb[0].mxu0
      %2102 = vdwg.mxu0
      %v2103 = vadd.f32 %v1446, %v1977
      %v2104 = vadd.f32 %v1449, %v1980
      %v2105 = vadd.f32 %v1454, %v1985
      %v2106 = vadd.f32 %v1457, %v1988
      %v2107 = vadd.f32 %v1462, %v1993
      %v2108 = vadd.f32 %v1465, %v1996
      %v2109 = vadd.f32 %v1470, %v2001
      %v2110 = vadd.f32 %v1473, %v2004
      %v2111 = vadd.f32 %v1478, %v2009
      %v2112 = vadd.f32 %v1481, %v2012
      %v2113 = vadd.f32 %v1486, %v2017
      %v2114 = vadd.f32 %v1489, %v2020
      %v2115 = vadd.f32 %v1494, %v2025
      %v2116 = vadd.f32 %v1497, %v2028
      %v2117 = vadd.f32 %v1502, %v2033
      %v2118 = vadd.f32 %v1505, %v2036
      %v2119 = vadd.f32 %v1510, %v2041
      %v2120 = vadd.f32 %v1513, %v2044
      %v2121 = vadd.f32 %v1518, %v2049
      %v2122 = vadd.f32 %v1521, %v2052
      %v2123 = vadd.f32 %v1526, %v2057
      %v2124 = vadd.f32 %v1529, %v2060
      %v2125 = vadd.f32 %v1534, %v2065
      %v2126 = vadd.f32 %v1537, %v2068
      %v2127 = vadd.f32 %v1542, %v2073
      %v2128 = vadd.f32 %v1545, %v2076
      %v2129 = vadd.f32 %v1550, %v2081
      %v2130 = vadd.f32 %v1553, %v2084
      %v2131 = vadd.f32 %v1558, %v2089
      %v2132 = vadd.f32 %v1561, %v2092
      %v2133 = vadd.f32 %v1566, %v2097
      %v2134 = vadd.f32 %v1569, %v2100
      %v2135 = vld [vmem:[%s2] sm:$0x1]
      %v2137 = vlaneseq
      %v2138 = vshrl.u32 %v2137, 7
      %v2139 = vsub.s32 0, %v2138
      %v2140 = vrot.slane %v2135, %v2139
      %v2142 = vmul.f32 %v2103, %v2140
      %v2143 = vmul.f32 %v2104, %v2140
      %v2144 = vmul.f32 %v2105, %v2140
      %v2145 = vmul.f32 %v2106, %v2140
      %v2146 = vmul.f32 %v2107, %v2140
      %v2147 = vmul.f32 %v2108, %v2140
      %v2148 = vmul.f32 %v2109, %v2140
      %v2149 = vmul.f32 %v2110, %v2140
      %v2150 = vmul.f32 %v2111, %v2140
      %v2151 = vmul.f32 %v2112, %v2140
      %v2152 = vmul.f32 %v2113, %v2140
      %v2153 = vmul.f32 %v2114, %v2140
      %v2154 = vmul.f32 %v2115, %v2140
      %v2155 = vmul.f32 %v2116, %v2140
      %v2156 = vmul.f32 %v2117, %v2140
      %v2157 = vmul.f32 %v2118, %v2140
      %v2158 = vmul.f32 %v2119, %v2140
      %v2159 = vmul.f32 %v2120, %v2140
      %v2160 = vmul.f32 %v2121, %v2140
      %v2161 = vmul.f32 %v2122, %v2140
      %v2162 = vmul.f32 %v2123, %v2140
      %v2163 = vmul.f32 %v2124, %v2140
      %v2164 = vmul.f32 %v2125, %v2140
      %v2165 = vmul.f32 %v2126, %v2140
      %v2166 = vmul.f32 %v2127, %v2140
      %v2167 = vmul.f32 %v2128, %v2140
      %v2168 = vmul.f32 %v2129, %v2140
      %v2169 = vmul.f32 %v2130, %v2140
      %v2170 = vmul.f32 %v2131, %v2140
      %v2171 = vmul.f32 %v2132, %v2140
      %v2172 = vmul.f32 %v2133, %v2140
      %v2173 = vmul.f32 %v2134, %v2140
      %v2174 = vld [vmem:[%s3] sm:$0x1]
      %v2176 = vlaneseq
      %v2177 = vshrl.u32 %v2176, 7
      %v2178 = vsub.s32 0, %v2177
      %v2179 = vrot.slane %v2174, %v2178
      %v2181 = vadd.f32 %v2142, %v2179
      %v2182 = vadd.f32 %v2143, %v2179
      %v2183 = vadd.f32 %v2144, %v2179
      %v2184 = vadd.f32 %v2145, %v2179
      %v2185 = vadd.f32 %v2146, %v2179
      %v2186 = vadd.f32 %v2147, %v2179
      %v2187 = vadd.f32 %v2148, %v2179
      %v2188 = vadd.f32 %v2149, %v2179
      %v2189 = vadd.f32 %v2150, %v2179
      %v2190 = vadd.f32 %v2151, %v2179
      %v2191 = vadd.f32 %v2152, %v2179
      %v2192 = vadd.f32 %v2153, %v2179
      %v2193 = vadd.f32 %v2154, %v2179
      %v2194 = vadd.f32 %v2155, %v2179
      %v2195 = vadd.f32 %v2156, %v2179
      %v2196 = vadd.f32 %v2157, %v2179
      %v2197 = vadd.f32 %v2158, %v2179
      %v2198 = vadd.f32 %v2159, %v2179
      %v2199 = vadd.f32 %v2160, %v2179
      %v2200 = vadd.f32 %v2161, %v2179
      %v2201 = vadd.f32 %v2162, %v2179
      %v2202 = vadd.f32 %v2163, %v2179
      %v2203 = vadd.f32 %v2164, %v2179
      %v2204 = vadd.f32 %v2165, %v2179
      %v2205 = vadd.f32 %v2166, %v2179
      %v2206 = vadd.f32 %v2167, %v2179
      %v2207 = vadd.f32 %v2168, %v2179
      %v2208 = vadd.f32 %v2169, %v2179
      %v2209 = vadd.f32 %v2170, %v2179
      %v2210 = vadd.f32 %v2171, %v2179
      %v2211 = vadd.f32 %v2172, %v2179
      %v2212 = vadd.f32 %v2173, %v2179
      %v2213 = vpack.c.bf16 %v2182, %v2181
      %v2214 = vpack.c.bf16 %v2184, %v2183
      %v2215 = vpack.c.bf16 %v2186, %v2185
      %v2216 = vpack.c.bf16 %v2188, %v2187
      %v2217 = vpack.c.bf16 %v2190, %v2189
      %v2218 = vpack.c.bf16 %v2192, %v2191
      %v2219 = vpack.c.bf16 %v2194, %v2193
      %v2220 = vpack.c.bf16 %v2196, %v2195
      %v2221 = vpack.c.bf16 %v2198, %v2197
      %v2222 = vpack.c.bf16 %v2200, %v2199
      %v2223 = vpack.c.bf16 %v2202, %v2201
      %v2224 = vpack.c.bf16 %v2204, %v2203
      %v2225 = vpack.c.bf16 %v2206, %v2205
      %v2226 = vpack.c.bf16 %v2208, %v2207
      %v2227 = vpack.c.bf16 %v2210, %v2209
      %v2228 = vpack.c.bf16 %v2212, %v2211
      %v2245 = vunpack.c.l.b16 %v2213
      %v2246 = vunpack.c.h.b16 %v2213
      %v2247 = vunpack.c.l.b16 %v2214
      %v2248 = vunpack.c.h.b16 %v2214
      %v2249 = vunpack.c.l.b16 %v2215
      %v2250 = vunpack.c.h.b16 %v2215
      %v2251 = vunpack.c.l.b16 %v2216
      %v2252 = vunpack.c.h.b16 %v2216
      %v2253 = vunpack.c.l.b16 %v2217
      %v2254 = vunpack.c.h.b16 %v2217
      %v2255 = vunpack.c.l.b16 %v2218
      %v2256 = vunpack.c.h.b16 %v2218
      %v2257 = vunpack.c.l.b16 %v2219
      %v2258 = vunpack.c.h.b16 %v2219
      %v2259 = vunpack.c.l.b16 %v2220
      %v2260 = vunpack.c.h.b16 %v2220
      %v2261 = vunpack.c.l.b16 %v2221
      %v2262 = vunpack.c.h.b16 %v2221
      %v2263 = vunpack.c.l.b16 %v2222
      %v2264 = vunpack.c.h.b16 %v2222
      %v2265 = vunpack.c.l.b16 %v2223
      %v2266 = vunpack.c.h.b16 %v2223
      %v2267 = vunpack.c.l.b16 %v2224
      %v2268 = vunpack.c.h.b16 %v2224
      %v2269 = vunpack.c.l.b16 %v2225
      %v2270 = vunpack.c.h.b16 %v2225
      %v2271 = vunpack.c.l.b16 %v2226
      %v2272 = vunpack.c.h.b16 %v2226
      %v2273 = vunpack.c.l.b16 %v2227
      %v2274 = vunpack.c.h.b16 %v2227
      %v2275 = vunpack.c.l.b16 %v2228
      %v2276 = vunpack.c.h.b16 %v2228
      %v2277 = vpack.c.b16 %v2245, %v2245
      %v2278 = vpack.c.b16 %v2246, %v2246
      %v2279 = vpack.c.b16 %v2247, %v2247
      %v2280 = vpack.c.b16 %v2248, %v2248
      %v2281 = vpack.c.b16 %v2249, %v2249
      %v2282 = vpack.c.b16 %v2250, %v2250
      %v2283 = vpack.c.b16 %v2251, %v2251
      %v2284 = vpack.c.b16 %v2252, %v2252
      %v2285 = vpack.c.b16 %v2253, %v2253
      %v2286 = vpack.c.b16 %v2254, %v2254
      %v2287 = vpack.c.b16 %v2255, %v2255
      %v2288 = vpack.c.b16 %v2256, %v2256
      %v2289 = vpack.c.b16 %v2257, %v2257
      %v2290 = vpack.c.b16 %v2258, %v2258
      %v2291 = vpack.c.b16 %v2259, %v2259
      %v2292 = vpack.c.b16 %v2260, %v2260
      %v2293 = vpack.c.b16 %v2261, %v2261
      %v2294 = vpack.c.b16 %v2262, %v2262
      %v2295 = vpack.c.b16 %v2263, %v2263
      %v2296 = vpack.c.b16 %v2264, %v2264
      %v2297 = vpack.c.b16 %v2265, %v2265
      %v2298 = vpack.c.b16 %v2266, %v2266
      %v2299 = vpack.c.b16 %v2267, %v2267
      %v2300 = vpack.c.b16 %v2268, %v2268
      %v2301 = vpack.c.b16 %v2269, %v2269
      %v2302 = vpack.c.b16 %v2270, %v2270
      %v2303 = vpack.c.b16 %v2271, %v2271
      %v2304 = vpack.c.b16 %v2272, %v2272
      %v2305 = vpack.c.b16 %v2273, %v2273
      %v2306 = vpack.c.b16 %v2274, %v2274
      %v2307 = vpack.c.b16 %v2275, %v2275
      %v2308 = vpack.c.b16 %v2276, %v2276
      %2341 = vst [vmem:[%s197] sm:$0xf] %v2277
      %2342 = vst [vmem:[%s197 + $0x4] sm:$0xf] %v2278
      %2343 = vst [vmem:[%s197 + $0x8] sm:$0xf] %v2279
      %2344 = vst [vmem:[%s197 + $0xc] sm:$0xf] %v2280
      %2345 = vst [vmem:[%s197 + $0x10] sm:$0xf] %v2281
      %2346 = vst [vmem:[%s197 + $0x14] sm:$0xf] %v2282
      %2347 = vst [vmem:[%s197 + $0x18] sm:$0xf] %v2283
      %2348 = vst [vmem:[%s197 + $0x1c] sm:$0xf] %v2284
      %2349 = vst [vmem:[%s197 + $0x20] sm:$0xf] %v2285
      %2350 = vst [vmem:[%s197 + $0x24] sm:$0xf] %v2286
      %2351 = vst [vmem:[%s197 + $0x28] sm:$0xf] %v2287
      %2352 = vst [vmem:[%s197 + $0x2c] sm:$0xf] %v2288
      %2353 = vst [vmem:[%s197 + $0x30] sm:$0xf] %v2289
      %2354 = vst [vmem:[%s197 + $0x34] sm:$0xf] %v2290
      %2355 = vst [vmem:[%s197 + $0x38] sm:$0xf] %v2291
      %2356 = vst [vmem:[%s197 + $0x3c] sm:$0xf] %v2292
      %2357 = vst [vmem:[%s197 + $0x40] sm:$0xf] %v2293
      %2358 = vst [vmem:[%s197 + $0x44] sm:$0xf] %v2294
      %2359 = vst [vmem:[%s197 + $0x48] sm:$0xf] %v2295
      %2360 = vst [vmem:[%s197 + $0x4c] sm:$0xf] %v2296
      %2361 = vst [vmem:[%s197 + $0x50] sm:$0xf] %v2297
      %2362 = vst [vmem:[%s197 + $0x54] sm:$0xf] %v2298
      %2363 = vst [vmem:[%s197 + $0x58] sm:$0xf] %v2299
      %2364 = vst [vmem:[%s197 + $0x5c] sm:$0xf] %v2300
      %2365 = vst [vmem:[%s197 + $0x60] sm:$0xf] %v2301
      %2366 = vst [vmem:[%s197 + $0x64] sm:$0xf] %v2302
      %2367 = vst [vmem:[%s197 + $0x68] sm:$0xf] %v2303
      %2368 = vst [vmem:[%s197 + $0x6c] sm:$0xf] %v2304
      %2369 = vst [vmem:[%s197 + $0x70] sm:$0xf] %v2305
      %2370 = vst [vmem:[%s197 + $0x74] sm:$0xf] %v2306
      %2371 = vst [vmem:[%s197 + $0x78] sm:$0xf] %v2307
      %2372 = vst [vmem:[%s197 + $0x7c] sm:$0xf] %v2308
      %p2373 = scmp.lt.s32.totalorder %s15, 1
      %s2374 = scalar_select %p2373, %s15, 1
      %s2375 = smul.addr %s2374, 32
      %s2376 = smul.addr %s2375, 4
      %s2377 = scalar_lea.vmem %s4, %s2376
      // Predicated region
      $region37: #{basic_block_forward.7} parent=35 // pred_check
        %p2378 = pneg %p122
      $region38: #{basic_block_forward.7} parent=35 // pred_check_branch
        %2380 = sbr.rel (%p2378) target = $region40
      $region39: #{basic_block_forward.7} parent=35 // pred_region
        _
      $region40: #{basic_block_forward.7} parent=35 // pred_fallthru
        _
    $region36: #{basic_block_forward.7} parent=5 // pred_fallthru
      _
    %p2381 = scmp.le.s32.totalorder 2, %s10
    // Predicated region
    $region41: #{basic_block_forward.7} parent=5 // pred_check
      %p2382 = pneg %p2381
    $region42: #{basic_block_forward.7} parent=5 // pred_check_branch
      %2384 = sbr.rel (%p2382) target = $region44
    $region43: #{basic_block_forward.7} parent=5 // pred_region
      %s2385 = ssub.s32 %s10, 2
      // Predicated region
      $region45: #{basic_block_forward.7} parent=43 // pred_check
        %p2386 = pneg %p128
      $region46: #{basic_block_forward.7} parent=43 // pred_check_branch
        %2388 = sbr.rel (%p2386) target = $region48
      $region47: #{basic_block_forward.7} parent=43 // pred_region
        %p2389 = scmp.lt.s32.totalorder %s16, 1
        %s2390 = scalar_select %p2389, %s16, 1
        %s2391 = smul.addr %s2390, 32
        %s2392 = smul.addr %s2391, 4
        %s2393 = scalar_lea.vmem %s4, %s2392
      $region48: #{basic_block_forward.7} parent=43 // pred_fallthru
        _
    $region44: #{basic_block_forward.7} parent=5 // pred_fallthru
      _
  $region6: #{basic_block_forward.7} parent=0 // loop_footer
    %s14 = sadd.s32 1, %s10
  $region7: #{basic_block_forward.7} parent=0 // loop_footer_branch
    %9 = sbr.rel target = $region3
  $region8: #{basic_block_forward.7} parent=0 // loop_exit
    _

// kernel: basic_block_forward.8
$region0: #{basic_block_forward.8}
  #allocation0 [shape = 'u32[]', space=smem, size = 0x4, offset = 0x4, fixed_abs, tag = 'smem constant byte address 0x4 - core index']
  #allocation1 [shape = 'u32[144,128]{1,0:T(1,128)}', space=vmem, size = 0x12000, scoped, tag = 'internal scratch']
  %s0 = inlined_call_operand.vmem [shape: bf16[512,128], index: 0, kind: input, shape index: {}]
  %s1 = inlined_call_operand.vmem [shape: bf16[128,128], index: 1, kind: input, shape index: {}]
  %s2 = inlined_call_operand.vmem [shape: f32[1,128], index: 2, kind: input, shape index: {}]
  %s3 = inlined_call_operand.vmem [shape: f32[1,128], index: 3, kind: input, shape index: {}]
  %s4 = inlined_call_operand.vmem [shape: bf16[512,128], index: 4, kind: output, shape index: {}]
  %s5 = sld [smem:[#allocation0]]
  $region49: #{basic_block_forward.8} parent=0
    _
  %s7 = ssub.s32 1, %s5
  %s8 = scalar_select 0, %s7, %s5
  loop: start=0, step=1, limit=4
  $region2: #{basic_block_forward.8} parent=0 // loop_pre_header
    _
  $region3: #{basic_block_forward.8} parent=0 // loop_header
    %s10 = sphi 0, %s14
    %p11 = scmp.ge.s32.totalorder %s10, 4
    %s20 = sphi 0, %s22
    %s23 = sphi 0, %s20
    %s24 = sphi 0, %s23
    %s40 = sphi 0, %s24
    %s44 = sphi 0, %s44
    %s46 = sphi 0, %s44
    %s47 = sphi 0, %s46
    %s61 = sphi 0, %s47
    %s65 = sphi 0, %s65
    %s67 = sphi 0, %s65
    %s68 = sphi 0, %s67
    %s82 = sphi 0, %s68
    %s86 = sphi 0, %s86
    %s88 = sphi 0, %s86
    %s89 = sphi 0, %s88
    %s103 = sphi 0, %s89
    %s109 = sphi 0, %s111
    %s112 = sphi 0, %s109
    %s113 = sphi 0, %s112
    %s129 = sphi 0, %s113
  $region4: #{basic_block_forward.8} parent=0 // loop_header_branch
    %13 = sbr.rel (%p11) target = $region8
  $region5: #{basic_block_forward.8} parent=0 // loop_body
    %s15 = ssub.s32 %s10, 1
    %s16 = ssub.s32 %s10, 2
    %s17 = sadd.s32 %s10, 1
    %s18 = ssub.s32 %s10, %s17
    %p19 = scmp.eq.s32.totalorder %s18, 0
    %s21 = sadd.s32 %s20, 1
    %s22 = scalar_select %p19, %s20, %s21
    %p25 = pneg %p19
    %p26 = scmp.eq.s32.totalorder %s10, 1
    %p27 = por %p25, %p26
    %p28 = scmp.ne.s32.totalorder %s20, %s23
    %p29 = scmp.eq.s32.totalorder %s10, 0
    %p30 = por %p28, %p29
    %p31 = scmp.ne.s32.totalorder %s20, %s23
    %p32 = scmp.eq.s32.totalorder %s15, 1
    %p33 = por %p31, %p32
    %p34 = scmp.ne.s32.totalorder %s23, %s24
    %p35 = scmp.eq.s32.totalorder %s15, 0
    %p36 = por %p34, %p35
    %p37 = scmp.ne.s32.totalorder %s23, %s24
    %p38 = scmp.eq.s32.totalorder %s16, 1
    %p39 = por %p37, %p38
    %p41 = scmp.ne.s32.totalorder %s24, %s40
    %p42 = scmp.eq.s32.totalorder %s16, 0
    %p43 = por %p41, %p42
    %s45 = sadd.s32 %s44, 1
    %p48 = scmp.eq.s32.totalorder %s10, 1
    %p49 = scmp.ne.s32.totalorder %s44, %s46
    %p50 = scmp.eq.s32.totalorder %s10, 0
    %p51 = por %p49, %p50
    %p52 = scmp.ne.s32.totalorder %s44, %s46
    %p53 = scmp.eq.s32.totalorder %s15, 1
    %p54 = por %p52, %p53
    %p55 = scmp.ne.s32.totalorder %s46, %s47
    %p56 = scmp.eq.s32.totalorder %s15, 0
    %p57 = por %p55, %p56
    %p58 = scmp.ne.s32.totalorder %s46, %s47
    %p59 = scmp.eq.s32.totalorder %s16, 1
    %p60 = por %p58, %p59
    %p62 = scmp.ne.s32.totalorder %s47, %s61
    %p63 = scmp.eq.s32.totalorder %s16, 0
    %p64 = por %p62, %p63
    %s66 = sadd.s32 %s65, 1
    %p69 = scmp.eq.s32.totalorder %s10, 1
    %p70 = scmp.ne.s32.totalorder %s65, %s67
    %p71 = scmp.eq.s32.totalorder %s10, 0
    %p72 = por %p70, %p71
    %p73 = scmp.ne.s32.totalorder %s65, %s67
    %p74 = scmp.eq.s32.totalorder %s15, 1
    %p75 = por %p73, %p74
    %p76 = scmp.ne.s32.totalorder %s67, %s68
    %p77 = scmp.eq.s32.totalorder %s15, 0
    %p78 = por %p76, %p77
    %p79 = scmp.ne.s32.totalorder %s67, %s68
    %p80 = scmp.eq.s32.totalorder %s16, 1
    %p81 = por %p79, %p80
    %p83 = scmp.ne.s32.totalorder %s68, %s82
    %p84 = scmp.eq.s32.totalorder %s16, 0
    %p85 = por %p83, %p84
    %s87 = sadd.s32 %s86, 1
    %p90 = scmp.eq.s32.totalorder %s10, 1
    %p91 = scmp.ne.s32.totalorder %s86, %s88
    %p92 = scmp.eq.s32.totalorder %s10, 0
    %p93 = por %p91, %p92
    %p94 = scmp.ne.s32.totalorder %s86, %s88
    %p95 = scmp.eq.s32.totalorder %s15, 1
    %p96 = por %p94, %p95
    %p97 = scmp.ne.s32.totalorder %s88, %s89
    %p98 = scmp.eq.s32.totalorder %s15, 0
    %p99 = por %p97, %p98
    %p100 = scmp.ne.s32.totalorder %s88, %s89
    %p101 = scmp.eq.s32.totalorder %s16, 1
    %p102 = por %p100, %p101
    %p104 = scmp.ne.s32.totalorder %s89, %s103
    %p105 = scmp.eq.s32.totalorder %s16, 0
    %p106 = por %p104, %p105
    %s107 = ssub.s32 %s10, %s17
    %p108 = scmp.eq.s32.totalorder %s107, 0
    %s110 = sadd.s32 %s109, 1
    %s111 = scalar_select %p108, %s109, %s110
    %p114 = pneg %p108
    %p115 = scmp.eq.s32.totalorder %s10, 1
    %p116 = por %p114, %p115
    %p117 = scmp.ne.s32.totalorder %s109, %s112
    %p118 = scmp.eq.s32.totalorder %s10, 0
    %p119 = por %p117, %p118
    %p120 = scmp.ne.s32.totalorder %s109, %s112
    %p121 = scmp.eq.s32.totalorder %s15, 1
    %p122 = por %p120, %p121
    %p123 = scmp.ne.s32.totalorder %s112, %s113
    %p124 = scmp.eq.s32.totalorder %s15, 0
    %p125 = por %p123, %p124
    %p126 = scmp.ne.s32.totalorder %s112, %s113
    %p127 = scmp.eq.s32.totalorder %s16, 1
    %p128 = por %p126, %p127
    %p130 = scmp.ne.s32.totalorder %s113, %s129
    %p131 = scmp.eq.s32.totalorder %s16, 0
    %p132 = por %p130, %p131
    %p133 = scmp.le.s32.totalorder 1, %s10
    %p134 = scmp.lt.s32.totalorder %s10, 3
    %p135 = pnand %p133, %p134
    %p136 = pneg %p135
    // Predicated region
    $region9: #{basic_block_forward.8} parent=5 // pred_check
      _
    $region10: #{basic_block_forward.8} parent=5 // pred_check_branch
      %138 = sbr.rel (%p135) target = $region12
    $region11: #{basic_block_forward.8} parent=5 // pred_region
      %s139 = ssub.s32 %s10, 1
      // Predicated region
      $region13: #{basic_block_forward.8} parent=11 // pred_check
        %p140 = pneg %p57
      $region14: #{basic_block_forward.8} parent=11 // pred_check_branch
        %142 = sbr.rel (%p140) target = $region16
      $region15: #{basic_block_forward.8} parent=11 // pred_region
        _
      $region16: #{basic_block_forward.8} parent=11 // pred_fallthru
        _
      // Predicated region
      $region17: #{basic_block_forward.8} parent=11 // pred_check
        %p143 = pneg %p78
      $region18: #{basic_block_forward.8} parent=11 // pred_check_branch
        %145 = sbr.rel (%p143) target = $region20
      $region19: #{basic_block_forward.8} parent=11 // pred_region
        _
      $region20: #{basic_block_forward.8} parent=11 // pred_fallthru
        _
      // Predicated region
      $region21: #{basic_block_forward.8} parent=11 // pred_check
        %p146 = pneg %p99
      $region22: #{basic_block_forward.8} parent=11 // pred_check_branch
        %148 = sbr.rel (%p146) target = $region24
      $region23: #{basic_block_forward.8} parent=11 // pred_region
        _
      $region24: #{basic_block_forward.8} parent=11 // pred_fallthru
        _
    $region12: #{basic_block_forward.8} parent=5 // pred_fallthru
      _
    %p149 = scmp.lt.s32.totalorder %s10, 2
    // Predicated region
    $region25: #{basic_block_forward.8} parent=5 // pred_check
      %p150 = pneg %p149
    $region26: #{basic_block_forward.8} parent=5 // pred_check_branch
      %152 = sbr.rel (%p150) target = $region28
    $region27: #{basic_block_forward.8} parent=5 // pred_region
      // Predicated region
      $region29: #{basic_block_forward.8} parent=27 // pred_check
        %p153 = pneg %p30
      $region30: #{basic_block_forward.8} parent=27 // pred_check_branch
        %155 = sbr.rel (%p153) target = $region32
      $region31: #{basic_block_forward.8} parent=27 // pred_region
        %s156 = smul.u32 32, %s10
        %p157 = scmp.lt.s32.totalorder %s156, 63
        %s158 = scalar_select %p157, %s156, 63
        %s159 = smul.addr %s158, 4
        %s160 = scalar_lea.vmem %s0, %s159
        %s161 = smul.u32 32, %s10
      $region32: #{basic_block_forward.8} parent=27 // pred_fallthru
        _
    $region28: #{basic_block_forward.8} parent=5 // pred_fallthru
      _
    %p162 = scmp.le.s32.totalorder 1, %s10
    %p163 = scmp.lt.s32.totalorder %s10, 3
    %p164 = pnand %p162, %p163
    %p165 = pneg %p164
    // Predicated region
    $region33: #{basic_block_forward.8} parent=5 // pred_check
      _
    $region34: #{basic_block_forward.8} parent=5 // pred_check_branch
      %167 = sbr.rel (%p164) target = $region36
    $region35: #{basic_block_forward.8} parent=5 // pred_region
      %s168 = ssub.s32 %s10, 1
      %s169 = smul.u32 32, %s15
      %p170 = scmp.lt.s32.totalorder %s169, 63
      %s171 = scalar_select %p170, %s169, 63
      %s172 = smul.addr %s171, 4
      %s173 = scalar_lea.vmem %s0, %s172
      %p174 = pneg %p36
      %p175 = pneg %p33
      %p176 = pneg %p57
      %p177 = pneg %p54
      %p178 = pneg %p78
      %p179 = pneg %p75
      %p180 = pneg %p99
      %p181 = pneg %p96
      %p182 = pneg %p125
      %p183 = pneg %p122
      %s184 = smul.u32 32, %s15
      %p185 = scmp.lt.s32.totalorder %s184, 63
      %s186 = scalar_select %p185, %s184, 63
      %s187 = smul.addr %s186, 4
      %s188 = scalar_lea.vmem %s4, %s187
      %s189 = smul.u32 32, %s15
      %p190 = scmp.lt.s32.totalorder %s189, 63
      %s191 = scalar_select %p190, %s189, 63
      %s192 = smul.addr %s191, 4
      %s193 = scalar_lea.vmem %s0, %s192
      %s194 = smul.u32 32, %s15
      %s195 = smul.u32 32, %s15
      %p196 = scmp.lt.s32.totalorder %s195, 63
      %s197 = scalar_select %p196, %s195, 63
      %s198 = smul.addr %s197, 4
      %s199 = scalar_lea.vmem %s4, %s198
      %s200 = smul.u32 32, %s15
      %v202 = vld [vmem:[%s193] sm:$0xf]
      %v203 = vld [vmem:[%s193 + $0x4] sm:$0xf]
      %v204 = vld [vmem:[%s193 + $0x8] sm:$0xf]
      %v205 = vld [vmem:[%s193 + $0xc] sm:$0xf]
      %v206 = vld [vmem:[%s193 + $0x10] sm:$0xf]
      %v207 = vld [vmem:[%s193 + $0x14] sm:$0xf]
      %v208 = vld [vmem:[%s193 + $0x18] sm:$0xf]
      %v209 = vld [vmem:[%s193 + $0x1c] sm:$0xf]
      %v210 = vld [vmem:[%s193 + $0x20] sm:$0xf]
      %v211 = vld [vmem:[%s193 + $0x24] sm:$0xf]
      %v212 = vld [vmem:[%s193 + $0x28] sm:$0xf]
      %v213 = vld [vmem:[%s193 + $0x2c] sm:$0xf]
      %v214 = vld [vmem:[%s193 + $0x30] sm:$0xf]
      %v215 = vld [vmem:[%s193 + $0x34] sm:$0xf]
      %v216 = vld [vmem:[%s193 + $0x38] sm:$0xf]
      %v217 = vld [vmem:[%s193 + $0x3c] sm:$0xf]
      %v218 = vld [vmem:[%s193 + $0x40] sm:$0xf]
      %v219 = vld [vmem:[%s193 + $0x44] sm:$0xf]
      %v220 = vld [vmem:[%s193 + $0x48] sm:$0xf]
      %v221 = vld [vmem:[%s193 + $0x4c] sm:$0xf]
      %v222 = vld [vmem:[%s193 + $0x50] sm:$0xf]
      %v223 = vld [vmem:[%s193 + $0x54] sm:$0xf]
      %v224 = vld [vmem:[%s193 + $0x58] sm:$0xf]
      %v225 = vld [vmem:[%s193 + $0x5c] sm:$0xf]
      %v226 = vld [vmem:[%s193 + $0x60] sm:$0xf]
      %v227 = vld [vmem:[%s193 + $0x64] sm:$0xf]
      %v228 = vld [vmem:[%s193 + $0x68] sm:$0xf]
      %v229 = vld [vmem:[%s193 + $0x6c] sm:$0xf]
      %v230 = vld [vmem:[%s193 + $0x70] sm:$0xf]
      %v231 = vld [vmem:[%s193 + $0x74] sm:$0xf]
      %v232 = vld [vmem:[%s193 + $0x78] sm:$0xf]
      %v233 = vld [vmem:[%s193 + $0x7c] sm:$0xf]
      %v234 = vld [vmem:[%s1] sm:$0xf]
      %v235 = vld [vmem:[%s1 + $0x4] sm:$0xf]
      %v236 = vld [vmem:[%s1 + $0x8] sm:$0xf]
      %v237 = vld [vmem:[%s1 + $0xc] sm:$0xf]
      %v238 = vld [vmem:[%s1 + $0x10] sm:$0xf]
      %v239 = vld [vmem:[%s1 + $0x14] sm:$0xf]
      %v240 = vld [vmem:[%s1 + $0x18] sm:$0xf]
      %v241 = vld [vmem:[%s1 + $0x1c] sm:$0xf]
      %v242 = vld [vmem:[%s1 + $0x20] sm:$0xf]
      %v243 = vld [vmem:[%s1 + $0x24] sm:$0xf]
      %v244 = vld [vmem:[%s1 + $0x28] sm:$0xf]
      %v245 = vld [vmem:[%s1 + $0x2c] sm:$0xf]
      %v246 = vld [vmem:[%s1 + $0x30] sm:$0xf]
      %v247 = vld [vmem:[%s1 + $0x34] sm:$0xf]
      %v248 = vld [vmem:[%s1 + $0x38] sm:$0xf]
      %v249 = vld [vmem:[%s1 + $0x3c] sm:$0xf]
      %v282 = vunpack.c.l.b16 %v202
      %v283 = vunpack.c.l.b16 %v203
      %v284 = vunpack.c.l.b16 %v204
      %v285 = vunpack.c.l.b16 %v205
      %v286 = vunpack.c.l.b16 %v206
      %v287 = vunpack.c.l.b16 %v207
      %v288 = vunpack.c.l.b16 %v208
      %v289 = vunpack.c.l.b16 %v209
      %v290 = vunpack.c.l.b16 %v210
      %v291 = vunpack.c.l.b16 %v211
      %v292 = vunpack.c.l.b16 %v212
      %v293 = vunpack.c.l.b16 %v213
      %v294 = vunpack.c.l.b16 %v214
      %v295 = vunpack.c.l.b16 %v215
      %v296 = vunpack.c.l.b16 %v216
      %v297 = vunpack.c.l.b16 %v217
      %v298 = vunpack.c.l.b16 %v218
      %v299 = vunpack.c.l.b16 %v219
      %v300 = vunpack.c.l.b16 %v220
      %v301 = vunpack.c.l.b16 %v221
      %v302 = vunpack.c.l.b16 %v222
      %v303 = vunpack.c.l.b16 %v223
      %v304 = vunpack.c.l.b16 %v224
      %v305 = vunpack.c.l.b16 %v225
      %v306 = vunpack.c.l.b16 %v226
      %v307 = vunpack.c.l.b16 %v227
      %v308 = vunpack.c.l.b16 %v228
      %v309 = vunpack.c.l.b16 %v229
      %v310 = vunpack.c.l.b16 %v230
      %v311 = vunpack.c.l.b16 %v231
      %v312 = vunpack.c.l.b16 %v232
      %v313 = vunpack.c.l.b16 %v233
      %v314 = vpack.c.b16 %v283, %v282
      %v315 = vpack.c.b16 %v285, %v284
      %v316 = vpack.c.b16 %v287, %v286
      %v317 = vpack.c.b16 %v289, %v288
      %v318 = vpack.c.b16 %v291, %v290
      %v319 = vpack.c.b16 %v293, %v292
      %v320 = vpack.c.b16 %v295, %v294
      %v321 = vpack.c.b16 %v297, %v296
      %v322 = vpack.c.b16 %v299, %v298
      %v323 = vpack.c.b16 %v301, %v300
      %v324 = vpack.c.b16 %v303, %v302
      %v325 = vpack.c.b16 %v305, %v304
      %v326 = vpack.c.b16 %v307, %v306
      %v327 = vpack.c.b16 %v309, %v308
      %v328 = vpack.c.b16 %v311, %v310
      %v329 = vpack.c.b16 %v313, %v312
      %v362 = vunpack.c.l.b16 %v234
      %v363 = vunpack.c.l.b16 %v235
      %v364 = vunpack.c.l.b16 %v236
      %v365 = vunpack.c.l.b16 %v237
      %v366 = vunpack.c.l.b16 %v238
      %v367 = vunpack.c.l.b16 %v239
      %v368 = vunpack.c.l.b16 %v240
      %v369 = vunpack.c.l.b16 %v241
      %v370 = vunpack.c.l.b16 %v242
      %v371 = vunpack.c.l.b16 %v243
      %v372 = vunpack.c.l.b16 %v244
      %v373 = vunpack.c.l.b16 %v245
      %v374 = vunpack.c.l.b16 %v246
      %v375 = vunpack.c.l.b16 %v247
      %v376 = vunpack.c.l.b16 %v248
      %v377 = vunpack.c.l.b16 %v249
      %v378 = vpack.c.b16 %v363, %v362
      %v379 = vpack.c.b16 %v365, %v364
      %v380 = vpack.c.b16 %v367, %v366
      %v381 = vpack.c.b16 %v369, %v368
      %v382 = vpack.c.b16 %v371, %v370
      %v383 = vpack.c.b16 %v373, %v372
      %v384 = vpack.c.b16 %v375, %v374
      %v385 = vpack.c.b16 %v377, %v376
      %394 = vmatprep.subr.bf16.mxu0 0
      %395 = vmatpush1.bf16.msra.mxu0 %v378
      %396 = vmatprep.subr.bf16.mxu0 0
      %397 = vmatpush1.bf16.msra.mxu0 %v379
      %398 = vmatprep.subr.bf16.mxu0 0
      %399 = vmatpush1.bf16.msra.mxu0 %v380
      %400 = vmatprep.subr.bf16.mxu0 0
      %401 = vmatpush1.bf16.msra.mxu0 %v381
      %402 = vmatprep.subr.bf16.mxu0 0
      %403 = vmatpush1.bf16.msra.mxu0 %v382
      %404 = vmatprep.subr.bf16.mxu0 0
      %405 = vmatpush1.bf16.msra.mxu0 %v383
      %406 = vmatprep.subr.bf16.mxu0 0
      %407 = vmatpush1.bf16.msra.mxu0 %v384
      %408 = vmatprep.subr.bf16.mxu0 0
      %409 = vmatpush1.bf16.msra.mxu0 %v385
      %410 = vmatprep.subr.bf16.mxu0 0
      %411 = vmatpush1.bf16.msra.mxu0 0
      %412 = vmatprep.subr.bf16.mxu0 0
      %413 = vmatpush1.bf16.msra.mxu0 0
      %414 = vmatprep.subr.bf16.mxu0 0
      %415 = vmatpush1.bf16.msra.mxu0 0
      %416 = vmatprep.subr.bf16.mxu0 0
      %417 = vmatpush1.bf16.msra.mxu0 0
      %418 = vmatprep.subr.bf16.mxu0 0
      %419 = vmatpush1.bf16.msra.mxu0 0
      %420 = vmatprep.subr.bf16.mxu0 0
      %421 = vmatpush1.bf16.msra.mxu0 0
      %422 = vmatprep.subr.bf16.mxu0 0
      %423 = vmatpush1.bf16.msra.mxu0 0
      %424 = vmatprep.subr.bf16.mxu0 0
      %425 = vmatpush1.bf16.msra.mxu0 0
      %426 = vmatprep.mubr.bf16.mxu0 0
      %427 = vmatmul.mubr.bf16.gmra.mrb[0].mxu0 %v314
      %v428 = vpop.f32.mrb[0].mxu0
      %v429 = vadd.f32 0.0, %v428
      %v430 = vpop.f32.mrb[0].mxu0
      %v431 = vpop.f32.mrb[0].mxu0
      %v432 = vadd.f32 0.0, %v431
      %v433 = vpop.f32.mrb[0].mxu0
      %434 = vmatprep.mubr.bf16.mxu0 0
      %435 = vmatmul.mubr.bf16.gmra.mrb[0].mxu0 %v315
      %v436 = vpop.f32.mrb[0].mxu0
      %v437 = vadd.f32 0.0, %v436
      %v438 = vpop.f32.mrb[0].mxu0
      %v439 = vpop.f32.mrb[0].mxu0
      %v440 = vadd.f32 0.0, %v439
      %v441 = vpop.f32.mrb[0].mxu0
      %442 = vmatprep.mubr.bf16.mxu0 0
      %443 = vmatmul.mubr.bf16.gmra.mrb[0].mxu0 %v316
      %v444 = vpop.f32.mrb[0].mxu0
      %v445 = vadd.f32 0.0, %v444
      %v446 = vpop.f32.mrb[0].mxu0
      %v447 = vpop.f32.mrb[0].mxu0
      %v448 = vadd.f32 0.0, %v447
      %v449 = vpop.f32.mrb[0].mxu0
      %450 = vmatprep.mubr.bf16.mxu0 0
      %451 = vmatmul.mubr.bf16.gmra.mrb[0].mxu0 %v317
      %v452 = vpop.f32.mrb[0].mxu0
      %v453 = vadd.f32 0.0, %v452
      %v454 = vpop.f32.mrb[0].mxu0
      %v455 = vpop.f32.mrb[0].mxu0
      %v456 = vadd.f32 0.0, %v455
      %v457 = vpop.f32.mrb[0].mxu0
      %458 = vmatprep.mubr.bf16.mxu0 0
      %459 = vmatmul.mubr.bf16.gmra.mrb[0].mxu0 %v318
      %v460 = vpop.f32.mrb[0].mxu0
      %v461 = vadd.f32 0.0, %v460
      %v462 = vpop.f32.mrb[0].mxu0
      %v463 = vpop.f32.mrb[0].mxu0
      %v464 = vadd.f32 0.0, %v463
      %v465 = vpop.f32.mrb[0].mxu0
      %466 = vmatprep.mubr.bf16.mxu0 0
      %467 = vmatmul.mubr.bf16.gmra.mrb[0].mxu0 %v319
      %v468 = vpop.f32.mrb[0].mxu0
      %v469 = vadd.f32 0.0, %v468
      %v470 = vpop.f32.mrb[0].mxu0
      %v471 = vpop.f32.mrb[0].mxu0
      %v472 = vadd.f32 0.0, %v471
      %v473 = vpop.f32.mrb[0].mxu0
      %474 = vmatprep.mubr.bf16.mxu0 0
      %475 = vmatmul.mubr.bf16.gmra.mrb[0].mxu0 %v320
      %v476 = vpop.f32.mrb[0].mxu0
      %v477 = vadd.f32 0.0, %v476
      %v478 = vpop.f32.mrb[0].mxu0
      %v479 = vpop.f32.mrb[0].mxu0
      %v480 = vadd.f32 0.0, %v479
      %v481 = vpop.f32.mrb[0].mxu0
      %482 = vmatprep.mubr.bf16.mxu0 0
      %483 = vmatmul.mubr.bf16.gmra.mrb[0].mxu0 %v321
      %v484 = vpop.f32.mrb[0].mxu0
      %v485 = vadd.f32 0.0, %v484
      %v486 = vpop.f32.mrb[0].mxu0
      %v487 = vpop.f32.mrb[0].mxu0
      %v488 = vadd.f32 0.0, %v487
      %v489 = vpop.f32.mrb[0].mxu0
      %490 = vmatprep.mubr.bf16.mxu0 0
      %491 = vmatmul.mubr.bf16.gmra.mrb[0].mxu0 %v322
      %v492 = vpop.f32.mrb[0].mxu0
      %v493 = vadd.f32 0.0, %v492
      %v494 = vpop.f32.mrb[0].mxu0
      %v495 = vpop.f32.mrb[0].mxu0
      %v496 = vadd.f32 0.0, %v495
      %v497 = vpop.f32.mrb[0].mxu0
      %498 = vmatprep.mubr.bf16.mxu0 0
      %499 = vmatmul.mubr.bf16.gmra.mrb[0].mxu0 %v323
      %v500 = vpop.f32.mrb[0].mxu0
      %v501 = vadd.f32 0.0, %v500
      %v502 = vpop.f32.mrb[0].mxu0
      %v503 = vpop.f32.mrb[0].mxu0
      %v504 = vadd.f32 0.0, %v503
      %v505 = vpop.f32.mrb[0].mxu0
      %506 = vmatprep.mubr.bf16.mxu0 0
      %507 = vmatmul.mubr.bf16.gmra.mrb[0].mxu0 %v324
      %v508 = vpop.f32.mrb[0].mxu0
      %v509 = vadd.f32 0.0, %v508
      %v510 = vpop.f32.mrb[0].mxu0
      %v511 = vpop.f32.mrb[0].mxu0
      %v512 = vadd.f32 0.0, %v511
      %v513 = vpop.f32.mrb[0].mxu0
      %514 = vmatprep.mubr.bf16.mxu0 0
      %515 = vmatmul.mubr.bf16.gmra.mrb[0].mxu0 %v325
      %v516 = vpop.f32.mrb[0].mxu0
      %v517 = vadd.f32 0.0, %v516
      %v518 = vpop.f32.mrb[0].mxu0
      %v519 = vpop.f32.mrb[0].mxu0
      %v520 = vadd.f32 0.0, %v519
      %v521 = vpop.f32.mrb[0].mxu0
      %522 = vmatprep.mubr.bf16.mxu0 0
      %523 = vmatmul.mubr.bf16.gmra.mrb[0].mxu0 %v326
      %v524 = vpop.f32.mrb[0].mxu0
      %v525 = vadd.f32 0.0, %v524
      %v526 = vpop.f32.mrb[0].mxu0
      %v527 = vpop.f32.mrb[0].mxu0
      %v528 = vadd.f32 0.0, %v527
      %v529 = vpop.f32.mrb[0].mxu0
      %530 = vmatprep.mubr.bf16.mxu0 0
      %531 = vmatmul.mubr.bf16.gmra.mrb[0].mxu0 %v327
      %v532 = vpop.f32.mrb[0].mxu0
      %v533 = vadd.f32 0.0, %v532
      %v534 = vpop.f32.mrb[0].mxu0
      %v535 = vpop.f32.mrb[0].mxu0
      %v536 = vadd.f32 0.0, %v535
      %v537 = vpop.f32.mrb[0].mxu0
      %538 = vmatprep.mubr.bf16.mxu0 0
      %539 = vmatmul.mubr.bf16.gmra.mrb[0].mxu0 %v328
      %v540 = vpop.f32.mrb[0].mxu0
      %v541 = vadd.f32 0.0, %v540
      %v542 = vpop.f32.mrb[0].mxu0
      %v543 = vpop.f32.mrb[0].mxu0
      %v544 = vadd.f32 0.0, %v543
      %v545 = vpop.f32.mrb[0].mxu0
      %546 = vmatprep.mubr.bf16.mxu0 0
      %547 = vmatmul.mubr.bf16.gmra.mrb[0].mxu0 %v329
      %v548 = vpop.f32.mrb[0].mxu0
      %v549 = vadd.f32 0.0, %v548
      %v550 = vpop.f32.mrb[0].mxu0
      %v551 = vpop.f32.mrb[0].mxu0
      %v552 = vadd.f32 0.0, %v551
      %v553 = vpop.f32.mrb[0].mxu0
      %554 = vdwg.mxu0
      %v555 = vld [vmem:[%s2] sm:$0x1]
      %v557 = vlaneseq
      %v558 = vshrl.u32 %v557, 7
      %v559 = vsub.s32 0, %v558
      %v560 = vrot.slane %v555, %v559
      %v562 = vmul.f32 %v429, %v560
      %v563 = vmul.f32 %v432, %v560
      %v564 = vmul.f32 %v437, %v560
      %v565 = vmul.f32 %v440, %v560
      %v566 = vmul.f32 %v445, %v560
      %v567 = vmul.f32 %v448, %v560
      %v568 = vmul.f32 %v453, %v560
      %v569 = vmul.f32 %v456, %v560
      %v570 = vmul.f32 %v461, %v560
      %v571 = vmul.f32 %v464, %v560
      %v572 = vmul.f32 %v469, %v560
      %v573 = vmul.f32 %v472, %v560
      %v574 = vmul.f32 %v477, %v560
      %v575 = vmul.f32 %v480, %v560
      %v576 = vmul.f32 %v485, %v560
      %v577 = vmul.f32 %v488, %v560
      %v578 = vmul.f32 %v493, %v560
      %v579 = vmul.f32 %v496, %v560
      %v580 = vmul.f32 %v501, %v560
      %v581 = vmul.f32 %v504, %v560
      %v582 = vmul.f32 %v509, %v560
      %v583 = vmul.f32 %v512, %v560
      %v584 = vmul.f32 %v517, %v560
      %v585 = vmul.f32 %v520, %v560
      %v586 = vmul.f32 %v525, %v560
      %v587 = vmul.f32 %v528, %v560
      %v588 = vmul.f32 %v533, %v560
      %v589 = vmul.f32 %v536, %v560
      %v590 = vmul.f32 %v541, %v560
      %v591 = vmul.f32 %v544, %v560
      %v592 = vmul.f32 %v549, %v560
      %v593 = vmul.f32 %v552, %v560
      %v594 = vld [vmem:[%s3] sm:$0x1]
      %v596 = vlaneseq
      %v597 = vshrl.u32 %v596, 7
      %v598 = vsub.s32 0, %v597
      %v599 = vrot.slane %v594, %v598
      %v601 = vadd.f32 %v562, %v599
      %v602 = vadd.f32 %v563, %v599
      %v603 = vadd.f32 %v564, %v599
      %v604 = vadd.f32 %v565, %v599
      %v605 = vadd.f32 %v566, %v599
      %v606 = vadd.f32 %v567, %v599
      %v607 = vadd.f32 %v568, %v599
      %v608 = vadd.f32 %v569, %v599
      %v609 = vadd.f32 %v570, %v599
      %v610 = vadd.f32 %v571, %v599
      %v611 = vadd.f32 %v572, %v599
      %v612 = vadd.f32 %v573, %v599
      %v613 = vadd.f32 %v574, %v599
      %v614 = vadd.f32 %v575, %v599
      %v615 = vadd.f32 %v576, %v599
      %v616 = vadd.f32 %v577, %v599
      %v617 = vadd.f32 %v578, %v599
      %v618 = vadd.f32 %v579, %v599
      %v619 = vadd.f32 %v580, %v599
      %v620 = vadd.f32 %v581, %v599
      %v621 = vadd.f32 %v582, %v599
      %v622 = vadd.f32 %v583, %v599
      %v623 = vadd.f32 %v584, %v599
      %v624 = vadd.f32 %v585, %v599
      %v625 = vadd.f32 %v586, %v599
      %v626 = vadd.f32 %v587, %v599
      %v627 = vadd.f32 %v588, %v599
      %v628 = vadd.f32 %v589, %v599
      %v629 = vadd.f32 %v590, %v599
      %v630 = vadd.f32 %v591, %v599
      %v631 = vadd.f32 %v592, %v599
      %v632 = vadd.f32 %v593, %v599
      %v633 = vpack.c.bf16 %v602, %v601
      %v634 = vpack.c.bf16 %v604, %v603
      %v635 = vpack.c.bf16 %v606, %v605
      %v636 = vpack.c.bf16 %v608, %v607
      %v637 = vpack.c.bf16 %v610, %v609
      %v638 = vpack.c.bf16 %v612, %v611
      %v639 = vpack.c.bf16 %v614, %v613
      %v640 = vpack.c.bf16 %v616, %v615
      %v641 = vpack.c.bf16 %v618, %v617
      %v642 = vpack.c.bf16 %v620, %v619
      %v643 = vpack.c.bf16 %v622, %v621
      %v644 = vpack.c.bf16 %v624, %v623
      %v645 = vpack.c.bf16 %v626, %v625
      %v646 = vpack.c.bf16 %v628, %v627
      %v647 = vpack.c.bf16 %v630, %v629
      %v648 = vpack.c.bf16 %v632, %v631
      %v665 = vunpack.c.l.b16 %v633
      %v666 = vunpack.c.h.b16 %v633
      %v667 = vunpack.c.l.b16 %v634
      %v668 = vunpack.c.h.b16 %v634
      %v669 = vunpack.c.l.b16 %v635
      %v670 = vunpack.c.h.b16 %v635
      %v671 = vunpack.c.l.b16 %v636
      %v672 = vunpack.c.h.b16 %v636
      %v673 = vunpack.c.l.b16 %v637
      %v674 = vunpack.c.h.b16 %v637
      %v675 = vunpack.c.l.b16 %v638
      %v676 = vunpack.c.h.b16 %v638
      %v677 = vunpack.c.l.b16 %v639
      %v678 = vunpack.c.h.b16 %v639
      %v679 = vunpack.c.l.b16 %v640
      %v680 = vunpack.c.h.b16 %v640
      %v681 = vunpack.c.l.b16 %v641
      %v682 = vunpack.c.h.b16 %v641
      %v683 = vunpack.c.l.b16 %v642
      %v684 = vunpack.c.h.b16 %v642
      %v685 = vunpack.c.l.b16 %v643
      %v686 = vunpack.c.h.b16 %v643
      %v687 = vunpack.c.l.b16 %v644
      %v688 = vunpack.c.h.b16 %v644
      %v689 = vunpack.c.l.b16 %v645
      %v690 = vunpack.c.h.b16 %v645
      %v691 = vunpack.c.l.b16 %v646
      %v692 = vunpack.c.h.b16 %v646
      %v693 = vunpack.c.l.b16 %v647
      %v694 = vunpack.c.h.b16 %v647
      %v695 = vunpack.c.l.b16 %v648
      %v696 = vunpack.c.h.b16 %v648
      %v697 = vpack.c.b16 %v665, %v665
      %v698 = vpack.c.b16 %v666, %v666
      %v699 = vpack.c.b16 %v667, %v667
      %v700 = vpack.c.b16 %v668, %v668
      %v701 = vpack.c.b16 %v669, %v669
      %v702 = vpack.c.b16 %v670, %v670
      %v703 = vpack.c.b16 %v671, %v671
      %v704 = vpack.c.b16 %v672, %v672
      %v705 = vpack.c.b16 %v673, %v673
      %v706 = vpack.c.b16 %v674, %v674
      %v707 = vpack.c.b16 %v675, %v675
      %v708 = vpack.c.b16 %v676, %v676
      %v709 = vpack.c.b16 %v677, %v677
      %v710 = vpack.c.b16 %v678, %v678
      %v711 = vpack.c.b16 %v679, %v679
      %v712 = vpack.c.b16 %v680, %v680
      %v713 = vpack.c.b16 %v681, %v681
      %v714 = vpack.c.b16 %v682, %v682
      %v715 = vpack.c.b16 %v683, %v683
      %v716 = vpack.c.b16 %v684, %v684
      %v717 = vpack.c.b16 %v685, %v685
      %v718 = vpack.c.b16 %v686, %v686
      %v719 = vpack.c.b16 %v687, %v687
      %v720 = vpack.c.b16 %v688, %v688
      %v721 = vpack.c.b16 %v689, %v689
      %v722 = vpack.c.b16 %v690, %v690
      %v723 = vpack.c.b16 %v691, %v691
      %v724 = vpack.c.b16 %v692, %v692
      %v725 = vpack.c.b16 %v693, %v693
      %v726 = vpack.c.b16 %v694, %v694
      %v727 = vpack.c.b16 %v695, %v695
      %v728 = vpack.c.b16 %v696, %v696
      %761 = vst [vmem:[%s199] sm:$0xf] %v697
      %762 = vst [vmem:[%s199 + $0x4] sm:$0xf] %v698
      %763 = vst [vmem:[%s199 + $0x8] sm:$0xf] %v699
      %764 = vst [vmem:[%s199 + $0xc] sm:$0xf] %v700
      %765 = vst [vmem:[%s199 + $0x10] sm:$0xf] %v701
      %766 = vst [vmem:[%s199 + $0x14] sm:$0xf] %v702
      %767 = vst [vmem:[%s199 + $0x18] sm:$0xf] %v703
      %768 = vst [vmem:[%s199 + $0x1c] sm:$0xf] %v704
      %769 = vst [vmem:[%s199 + $0x20] sm:$0xf] %v705
      %770 = vst [vmem:[%s199 + $0x24] sm:$0xf] %v706
      %771 = vst [vmem:[%s199 + $0x28] sm:$0xf] %v707
      %772 = vst [vmem:[%s199 + $0x2c] sm:$0xf] %v708
      %773 = vst [vmem:[%s199 + $0x30] sm:$0xf] %v709
      %774 = vst [vmem:[%s199 + $0x34] sm:$0xf] %v710
      %775 = vst [vmem:[%s199 + $0x38] sm:$0xf] %v711
      %776 = vst [vmem:[%s199 + $0x3c] sm:$0xf] %v712
      %777 = vst [vmem:[%s199 + $0x40] sm:$0xf] %v713
      %778 = vst [vmem:[%s199 + $0x44] sm:$0xf] %v714
      %779 = vst [vmem:[%s199 + $0x48] sm:$0xf] %v715
      %780 = vst [vmem:[%s199 + $0x4c] sm:$0xf] %v716
      %781 = vst [vmem:[%s199 + $0x50] sm:$0xf] %v717
      %782 = vst [vmem:[%s199 + $0x54] sm:$0xf] %v718
      %783 = vst [vmem:[%s199 + $0x58] sm:$0xf] %v719
      %784 = vst [vmem:[%s199 + $0x5c] sm:$0xf] %v720
      %785 = vst [vmem:[%s199 + $0x60] sm:$0xf] %v721
      %786 = vst [vmem:[%s199 + $0x64] sm:$0xf] %v722
      %787 = vst [vmem:[%s199 + $0x68] sm:$0xf] %v723
      %788 = vst [vmem:[%s199 + $0x6c] sm:$0xf] %v724
      %789 = vst [vmem:[%s199 + $0x70] sm:$0xf] %v725
      %790 = vst [vmem:[%s199 + $0x74] sm:$0xf] %v726
      %791 = vst [vmem:[%s199 + $0x78] sm:$0xf] %v727
      %792 = vst [vmem:[%s199 + $0x7c] sm:$0xf] %v728
      %s793 = smul.u32 32, %s15
      %p794 = scmp.lt.s32.totalorder %s793, 63
      %s795 = scalar_select %p794, %s793, 63
      %s796 = smul.addr %s795, 4
      %s797 = scalar_lea.vmem %s4, %s796
      // Predicated region
      $region37: #{basic_block_forward.8} parent=35 // pred_check
        %p798 = pneg %p122
      $region38: #{basic_block_forward.8} parent=35 // pred_check_branch
        %800 = sbr.rel (%p798) target = $region40
      $region39: #{basic_block_forward.8} parent=35 // pred_region
        %s801 = smul.u32 32, %s15
      $region40: #{basic_block_forward.8} parent=35 // pred_fallthru
        _
    $region36: #{basic_block_forward.8} parent=5 // pred_fallthru
      _
    %p802 = scmp.le.s32.totalorder 2, %s10
    // Predicated region
    $region41: #{basic_block_forward.8} parent=5 // pred_check
      %p803 = pneg %p802
    $region42: #{basic_block_forward.8} parent=5 // pred_check_branch
      %805 = sbr.rel (%p803) target = $region44
    $region43: #{basic_block_forward.8} parent=5 // pred_region
      %s806 = ssub.s32 %s10, 2
      // Predicated region
      $region45: #{basic_block_forward.8} parent=43 // pred_check
        %p807 = pneg %p128
      $region46: #{basic_block_forward.8} parent=43 // pred_check_branch
        %809 = sbr.rel (%p807) target = $region48
      $region47: #{basic_block_forward.8} parent=43 // pred_region
        %s810 = smul.u32 32, %s16
        %p811 = scmp.lt.s32.totalorder %s810, 63
        %s812 = scalar_select %p811, %s810, 63
        %s813 = smul.addr %s812, 4
        %s814 = scalar_lea.vmem %s4, %s813
      $region48: #{basic_block_forward.8} parent=43 // pred_fallthru
        _
    $region44: #{basic_block_forward.8} parent=5 // pred_fallthru
      _
  $region6: #{basic_block_forward.8} parent=0 // loop_footer
    %s14 = sadd.s32 1, %s10
  $region7: #{basic_block_forward.8} parent=0 // loop_footer_branch
    %9 = sbr.rel target = $region3
  $region8: #{basic_block_forward.8} parent=0 // loop_exit
    _

// kernel: basic_block_forward.10
$region0: #{basic_block_forward.10}
  #allocation0 [shape = 'u32[]', space=smem, size = 0x4, offset = 0x4, fixed_abs, tag = 'smem constant byte address 0x4 - core index']
  #allocation1 [shape = 'u32[144,128]{1,0:T(1,128)}', space=vmem, size = 0x12000, scoped, tag = 'internal scratch']
  #allocation2 [shape = 'f32[256,1]{1,0:T(8,128)}', space=vmem, size = 0x20000, scoped, tag = 'scratch operand']
  #allocation3 [shape = 'f32[256,1]{1,0:T(8,128)}', space=vmem, size = 0x20000, scoped, tag = 'scratch operand']
  #allocation4 [shape = 'f32[256,128]{1,0:T(8,128)}', space=vmem, size = 0x20000, scoped, tag = 'scratch operand']
  %s0 = inlined_call_operand.vmem [shape: bf16[2,256,128], index: 0, kind: input, shape index: {}]
  %s1 = inlined_call_operand.vmem [shape: bf16[2,64,128], index: 1, kind: input, shape index: {}]
  %s2 = inlined_call_operand.vmem [shape: bf16[2,64,128], index: 2, kind: input, shape index: {}]
  %s3 = inlined_call_operand.vmem [shape: bf16[2,256,128], index: 3, kind: output, shape index: {}]
  %s4 = sld [smem:[#allocation0]]
  $region53: #{basic_block_forward.10} parent=0
    _
  %s6 = ssub.s32 1, %s4
  %s7 = scalar_select 0, %s6, %s4
  loop: start=0, step=1, limit=4
  $region2: #{basic_block_forward.10} parent=0 // loop_pre_header
    _
  $region3: #{basic_block_forward.10} parent=0 // loop_header
    %s9 = sphi 0, %s13
    %p10 = scmp.ge.s32.totalorder %s9, 4
    %s16 = sphi 0, %s35
    %s17 = sphi 0, %s31
    %s18 = sphi 0, %s27
    %s19 = sphi 0, %s16
    %s20 = sphi 0, %s17
    %s21 = sphi 0, %s18
    %s22 = sphi 0, %s19
    %s23 = sphi 0, %s20
    %s24 = sphi 0, %s21
    %s40 = sphi 0, %s42
    %s43 = sphi 0, %s40
    %s44 = sphi 0, %s43
    %s60 = sphi 0, %s44
    %s68 = sphi 0, %s70
    %s71 = sphi 0, %s68
    %s72 = sphi 0, %s71
    %s88 = sphi 0, %s72
    %s96 = sphi 0, %s98
    %s99 = sphi 0, %s96
    %s100 = sphi 0, %s99
    %s116 = sphi 0, %s100
    %s124 = sphi 0, %s126
    %s127 = sphi 0, %s124
    %s128 = sphi 0, %s127
    %s144 = sphi 0, %s128
  $region4: #{basic_block_forward.10} parent=0 // loop_header_branch
    %12 = sbr.rel (%p10) target = $region8
  $region5: #{basic_block_forward.10} parent=0 // loop_body
    %s14 = ssub.s32 %s9, 1
    %s15 = ssub.s32 %s9, 2
    %s25 = sadd.s32 1, %s18
    %p26 = scmp.ge.s32.totalorder %s25, 1
    %s27 = scalar_select %p26, 0, %s25
    %s28 = sadd.s32 1, %s17
    %s29 = scalar_select %p26, %s28, %s17
    %p30 = scmp.ge.s32.totalorder %s29, 1
    %s31 = scalar_select %p30, 0, %s29
    %s32 = sadd.s32 1, %s16
    %s33 = scalar_select %p30, %s32, %s16
    %p34 = scmp.ge.s32.totalorder %s33, 2
    %s35 = scalar_select %p34, 0, %s33
    %s36 = ssub.s32 %s16, %s35
    %s37 = ssub.s32 %s17, %s31
    %s38 = sor.u32 %s36, %s37
    %p39 = scmp.eq.s32.totalorder %s38, 0
    %s41 = sadd.s32 %s40, 1
    %s42 = scalar_select %p39, %s40, %s41
    %p45 = pneg %p39
    %p46 = scmp.eq.s32.totalorder %s9, 1
    %p47 = por %p45, %p46
    %p48 = scmp.ne.s32.totalorder %s40, %s43
    %p49 = scmp.eq.s32.totalorder %s9, 0
    %p50 = por %p48, %p49
    %p51 = scmp.ne.s32.totalorder %s40, %s43
    %p52 = scmp.eq.s32.totalorder %s14, 1
    %p53 = por %p51, %p52
    %p54 = scmp.ne.s32.totalorder %s43, %s44
    %p55 = scmp.eq.s32.totalorder %s14, 0
    %p56 = por %p54, %p55
    %p57 = scmp.ne.s32.totalorder %s43, %s44
    %p58 = scmp.eq.s32.totalorder %s15, 1
    %p59 = por %p57, %p58
    %p61 = scmp.ne.s32.totalorder %s44, %s60
    %p62 = scmp.eq.s32.totalorder %s15, 0
    %p63 = por %p61, %p62
    %s64 = ssub.s32 %s16, %s35
    %s65 = ssub.s32 %s18, %s27
    %s66 = sor.u32 %s64, %s65
    %p67 = scmp.eq.s32.totalorder %s66, 0
    %s69 = sadd.s32 %s68, 1
    %s70 = scalar_select %p67, %s68, %s69
    %p73 = pneg %p67
    %p74 = scmp.eq.s32.totalorder %s9, 1
    %p75 = por %p73, %p74
    %p76 = scmp.ne.s32.totalorder %s68, %s71
    %p77 = scmp.eq.s32.totalorder %s9, 0
    %p78 = por %p76, %p77
    %p79 = scmp.ne.s32.totalorder %s68, %s71
    %p80 = scmp.eq.s32.totalorder %s14, 1
    %p81 = por %p79, %p80
    %p82 = scmp.ne.s32.totalorder %s71, %s72
    %p83 = scmp.eq.s32.totalorder %s14, 0
    %p84 = por %p82, %p83
    %p85 = scmp.ne.s32.totalorder %s71, %s72
    %p86 = scmp.eq.s32.totalorder %s15, 1
    %p87 = por %p85, %p86
    %p89 = scmp.ne.s32.totalorder %s72, %s88
    %p90 = scmp.eq.s32.totalorder %s15, 0
    %p91 = por %p89, %p90
    %s92 = ssub.s32 %s16, %s35
    %s93 = ssub.s32 %s18, %s27
    %s94 = sor.u32 %s92, %s93
    %p95 = scmp.eq.s32.totalorder %s94, 0
    %s97 = sadd.s32 %s96, 1
    %s98 = scalar_select %p95, %s96, %s97
    %p101 = pneg %p95
    %p102 = scmp.eq.s32.totalorder %s9, 1
    %p103 = por %p101, %p102
    %p104 = scmp.ne.s32.totalorder %s96, %s99
    %p105 = scmp.eq.s32.totalorder %s9, 0
    %p106 = por %p104, %p105
    %p107 = scmp.ne.s32.totalorder %s96, %s99
    %p108 = scmp.eq.s32.totalorder %s14, 1
    %p109 = por %p107, %p108
    %p110 = scmp.ne.s32.totalorder %s99, %s100
    %p111 = scmp.eq.s32.totalorder %s14, 0
    %p112 = por %p110, %p111
    %p113 = scmp.ne.s32.totalorder %s99, %s100
    %p114 = scmp.eq.s32.totalorder %s15, 1
    %p115 = por %p113, %p114
    %p117 = scmp.ne.s32.totalorder %s100, %s116
    %p118 = scmp.eq.s32.totalorder %s15, 0
    %p119 = por %p117, %p118
    %s120 = ssub.s32 %s16, %s35
    %s121 = ssub.s32 %s17, %s31
    %s122 = sor.u32 %s120, %s121
    %p123 = scmp.eq.s32.totalorder %s122, 0
    %s125 = sadd.s32 %s124, 1
    %s126 = scalar_select %p123, %s124, %s125
    %p129 = pneg %p123
    %p130 = scmp.eq.s32.totalorder %s9, 1
    %p131 = por %p129, %p130
    %p132 = scmp.ne.s32.totalorder %s124, %s127
    %p133 = scmp.eq.s32.totalorder %s9, 0
    %p134 = por %p132, %p133
    %p135 = scmp.ne.s32.totalorder %s124, %s127
    %p136 = scmp.eq.s32.totalorder %s14, 1
    %p137 = por %p135, %p136
    %p138 = scmp.ne.s32.totalorder %s127, %s128
    %p139 = scmp.eq.s32.totalorder %s14, 0
    %p140 = por %p138, %p139
    %p141 = scmp.ne.s32.totalorder %s127, %s128
    %p142 = scmp.eq.s32.totalorder %s15, 1
    %p143 = por %p141, %p142
    %p145 = scmp.ne.s32.totalorder %s128, %s144
    %p146 = scmp.eq.s32.totalorder %s15, 0
    %p147 = por %p145, %p146
    %p148 = scmp.le.s32.totalorder 1, %s9
    %p149 = scmp.lt.s32.totalorder %s9, 3
    %p150 = pnand %p148, %p149
    %p151 = pneg %p150
    // Predicated region
    $region9: #{basic_block_forward.10} parent=5 // pred_check
      _
    $region10: #{basic_block_forward.10} parent=5 // pred_check_branch
      %153 = sbr.rel (%p150) target = $region12
    $region11: #{basic_block_forward.10} parent=5 // pred_region
      %s154 = ssub.s32 %s9, 1
    $region12: #{basic_block_forward.10} parent=5 // pred_fallthru
      _
    %p155 = scmp.lt.s32.totalorder %s9, 2
    // Predicated region
    $region13: #{basic_block_forward.10} parent=5 // pred_check
      %p156 = pneg %p155
    $region14: #{basic_block_forward.10} parent=5 // pred_check_branch
      %158 = sbr.rel (%p156) target = $region16
    $region15: #{basic_block_forward.10} parent=5 // pred_region
      // Predicated region
      $region17: #{basic_block_forward.10} parent=15 // pred_check
        %p159 = pneg %p50
      $region18: #{basic_block_forward.10} parent=15 // pred_check_branch
        %161 = sbr.rel (%p159) target = $region20
      $region19: #{basic_block_forward.10} parent=15 // pred_region
        %s162 = smul.u32 32, %s17
        %p163 = scmp.lt.s32.totalorder %s16, 1
        %s164 = scalar_select %p163, %s16, 1
        %p165 = scmp.lt.s32.totalorder %s162, 31
        %s166 = scalar_select %p165, %s162, 31
        %s167 = smul.addr %s164, 32
        %s168 = sadd.s32 %s166, %s167
        %s169 = smul.addr %s168, 4
        %s170 = scalar_lea.vmem %s0, %s169
        %s171 = smul.u32 32, %s17
      $region20: #{basic_block_forward.10} parent=15 // pred_fallthru
        _
      // Predicated region
      $region21: #{basic_block_forward.10} parent=15 // pred_check
        %p172 = pneg %p78
      $region22: #{basic_block_forward.10} parent=15 // pred_check_branch
        %174 = sbr.rel (%p172) target = $region24
      $region23: #{basic_block_forward.10} parent=15 // pred_region
        %s175 = smul.u32 8, %s18
        %p176 = scmp.lt.s32.totalorder %s16, 1
        %s177 = scalar_select %p176, %s16, 1
        %p178 = scmp.lt.s32.totalorder %s175, 7
        %s179 = scalar_select %p178, %s175, 7
        %s180 = smul.addr %s177, 8
        %s181 = sadd.s32 %s179, %s180
        %s182 = smul.addr %s181, 4
        %s183 = scalar_lea.vmem %s1, %s182
        %s184 = smul.u32 8, %s18
      $region24: #{basic_block_forward.10} parent=15 // pred_fallthru
        _
      // Predicated region
      $region25: #{basic_block_forward.10} parent=15 // pred_check
        %p185 = pneg %p106
      $region26: #{basic_block_forward.10} parent=15 // pred_check_branch
        %187 = sbr.rel (%p185) target = $region28
      $region27: #{basic_block_forward.10} parent=15 // pred_region
        %s188 = smul.u32 8, %s18
        %p189 = scmp.lt.s32.totalorder %s16, 1
        %s190 = scalar_select %p189, %s16, 1
        %p191 = scmp.lt.s32.totalorder %s188, 7
        %s192 = scalar_select %p191, %s188, 7
        %s193 = smul.addr %s190, 8
        %s194 = sadd.s32 %s192, %s193
        %s195 = smul.addr %s194, 4
        %s196 = scalar_lea.vmem %s2, %s195
        %s197 = smul.u32 8, %s18
      $region28: #{basic_block_forward.10} parent=15 // pred_fallthru
        _
    $region16: #{basic_block_forward.10} parent=5 // pred_fallthru
      _
    %p198 = scmp.le.s32.totalorder 1, %s9
    %p199 = scmp.lt.s32.totalorder %s9, 3
    %p200 = pnand %p198, %p199
    %p201 = pneg %p200
    // Predicated region
    $region29: #{basic_block_forward.10} parent=5 // pred_check
      _
    $region30: #{basic_block_forward.10} parent=5 // pred_check_branch
      %203 = sbr.rel (%p200) target = $region32
    $region31: #{basic_block_forward.10} parent=5 // pred_region
      %s204 = ssub.s32 %s9, 1
      %s205 = smul.u32 32, %s20
      %p206 = scmp.lt.s32.totalorder %s19, 1
      %s207 = scalar_select %p206, %s19, 1
      %p208 = scmp.lt.s32.totalorder %s205, 31
      %s209 = scalar_select %p208, %s205, 31
      %s210 = smul.addr %s207, 32
      %s211 = sadd.s32 %s209, %s210
      %s212 = smul.addr %s211, 4
      %s213 = scalar_lea.vmem %s0, %s212
      %p214 = pneg %p56
      %p215 = pneg %p53
      %s216 = smul.u32 8, %s21
      %p217 = scmp.lt.s32.totalorder %s19, 1
      %s218 = scalar_select %p217, %s19, 1
      %p219 = scmp.lt.s32.totalorder %s216, 7
      %s220 = scalar_select %p219, %s216, 7
      %s221 = smul.addr %s218, 8
      %s222 = sadd.s32 %s220, %s221
      %s223 = smul.addr %s222, 4
      %s224 = scalar_lea.vmem %s1, %s223
      %p225 = pneg %p84
      %p226 = pneg %p81
      %s227 = smul.u32 8, %s21
      %p228 = scmp.lt.s32.totalorder %s19, 1
      %s229 = scalar_select %p228, %s19, 1
      %p230 = scmp.lt.s32.totalorder %s227, 7
      %s231 = scalar_select %p230, %s227, 7
      %s232 = smul.addr %s229, 8
      %s233 = sadd.s32 %s231, %s232
      %s234 = smul.addr %s233, 4
      %s235 = scalar_lea.vmem %s2, %s234
      %p236 = pneg %p112
      %p237 = pneg %p109
      %p238 = pneg %p140
      %p239 = pneg %p137
      %s240 = smul.u32 32, %s20
      %p241 = scmp.lt.s32.totalorder %s19, 1
      %s242 = scalar_select %p241, %s19, 1
      %p243 = scmp.lt.s32.totalorder %s240, 31
      %s244 = scalar_select %p243, %s240, 31
      %s245 = smul.addr %s242, 32
      %s246 = sadd.s32 %s244, %s245
      %s247 = smul.addr %s246, 4
      %s248 = scalar_lea.vmem %s3, %s247
      %s249 = smul.u32 32, %s20
      %p250 = scmp.lt.s32.totalorder %s19, 1
      %s251 = scalar_select %p250, %s19, 1
      %p252 = scmp.lt.s32.totalorder %s249, 31
      %s253 = scalar_select %p252, %s249, 31
      %s254 = smul.addr %s251, 32
      %s255 = sadd.s32 %s253, %s254
      %s256 = smul.addr %s255, 4
      %s257 = scalar_lea.vmem %s0, %s256
      %s258 = smul.u32 32, %s20
      %s259 = smul.u32 8, %s21
      %p260 = scmp.lt.s32.totalorder %s19, 1
      %s261 = scalar_select %p260, %s19, 1
      %p262 = scmp.lt.s32.totalorder %s259, 7
      %s263 = scalar_select %p262, %s259, 7
      %s264 = smul.addr %s261, 8
      %s265 = sadd.s32 %s263, %s264
      %s266 = smul.addr %s265, 4
      %s267 = scalar_lea.vmem %s1, %s266
      %s268 = smul.u32 8, %s21
      %s269 = smul.u32 8, %s21
      %p270 = scmp.lt.s32.totalorder %s19, 1
      %s271 = scalar_select %p270, %s19, 1
      %p272 = scmp.lt.s32.totalorder %s269, 7
      %s273 = scalar_select %p272, %s269, 7
      %s274 = smul.addr %s271, 8
      %s275 = sadd.s32 %s273, %s274
      %s276 = smul.addr %s275, 4
      %s277 = scalar_lea.vmem %s2, %s276
      %s278 = smul.u32 8, %s21
      %s279 = smul.u32 32, %s20
      %p280 = scmp.lt.s32.totalorder %s19, 1
      %s281 = scalar_select %p280, %s19, 1
      %p282 = scmp.lt.s32.totalorder %s279, 31
      %s283 = scalar_select %p282, %s279, 31
      %s284 = smul.addr %s281, 32
      %s285 = sadd.s32 %s283, %s284
      %s286 = smul.addr %s285, 4
      %s287 = scalar_lea.vmem %s3, %s286
      %s288 = smul.u32 32, %s20
      %p290 = scmp.eq.s32.totalorder %s21, 0
      // Predicated region
      $region33: #{basic_block_forward.10} parent=31 // pred_check
        %p291 = pneg %p290
      $region34: #{basic_block_forward.10} parent=31 // pred_check_branch
        %293 = sbr.rel (%p291) target = $region36
      $region35: #{basic_block_forward.10} parent=31 // pred_region
        %vm294 = vcmask 7168
        %295 = vst.msk [vmem:[#allocation2] sm:$0xff] %vm294, -inf
        %296 = vst.msk [vmem:[#allocation2 + $0x8] sm:$0xff] %vm294, -inf
        %297 = vst.msk [vmem:[#allocation2 + $0x10] sm:$0xff] %vm294, -inf
        %298 = vst.msk [vmem:[#allocation2 + $0x18] sm:$0xff] %vm294, -inf
        %299 = vst.msk [vmem:[#allocation2 + $0x20] sm:$0xff] %vm294, -inf
        %300 = vst.msk [vmem:[#allocation2 + $0x28] sm:$0xff] %vm294, -inf
        %301 = vst.msk [vmem:[#allocation2 + $0x30] sm:$0xff] %vm294, -inf
        %302 = vst.msk [vmem:[#allocation2 + $0x38] sm:$0xff] %vm294, -inf
        %303 = vst.msk [vmem:[#allocation2 + $0x40] sm:$0xff] %vm294, -inf
        %304 = vst.msk [vmem:[#allocation2 + $0x48] sm:$0xff] %vm294, -inf
        %305 = vst.msk [vmem:[#allocation2 + $0x50] sm:$0xff] %vm294, -inf
        %306 = vst.msk [vmem:[#allocation2 + $0x58] sm:$0xff] %vm294, -inf
        %307 = vst.msk [vmem:[#allocation2 + $0x60] sm:$0xff] %vm294, -inf
        %308 = vst.msk [vmem:[#allocation2 + $0x68] sm:$0xff] %vm294, -inf
        %309 = vst.msk [vmem:[#allocation2 + $0x70] sm:$0xff] %vm294, -inf
        %310 = vst.msk [vmem:[#allocation2 + $0x78] sm:$0xff] %vm294, -inf
        %311 = vst.msk [vmem:[#allocation2 + $0x80] sm:$0xff] %vm294, -inf
        %312 = vst.msk [vmem:[#allocation2 + $0x88] sm:$0xff] %vm294, -inf
        %313 = vst.msk [vmem:[#allocation2 + $0x90] sm:$0xff] %vm294, -inf
        %314 = vst.msk [vmem:[#allocation2 + $0x98] sm:$0xff] %vm294, -inf
        %315 = vst.msk [vmem:[#allocation2 + $0xa0] sm:$0xff] %vm294, -inf
        %316 = vst.msk [vmem:[#allocation2 + $0xa8] sm:$0xff] %vm294, -inf
        %317 = vst.msk [vmem:[#allocation2 + $0xb0] sm:$0xff] %vm294, -inf
        %318 = vst.msk [vmem:[#allocation2 + $0xb8] sm:$0xff] %vm294, -inf
        %319 = vst.msk [vmem:[#allocation2 + $0xc0] sm:$0xff] %vm294, -inf
        %320 = vst.msk [vmem:[#allocation2 + $0xc8] sm:$0xff] %vm294, -inf
        %321 = vst.msk [vmem:[#allocation2 + $0xd0] sm:$0xff] %vm294, -inf
        %322 = vst.msk [vmem:[#allocation2 + $0xd8] sm:$0xff] %vm294, -inf
        %323 = vst.msk [vmem:[#allocation2 + $0xe0] sm:$0xff] %vm294, -inf
        %324 = vst.msk [vmem:[#allocation2 + $0xe8] sm:$0xff] %vm294, -inf
        %325 = vst.msk [vmem:[#allocation2 + $0xf0] sm:$0xff] %vm294, -inf
        %326 = vst.msk [vmem:[#allocation2 + $0xf8] sm:$0xff] %vm294, -inf
        %327 = vst.msk [vmem:[#allocation3] sm:$0xff] %vm294, 0.0
        %328 = vst.msk [vmem:[#allocation3 + $0x8] sm:$0xff] %vm294, 0.0
        %329 = vst.msk [vmem:[#allocation3 + $0x10] sm:$0xff] %vm294, 0.0
        %330 = vst.msk [vmem:[#allocation3 + $0x18] sm:$0xff] %vm294, 0.0
        %331 = vst.msk [vmem:[#allocation3 + $0x20] sm:$0xff] %vm294, 0.0
        %332 = vst.msk [vmem:[#allocation3 + $0x28] sm:$0xff] %vm294, 0.0
        %333 = vst.msk [vmem:[#allocation3 + $0x30] sm:$0xff] %vm294, 0.0
        %334 = vst.msk [vmem:[#allocation3 + $0x38] sm:$0xff] %vm294, 0.0
        %335 = vst.msk [vmem:[#allocation3 + $0x40] sm:$0xff] %vm294, 0.0
        %336 = vst.msk [vmem:[#allocation3 + $0x48] sm:$0xff] %vm294, 0.0
        %337 = vst.msk [vmem:[#allocation3 + $0x50] sm:$0xff] %vm294, 0.0
        %338 = vst.msk [vmem:[#allocation3 + $0x58] sm:$0xff] %vm294, 0.0
        %339 = vst.msk [vmem:[#allocation3 + $0x60] sm:$0xff] %vm294, 0.0
        %340 = vst.msk [vmem:[#allocation3 + $0x68] sm:$0xff] %vm294, 0.0
        %341 = vst.msk [vmem:[#allocation3 + $0x70] sm:$0xff] %vm294, 0.0
        %342 = vst.msk [vmem:[#allocation3 + $0x78] sm:$0xff] %vm294, 0.0
        %343 = vst.msk [vmem:[#allocation3 + $0x80] sm:$0xff] %vm294, 0.0
        %344 = vst.msk [vmem:[#allocation3 + $0x88] sm:$0xff] %vm294, 0.0
        %345 = vst.msk [vmem:[#allocation3 + $0x90] sm:$0xff] %vm294, 0.0
        %346 = vst.msk [vmem:[#allocation3 + $0x98] sm:$0xff] %vm294, 0.0
        %347 = vst.msk [vmem:[#allocation3 + $0xa0] sm:$0xff] %vm294, 0.0
        %348 = vst.msk [vmem:[#allocation3 + $0xa8] sm:$0xff] %vm294, 0.0
        %349 = vst.msk [vmem:[#allocation3 + $0xb0] sm:$0xff] %vm294, 0.0
        %350 = vst.msk [vmem:[#allocation3 + $0xb8] sm:$0xff] %vm294, 0.0
        %351 = vst.msk [vmem:[#allocation3 + $0xc0] sm:$0xff] %vm294, 0.0
        %352 = vst.msk [vmem:[#allocation3 + $0xc8] sm:$0xff] %vm294, 0.0
        %353 = vst.msk [vmem:[#allocation3 + $0xd0] sm:$0xff] %vm294, 0.0
        %354 = vst.msk [vmem:[#allocation3 + $0xd8] sm:$0xff] %vm294, 0.0
        %355 = vst.msk [vmem:[#allocation3 + $0xe0] sm:$0xff] %vm294, 0.0
        %356 = vst.msk [vmem:[#allocation3 + $0xe8] sm:$0xff] %vm294, 0.0
        %357 = vst.msk [vmem:[#allocation3 + $0xf0] sm:$0xff] %vm294, 0.0
        %358 = vst.msk [vmem:[#allocation3 + $0xf8] sm:$0xff] %vm294, 0.0
        %359 = vst [vmem:[#allocation4] sm:$0xff] 0.0
        %360 = vst [vmem:[#allocation4 + $0x8] sm:$0xff] 0.0
        %361 = vst [vmem:[#allocation4 + $0x10] sm:$0xff] 0.0
        %362 = vst [vmem:[#allocation4 + $0x18] sm:$0xff] 0.0
        %363 = vst [vmem:[#allocation4 + $0x20] sm:$0xff] 0.0
        %364 = vst [vmem:[#allocation4 + $0x28] sm:$0xff] 0.0
        %365 = vst [vmem:[#allocation4 + $0x30] sm:$0xff] 0.0
        %366 = vst [vmem:[#allocation4 + $0x38] sm:$0xff] 0.0
        %367 = vst [vmem:[#allocation4 + $0x40] sm:$0xff] 0.0
        %368 = vst [vmem:[#allocation4 + $0x48] sm:$0xff] 0.0
        %369 = vst [vmem:[#allocation4 + $0x50] sm:$0xff] 0.0
        %370 = vst [vmem:[#allocation4 + $0x58] sm:$0xff] 0.0
        %371 = vst [vmem:[#allocation4 + $0x60] sm:$0xff] 0.0
        %372 = vst [vmem:[#allocation4 + $0x68] sm:$0xff] 0.0
        %373 = vst [vmem:[#allocation4 + $0x70] sm:$0xff] 0.0
        %374 = vst [vmem:[#allocation4 + $0x78] sm:$0xff] 0.0
        %375 = vst [vmem:[#allocation4 + $0x80] sm:$0xff] 0.0
        %376 = vst [vmem:[#allocation4 + $0x88] sm:$0xff] 0.0
        %377 = vst [vmem:[#allocation4 + $0x90] sm:$0xff] 0.0
        %378 = vst [vmem:[#allocation4 + $0x98] sm:$0xff] 0.0
        %379 = vst [vmem:[#allocation4 + $0xa0] sm:$0xff] 0.0
        %380 = vst [vmem:[#allocation4 + $0xa8] sm:$0xff] 0.0
        %381 = vst [vmem:[#allocation4 + $0xb0] sm:$0xff] 0.0
        %382 = vst [vmem:[#allocation4 + $0xb8] sm:$0xff] 0.0
        %383 = vst [vmem:[#allocation4 + $0xc0] sm:$0xff] 0.0
        %384 = vst [vmem:[#allocation4 + $0xc8] sm:$0xff] 0.0
        %385 = vst [vmem:[#allocation4 + $0xd0] sm:$0xff] 0.0
        %386 = vst [vmem:[#allocation4 + $0xd8] sm:$0xff] 0.0
        %387 = vst [vmem:[#allocation4 + $0xe0] sm:$0xff] 0.0
        %388 = vst [vmem:[#allocation4 + $0xe8] sm:$0xff] 0.0
        %389 = vst [vmem:[#allocation4 + $0xf0] sm:$0xff] 0.0
        %390 = vst [vmem:[#allocation4 + $0xf8] sm:$0xff] 0.0
      $region36: #{basic_block_forward.10} parent=31 // pred_fallthru
        _
      %v391 = vld [vmem:[%s257] sm:$0xf]
      %v392 = vld [vmem:[%s257 + $0x4] sm:$0xf]
      %v393 = vld [vmem:[%s257 + $0x8] sm:$0xf]
      %v394 = vld [vmem:[%s257 + $0xc] sm:$0xf]
      %v395 = vld [vmem:[%s257 + $0x10] sm:$0xf]
      %v396 = vld [vmem:[%s257 + $0x14] sm:$0xf]
      %v397 = vld [vmem:[%s257 + $0x18] sm:$0xf]
      %v398 = vld [vmem:[%s257 + $0x1c] sm:$0xf]
      %v399 = vld [vmem:[%s257 + $0x20] sm:$0xf]
      %v400 = vld [vmem:[%s257 + $0x24] sm:$0xf]
      %v401 = vld [vmem:[%s257 + $0x28] sm:$0xf]
      %v402 = vld [vmem:[%s257 + $0x2c] sm:$0xf]
      %v403 = vld [vmem:[%s257 + $0x30] sm:$0xf]
      %v404 = vld [vmem:[%s257 + $0x34] sm:$0xf]
      %v405 = vld [vmem:[%s257 + $0x38] sm:$0xf]
      %v406 = vld [vmem:[%s257 + $0x3c] sm:$0xf]
      %v407 = vld [vmem:[%s257 + $0x40] sm:$0xf]
      %v408 = vld [vmem:[%s257 + $0x44] sm:$0xf]
      %v409 = vld [vmem:[%s257 + $0x48] sm:$0xf]
      %v410 = vld [vmem:[%s257 + $0x4c] sm:$0xf]
      %v411 = vld [vmem:[%s257 + $0x50] sm:$0xf]
      %v412 = vld [vmem:[%s257 + $0x54] sm:$0xf]
      %v413 = vld [vmem:[%s257 + $0x58] sm:$0xf]
      %v414 = vld [vmem:[%s257 + $0x5c] sm:$0xf]
      %v415 = vld [vmem:[%s257 + $0x60] sm:$0xf]
      %v416 = vld [vmem:[%s257 + $0x64] sm:$0xf]
      %v417 = vld [vmem:[%s257 + $0x68] sm:$0xf]
      %v418 = vld [vmem:[%s257 + $0x6c] sm:$0xf]
      %v419 = vld [vmem:[%s257 + $0x70] sm:$0xf]
      %v420 = vld [vmem:[%s257 + $0x74] sm:$0xf]
      %v421 = vld [vmem:[%s257 + $0x78] sm:$0xf]
      %v422 = vld [vmem:[%s257 + $0x7c] sm:$0xf]
      %v423 = vld [vmem:[%s267] sm:$0xf]
      %v424 = vld [vmem:[%s267 + $0x4] sm:$0xf]
      %v425 = vld [vmem:[%s267 + $0x8] sm:$0xf]
      %v426 = vld [vmem:[%s267 + $0xc] sm:$0xf]
      %v427 = vld [vmem:[%s267 + $0x10] sm:$0xf]
      %v428 = vld [vmem:[%s267 + $0x14] sm:$0xf]
      %v429 = vld [vmem:[%s267 + $0x18] sm:$0xf]
      %v430 = vld [vmem:[%s267 + $0x1c] sm:$0xf]
      %v463 = vunpack.c.l.b16 %v391
      %v464 = vunpack.c.l.b16 %v392
      %v465 = vunpack.c.l.b16 %v393
      %v466 = vunpack.c.l.b16 %v394
      %v467 = vunpack.c.l.b16 %v395
      %v468 = vunpack.c.l.b16 %v396
      %v469 = vunpack.c.l.b16 %v397
      %v470 = vunpack.c.l.b16 %v398
      %v471 = vunpack.c.l.b16 %v399
      %v472 = vunpack.c.l.b16 %v400
      %v473 = vunpack.c.l.b16 %v401
      %v474 = vunpack.c.l.b16 %v402
      %v475 = vunpack.c.l.b16 %v403
      %v476 = vunpack.c.l.b16 %v404
      %v477 = vunpack.c.l.b16 %v405
      %v478 = vunpack.c.l.b16 %v406
      %v479 = vunpack.c.l.b16 %v407
      %v480 = vunpack.c.l.b16 %v408
      %v481 = vunpack.c.l.b16 %v409
      %v482 = vunpack.c.l.b16 %v410
      %v483 = vunpack.c.l.b16 %v411
      %v484 = vunpack.c.l.b16 %v412
      %v485 = vunpack.c.l.b16 %v413
      %v486 = vunpack.c.l.b16 %v414
      %v487 = vunpack.c.l.b16 %v415
      %v488 = vunpack.c.l.b16 %v416
      %v489 = vunpack.c.l.b16 %v417
      %v490 = vunpack.c.l.b16 %v418
      %v491 = vunpack.c.l.b16 %v419
      %v492 = vunpack.c.l.b16 %v420
      %v493 = vunpack.c.l.b16 %v421
      %v494 = vunpack.c.l.b16 %v422
      %v495 = vpack.c.b16 %v464, %v463
      %v496 = vpack.c.b16 %v466, %v465
      %v497 = vpack.c.b16 %v468, %v467
      %v498 = vpack.c.b16 %v470, %v469
      %v499 = vpack.c.b16 %v472, %v471
      %v500 = vpack.c.b16 %v474, %v473
      %v501 = vpack.c.b16 %v476, %v475
      %v502 = vpack.c.b16 %v478, %v477
      %v503 = vpack.c.b16 %v480, %v479
      %v504 = vpack.c.b16 %v482, %v481
      %v505 = vpack.c.b16 %v484, %v483
      %v506 = vpack.c.b16 %v486, %v485
      %v507 = vpack.c.b16 %v488, %v487
      %v508 = vpack.c.b16 %v490, %v489
      %v509 = vpack.c.b16 %v492, %v491
      %v510 = vpack.c.b16 %v494, %v493
      %v535 = vunpack.c.l.b16 %v423
      %v536 = vunpack.c.l.b16 %v424
      %v537 = vunpack.c.l.b16 %v425
      %v538 = vunpack.c.l.b16 %v426
      %v539 = vunpack.c.l.b16 %v427
      %v540 = vunpack.c.l.b16 %v428
      %v541 = vunpack.c.l.b16 %v429
      %v542 = vunpack.c.l.b16 %v430
      %v543 = vpack.c.b16 %v536, %v535
      %v544 = vpack.c.b16 %v538, %v537
      %v545 = vpack.c.b16 %v540, %v539
      %v546 = vpack.c.b16 %v542, %v541
      %551 = vmatprep.subr.bf16.mxu0 0
      %552 = vmatpush1.bf16.xpose.msra.mxu0 %v543
      %553 = vmatprep.subr.bf16.mxu0 0
      %554 = vmatpush1.bf16.xpose.msra.mxu0 %v544
      %555 = vmatprep.subr.bf16.mxu0 0
      %556 = vmatpush1.bf16.xpose.msra.mxu0 %v545
      %557 = vmatprep.subr.bf16.mxu0 0
      %558 = vmatpush1.bf16.xpose.msra.mxu0 %v546
      %559 = vmatprep.subr.bf16.mxu0 0
      %560 = vmatpush1.bf16.xpose.msra.mxu0 0
      %561 = vmatprep.subr.bf16.mxu0 0
      %562 = vmatpush1.bf16.xpose.msra.mxu0 0
      %563 = vmatprep.subr.bf16.mxu0 0
      %564 = vmatpush1.bf16.xpose.msra.mxu0 0
      %565 = vmatprep.subr.bf16.mxu0 0
      %566 = vmatpush1.bf16.xpose.msra.mxu0 0
      %567 = vmatprep.subr.bf16.mxu0 0
      %568 = vmatpush1.bf16.xpose.msra.mxu0 0
      %569 = vmatprep.subr.bf16.mxu0 0
      %570 = vmatpush1.bf16.xpose.msra.mxu0 0
      %571 = vmatprep.subr.bf16.mxu0 0
      %572 = vmatpush1.bf16.xpose.msra.mxu0 0
      %573 = vmatprep.subr.bf16.mxu0 0
      %574 = vmatpush1.bf16.xpose.msra.mxu0 0
      %575 = vmatprep.subr.bf16.mxu0 0
      %576 = vmatpush1.bf16.xpose.msra.mxu0 0
      %577 = vmatprep.subr.bf16.mxu0 0
      %578 = vmatpush1.bf16.xpose.msra.mxu0 0
      %579 = vmatprep.subr.bf16.mxu0 0
      %580 = vmatpush1.bf16.xpose.msra.mxu0 0
      %581 = vmatprep.subr.bf16.mxu0 0
      %582 = vmatpush1.bf16.xpose.msra.mxu0 0
      %583 = vmatprep.mubr.bf16.mxu0 0
      %584 = vmatmul.mubr.bf16.gmra.mrb[0].mxu0 %v495
      %v585 = vpop.f32.mrb[0].mxu0
      %v586 = vadd.f32 0.0, %v585
      %v587 = vpop.f32.mrb[0].mxu0
      %v588 = vpop.f32.mrb[0].mxu0
      %v589 = vadd.f32 0.0, %v588
      %v590 = vpop.f32.mrb[0].mxu0
      %591 = vmatprep.mubr.bf16.mxu0 0
      %592 = vmatmul.mubr.bf16.gmra.mrb[0].mxu0 %v496
      %v593 = vpop.f32.mrb[0].mxu0
      %v594 = vadd.f32 0.0, %v593
      %v595 = vpop.f32.mrb[0].mxu0
      %v596 = vpop.f32.mrb[0].mxu0
      %v597 = vadd.f32 0.0, %v596
      %v598 = vpop.f32.mrb[0].mxu0
      %599 = vmatprep.mubr.bf16.mxu0 0
      %600 = vmatmul.mubr.bf16.gmra.mrb[0].mxu0 %v497
      %v601 = vpop.f32.mrb[0].mxu0
      %v602 = vadd.f32 0.0, %v601
      %v603 = vpop.f32.mrb[0].mxu0
      %v604 = vpop.f32.mrb[0].mxu0
      %v605 = vadd.f32 0.0, %v604
      %v606 = vpop.f32.mrb[0].mxu0
      %607 = vmatprep.mubr.bf16.mxu0 0
      %608 = vmatmul.mubr.bf16.gmra.mrb[0].mxu0 %v498
      %v609 = vpop.f32.mrb[0].mxu0
      %v610 = vadd.f32 0.0, %v609
      %v611 = vpop.f32.mrb[0].mxu0
      %v612 = vpop.f32.mrb[0].mxu0
      %v613 = vadd.f32 0.0, %v612
      %v614 = vpop.f32.mrb[0].mxu0
      %615 = vmatprep.mubr.bf16.mxu0 0
      %616 = vmatmul.mubr.bf16.gmra.mrb[0].mxu0 %v499
      %v617 = vpop.f32.mrb[0].mxu0
      %v618 = vadd.f32 0.0, %v617
      %v619 = vpop.f32.mrb[0].mxu0
      %v620 = vpop.f32.mrb[0].mxu0
      %v621 = vadd.f32 0.0, %v620
      %v622 = vpop.f32.mrb[0].mxu0
      %623 = vmatprep.mubr.bf16.mxu0 0
      %624 = vmatmul.mubr.bf16.gmra.mrb[0].mxu0 %v500
      %v625 = vpop.f32.mrb[0].mxu0
      %v626 = vadd.f32 0.0, %v625
      %v627 = vpop.f32.mrb[0].mxu0
      %v628 = vpop.f32.mrb[0].mxu0
      %v629 = vadd.f32 0.0, %v628
      %v630 = vpop.f32.mrb[0].mxu0
      %631 = vmatprep.mubr.bf16.mxu0 0
      %632 = vmatmul.mubr.bf16.gmra.mrb[0].mxu0 %v501
      %v633 = vpop.f32.mrb[0].mxu0
      %v634 = vadd.f32 0.0, %v633
      %v635 = vpop.f32.mrb[0].mxu0
      %v636 = vpop.f32.mrb[0].mxu0
      %v637 = vadd.f32 0.0, %v636
      %v638 = vpop.f32.mrb[0].mxu0
      %639 = vmatprep.mubr.bf16.mxu0 0
      %640 = vmatmul.mubr.bf16.gmra.mrb[0].mxu0 %v502
      %v641 = vpop.f32.mrb[0].mxu0
      %v642 = vadd.f32 0.0, %v641
      %v643 = vpop.f32.mrb[0].mxu0
      %v644 = vpop.f32.mrb[0].mxu0
      %v645 = vadd.f32 0.0, %v644
      %v646 = vpop.f32.mrb[0].mxu0
      %647 = vmatprep.mubr.bf16.mxu0 0
      %648 = vmatmul.mubr.bf16.gmra.mrb[0].mxu0 %v503
      %v649 = vpop.f32.mrb[0].mxu0
      %v650 = vadd.f32 0.0, %v649
      %v651 = vpop.f32.mrb[0].mxu0
      %v652 = vpop.f32.mrb[0].mxu0
      %v653 = vadd.f32 0.0, %v652
      %v654 = vpop.f32.mrb[0].mxu0
      %655 = vmatprep.mubr.bf16.mxu0 0
      %656 = vmatmul.mubr.bf16.gmra.mrb[0].mxu0 %v504
      %v657 = vpop.f32.mrb[0].mxu0
      %v658 = vadd.f32 0.0, %v657
      %v659 = vpop.f32.mrb[0].mxu0
      %v660 = vpop.f32.mrb[0].mxu0
      %v661 = vadd.f32 0.0, %v660
      %v662 = vpop.f32.mrb[0].mxu0
      %663 = vmatprep.mubr.bf16.mxu0 0
      %664 = vmatmul.mubr.bf16.gmra.mrb[0].mxu0 %v505
      %v665 = vpop.f32.mrb[0].mxu0
      %v666 = vadd.f32 0.0, %v665
      %v667 = vpop.f32.mrb[0].mxu0
      %v668 = vpop.f32.mrb[0].mxu0
      %v669 = vadd.f32 0.0, %v668
      %v670 = vpop.f32.mrb[0].mxu0
      %671 = vmatprep.mubr.bf16.mxu0 0
      %672 = vmatmul.mubr.bf16.gmra.mrb[0].mxu0 %v506
      %v673 = vpop.f32.mrb[0].mxu0
      %v674 = vadd.f32 0.0, %v673
      %v675 = vpop.f32.mrb[0].mxu0
      %v676 = vpop.f32.mrb[0].mxu0
      %v677 = vadd.f32 0.0, %v676
      %v678 = vpop.f32.mrb[0].mxu0
      %679 = vmatprep.mubr.bf16.mxu0 0
      %680 = vmatmul.mubr.bf16.gmra.mrb[0].mxu0 %v507
      %v681 = vpop.f32.mrb[0].mxu0
      %v682 = vadd.f32 0.0, %v681
      %v683 = vpop.f32.mrb[0].mxu0
      %v684 = vpop.f32.mrb[0].mxu0
      %v685 = vadd.f32 0.0, %v684
      %v686 = vpop.f32.mrb[0].mxu0
      %687 = vmatprep.mubr.bf16.mxu0 0
      %688 = vmatmul.mubr.bf16.gmra.mrb[0].mxu0 %v508
      %v689 = vpop.f32.mrb[0].mxu0
      %v690 = vadd.f32 0.0, %v689
      %v691 = vpop.f32.mrb[0].mxu0
      %v692 = vpop.f32.mrb[0].mxu0
      %v693 = vadd.f32 0.0, %v692
      %v694 = vpop.f32.mrb[0].mxu0
      %695 = vmatprep.mubr.bf16.mxu0 0
      %696 = vmatmul.mubr.bf16.gmra.mrb[0].mxu0 %v509
      %v697 = vpop.f32.mrb[0].mxu0
      %v698 = vadd.f32 0.0, %v697
      %v699 = vpop.f32.mrb[0].mxu0
      %v700 = vpop.f32.mrb[0].mxu0
      %v701 = vadd.f32 0.0, %v700
      %v702 = vpop.f32.mrb[0].mxu0
      %703 = vmatprep.mubr.bf16.mxu0 0
      %704 = vmatmul.mubr.bf16.gmra.mrb[0].mxu0 %v510
      %v705 = vpop.f32.mrb[0].mxu0
      %v706 = vadd.f32 0.0, %v705
      %v707 = vpop.f32.mrb[0].mxu0
      %v708 = vpop.f32.mrb[0].mxu0
      %v709 = vadd.f32 0.0, %v708
      %v710 = vpop.f32.mrb[0].mxu0
      %711 = vdwg.mxu0
      %v712 = vld [vmem:[#allocation2] sm:$0xff]
      %v713 = vld [vmem:[#allocation2 + $0x8] sm:$0xff]
      %v714 = vld [vmem:[#allocation2 + $0x10] sm:$0xff]
      %v715 = vld [vmem:[#allocation2 + $0x18] sm:$0xff]
      %v716 = vld [vmem:[#allocation2 + $0x20] sm:$0xff]
      %v717 = vld [vmem:[#allocation2 + $0x28] sm:$0xff]
      %v718 = vld [vmem:[#allocation2 + $0x30] sm:$0xff]
      %v719 = vld [vmem:[#allocation2 + $0x38] sm:$0xff]
      %v720 = vld [vmem:[#allocation2 + $0x40] sm:$0xff]
      %v721 = vld [vmem:[#allocation2 + $0x48] sm:$0xff]
      %v722 = vld [vmem:[#allocation2 + $0x50] sm:$0xff]
      %v723 = vld [vmem:[#allocation2 + $0x58] sm:$0xff]
      %v724 = vld [vmem:[#allocation2 + $0x60] sm:$0xff]
      %v725 = vld [vmem:[#allocation2 + $0x68] sm:$0xff]
      %v726 = vld [vmem:[#allocation2 + $0x70] sm:$0xff]
      %v727 = vld [vmem:[#allocation2 + $0x78] sm:$0xff]
      %v728 = vld [vmem:[#allocation2 + $0x80] sm:$0xff]
      %v729 = vld [vmem:[#allocation2 + $0x88] sm:$0xff]
      %v730 = vld [vmem:[#allocation2 + $0x90] sm:$0xff]
      %v731 = vld [vmem:[#allocation2 + $0x98] sm:$0xff]
      %v732 = vld [vmem:[#allocation2 + $0xa0] sm:$0xff]
      %v733 = vld [vmem:[#allocation2 + $0xa8] sm:$0xff]
      %v734 = vld [vmem:[#allocation2 + $0xb0] sm:$0xff]
      %v735 = vld [vmem:[#allocation2 + $0xb8] sm:$0xff]
      %v736 = vld [vmem:[#allocation2 + $0xc0] sm:$0xff]
      %v737 = vld [vmem:[#allocation2 + $0xc8] sm:$0xff]
      %v738 = vld [vmem:[#allocation2 + $0xd0] sm:$0xff]
      %v739 = vld [vmem:[#allocation2 + $0xd8] sm:$0xff]
      %v740 = vld [vmem:[#allocation2 + $0xe0] sm:$0xff]
      %v741 = vld [vmem:[#allocation2 + $0xe8] sm:$0xff]
      %v742 = vld [vmem:[#allocation2 + $0xf0] sm:$0xff]
      %v743 = vld [vmem:[#allocation2 + $0xf8] sm:$0xff]
      %vm744 = vcmask 523264
      %v745 = vsel %vm744, %v586, -inf
      %746 = vmax.xlane.f32.xlu0 %v745
      %v747 = vpop.xlane.xlu0 %746
      %v748 = vsel %vm744, %v589, -inf
      %749 = vmax.xlane.f32.xlu0 %v748
      %v750 = vpop.xlane.xlu0 %749
      %v751 = vsel %vm744, %v594, -inf
      %752 = vmax.xlane.f32.xlu0 %v751
      %v753 = vpop.xlane.xlu0 %752
      %v754 = vsel %vm744, %v597, -inf
      %755 = vmax.xlane.f32.xlu0 %v754
      %v756 = vpop.xlane.xlu0 %755
      %v757 = vsel %vm744, %v602, -inf
      %758 = vmax.xlane.f32.xlu0 %v757
      %v759 = vpop.xlane.xlu0 %758
      %v760 = vsel %vm744, %v605, -inf
      %761 = vmax.xlane.f32.xlu0 %v760
      %v762 = vpop.xlane.xlu0 %761
      %v763 = vsel %vm744, %v610, -inf
      %764 = vmax.xlane.f32.xlu0 %v763
      %v765 = vpop.xlane.xlu0 %764
      %v766 = vsel %vm744, %v613, -inf
      %767 = vmax.xlane.f32.xlu0 %v766
      %v768 = vpop.xlane.xlu0 %767
      %v769 = vsel %vm744, %v618, -inf
      %770 = vmax.xlane.f32.xlu0 %v769
      %v771 = vpop.xlane.xlu0 %770
      %v772 = vsel %vm744, %v621, -inf
      %773 = vmax.xlane.f32.xlu0 %v772
      %v774 = vpop.xlane.xlu0 %773
      %v775 = vsel %vm744, %v626, -inf
      %776 = vmax.xlane.f32.xlu0 %v775
      %v777 = vpop.xlane.xlu0 %776
      %v778 = vsel %vm744, %v629, -inf
      %779 = vmax.xlane.f32.xlu0 %v778
      %v780 = vpop.xlane.xlu0 %779
      %v781 = vsel %vm744, %v634, -inf
      %782 = vmax.xlane.f32.xlu0 %v781
      %v783 = vpop.xlane.xlu0 %782
      %v784 = vsel %vm744, %v637, -inf
      %785 = vmax.xlane.f32.xlu0 %v784
      %v786 = vpop.xlane.xlu0 %785
      %v787 = vsel %vm744, %v642, -inf
      %788 = vmax.xlane.f32.xlu0 %v787
      %v789 = vpop.xlane.xlu0 %788
      %v790 = vsel %vm744, %v645, -inf
      %791 = vmax.xlane.f32.xlu0 %v790
      %v792 = vpop.xlane.xlu0 %791
      %v793 = vsel %vm744, %v650, -inf
      %794 = vmax.xlane.f32.xlu0 %v793
      %v795 = vpop.xlane.xlu0 %794
      %v796 = vsel %vm744, %v653, -inf
      %797 = vmax.xlane.f32.xlu0 %v796
      %v798 = vpop.xlane.xlu0 %797
      %v799 = vsel %vm744, %v658, -inf
      %800 = vmax.xlane.f32.xlu0 %v799
      %v801 = vpop.xlane.xlu0 %800
      %v802 = vsel %vm744, %v661, -inf
      %803 = vmax.xlane.f32.xlu0 %v802
      %v804 = vpop.xlane.xlu0 %803
      %v805 = vsel %vm744, %v666, -inf
      %806 = vmax.xlane.f32.xlu0 %v805
      %v807 = vpop.xlane.xlu0 %806
      %v808 = vsel %vm744, %v669, -inf
      %809 = vmax.xlane.f32.xlu0 %v808
      %v810 = vpop.xlane.xlu0 %809
      %v811 = vsel %vm744, %v674, -inf
      %812 = vmax.xlane.f32.xlu0 %v811
      %v813 = vpop.xlane.xlu0 %812
      %v814 = vsel %vm744, %v677, -inf
      %815 = vmax.xlane.f32.xlu0 %v814
      %v816 = vpop.xlane.xlu0 %815
      %v817 = vsel %vm744, %v682, -inf
      %818 = vmax.xlane.f32.xlu0 %v817
      %v819 = vpop.xlane.xlu0 %818
      %v820 = vsel %vm744, %v685, -inf
      %821 = vmax.xlane.f32.xlu0 %v820
      %v822 = vpop.xlane.xlu0 %821
      %v823 = vsel %vm744, %v690, -inf
      %824 = vmax.xlane.f32.xlu0 %v823
      %v825 = vpop.xlane.xlu0 %824
      %v826 = vsel %vm744, %v693, -inf
      %827 = vmax.xlane.f32.xlu0 %v826
      %v828 = vpop.xlane.xlu0 %827
      %v829 = vsel %vm744, %v698, -inf
      %830 = vmax.xlane.f32.xlu0 %v829
      %v831 = vpop.xlane.xlu0 %830
      %v832 = vsel %vm744, %v701, -inf
      %833 = vmax.xlane.f32.xlu0 %v832
      %v834 = vpop.xlane.xlu0 %833
      %v835 = vsel %vm744, %v706, -inf
      %836 = vmax.xlane.f32.xlu0 %v835
      %v837 = vpop.xlane.xlu0 %836
      %v838 = vsel %vm744, %v709, -inf
      %839 = vmax.xlane.f32.xlu0 %v838
      %v840 = vpop.xlane.xlu0 %839
      %v841 = vmax.f32 %v712, %v747
      %v842 = vmax.f32 %v713, %v750
      %v843 = vmax.f32 %v714, %v753
      %v844 = vmax.f32 %v715, %v756
      %v845 = vmax.f32 %v716, %v759
      %v846 = vmax.f32 %v717, %v762
      %v847 = vmax.f32 %v718, %v765
      %v848 = vmax.f32 %v719, %v768
      %v849 = vmax.f32 %v720, %v771
      %v850 = vmax.f32 %v721, %v774
      %v851 = vmax.f32 %v722, %v777
      %v852 = vmax.f32 %v723, %v780
      %v853 = vmax.f32 %v724, %v783
      %v854 = vmax.f32 %v725, %v786
      %v855 = vmax.f32 %v726, %v789
      %v856 = vmax.f32 %v727, %v792
      %v857 = vmax.f32 %v728, %v795
      %v858 = vmax.f32 %v729, %v798
      %v859 = vmax.f32 %v730, %v801
      %v860 = vmax.f32 %v731, %v804
      %v861 = vmax.f32 %v732, %v807
      %v862 = vmax.f32 %v733, %v810
      %v863 = vmax.f32 %v734, %v813
      %v864 = vmax.f32 %v735, %v816
      %v865 = vmax.f32 %v736, %v819
      %v866 = vmax.f32 %v737, %v822
      %v867 = vmax.f32 %v738, %v825
      %v868 = vmax.f32 %v739, %v828
      %v869 = vmax.f32 %v740, %v831
      %v870 = vmax.f32 %v741, %v834
      %v871 = vmax.f32 %v742, %v837
      %v872 = vmax.f32 %v743, %v840
      %v873 = vsub.f32 %v712, %v841
      %v874 = vsub.f32 %v713, %v842
      %v875 = vsub.f32 %v714, %v843
      %v876 = vsub.f32 %v715, %v844
      %v877 = vsub.f32 %v716, %v845
      %v878 = vsub.f32 %v717, %v846
      %v879 = vsub.f32 %v718, %v847
      %v880 = vsub.f32 %v719, %v848
      %v881 = vsub.f32 %v720, %v849
      %v882 = vsub.f32 %v721, %v850
      %v883 = vsub.f32 %v722, %v851
      %v884 = vsub.f32 %v723, %v852
      %v885 = vsub.f32 %v724, %v853
      %v886 = vsub.f32 %v725, %v854
      %v887 = vsub.f32 %v726, %v855
      %v888 = vsub.f32 %v727, %v856
      %v889 = vsub.f32 %v728, %v857
      %v890 = vsub.f32 %v729, %v858
      %v891 = vsub.f32 %v730, %v859
      %v892 = vsub.f32 %v731, %v860
      %v893 = vsub.f32 %v732, %v861
      %v894 = vsub.f32 %v733, %v862
      %v895 = vsub.f32 %v734, %v863
      %v896 = vsub.f32 %v735, %v864
      %v897 = vsub.f32 %v736, %v865
      %v898 = vsub.f32 %v737, %v866
      %v899 = vsub.f32 %v738, %v867
      %v900 = vsub.f32 %v739, %v868
      %v901 = vsub.f32 %v740, %v869
      %v902 = vsub.f32 %v741, %v870
      %v903 = vsub.f32 %v742, %v871
      %v904 = vsub.f32 %v743, %v872
      %v905 = vmul.f32 %v873, 1.442695
      %v906 = vpow.pop %v905
      %v907 = vmul.f32 %v874, 1.442695
      %v908 = vpow.pop %v907
      %v909 = vmul.f32 %v875, 1.442695
      %v910 = vpow.pop %v909
      %v911 = vmul.f32 %v876, 1.442695
      %v912 = vpow.pop %v911
      %v913 = vmul.f32 %v877, 1.442695
      %v914 = vpow.pop %v913
      %v915 = vmul.f32 %v878, 1.442695
      %v916 = vpow.pop %v915
      %v917 = vmul.f32 %v879, 1.442695
      %v918 = vpow.pop %v917
      %v919 = vmul.f32 %v880, 1.442695
      %v920 = vpow.pop %v919
      %v921 = vmul.f32 %v881, 1.442695
      %v922 = vpow.pop %v921
      %v923 = vmul.f32 %v882, 1.442695
      %v924 = vpow.pop %v923
      %v925 = vmul.f32 %v883, 1.442695
      %v926 = vpow.pop %v925
      %v927 = vmul.f32 %v884, 1.442695
      %v928 = vpow.pop %v927
      %v929 = vmul.f32 %v885, 1.442695
      %v930 = vpow.pop %v929
      %v931 = vmul.f32 %v886, 1.442695
      %v932 = vpow.pop %v931
      %v933 = vmul.f32 %v887, 1.442695
      %v934 = vpow.pop %v933
      %v935 = vmul.f32 %v888, 1.442695
      %v936 = vpow.pop %v935
      %v937 = vmul.f32 %v889, 1.442695
      %v938 = vpow.pop %v937
      %v939 = vmul.f32 %v890, 1.442695
      %v940 = vpow.pop %v939
      %v941 = vmul.f32 %v891, 1.442695
      %v942 = vpow.pop %v941
      %v943 = vmul.f32 %v892, 1.442695
      %v944 = vpow.pop %v943
      %v945 = vmul.f32 %v893, 1.442695
      %v946 = vpow.pop %v945
      %v947 = vmul.f32 %v894, 1.442695
      %v948 = vpow.pop %v947
      %v949 = vmul.f32 %v895, 1.442695
      %v950 = vpow.pop %v949
      %v951 = vmul.f32 %v896, 1.442695
      %v952 = vpow.pop %v951
      %v953 = vmul.f32 %v897, 1.442695
      %v954 = vpow.pop %v953
      %v955 = vmul.f32 %v898, 1.442695
      %v956 = vpow.pop %v955
      %v957 = vmul.f32 %v899, 1.442695
      %v958 = vpow.pop %v957
      %v959 = vmul.f32 %v900, 1.442695
      %v960 = vpow.pop %v959
      %v961 = vmul.f32 %v901, 1.442695
      %v962 = vpow.pop %v961
      %v963 = vmul.f32 %v902, 1.442695
      %v964 = vpow.pop %v963
      %v965 = vmul.f32 %v903, 1.442695
      %v966 = vpow.pop %v965
      %v967 = vmul.f32 %v904, 1.442695
      %v968 = vpow.pop %v967
      %970 = vset.pattern.permute.xlu0 0
      %971 = vperm.xlu0 %970, %v841
      %v972 = vpop.permute.xlu0 %971
      %975 = vset.pattern.permute.xlu0 0
      %976 = vperm.xlu0 %975, %v842
      %v977 = vpop.permute.xlu0 %976
      %980 = vset.pattern.permute.xlu0 0
      %981 = vperm.xlu0 %980, %v843
      %v982 = vpop.permute.xlu0 %981
      %985 = vset.pattern.permute.xlu0 0
      %986 = vperm.xlu0 %985, %v844
      %v987 = vpop.permute.xlu0 %986
      %990 = vset.pattern.permute.xlu0 0
      %991 = vperm.xlu0 %990, %v845
      %v992 = vpop.permute.xlu0 %991
      %995 = vset.pattern.permute.xlu0 0
      %996 = vperm.xlu0 %995, %v846
      %v997 = vpop.permute.xlu0 %996
      %1000 = vset.pattern.permute.xlu0 0
      %1001 = vperm.xlu0 %1000, %v847
      %v1002 = vpop.permute.xlu0 %1001
      %1005 = vset.pattern.permute.xlu0 0
      %1006 = vperm.xlu0 %1005, %v848
      %v1007 = vpop.permute.xlu0 %1006
      %1010 = vset.pattern.permute.xlu0 0
      %1011 = vperm.xlu0 %1010, %v849
      %v1012 = vpop.permute.xlu0 %1011
      %1015 = vset.pattern.permute.xlu0 0
      %1016 = vperm.xlu0 %1015, %v850
      %v1017 = vpop.permute.xlu0 %1016
      %1020 = vset.pattern.permute.xlu0 0
      %1021 = vperm.xlu0 %1020, %v851
      %v1022 = vpop.permute.xlu0 %1021
      %1025 = vset.pattern.permute.xlu0 0
      %1026 = vperm.xlu0 %1025, %v852
      %v1027 = vpop.permute.xlu0 %1026
      %1030 = vset.pattern.permute.xlu0 0
      %1031 = vperm.xlu0 %1030, %v853
      %v1032 = vpop.permute.xlu0 %1031
      %1035 = vset.pattern.permute.xlu0 0
      %1036 = vperm.xlu0 %1035, %v854
      %v1037 = vpop.permute.xlu0 %1036
      %1040 = vset.pattern.permute.xlu0 0
      %1041 = vperm.xlu0 %1040, %v855
      %v1042 = vpop.permute.xlu0 %1041
      %1045 = vset.pattern.permute.xlu0 0
      %1046 = vperm.xlu0 %1045, %v856
      %v1047 = vpop.permute.xlu0 %1046
      %1050 = vset.pattern.permute.xlu0 0
      %1051 = vperm.xlu0 %1050, %v857
      %v1052 = vpop.permute.xlu0 %1051
      %1055 = vset.pattern.permute.xlu0 0
      %1056 = vperm.xlu0 %1055, %v858
      %v1057 = vpop.permute.xlu0 %1056
      %1060 = vset.pattern.permute.xlu0 0
      %1061 = vperm.xlu0 %1060, %v859
      %v1062 = vpop.permute.xlu0 %1061
      %1065 = vset.pattern.permute.xlu0 0
      %1066 = vperm.xlu0 %1065, %v860
      %v1067 = vpop.permute.xlu0 %1066
      %1070 = vset.pattern.permute.xlu0 0
      %1071 = vperm.xlu0 %1070, %v861
      %v1072 = vpop.permute.xlu0 %1071
      %1075 = vset.pattern.permute.xlu0 0
      %1076 = vperm.xlu0 %1075, %v862
      %v1077 = vpop.permute.xlu0 %1076
      %1080 = vset.pattern.permute.xlu0 0
      %1081 = vperm.xlu0 %1080, %v863
      %v1082 = vpop.permute.xlu0 %1081
      %1085 = vset.pattern.permute.xlu0 0
      %1086 = vperm.xlu0 %1085, %v864
      %v1087 = vpop.permute.xlu0 %1086
      %1090 = vset.pattern.permute.xlu0 0
      %1091 = vperm.xlu0 %1090, %v865
      %v1092 = vpop.permute.xlu0 %1091
      %1095 = vset.pattern.permute.xlu0 0
      %1096 = vperm.xlu0 %1095, %v866
      %v1097 = vpop.permute.xlu0 %1096
      %1100 = vset.pattern.permute.xlu0 0
      %1101 = vperm.xlu0 %1100, %v867
      %v1102 = vpop.permute.xlu0 %1101
      %1105 = vset.pattern.permute.xlu0 0
      %1106 = vperm.xlu0 %1105, %v868
      %v1107 = vpop.permute.xlu0 %1106
      %1110 = vset.pattern.permute.xlu0 0
      %1111 = vperm.xlu0 %1110, %v869
      %v1112 = vpop.permute.xlu0 %1111
      %1115 = vset.pattern.permute.xlu0 0
      %1116 = vperm.xlu0 %1115, %v870
      %v1117 = vpop.permute.xlu0 %1116
      %1120 = vset.pattern.permute.xlu0 0
      %1121 = vperm.xlu0 %1120, %v871
      %v1122 = vpop.permute.xlu0 %1121
      %1125 = vset.pattern.permute.xlu0 0
      %1126 = vperm.xlu0 %1125, %v872
      %v1127 = vpop.permute.xlu0 %1126
      %v1129 = vsub.f32 %v586, %v972
      %v1130 = vsub.f32 %v589, %v977
      %v1131 = vsub.f32 %v594, %v982
      %v1132 = vsub.f32 %v597, %v987
      %v1133 = vsub.f32 %v602, %v992
      %v1134 = vsub.f32 %v605, %v997
      %v1135 = vsub.f32 %v610, %v1002
      %v1136 = vsub.f32 %v613, %v1007
      %v1137 = vsub.f32 %v618, %v1012
      %v1138 = vsub.f32 %v621, %v1017
      %v1139 = vsub.f32 %v626, %v1022
      %v1140 = vsub.f32 %v629, %v1027
      %v1141 = vsub.f32 %v634, %v1032
      %v1142 = vsub.f32 %v637, %v1037
      %v1143 = vsub.f32 %v642, %v1042
      %v1144 = vsub.f32 %v645, %v1047
      %v1145 = vsub.f32 %v650, %v1052
      %v1146 = vsub.f32 %v653, %v1057
      %v1147 = vsub.f32 %v658, %v1062
      %v1148 = vsub.f32 %v661, %v1067
      %v1149 = vsub.f32 %v666, %v1072
      %v1150 = vsub.f32 %v669, %v1077
      %v1151 = vsub.f32 %v674, %v1082
      %v1152 = vsub.f32 %v677, %v1087
      %v1153 = vsub.f32 %v682, %v1092
      %v1154 = vsub.f32 %v685, %v1097
      %v1155 = vsub.f32 %v690, %v1102
      %v1156 = vsub.f32 %v693, %v1107
      %v1157 = vsub.f32 %v698, %v1112
      %v1158 = vsub.f32 %v701, %v1117
      %v1159 = vsub.f32 %v706, %v1122
      %v1160 = vsub.f32 %v709, %v1127
      %v1161 = vmul.f32 %v1129, 1.442695
      %v1162 = vpow.pop %v1161
      %v1163 = vmul.f32 %v1130, 1.442695
      %v1164 = vpow.pop %v1163
      %v1165 = vmul.f32 %v1131, 1.442695
      %v1166 = vpow.pop %v1165
      %v1167 = vmul.f32 %v1132, 1.442695
      %v1168 = vpow.pop %v1167
      %v1169 = vmul.f32 %v1133, 1.442695
      %v1170 = vpow.pop %v1169
      %v1171 = vmul.f32 %v1134, 1.442695
      %v1172 = vpow.pop %v1171
      %v1173 = vmul.f32 %v1135, 1.442695
      %v1174 = vpow.pop %v1173
      %v1175 = vmul.f32 %v1136, 1.442695
      %v1176 = vpow.pop %v1175
      %v1177 = vmul.f32 %v1137, 1.442695
      %v1178 = vpow.pop %v1177
      %v1179 = vmul.f32 %v1138, 1.442695
      %v1180 = vpow.pop %v1179
      %v1181 = vmul.f32 %v1139, 1.442695
      %v1182 = vpow.pop %v1181
      %v1183 = vmul.f32 %v1140, 1.442695
      %v1184 = vpow.pop %v1183
      %v1185 = vmul.f32 %v1141, 1.442695
      %v1186 = vpow.pop %v1185
      %v1187 = vmul.f32 %v1142, 1.442695
      %v1188 = vpow.pop %v1187
      %v1189 = vmul.f32 %v1143, 1.442695
      %v1190 = vpow.pop %v1189
      %v1191 = vmul.f32 %v1144, 1.442695
      %v1192 = vpow.pop %v1191
      %v1193 = vmul.f32 %v1145, 1.442695
      %v1194 = vpow.pop %v1193
      %v1195 = vmul.f32 %v1146, 1.442695
      %v1196 = vpow.pop %v1195
      %v1197 = vmul.f32 %v1147, 1.442695
      %v1198 = vpow.pop %v1197
      %v1199 = vmul.f32 %v1148, 1.442695
      %v1200 = vpow.pop %v1199
      %v1201 = vmul.f32 %v1149, 1.442695
      %v1202 = vpow.pop %v1201
      %v1203 = vmul.f32 %v1150, 1.442695
      %v1204 = vpow.pop %v1203
      %v1205 = vmul.f32 %v1151, 1.442695
      %v1206 = vpow.pop %v1205
      %v1207 = vmul.f32 %v1152, 1.442695
      %v1208 = vpow.pop %v1207
      %v1209 = vmul.f32 %v1153, 1.442695
      %v1210 = vpow.pop %v1209
      %v1211 = vmul.f32 %v1154, 1.442695
      %v1212 = vpow.pop %v1211
      %v1213 = vmul.f32 %v1155, 1.442695
      %v1214 = vpow.pop %v1213
      %v1215 = vmul.f32 %v1156, 1.442695
      %v1216 = vpow.pop %v1215
      %v1217 = vmul.f32 %v1157, 1.442695
      %v1218 = vpow.pop %v1217
      %v1219 = vmul.f32 %v1158, 1.442695
      %v1220 = vpow.pop %v1219
      %v1221 = vmul.f32 %v1159, 1.442695
      %v1222 = vpow.pop %v1221
      %v1223 = vmul.f32 %v1160, 1.442695
      %v1224 = vpow.pop %v1223
      %v1225 = vld [vmem:[#allocation3] sm:$0xff]
      %v1226 = vld [vmem:[#allocation3 + $0x8] sm:$0xff]
      %v1227 = vld [vmem:[#allocation3 + $0x10] sm:$0xff]
      %v1228 = vld [vmem:[#allocation3 + $0x18] sm:$0xff]
      %v1229 = vld [vmem:[#allocation3 + $0x20] sm:$0xff]
      %v1230 = vld [vmem:[#allocation3 + $0x28] sm:$0xff]
      %v1231 = vld [vmem:[#allocation3 + $0x30] sm:$0xff]
      %v1232 = vld [vmem:[#allocation3 + $0x38] sm:$0xff]
      %v1233 = vld [vmem:[#allocation3 + $0x40] sm:$0xff]
      %v1234 = vld [vmem:[#allocation3 + $0x48] sm:$0xff]
      %v1235 = vld [vmem:[#allocation3 + $0x50] sm:$0xff]
      %v1236 = vld [vmem:[#allocation3 + $0x58] sm:$0xff]
      %v1237 = vld [vmem:[#allocation3 + $0x60] sm:$0xff]
      %v1238 = vld [vmem:[#allocation3 + $0x68] sm:$0xff]
      %v1239 = vld [vmem:[#allocation3 + $0x70] sm:$0xff]
      %v1240 = vld [vmem:[#allocation3 + $0x78] sm:$0xff]
      %v1241 = vld [vmem:[#allocation3 + $0x80] sm:$0xff]
      %v1242 = vld [vmem:[#allocation3 + $0x88] sm:$0xff]
      %v1243 = vld [vmem:[#allocation3 + $0x90] sm:$0xff]
      %v1244 = vld [vmem:[#allocation3 + $0x98] sm:$0xff]
      %v1245 = vld [vmem:[#allocation3 + $0xa0] sm:$0xff]
      %v1246 = vld [vmem:[#allocation3 + $0xa8] sm:$0xff]
      %v1247 = vld [vmem:[#allocation3 + $0xb0] sm:$0xff]
      %v1248 = vld [vmem:[#allocation3 + $0xb8] sm:$0xff]
      %v1249 = vld [vmem:[#allocation3 + $0xc0] sm:$0xff]
      %v1250 = vld [vmem:[#allocation3 + $0xc8] sm:$0xff]
      %v1251 = vld [vmem:[#allocation3 + $0xd0] sm:$0xff]
      %v1252 = vld [vmem:[#allocation3 + $0xd8] sm:$0xff]
      %v1253 = vld [vmem:[#allocation3 + $0xe0] sm:$0xff]
      %v1254 = vld [vmem:[#allocation3 + $0xe8] sm:$0xff]
      %v1255 = vld [vmem:[#allocation3 + $0xf0] sm:$0xff]
      %v1256 = vld [vmem:[#allocation3 + $0xf8] sm:$0xff]
      %v1257 = vmul.f32 %v906, %v1225
      %v1258 = vmul.f32 %v908, %v1226
      %v1259 = vmul.f32 %v910, %v1227
      %v1260 = vmul.f32 %v912, %v1228
      %v1261 = vmul.f32 %v914, %v1229
      %v1262 = vmul.f32 %v916, %v1230
      %v1263 = vmul.f32 %v918, %v1231
      %v1264 = vmul.f32 %v920, %v1232
      %v1265 = vmul.f32 %v922, %v1233
      %v1266 = vmul.f32 %v924, %v1234
      %v1267 = vmul.f32 %v926, %v1235
      %v1268 = vmul.f32 %v928, %v1236
      %v1269 = vmul.f32 %v930, %v1237
      %v1270 = vmul.f32 %v932, %v1238
      %v1271 = vmul.f32 %v934, %v1239
      %v1272 = vmul.f32 %v936, %v1240
      %v1273 = vmul.f32 %v938, %v1241
      %v1274 = vmul.f32 %v940, %v1242
      %v1275 = vmul.f32 %v942, %v1243
      %v1276 = vmul.f32 %v944, %v1244
      %v1277 = vmul.f32 %v946, %v1245
      %v1278 = vmul.f32 %v948, %v1246
      %v1279 = vmul.f32 %v950, %v1247
      %v1280 = vmul.f32 %v952, %v1248
      %v1281 = vmul.f32 %v954, %v1249
      %v1282 = vmul.f32 %v956, %v1250
      %v1283 = vmul.f32 %v958, %v1251
      %v1284 = vmul.f32 %v960, %v1252
      %v1285 = vmul.f32 %v962, %v1253
      %v1286 = vmul.f32 %v964, %v1254
      %v1287 = vmul.f32 %v966, %v1255
      %v1288 = vmul.f32 %v968, %v1256
      %v1289 = vsel %vm744, %v1162, 0.0
      %1290 = vadd.xlane.f32.xlu0 %v1289
      %v1291 = vpop.xlane.xlu0 %1290
      %v1292 = vsel %vm744, %v1164, 0.0
      %1293 = vadd.xlane.f32.xlu0 %v1292
      %v1294 = vpop.xlane.xlu0 %1293
      %v1295 = vsel %vm744, %v1166, 0.0
      %1296 = vadd.xlane.f32.xlu0 %v1295
      %v1297 = vpop.xlane.xlu0 %1296
      %v1298 = vsel %vm744, %v1168, 0.0
      %1299 = vadd.xlane.f32.xlu0 %v1298
      %v1300 = vpop.xlane.xlu0 %1299
      %v1301 = vsel %vm744, %v1170, 0.0
      %1302 = vadd.xlane.f32.xlu0 %v1301
      %v1303 = vpop.xlane.xlu0 %1302
      %v1304 = vsel %vm744, %v1172, 0.0
      %1305 = vadd.xlane.f32.xlu0 %v1304
      %v1306 = vpop.xlane.xlu0 %1305
      %v1307 = vsel %vm744, %v1174, 0.0
      %1308 = vadd.xlane.f32.xlu0 %v1307
      %v1309 = vpop.xlane.xlu0 %1308
      %v1310 = vsel %vm744, %v1176, 0.0
      %1311 = vadd.xlane.f32.xlu0 %v1310
      %v1312 = vpop.xlane.xlu0 %1311
      %v1313 = vsel %vm744, %v1178, 0.0
      %1314 = vadd.xlane.f32.xlu0 %v1313
      %v1315 = vpop.xlane.xlu0 %1314
      %v1316 = vsel %vm744, %v1180, 0.0
      %1317 = vadd.xlane.f32.xlu0 %v1316
      %v1318 = vpop.xlane.xlu0 %1317
      %v1319 = vsel %vm744, %v1182, 0.0
      %1320 = vadd.xlane.f32.xlu0 %v1319
      %v1321 = vpop.xlane.xlu0 %1320
      %v1322 = vsel %vm744, %v1184, 0.0
      %1323 = vadd.xlane.f32.xlu0 %v1322
      %v1324 = vpop.xlane.xlu0 %1323
      %v1325 = vsel %vm744, %v1186, 0.0
      %1326 = vadd.xlane.f32.xlu0 %v1325
      %v1327 = vpop.xlane.xlu0 %1326
      %v1328 = vsel %vm744, %v1188, 0.0
      %1329 = vadd.xlane.f32.xlu0 %v1328
      %v1330 = vpop.xlane.xlu0 %1329
      %v1331 = vsel %vm744, %v1190, 0.0
      %1332 = vadd.xlane.f32.xlu0 %v1331
      %v1333 = vpop.xlane.xlu0 %1332
      %v1334 = vsel %vm744, %v1192, 0.0
      %1335 = vadd.xlane.f32.xlu0 %v1334
      %v1336 = vpop.xlane.xlu0 %1335
      %v1337 = vsel %vm744, %v1194, 0.0
      %1338 = vadd.xlane.f32.xlu0 %v1337
      %v1339 = vpop.xlane.xlu0 %1338
      %v1340 = vsel %vm744, %v1196, 0.0
      %1341 = vadd.xlane.f32.xlu0 %v1340
      %v1342 = vpop.xlane.xlu0 %1341
      %v1343 = vsel %vm744, %v1198, 0.0
      %1344 = vadd.xlane.f32.xlu0 %v1343
      %v1345 = vpop.xlane.xlu0 %1344
      %v1346 = vsel %vm744, %v1200, 0.0
      %1347 = vadd.xlane.f32.xlu0 %v1346
      %v1348 = vpop.xlane.xlu0 %1347
      %v1349 = vsel %vm744, %v1202, 0.0
      %1350 = vadd.xlane.f32.xlu0 %v1349
      %v1351 = vpop.xlane.xlu0 %1350
      %v1352 = vsel %vm744, %v1204, 0.0
      %1353 = vadd.xlane.f32.xlu0 %v1352
      %v1354 = vpop.xlane.xlu0 %1353
      %v1355 = vsel %vm744, %v1206, 0.0
      %1356 = vadd.xlane.f32.xlu0 %v1355
      %v1357 = vpop.xlane.xlu0 %1356
      %v1358 = vsel %vm744, %v1208, 0.0
      %1359 = vadd.xlane.f32.xlu0 %v1358
      %v1360 = vpop.xlane.xlu0 %1359
      %v1361 = vsel %vm744, %v1210, 0.0
      %1362 = vadd.xlane.f32.xlu0 %v1361
      %v1363 = vpop.xlane.xlu0 %1362
      %v1364 = vsel %vm744, %v1212, 0.0
      %1365 = vadd.xlane.f32.xlu0 %v1364
      %v1366 = vpop.xlane.xlu0 %1365
      %v1367 = vsel %vm744, %v1214, 0.0
      %1368 = vadd.xlane.f32.xlu0 %v1367
      %v1369 = vpop.xlane.xlu0 %1368
      %v1370 = vsel %vm744, %v1216, 0.0
      %1371 = vadd.xlane.f32.xlu0 %v1370
      %v1372 = vpop.xlane.xlu0 %1371
      %v1373 = vsel %vm744, %v1218, 0.0
      %1374 = vadd.xlane.f32.xlu0 %v1373
      %v1375 = vpop.xlane.xlu0 %1374
      %v1376 = vsel %vm744, %v1220, 0.0
      %1377 = vadd.xlane.f32.xlu0 %v1376
      %v1378 = vpop.xlane.xlu0 %1377
      %v1379 = vsel %vm744, %v1222, 0.0
      %1380 = vadd.xlane.f32.xlu0 %v1379
      %v1381 = vpop.xlane.xlu0 %1380
      %v1382 = vsel %vm744, %v1224, 0.0
      %1383 = vadd.xlane.f32.xlu0 %v1382
      %v1384 = vpop.xlane.xlu0 %1383
      %v1385 = vadd.f32 %v1257, %v1291
      %v1386 = vadd.f32 %v1258, %v1294
      %v1387 = vadd.f32 %v1259, %v1297
      %v1388 = vadd.f32 %v1260, %v1300
      %v1389 = vadd.f32 %v1261, %v1303
      %v1390 = vadd.f32 %v1262, %v1306
      %v1391 = vadd.f32 %v1263, %v1309
      %v1392 = vadd.f32 %v1264, %v1312
      %v1393 = vadd.f32 %v1265, %v1315
      %v1394 = vadd.f32 %v1266, %v1318
      %v1395 = vadd.f32 %v1267, %v1321
      %v1396 = vadd.f32 %v1268, %v1324
      %v1397 = vadd.f32 %v1269, %v1327
      %v1398 = vadd.f32 %v1270, %v1330
      %v1399 = vadd.f32 %v1271, %v1333
      %v1400 = vadd.f32 %v1272, %v1336
      %v1401 = vadd.f32 %v1273, %v1339
      %v1402 = vadd.f32 %v1274, %v1342
      %v1403 = vadd.f32 %v1275, %v1345
      %v1404 = vadd.f32 %v1276, %v1348
      %v1405 = vadd.f32 %v1277, %v1351
      %v1406 = vadd.f32 %v1278, %v1354
      %v1407 = vadd.f32 %v1279, %v1357
      %v1408 = vadd.f32 %v1280, %v1360
      %v1409 = vadd.f32 %v1281, %v1363
      %v1410 = vadd.f32 %v1282, %v1366
      %v1411 = vadd.f32 %v1283, %v1369
      %v1412 = vadd.f32 %v1284, %v1372
      %v1413 = vadd.f32 %v1285, %v1375
      %v1414 = vadd.f32 %v1286, %v1378
      %v1415 = vadd.f32 %v1287, %v1381
      %v1416 = vadd.f32 %v1288, %v1384
      %vm1417 = vcmask 7168
      %1418 = vst.msk [vmem:[#allocation3] sm:$0xff] %vm1417, %v1385
      %1419 = vst.msk [vmem:[#allocation3 + $0x8] sm:$0xff] %vm1417, %v1386
      %1420 = vst.msk [vmem:[#allocation3 + $0x10] sm:$0xff] %vm1417, %v1387
      %1421 = vst.msk [vmem:[#allocation3 + $0x18] sm:$0xff] %vm1417, %v1388
      %1422 = vst.msk [vmem:[#allocation3 + $0x20] sm:$0xff] %vm1417, %v1389
      %1423 = vst.msk [vmem:[#allocation3 + $0x28] sm:$0xff] %vm1417, %v1390
      %1424 = vst.msk [vmem:[#allocation3 + $0x30] sm:$0xff] %vm1417, %v1391
      %1425 = vst.msk [vmem:[#allocation3 + $0x38] sm:$0xff] %vm1417, %v1392
      %1426 = vst.msk [vmem:[#allocation3 + $0x40] sm:$0xff] %vm1417, %v1393
      %1427 = vst.msk [vmem:[#allocation3 + $0x48] sm:$0xff] %vm1417, %v1394
      %1428 = vst.msk [vmem:[#allocation3 + $0x50] sm:$0xff] %vm1417, %v1395
      %1429 = vst.msk [vmem:[#allocation3 + $0x58] sm:$0xff] %vm1417, %v1396
      %1430 = vst.msk [vmem:[#allocation3 + $0x60] sm:$0xff] %vm1417, %v1397
      %1431 = vst.msk [vmem:[#allocation3 + $0x68] sm:$0xff] %vm1417, %v1398
      %1432 = vst.msk [vmem:[#allocation3 + $0x70] sm:$0xff] %vm1417, %v1399
      %1433 = vst.msk [vmem:[#allocation3 + $0x78] sm:$0xff] %vm1417, %v1400
      %1434 = vst.msk [vmem:[#allocation3 + $0x80] sm:$0xff] %vm1417, %v1401
      %1435 = vst.msk [vmem:[#allocation3 + $0x88] sm:$0xff] %vm1417, %v1402
      %1436 = vst.msk [vmem:[#allocation3 + $0x90] sm:$0xff] %vm1417, %v1403
      %1437 = vst.msk [vmem:[#allocation3 + $0x98] sm:$0xff] %vm1417, %v1404
      %1438 = vst.msk [vmem:[#allocation3 + $0xa0] sm:$0xff] %vm1417, %v1405
      %1439 = vst.msk [vmem:[#allocation3 + $0xa8] sm:$0xff] %vm1417, %v1406
      %1440 = vst.msk [vmem:[#allocation3 + $0xb0] sm:$0xff] %vm1417, %v1407
      %1441 = vst.msk [vmem:[#allocation3 + $0xb8] sm:$0xff] %vm1417, %v1408
      %1442 = vst.msk [vmem:[#allocation3 + $0xc0] sm:$0xff] %vm1417, %v1409
      %1443 = vst.msk [vmem:[#allocation3 + $0xc8] sm:$0xff] %vm1417, %v1410
      %1444 = vst.msk [vmem:[#allocation3 + $0xd0] sm:$0xff] %vm1417, %v1411
      %1445 = vst.msk [vmem:[#allocation3 + $0xd8] sm:$0xff] %vm1417, %v1412
      %1446 = vst.msk [vmem:[#allocation3 + $0xe0] sm:$0xff] %vm1417, %v1413
      %1447 = vst.msk [vmem:[#allocation3 + $0xe8] sm:$0xff] %vm1417, %v1414
      %1448 = vst.msk [vmem:[#allocation3 + $0xf0] sm:$0xff] %vm1417, %v1415
      %1449 = vst.msk [vmem:[#allocation3 + $0xf8] sm:$0xff] %vm1417, %v1416
      %v1450 = vld [vmem:[#allocation4] sm:$0xff]
      %v1451 = vld [vmem:[#allocation4 + $0x8] sm:$0xff]
      %v1452 = vld [vmem:[#allocation4 + $0x10] sm:$0xff]
      %v1453 = vld [vmem:[#allocation4 + $0x18] sm:$0xff]
      %v1454 = vld [vmem:[#allocation4 + $0x20] sm:$0xff]
      %v1455 = vld [vmem:[#allocation4 + $0x28] sm:$0xff]
      %v1456 = vld [vmem:[#allocation4 + $0x30] sm:$0xff]
      %v1457 = vld [vmem:[#allocation4 + $0x38] sm:$0xff]
      %v1458 = vld [vmem:[#allocation4 + $0x40] sm:$0xff]
      %v1459 = vld [vmem:[#allocation4 + $0x48] sm:$0xff]
      %v1460 = vld [vmem:[#allocation4 + $0x50] sm:$0xff]
      %v1461 = vld [vmem:[#allocation4 + $0x58] sm:$0xff]
      %v1462 = vld [vmem:[#allocation4 + $0x60] sm:$0xff]
      %v1463 = vld [vmem:[#allocation4 + $0x68] sm:$0xff]
      %v1464 = vld [vmem:[#allocation4 + $0x70] sm:$0xff]
      %v1465 = vld [vmem:[#allocation4 + $0x78] sm:$0xff]
      %v1466 = vld [vmem:[#allocation4 + $0x80] sm:$0xff]
      %v1467 = vld [vmem:[#allocation4 + $0x88] sm:$0xff]
      %v1468 = vld [vmem:[#allocation4 + $0x90] sm:$0xff]
      %v1469 = vld [vmem:[#allocation4 + $0x98] sm:$0xff]
      %v1470 = vld [vmem:[#allocation4 + $0xa0] sm:$0xff]
      %v1471 = vld [vmem:[#allocation4 + $0xa8] sm:$0xff]
      %v1472 = vld [vmem:[#allocation4 + $0xb0] sm:$0xff]
      %v1473 = vld [vmem:[#allocation4 + $0xb8] sm:$0xff]
      %v1474 = vld [vmem:[#allocation4 + $0xc0] sm:$0xff]
      %v1475 = vld [vmem:[#allocation4 + $0xc8] sm:$0xff]
      %v1476 = vld [vmem:[#allocation4 + $0xd0] sm:$0xff]
      %v1477 = vld [vmem:[#allocation4 + $0xd8] sm:$0xff]
      %v1478 = vld [vmem:[#allocation4 + $0xe0] sm:$0xff]
      %v1479 = vld [vmem:[#allocation4 + $0xe8] sm:$0xff]
      %v1480 = vld [vmem:[#allocation4 + $0xf0] sm:$0xff]
      %v1481 = vld [vmem:[#allocation4 + $0xf8] sm:$0xff]
      %1483 = vset.pattern.permute.xlu0 0
      %1484 = vperm.xlu0 %1483, %v906
      %v1485 = vpop.permute.xlu0 %1484
      %1488 = vset.pattern.permute.xlu0 0
      %1489 = vperm.xlu0 %1488, %v908
      %v1490 = vpop.permute.xlu0 %1489
      %1493 = vset.pattern.permute.xlu0 0
      %1494 = vperm.xlu0 %1493, %v910
      %v1495 = vpop.permute.xlu0 %1494
      %1498 = vset.pattern.permute.xlu0 0
      %1499 = vperm.xlu0 %1498, %v912
      %v1500 = vpop.permute.xlu0 %1499
      %1503 = vset.pattern.permute.xlu0 0
      %1504 = vperm.xlu0 %1503, %v914
      %v1505 = vpop.permute.xlu0 %1504
      %1508 = vset.pattern.permute.xlu0 0
      %1509 = vperm.xlu0 %1508, %v916
      %v1510 = vpop.permute.xlu0 %1509
      %1513 = vset.pattern.permute.xlu0 0
      %1514 = vperm.xlu0 %1513, %v918
      %v1515 = vpop.permute.xlu0 %1514
      %1518 = vset.pattern.permute.xlu0 0
      %1519 = vperm.xlu0 %1518, %v920
      %v1520 = vpop.permute.xlu0 %1519
      %1523 = vset.pattern.permute.xlu0 0
      %1524 = vperm.xlu0 %1523, %v922
      %v1525 = vpop.permute.xlu0 %1524
      %1528 = vset.pattern.permute.xlu0 0
      %1529 = vperm.xlu0 %1528, %v924
      %v1530 = vpop.permute.xlu0 %1529
      %1533 = vset.pattern.permute.xlu0 0
      %1534 = vperm.xlu0 %1533, %v926
      %v1535 = vpop.permute.xlu0 %1534
      %1538 = vset.pattern.permute.xlu0 0
      %1539 = vperm.xlu0 %1538, %v928
      %v1540 = vpop.permute.xlu0 %1539
      %1543 = vset.pattern.permute.xlu0 0
      %1544 = vperm.xlu0 %1543, %v930
      %v1545 = vpop.permute.xlu0 %1544
      %1548 = vset.pattern.permute.xlu0 0
      %1549 = vperm.xlu0 %1548, %v932
      %v1550 = vpop.permute.xlu0 %1549
      %1553 = vset.pattern.permute.xlu0 0
      %1554 = vperm.xlu0 %1553, %v934
      %v1555 = vpop.permute.xlu0 %1554
      %1558 = vset.pattern.permute.xlu0 0
      %1559 = vperm.xlu0 %1558, %v936
      %v1560 = vpop.permute.xlu0 %1559
      %1563 = vset.pattern.permute.xlu0 0
      %1564 = vperm.xlu0 %1563, %v938
      %v1565 = vpop.permute.xlu0 %1564
      %1568 = vset.pattern.permute.xlu0 0
      %1569 = vperm.xlu0 %1568, %v940
      %v1570 = vpop.permute.xlu0 %1569
      %1573 = vset.pattern.permute.xlu0 0
      %1574 = vperm.xlu0 %1573, %v942
      %v1575 = vpop.permute.xlu0 %1574
      %1578 = vset.pattern.permute.xlu0 0
      %1579 = vperm.xlu0 %1578, %v944
      %v1580 = vpop.permute.xlu0 %1579
      %1583 = vset.pattern.permute.xlu0 0
      %1584 = vperm.xlu0 %1583, %v946
      %v1585 = vpop.permute.xlu0 %1584
      %1588 = vset.pattern.permute.xlu0 0
      %1589 = vperm.xlu0 %1588, %v948
      %v1590 = vpop.permute.xlu0 %1589
      %1593 = vset.pattern.permute.xlu0 0
      %1594 = vperm.xlu0 %1593, %v950
      %v1595 = vpop.permute.xlu0 %1594
      %1598 = vset.pattern.permute.xlu0 0
      %1599 = vperm.xlu0 %1598, %v952
      %v1600 = vpop.permute.xlu0 %1599
      %1603 = vset.pattern.permute.xlu0 0
      %1604 = vperm.xlu0 %1603, %v954
      %v1605 = vpop.permute.xlu0 %1604
      %1608 = vset.pattern.permute.xlu0 0
      %1609 = vperm.xlu0 %1608, %v956
      %v1610 = vpop.permute.xlu0 %1609
      %1613 = vset.pattern.permute.xlu0 0
      %1614 = vperm.xlu0 %1613, %v958
      %v1615 = vpop.permute.xlu0 %1614
      %1618 = vset.pattern.permute.xlu0 0
      %1619 = vperm.xlu0 %1618, %v960
      %v1620 = vpop.permute.xlu0 %1619
      %1623 = vset.pattern.permute.xlu0 0
      %1624 = vperm.xlu0 %1623, %v962
      %v1625 = vpop.permute.xlu0 %1624
      %1628 = vset.pattern.permute.xlu0 0
      %1629 = vperm.xlu0 %1628, %v964
      %v1630 = vpop.permute.xlu0 %1629
      %1633 = vset.pattern.permute.xlu0 0
      %1634 = vperm.xlu0 %1633, %v966
      %v1635 = vpop.permute.xlu0 %1634
      %1638 = vset.pattern.permute.xlu0 0
      %1639 = vperm.xlu0 %1638, %v968
      %v1640 = vpop.permute.xlu0 %1639
      %v1642 = vmul.f32 %v1485, %v1450
      %v1643 = vmul.f32 %v1490, %v1451
      %v1644 = vmul.f32 %v1495, %v1452
      %v1645 = vmul.f32 %v1500, %v1453
      %v1646 = vmul.f32 %v1505, %v1454
      %v1647 = vmul.f32 %v1510, %v1455
      %v1648 = vmul.f32 %v1515, %v1456
      %v1649 = vmul.f32 %v1520, %v1457
      %v1650 = vmul.f32 %v1525, %v1458
      %v1651 = vmul.f32 %v1530, %v1459
      %v1652 = vmul.f32 %v1535, %v1460
      %v1653 = vmul.f32 %v1540, %v1461
      %v1654 = vmul.f32 %v1545, %v1462
      %v1655 = vmul.f32 %v1550, %v1463
      %v1656 = vmul.f32 %v1555, %v1464
      %v1657 = vmul.f32 %v1560, %v1465
      %v1658 = vmul.f32 %v1565, %v1466
      %v1659 = vmul.f32 %v1570, %v1467
      %v1660 = vmul.f32 %v1575, %v1468
      %v1661 = vmul.f32 %v1580, %v1469
      %v1662 = vmul.f32 %v1585, %v1470
      %v1663 = vmul.f32 %v1590, %v1471
      %v1664 = vmul.f32 %v1595, %v1472
      %v1665 = vmul.f32 %v1600, %v1473
      %v1666 = vmul.f32 %v1605, %v1474
      %v1667 = vmul.f32 %v1610, %v1475
      %v1668 = vmul.f32 %v1615, %v1476
      %v1669 = vmul.f32 %v1620, %v1477
      %v1670 = vmul.f32 %v1625, %v1478
      %v1671 = vmul.f32 %v1630, %v1479
      %v1672 = vmul.f32 %v1635, %v1480
      %v1673 = vmul.f32 %v1640, %v1481
      %v1674 = vpack.c.bf16 %v1164, %v1162
      %v1675 = vpack.c.bf16 %v1168, %v1166
      %v1676 = vpack.c.bf16 %v1172, %v1170
      %v1677 = vpack.c.bf16 %v1176, %v1174
      %v1678 = vpack.c.bf16 %v1180, %v1178
      %v1679 = vpack.c.bf16 %v1184, %v1182
      %v1680 = vpack.c.bf16 %v1188, %v1186
      %v1681 = vpack.c.bf16 %v1192, %v1190
      %v1682 = vpack.c.bf16 %v1196, %v1194
      %v1683 = vpack.c.bf16 %v1200, %v1198
      %v1684 = vpack.c.bf16 %v1204, %v1202
      %v1685 = vpack.c.bf16 %v1208, %v1206
      %v1686 = vpack.c.bf16 %v1212, %v1210
      %v1687 = vpack.c.bf16 %v1216, %v1214
      %v1688 = vpack.c.bf16 %v1220, %v1218
      %v1689 = vpack.c.bf16 %v1224, %v1222
      %v1690 = vld [vmem:[%s277] sm:$0xf]
      %v1691 = vld [vmem:[%s277 + $0x4] sm:$0xf]
      %v1692 = vld [vmem:[%s277 + $0x8] sm:$0xf]
      %v1693 = vld [vmem:[%s277 + $0xc] sm:$0xf]
      %v1694 = vld [vmem:[%s277 + $0x10] sm:$0xf]
      %v1695 = vld [vmem:[%s277 + $0x14] sm:$0xf]
      %v1696 = vld [vmem:[%s277 + $0x18] sm:$0xf]
      %v1697 = vld [vmem:[%s277 + $0x1c] sm:$0xf]
      %v1706 = vunpack.c.l.b16 %v1690
      %v1707 = vunpack.c.l.b16 %v1691
      %v1708 = vunpack.c.l.b16 %v1692
      %v1709 = vunpack.c.l.b16 %v1693
      %v1710 = vunpack.c.l.b16 %v1694
      %v1711 = vunpack.c.l.b16 %v1695
      %v1712 = vunpack.c.l.b16 %v1696
      %v1713 = vunpack.c.l.b16 %v1697
      %v1714 = vpack.c.b16 %v1707, %v1706
      %v1715 = vpack.c.b16 %v1709, %v1708
      %v1716 = vpack.c.b16 %v1711, %v1710
      %v1717 = vpack.c.b16 %v1713, %v1712
      %v1723 = vsel %vm744, %v1674, 0
      %v1726 = vsel %vm744, %v1675, 0
      %v1729 = vsel %vm744, %v1676, 0
      %v1732 = vsel %vm744, %v1677, 0
      %v1735 = vsel %vm744, %v1678, 0
      %v1738 = vsel %vm744, %v1679, 0
      %v1741 = vsel %vm744, %v1680, 0
      %v1744 = vsel %vm744, %v1681, 0
      %v1747 = vsel %vm744, %v1682, 0
      %v1750 = vsel %vm744, %v1683, 0
      %v1753 = vsel %vm744, %v1684, 0
      %v1756 = vsel %vm744, %v1685, 0
      %v1759 = vsel %vm744, %v1686, 0
      %v1762 = vsel %vm744, %v1687, 0
      %v1765 = vsel %vm744, %v1688, 0
      %v1768 = vsel %vm744, %v1689, 0
      %1770 = vmatprep.subr.bf16.mxu0 0
      %1771 = vmatpush1.bf16.msra.mxu0 %v1714
      %1772 = vmatprep.subr.bf16.mxu0 0
      %1773 = vmatpush1.bf16.msra.mxu0 %v1715
      %1774 = vmatprep.subr.bf16.mxu0 0
      %1775 = vmatpush1.bf16.msra.mxu0 %v1716
      %1776 = vmatprep.subr.bf16.mxu0 0
      %1777 = vmatpush1.bf16.msra.mxu0 %v1717
      %1778 = vmatprep.subr.bf16.mxu0 0
      %1779 = vmatpush1.bf16.msra.mxu0 0
      %1780 = vmatprep.subr.bf16.mxu0 0
      %1781 = vmatpush1.bf16.msra.mxu0 0
      %1782 = vmatprep.subr.bf16.mxu0 0
      %1783 = vmatpush1.bf16.msra.mxu0 0
      %1784 = vmatprep.subr.bf16.mxu0 0
      %1785 = vmatpush1.bf16.msra.mxu0 0
      %1786 = vmatprep.subr.bf16.mxu0 0
      %1787 = vmatpush1.bf16.msra.mxu0 0
      %1788 = vmatprep.subr.bf16.mxu0 0
      %1789 = vmatpush1.bf16.msra.mxu0 0
      %1790 = vmatprep.subr.bf16.mxu0 0
      %1791 = vmatpush1.bf16.msra.mxu0 0
      %1792 = vmatprep.subr.bf16.mxu0 0
      %1793 = vmatpush1.bf16.msra.mxu0 0
      %1794 = vmatprep.subr.bf16.mxu0 0
      %1795 = vmatpush1.bf16.msra.mxu0 0
      %1796 = vmatprep.subr.bf16.mxu0 0
      %1797 = vmatpush1.bf16.msra.mxu0 0
      %1798 = vmatprep.subr.bf16.mxu0 0
      %1799 = vmatpush1.bf16.msra.mxu0 0
      %1800 = vmatprep.subr.bf16.mxu0 0
      %1801 = vmatpush1.bf16.msra.mxu0 0
      %1802 = vmatprep.mubr.bf16.mxu0 0
      %1803 = vmatmul.mubr.bf16.gmra.mrb[0].mxu0 %v1723
      %v1804 = vpop.f32.mrb[0].mxu0
      %v1805 = vadd.f32 0.0, %v1804
      %v1806 = vpop.f32.mrb[0].mxu0
      %v1807 = vpop.f32.mrb[0].mxu0
      %v1808 = vadd.f32 0.0, %v1807
      %v1809 = vpop.f32.mrb[0].mxu0
      %1810 = vmatprep.mubr.bf16.mxu0 0
      %1811 = vmatmul.mubr.bf16.gmra.mrb[0].mxu0 %v1726
      %v1812 = vpop.f32.mrb[0].mxu0
      %v1813 = vadd.f32 0.0, %v1812
      %v1814 = vpop.f32.mrb[0].mxu0
      %v1815 = vpop.f32.mrb[0].mxu0
      %v1816 = vadd.f32 0.0, %v1815
      %v1817 = vpop.f32.mrb[0].mxu0
      %1818 = vmatprep.mubr.bf16.mxu0 0
      %1819 = vmatmul.mubr.bf16.gmra.mrb[0].mxu0 %v1729
      %v1820 = vpop.f32.mrb[0].mxu0
      %v1821 = vadd.f32 0.0, %v1820
      %v1822 = vpop.f32.mrb[0].mxu0
      %v1823 = vpop.f32.mrb[0].mxu0
      %v1824 = vadd.f32 0.0, %v1823
      %v1825 = vpop.f32.mrb[0].mxu0
      %1826 = vmatprep.mubr.bf16.mxu0 0
      %1827 = vmatmul.mubr.bf16.gmra.mrb[0].mxu0 %v1732
      %v1828 = vpop.f32.mrb[0].mxu0
      %v1829 = vadd.f32 0.0, %v1828
      %v1830 = vpop.f32.mrb[0].mxu0
      %v1831 = vpop.f32.mrb[0].mxu0
      %v1832 = vadd.f32 0.0, %v1831
      %v1833 = vpop.f32.mrb[0].mxu0
      %1834 = vmatprep.mubr.bf16.mxu0 0
      %1835 = vmatmul.mubr.bf16.gmra.mrb[0].mxu0 %v1735
      %v1836 = vpop.f32.mrb[0].mxu0
      %v1837 = vadd.f32 0.0, %v1836
      %v1838 = vpop.f32.mrb[0].mxu0
      %v1839 = vpop.f32.mrb[0].mxu0
      %v1840 = vadd.f32 0.0, %v1839
      %v1841 = vpop.f32.mrb[0].mxu0
      %1842 = vmatprep.mubr.bf16.mxu0 0
      %1843 = vmatmul.mubr.bf16.gmra.mrb[0].mxu0 %v1738
      %v1844 = vpop.f32.mrb[0].mxu0
      %v1845 = vadd.f32 0.0, %v1844
      %v1846 = vpop.f32.mrb[0].mxu0
      %v1847 = vpop.f32.mrb[0].mxu0
      %v1848 = vadd.f32 0.0, %v1847
      %v1849 = vpop.f32.mrb[0].mxu0
      %1850 = vmatprep.mubr.bf16.mxu0 0
      %1851 = vmatmul.mubr.bf16.gmra.mrb[0].mxu0 %v1741
      %v1852 = vpop.f32.mrb[0].mxu0
      %v1853 = vadd.f32 0.0, %v1852
      %v1854 = vpop.f32.mrb[0].mxu0
      %v1855 = vpop.f32.mrb[0].mxu0
      %v1856 = vadd.f32 0.0, %v1855
      %v1857 = vpop.f32.mrb[0].mxu0
      %1858 = vmatprep.mubr.bf16.mxu0 0
      %1859 = vmatmul.mubr.bf16.gmra.mrb[0].mxu0 %v1744
      %v1860 = vpop.f32.mrb[0].mxu0
      %v1861 = vadd.f32 0.0, %v1860
      %v1862 = vpop.f32.mrb[0].mxu0
      %v1863 = vpop.f32.mrb[0].mxu0
      %v1864 = vadd.f32 0.0, %v1863
      %v1865 = vpop.f32.mrb[0].mxu0
      %1866 = vmatprep.mubr.bf16.mxu0 0
      %1867 = vmatmul.mubr.bf16.gmra.mrb[0].mxu0 %v1747
      %v1868 = vpop.f32.mrb[0].mxu0
      %v1869 = vadd.f32 0.0, %v1868
      %v1870 = vpop.f32.mrb[0].mxu0
      %v1871 = vpop.f32.mrb[0].mxu0
      %v1872 = vadd.f32 0.0, %v1871
      %v1873 = vpop.f32.mrb[0].mxu0
      %1874 = vmatprep.mubr.bf16.mxu0 0
      %1875 = vmatmul.mubr.bf16.gmra.mrb[0].mxu0 %v1750
      %v1876 = vpop.f32.mrb[0].mxu0
      %v1877 = vadd.f32 0.0, %v1876
      %v1878 = vpop.f32.mrb[0].mxu0
      %v1879 = vpop.f32.mrb[0].mxu0
      %v1880 = vadd.f32 0.0, %v1879
      %v1881 = vpop.f32.mrb[0].mxu0
      %1882 = vmatprep.mubr.bf16.mxu0 0
      %1883 = vmatmul.mubr.bf16.gmra.mrb[0].mxu0 %v1753
      %v1884 = vpop.f32.mrb[0].mxu0
      %v1885 = vadd.f32 0.0, %v1884
      %v1886 = vpop.f32.mrb[0].mxu0
      %v1887 = vpop.f32.mrb[0].mxu0
      %v1888 = vadd.f32 0.0, %v1887
      %v1889 = vpop.f32.mrb[0].mxu0
      %1890 = vmatprep.mubr.bf16.mxu0 0
      %1891 = vmatmul.mubr.bf16.gmra.mrb[0].mxu0 %v1756
      %v1892 = vpop.f32.mrb[0].mxu0
      %v1893 = vadd.f32 0.0, %v1892
      %v1894 = vpop.f32.mrb[0].mxu0
      %v1895 = vpop.f32.mrb[0].mxu0
      %v1896 = vadd.f32 0.0, %v1895
      %v1897 = vpop.f32.mrb[0].mxu0
      %1898 = vmatprep.mubr.bf16.mxu0 0
      %1899 = vmatmul.mubr.bf16.gmra.mrb[0].mxu0 %v1759
      %v1900 = vpop.f32.mrb[0].mxu0
      %v1901 = vadd.f32 0.0, %v1900
      %v1902 = vpop.f32.mrb[0].mxu0
      %v1903 = vpop.f32.mrb[0].mxu0
      %v1904 = vadd.f32 0.0, %v1903
      %v1905 = vpop.f32.mrb[0].mxu0
      %1906 = vmatprep.mubr.bf16.mxu0 0
      %1907 = vmatmul.mubr.bf16.gmra.mrb[0].mxu0 %v1762
      %v1908 = vpop.f32.mrb[0].mxu0
      %v1909 = vadd.f32 0.0, %v1908
      %v1910 = vpop.f32.mrb[0].mxu0
      %v1911 = vpop.f32.mrb[0].mxu0
      %v1912 = vadd.f32 0.0, %v1911
      %v1913 = vpop.f32.mrb[0].mxu0
      %1914 = vmatprep.mubr.bf16.mxu0 0
      %1915 = vmatmul.mubr.bf16.gmra.mrb[0].mxu0 %v1765
      %v1916 = vpop.f32.mrb[0].mxu0
      %v1917 = vadd.f32 0.0, %v1916
      %v1918 = vpop.f32.mrb[0].mxu0
      %v1919 = vpop.f32.mrb[0].mxu0
      %v1920 = vadd.f32 0.0, %v1919
      %v1921 = vpop.f32.mrb[0].mxu0
      %1922 = vmatprep.mubr.bf16.mxu0 0
      %1923 = vmatmul.mubr.bf16.gmra.mrb[0].mxu0 %v1768
      %v1924 = vpop.f32.mrb[0].mxu0
      %v1925 = vadd.f32 0.0, %v1924
      %v1926 = vpop.f32.mrb[0].mxu0
      %v1927 = vpop.f32.mrb[0].mxu0
      %v1928 = vadd.f32 0.0, %v1927
      %v1929 = vpop.f32.mrb[0].mxu0
      %1930 = vdwg.mxu0
      %v1931 = vadd.f32 %v1642, %v1805
      %v1932 = vadd.f32 %v1643, %v1808
      %v1933 = vadd.f32 %v1644, %v1813
      %v1934 = vadd.f32 %v1645, %v1816
      %v1935 = vadd.f32 %v1646, %v1821
      %v1936 = vadd.f32 %v1647, %v1824
      %v1937 = vadd.f32 %v1648, %v1829
      %v1938 = vadd.f32 %v1649, %v1832
      %v1939 = vadd.f32 %v1650, %v1837
      %v1940 = vadd.f32 %v1651, %v1840
      %v1941 = vadd.f32 %v1652, %v1845
      %v1942 = vadd.f32 %v1653, %v1848
      %v1943 = vadd.f32 %v1654, %v1853
      %v1944 = vadd.f32 %v1655, %v1856
      %v1945 = vadd.f32 %v1656, %v1861
      %v1946 = vadd.f32 %v1657, %v1864
      %v1947 = vadd.f32 %v1658, %v1869
      %v1948 = vadd.f32 %v1659, %v1872
      %v1949 = vadd.f32 %v1660, %v1877
      %v1950 = vadd.f32 %v1661, %v1880
      %v1951 = vadd.f32 %v1662, %v1885
      %v1952 = vadd.f32 %v1663, %v1888
      %v1953 = vadd.f32 %v1664, %v1893
      %v1954 = vadd.f32 %v1665, %v1896
      %v1955 = vadd.f32 %v1666, %v1901
      %v1956 = vadd.f32 %v1667, %v1904
      %v1957 = vadd.f32 %v1668, %v1909
      %v1958 = vadd.f32 %v1669, %v1912
      %v1959 = vadd.f32 %v1670, %v1917
      %v1960 = vadd.f32 %v1671, %v1920
      %v1961 = vadd.f32 %v1672, %v1925
      %v1962 = vadd.f32 %v1673, %v1928
      %1963 = vst [vmem:[#allocation4] sm:$0xff] %v1931
      %1964 = vst [vmem:[#allocation4 + $0x8] sm:$0xff] %v1932
      %1965 = vst [vmem:[#allocation4 + $0x10] sm:$0xff] %v1933
      %1966 = vst [vmem:[#allocation4 + $0x18] sm:$0xff] %v1934
      %1967 = vst [vmem:[#allocation4 + $0x20] sm:$0xff] %v1935
      %1968 = vst [vmem:[#allocation4 + $0x28] sm:$0xff] %v1936
      %1969 = vst [vmem:[#allocation4 + $0x30] sm:$0xff] %v1937
      %1970 = vst [vmem:[#allocation4 + $0x38] sm:$0xff] %v1938
      %1971 = vst [vmem:[#allocation4 + $0x40] sm:$0xff] %v1939
      %1972 = vst [vmem:[#allocation4 + $0x48] sm:$0xff] %v1940
      %1973 = vst [vmem:[#allocation4 + $0x50] sm:$0xff] %v1941
      %1974 = vst [vmem:[#allocation4 + $0x58] sm:$0xff] %v1942
      %1975 = vst [vmem:[#allocation4 + $0x60] sm:$0xff] %v1943
      %1976 = vst [vmem:[#allocation4 + $0x68] sm:$0xff] %v1944
      %1977 = vst [vmem:[#allocation4 + $0x70] sm:$0xff] %v1945
      %1978 = vst [vmem:[#allocation4 + $0x78] sm:$0xff] %v1946
      %1979 = vst [vmem:[#allocation4 + $0x80] sm:$0xff] %v1947
      %1980 = vst [vmem:[#allocation4 + $0x88] sm:$0xff] %v1948
      %1981 = vst [vmem:[#allocation4 + $0x90] sm:$0xff] %v1949
      %1982 = vst [vmem:[#allocation4 + $0x98] sm:$0xff] %v1950
      %1983 = vst [vmem:[#allocation4 + $0xa0] sm:$0xff] %v1951
      %1984 = vst [vmem:[#allocation4 + $0xa8] sm:$0xff] %v1952
      %1985 = vst [vmem:[#allocation4 + $0xb0] sm:$0xff] %v1953
      %1986 = vst [vmem:[#allocation4 + $0xb8] sm:$0xff] %v1954
      %1987 = vst [vmem:[#allocation4 + $0xc0] sm:$0xff] %v1955
      %1988 = vst [vmem:[#allocation4 + $0xc8] sm:$0xff] %v1956
      %1989 = vst [vmem:[#allocation4 + $0xd0] sm:$0xff] %v1957
      %1990 = vst [vmem:[#allocation4 + $0xd8] sm:$0xff] %v1958
      %1991 = vst [vmem:[#allocation4 + $0xe0] sm:$0xff] %v1959
      %1992 = vst [vmem:[#allocation4 + $0xe8] sm:$0xff] %v1960
      %1993 = vst [vmem:[#allocation4 + $0xf0] sm:$0xff] %v1961
      %1994 = vst [vmem:[#allocation4 + $0xf8] sm:$0xff] %v1962
      %1995 = vst.msk [vmem:[#allocation2] sm:$0xff] %vm1417, %v841
      %1996 = vst.msk [vmem:[#allocation2 + $0x8] sm:$0xff] %vm1417, %v842
      %1997 = vst.msk [vmem:[#allocation2 + $0x10] sm:$0xff] %vm1417, %v843
      %1998 = vst.msk [vmem:[#allocation2 + $0x18] sm:$0xff] %vm1417, %v844
      %1999 = vst.msk [vmem:[#allocation2 + $0x20] sm:$0xff] %vm1417, %v845
      %2000 = vst.msk [vmem:[#allocation2 + $0x28] sm:$0xff] %vm1417, %v846
      %2001 = vst.msk [vmem:[#allocation2 + $0x30] sm:$0xff] %vm1417, %v847
      %2002 = vst.msk [vmem:[#allocation2 + $0x38] sm:$0xff] %vm1417, %v848
      %2003 = vst.msk [vmem:[#allocation2 + $0x40] sm:$0xff] %vm1417, %v849
      %2004 = vst.msk [vmem:[#allocation2 + $0x48] sm:$0xff] %vm1417, %v850
      %2005 = vst.msk [vmem:[#allocation2 + $0x50] sm:$0xff] %vm1417, %v851
      %2006 = vst.msk [vmem:[#allocation2 + $0x58] sm:$0xff] %vm1417, %v852
      %2007 = vst.msk [vmem:[#allocation2 + $0x60] sm:$0xff] %vm1417, %v853
      %2008 = vst.msk [vmem:[#allocation2 + $0x68] sm:$0xff] %vm1417, %v854
      %2009 = vst.msk [vmem:[#allocation2 + $0x70] sm:$0xff] %vm1417, %v855
      %2010 = vst.msk [vmem:[#allocation2 + $0x78] sm:$0xff] %vm1417, %v856
      %2011 = vst.msk [vmem:[#allocation2 + $0x80] sm:$0xff] %vm1417, %v857
      %2012 = vst.msk [vmem:[#allocation2 + $0x88] sm:$0xff] %vm1417, %v858
      %2013 = vst.msk [vmem:[#allocation2 + $0x90] sm:$0xff] %vm1417, %v859
      %2014 = vst.msk [vmem:[#allocation2 + $0x98] sm:$0xff] %vm1417, %v860
      %2015 = vst.msk [vmem:[#allocation2 + $0xa0] sm:$0xff] %vm1417, %v861
      %2016 = vst.msk [vmem:[#allocation2 + $0xa8] sm:$0xff] %vm1417, %v862
      %2017 = vst.msk [vmem:[#allocation2 + $0xb0] sm:$0xff] %vm1417, %v863
      %2018 = vst.msk [vmem:[#allocation2 + $0xb8] sm:$0xff] %vm1417, %v864
      %2019 = vst.msk [vmem:[#allocation2 + $0xc0] sm:$0xff] %vm1417, %v865
      %2020 = vst.msk [vmem:[#allocation2 + $0xc8] sm:$0xff] %vm1417, %v866
      %2021 = vst.msk [vmem:[#allocation2 + $0xd0] sm:$0xff] %vm1417, %v867
      %2022 = vst.msk [vmem:[#allocation2 + $0xd8] sm:$0xff] %vm1417, %v868
      %2023 = vst.msk [vmem:[#allocation2 + $0xe0] sm:$0xff] %vm1417, %v869
      %2024 = vst.msk [vmem:[#allocation2 + $0xe8] sm:$0xff] %vm1417, %v870
      %2025 = vst.msk [vmem:[#allocation2 + $0xf0] sm:$0xff] %vm1417, %v871
      %2026 = vst.msk [vmem:[#allocation2 + $0xf8] sm:$0xff] %vm1417, %v872
      // Predicated region
      $region37: #{basic_block_forward.10} parent=31 // pred_check
        %p2027 = pneg %p290
      $region38: #{basic_block_forward.10} parent=31 // pred_check_branch
        %2029 = sbr.rel (%p2027) target = $region40
      $region39: #{basic_block_forward.10} parent=31 // pred_region
        %v2030 = vld [vmem:[#allocation4] sm:$0xff]
        %v2031 = vld [vmem:[#allocation4 + $0x8] sm:$0xff]
        %v2032 = vld [vmem:[#allocation4 + $0x10] sm:$0xff]
        %v2033 = vld [vmem:[#allocation4 + $0x18] sm:$0xff]
        %v2034 = vld [vmem:[#allocation4 + $0x20] sm:$0xff]
        %v2035 = vld [vmem:[#allocation4 + $0x28] sm:$0xff]
        %v2036 = vld [vmem:[#allocation4 + $0x30] sm:$0xff]
        %v2037 = vld [vmem:[#allocation4 + $0x38] sm:$0xff]
        %v2038 = vld [vmem:[#allocation4 + $0x40] sm:$0xff]
        %v2039 = vld [vmem:[#allocation4 + $0x48] sm:$0xff]
        %v2040 = vld [vmem:[#allocation4 + $0x50] sm:$0xff]
        %v2041 = vld [vmem:[#allocation4 + $0x58] sm:$0xff]
        %v2042 = vld [vmem:[#allocation4 + $0x60] sm:$0xff]
        %v2043 = vld [vmem:[#allocation4 + $0x68] sm:$0xff]
        %v2044 = vld [vmem:[#allocation4 + $0x70] sm:$0xff]
        %v2045 = vld [vmem:[#allocation4 + $0x78] sm:$0xff]
        %v2046 = vld [vmem:[#allocation4 + $0x80] sm:$0xff]
        %v2047 = vld [vmem:[#allocation4 + $0x88] sm:$0xff]
        %v2048 = vld [vmem:[#allocation4 + $0x90] sm:$0xff]
        %v2049 = vld [vmem:[#allocation4 + $0x98] sm:$0xff]
        %v2050 = vld [vmem:[#allocation4 + $0xa0] sm:$0xff]
        %v2051 = vld [vmem:[#allocation4 + $0xa8] sm:$0xff]
        %v2052 = vld [vmem:[#allocation4 + $0xb0] sm:$0xff]
        %v2053 = vld [vmem:[#allocation4 + $0xb8] sm:$0xff]
        %v2054 = vld [vmem:[#allocation4 + $0xc0] sm:$0xff]
        %v2055 = vld [vmem:[#allocation4 + $0xc8] sm:$0xff]
        %v2056 = vld [vmem:[#allocation4 + $0xd0] sm:$0xff]
        %v2057 = vld [vmem:[#allocation4 + $0xd8] sm:$0xff]
        %v2058 = vld [vmem:[#allocation4 + $0xe0] sm:$0xff]
        %v2059 = vld [vmem:[#allocation4 + $0xe8] sm:$0xff]
        %v2060 = vld [vmem:[#allocation4 + $0xf0] sm:$0xff]
        %v2061 = vld [vmem:[#allocation4 + $0xf8] sm:$0xff]
        %v2062 = vld [vmem:[#allocation3] sm:$0xff]
        %v2063 = vld [vmem:[#allocation3 + $0x8] sm:$0xff]
        %v2064 = vld [vmem:[#allocation3 + $0x10] sm:$0xff]
        %v2065 = vld [vmem:[#allocation3 + $0x18] sm:$0xff]
        %v2066 = vld [vmem:[#allocation3 + $0x20] sm:$0xff]
        %v2067 = vld [vmem:[#allocation3 + $0x28] sm:$0xff]
        %v2068 = vld [vmem:[#allocation3 + $0x30] sm:$0xff]
        %v2069 = vld [vmem:[#allocation3 + $0x38] sm:$0xff]
        %v2070 = vld [vmem:[#allocation3 + $0x40] sm:$0xff]
        %v2071 = vld [vmem:[#allocation3 + $0x48] sm:$0xff]
        %v2072 = vld [vmem:[#allocation3 + $0x50] sm:$0xff]
        %v2073 = vld [vmem:[#allocation3 + $0x58] sm:$0xff]
        %v2074 = vld [vmem:[#allocation3 + $0x60] sm:$0xff]
        %v2075 = vld [vmem:[#allocation3 + $0x68] sm:$0xff]
        %v2076 = vld [vmem:[#allocation3 + $0x70] sm:$0xff]
        %v2077 = vld [vmem:[#allocation3 + $0x78] sm:$0xff]
        %v2078 = vld [vmem:[#allocation3 + $0x80] sm:$0xff]
        %v2079 = vld [vmem:[#allocation3 + $0x88] sm:$0xff]
        %v2080 = vld [vmem:[#allocation3 + $0x90] sm:$0xff]
        %v2081 = vld [vmem:[#allocation3 + $0x98] sm:$0xff]
        %v2082 = vld [vmem:[#allocation3 + $0xa0] sm:$0xff]
        %v2083 = vld [vmem:[#allocation3 + $0xa8] sm:$0xff]
        %v2084 = vld [vmem:[#allocation3 + $0xb0] sm:$0xff]
        %v2085 = vld [vmem:[#allocation3 + $0xb8] sm:$0xff]
        %v2086 = vld [vmem:[#allocation3 + $0xc0] sm:$0xff]
        %v2087 = vld [vmem:[#allocation3 + $0xc8] sm:$0xff]
        %v2088 = vld [vmem:[#allocation3 + $0xd0] sm:$0xff]
        %v2089 = vld [vmem:[#allocation3 + $0xd8] sm:$0xff]
        %v2090 = vld [vmem:[#allocation3 + $0xe0] sm:$0xff]
        %v2091 = vld [vmem:[#allocation3 + $0xe8] sm:$0xff]
        %v2092 = vld [vmem:[#allocation3 + $0xf0] sm:$0xff]
        %v2093 = vld [vmem:[#allocation3 + $0xf8] sm:$0xff]
        %v2094 = vrcp.pop %v2062
        %v2095 = vrcp.pop %v2063
        %v2096 = vrcp.pop %v2064
        %v2097 = vrcp.pop %v2065
        %v2098 = vrcp.pop %v2066
        %v2099 = vrcp.pop %v2067
        %v2100 = vrcp.pop %v2068
        %v2101 = vrcp.pop %v2069
        %v2102 = vrcp.pop %v2070
        %v2103 = vrcp.pop %v2071
        %v2104 = vrcp.pop %v2072
        %v2105 = vrcp.pop %v2073
        %v2106 = vrcp.pop %v2074
        %v2107 = vrcp.pop %v2075
        %v2108 = vrcp.pop %v2076
        %v2109 = vrcp.pop %v2077
        %v2110 = vrcp.pop %v2078
        %v2111 = vrcp.pop %v2079
        %v2112 = vrcp.pop %v2080
        %v2113 = vrcp.pop %v2081
        %v2114 = vrcp.pop %v2082
        %v2115 = vrcp.pop %v2083
        %v2116 = vrcp.pop %v2084
        %v2117 = vrcp.pop %v2085
        %v2118 = vrcp.pop %v2086
        %v2119 = vrcp.pop %v2087
        %v2120 = vrcp.pop %v2088
        %v2121 = vrcp.pop %v2089
        %v2122 = vrcp.pop %v2090
        %v2123 = vrcp.pop %v2091
        %v2124 = vrcp.pop %v2092
        %v2125 = vrcp.pop %v2093
        %2127 = vset.pattern.permute.xlu0 0
        %2128 = vperm.xlu0 %2127, %v2094
        %v2129 = vpop.permute.xlu0 %2128
        %2132 = vset.pattern.permute.xlu0 0
        %2133 = vperm.xlu0 %2132, %v2095
        %v2134 = vpop.permute.xlu0 %2133
        %2137 = vset.pattern.permute.xlu0 0
        %2138 = vperm.xlu0 %2137, %v2096
        %v2139 = vpop.permute.xlu0 %2138
        %2142 = vset.pattern.permute.xlu0 0
        %2143 = vperm.xlu0 %2142, %v2097
        %v2144 = vpop.permute.xlu0 %2143
        %2147 = vset.pattern.permute.xlu0 0
        %2148 = vperm.xlu0 %2147, %v2098
        %v2149 = vpop.permute.xlu0 %2148
        %2152 = vset.pattern.permute.xlu0 0
        %2153 = vperm.xlu0 %2152, %v2099
        %v2154 = vpop.permute.xlu0 %2153
        %2157 = vset.pattern.permute.xlu0 0
        %2158 = vperm.xlu0 %2157, %v2100
        %v2159 = vpop.permute.xlu0 %2158
        %2162 = vset.pattern.permute.xlu0 0
        %2163 = vperm.xlu0 %2162, %v2101
        %v2164 = vpop.permute.xlu0 %2163
        %2167 = vset.pattern.permute.xlu0 0
        %2168 = vperm.xlu0 %2167, %v2102
        %v2169 = vpop.permute.xlu0 %2168
        %2172 = vset.pattern.permute.xlu0 0
        %2173 = vperm.xlu0 %2172, %v2103
        %v2174 = vpop.permute.xlu0 %2173
        %2177 = vset.pattern.permute.xlu0 0
        %2178 = vperm.xlu0 %2177, %v2104
        %v2179 = vpop.permute.xlu0 %2178
        %2182 = vset.pattern.permute.xlu0 0
        %2183 = vperm.xlu0 %2182, %v2105
        %v2184 = vpop.permute.xlu0 %2183
        %2187 = vset.pattern.permute.xlu0 0
        %2188 = vperm.xlu0 %2187, %v2106
        %v2189 = vpop.permute.xlu0 %2188
        %2192 = vset.pattern.permute.xlu0 0
        %2193 = vperm.xlu0 %2192, %v2107
        %v2194 = vpop.permute.xlu0 %2193
        %2197 = vset.pattern.permute.xlu0 0
        %2198 = vperm.xlu0 %2197, %v2108
        %v2199 = vpop.permute.xlu0 %2198
        %2202 = vset.pattern.permute.xlu0 0
        %2203 = vperm.xlu0 %2202, %v2109
        %v2204 = vpop.permute.xlu0 %2203
        %2207 = vset.pattern.permute.xlu0 0
        %2208 = vperm.xlu0 %2207, %v2110
        %v2209 = vpop.permute.xlu0 %2208
        %2212 = vset.pattern.permute.xlu0 0
        %2213 = vperm.xlu0 %2212, %v2111
        %v2214 = vpop.permute.xlu0 %2213
        %2217 = vset.pattern.permute.xlu0 0
        %2218 = vperm.xlu0 %2217, %v2112
        %v2219 = vpop.permute.xlu0 %2218
        %2222 = vset.pattern.permute.xlu0 0
        %2223 = vperm.xlu0 %2222, %v2113
        %v2224 = vpop.permute.xlu0 %2223
        %2227 = vset.pattern.permute.xlu0 0
        %2228 = vperm.xlu0 %2227, %v2114
        %v2229 = vpop.permute.xlu0 %2228
        %2232 = vset.pattern.permute.xlu0 0
        %2233 = vperm.xlu0 %2232, %v2115
        %v2234 = vpop.permute.xlu0 %2233
        %2237 = vset.pattern.permute.xlu0 0
        %2238 = vperm.xlu0 %2237, %v2116
        %v2239 = vpop.permute.xlu0 %2238
        %2242 = vset.pattern.permute.xlu0 0
        %2243 = vperm.xlu0 %2242, %v2117
        %v2244 = vpop.permute.xlu0 %2243
        %2247 = vset.pattern.permute.xlu0 0
        %2248 = vperm.xlu0 %2247, %v2118
        %v2249 = vpop.permute.xlu0 %2248
        %2252 = vset.pattern.permute.xlu0 0
        %2253 = vperm.xlu0 %2252, %v2119
        %v2254 = vpop.permute.xlu0 %2253
        %2257 = vset.pattern.permute.xlu0 0
        %2258 = vperm.xlu0 %2257, %v2120
        %v2259 = vpop.permute.xlu0 %2258
        %2262 = vset.pattern.permute.xlu0 0
        %2263 = vperm.xlu0 %2262, %v2121
        %v2264 = vpop.permute.xlu0 %2263
        %2267 = vset.pattern.permute.xlu0 0
        %2268 = vperm.xlu0 %2267, %v2122
        %v2269 = vpop.permute.xlu0 %2268
        %2272 = vset.pattern.permute.xlu0 0
        %2273 = vperm.xlu0 %2272, %v2123
        %v2274 = vpop.permute.xlu0 %2273
        %2277 = vset.pattern.permute.xlu0 0
        %2278 = vperm.xlu0 %2277, %v2124
        %v2279 = vpop.permute.xlu0 %2278
        %2282 = vset.pattern.permute.xlu0 0
        %2283 = vperm.xlu0 %2282, %v2125
        %v2284 = vpop.permute.xlu0 %2283
        %v2286 = vmul.f32 %v2030, %v2129
        %v2287 = vmul.f32 %v2031, %v2134
        %v2288 = vmul.f32 %v2032, %v2139
        %v2289 = vmul.f32 %v2033, %v2144
        %v2290 = vmul.f32 %v2034, %v2149
        %v2291 = vmul.f32 %v2035, %v2154
        %v2292 = vmul.f32 %v2036, %v2159
        %v2293 = vmul.f32 %v2037, %v2164
        %v2294 = vmul.f32 %v2038, %v2169
        %v2295 = vmul.f32 %v2039, %v2174
        %v2296 = vmul.f32 %v2040, %v2179
        %v2297 = vmul.f32 %v2041, %v2184
        %v2298 = vmul.f32 %v2042, %v2189
        %v2299 = vmul.f32 %v2043, %v2194
        %v2300 = vmul.f32 %v2044, %v2199
        %v2301 = vmul.f32 %v2045, %v2204
        %v2302 = vmul.f32 %v2046, %v2209
        %v2303 = vmul.f32 %v2047, %v2214
        %v2304 = vmul.f32 %v2048, %v2219
        %v2305 = vmul.f32 %v2049, %v2224
        %v2306 = vmul.f32 %v2050, %v2229
        %v2307 = vmul.f32 %v2051, %v2234
        %v2308 = vmul.f32 %v2052, %v2239
        %v2309 = vmul.f32 %v2053, %v2244
        %v2310 = vmul.f32 %v2054, %v2249
        %v2311 = vmul.f32 %v2055, %v2254
        %v2312 = vmul.f32 %v2056, %v2259
        %v2313 = vmul.f32 %v2057, %v2264
        %v2314 = vmul.f32 %v2058, %v2269
        %v2315 = vmul.f32 %v2059, %v2274
        %v2316 = vmul.f32 %v2060, %v2279
        %v2317 = vmul.f32 %v2061, %v2284
        %v2318 = vpack.c.bf16 %v2287, %v2286
        %v2319 = vpack.c.bf16 %v2289, %v2288
        %v2320 = vpack.c.bf16 %v2291, %v2290
        %v2321 = vpack.c.bf16 %v2293, %v2292
        %v2322 = vpack.c.bf16 %v2295, %v2294
        %v2323 = vpack.c.bf16 %v2297, %v2296
        %v2324 = vpack.c.bf16 %v2299, %v2298
        %v2325 = vpack.c.bf16 %v2301, %v2300
        %v2326 = vpack.c.bf16 %v2303, %v2302
        %v2327 = vpack.c.bf16 %v2305, %v2304
        %v2328 = vpack.c.bf16 %v2307, %v2306
        %v2329 = vpack.c.bf16 %v2309, %v2308
        %v2330 = vpack.c.bf16 %v2311, %v2310
        %v2331 = vpack.c.bf16 %v2313, %v2312
        %v2332 = vpack.c.bf16 %v2315, %v2314
        %v2333 = vpack.c.bf16 %v2317, %v2316
        %v2350 = vunpack.c.l.b16 %v2318
        %v2351 = vunpack.c.h.b16 %v2318
        %v2352 = vunpack.c.l.b16 %v2319
        %v2353 = vunpack.c.h.b16 %v2319
        %v2354 = vunpack.c.l.b16 %v2320
        %v2355 = vunpack.c.h.b16 %v2320
        %v2356 = vunpack.c.l.b16 %v2321
        %v2357 = vunpack.c.h.b16 %v2321
        %v2358 = vunpack.c.l.b16 %v2322
        %v2359 = vunpack.c.h.b16 %v2322
        %v2360 = vunpack.c.l.b16 %v2323
        %v2361 = vunpack.c.h.b16 %v2323
        %v2362 = vunpack.c.l.b16 %v2324
        %v2363 = vunpack.c.h.b16 %v2324
        %v2364 = vunpack.c.l.b16 %v2325
        %v2365 = vunpack.c.h.b16 %v2325
        %v2366 = vunpack.c.l.b16 %v2326
        %v2367 = vunpack.c.h.b16 %v2326
        %v2368 = vunpack.c.l.b16 %v2327
        %v2369 = vunpack.c.h.b16 %v2327
        %v2370 = vunpack.c.l.b16 %v2328
        %v2371 = vunpack.c.h.b16 %v2328
        %v2372 = vunpack.c.l.b16 %v2329
        %v2373 = vunpack.c.h.b16 %v2329
        %v2374 = vunpack.c.l.b16 %v2330
        %v2375 = vunpack.c.h.b16 %v2330
        %v2376 = vunpack.c.l.b16 %v2331
        %v2377 = vunpack.c.h.b16 %v2331
        %v2378 = vunpack.c.l.b16 %v2332
        %v2379 = vunpack.c.h.b16 %v2332
        %v2380 = vunpack.c.l.b16 %v2333
        %v2381 = vunpack.c.h.b16 %v2333
        %v2382 = vpack.c.b16 %v2350, %v2350
        %v2383 = vpack.c.b16 %v2351, %v2351
        %v2384 = vpack.c.b16 %v2352, %v2352
        %v2385 = vpack.c.b16 %v2353, %v2353
        %v2386 = vpack.c.b16 %v2354, %v2354
        %v2387 = vpack.c.b16 %v2355, %v2355
        %v2388 = vpack.c.b16 %v2356, %v2356
        %v2389 = vpack.c.b16 %v2357, %v2357
        %v2390 = vpack.c.b16 %v2358, %v2358
        %v2391 = vpack.c.b16 %v2359, %v2359
        %v2392 = vpack.c.b16 %v2360, %v2360
        %v2393 = vpack.c.b16 %v2361, %v2361
        %v2394 = vpack.c.b16 %v2362, %v2362
        %v2395 = vpack.c.b16 %v2363, %v2363
        %v2396 = vpack.c.b16 %v2364, %v2364
        %v2397 = vpack.c.b16 %v2365, %v2365
        %v2398 = vpack.c.b16 %v2366, %v2366
        %v2399 = vpack.c.b16 %v2367, %v2367
        %v2400 = vpack.c.b16 %v2368, %v2368
        %v2401 = vpack.c.b16 %v2369, %v2369
        %v2402 = vpack.c.b16 %v2370, %v2370
        %v2403 = vpack.c.b16 %v2371, %v2371
        %v2404 = vpack.c.b16 %v2372, %v2372
        %v2405 = vpack.c.b16 %v2373, %v2373
        %v2406 = vpack.c.b16 %v2374, %v2374
        %v2407 = vpack.c.b16 %v2375, %v2375
        %v2408 = vpack.c.b16 %v2376, %v2376
        %v2409 = vpack.c.b16 %v2377, %v2377
        %v2410 = vpack.c.b16 %v2378, %v2378
        %v2411 = vpack.c.b16 %v2379, %v2379
        %v2412 = vpack.c.b16 %v2380, %v2380
        %v2413 = vpack.c.b16 %v2381, %v2381
        %2446 = vst [vmem:[%s287] sm:$0xf] %v2382
        %2447 = vst [vmem:[%s287 + $0x4] sm:$0xf] %v2383
        %2448 = vst [vmem:[%s287 + $0x8] sm:$0xf] %v2384
        %2449 = vst [vmem:[%s287 + $0xc] sm:$0xf] %v2385
        %2450 = vst [vmem:[%s287 + $0x10] sm:$0xf] %v2386
        %2451 = vst [vmem:[%s287 + $0x14] sm:$0xf] %v2387
        %2452 = vst [vmem:[%s287 + $0x18] sm:$0xf] %v2388
        %2453 = vst [vmem:[%s287 + $0x1c] sm:$0xf] %v2389
        %2454 = vst [vmem:[%s287 + $0x20] sm:$0xf] %v2390
        %2455 = vst [vmem:[%s287 + $0x24] sm:$0xf] %v2391
        %2456 = vst [vmem:[%s287 + $0x28] sm:$0xf] %v2392
        %2457 = vst [vmem:[%s287 + $0x2c] sm:$0xf] %v2393
        %2458 = vst [vmem:[%s287 + $0x30] sm:$0xf] %v2394
        %2459 = vst [vmem:[%s287 + $0x34] sm:$0xf] %v2395
        %2460 = vst [vmem:[%s287 + $0x38] sm:$0xf] %v2396
        %2461 = vst [vmem:[%s287 + $0x3c] sm:$0xf] %v2397
        %2462 = vst [vmem:[%s287 + $0x40] sm:$0xf] %v2398
        %2463 = vst [vmem:[%s287 + $0x44] sm:$0xf] %v2399
        %2464 = vst [vmem:[%s287 + $0x48] sm:$0xf] %v2400
        %2465 = vst [vmem:[%s287 + $0x4c] sm:$0xf] %v2401
        %2466 = vst [vmem:[%s287 + $0x50] sm:$0xf] %v2402
        %2467 = vst [vmem:[%s287 + $0x54] sm:$0xf] %v2403
        %2468 = vst [vmem:[%s287 + $0x58] sm:$0xf] %v2404
        %2469 = vst [vmem:[%s287 + $0x5c] sm:$0xf] %v2405
        %2470 = vst [vmem:[%s287 + $0x60] sm:$0xf] %v2406
        %2471 = vst [vmem:[%s287 + $0x64] sm:$0xf] %v2407
        %2472 = vst [vmem:[%s287 + $0x68] sm:$0xf] %v2408
        %2473 = vst [vmem:[%s287 + $0x6c] sm:$0xf] %v2409
        %2474 = vst [vmem:[%s287 + $0x70] sm:$0xf] %v2410
        %2475 = vst [vmem:[%s287 + $0x74] sm:$0xf] %v2411
        %2476 = vst [vmem:[%s287 + $0x78] sm:$0xf] %v2412
        %2477 = vst [vmem:[%s287 + $0x7c] sm:$0xf] %v2413
      $region40: #{basic_block_forward.10} parent=31 // pred_fallthru
        _
      %s2478 = smul.u32 32, %s20
      %p2479 = scmp.lt.s32.totalorder %s19, 1
      %s2480 = scalar_select %p2479, %s19, 1
      %p2481 = scmp.lt.s32.totalorder %s2478, 31
      %s2482 = scalar_select %p2481, %s2478, 31
      %s2483 = smul.addr %s2480, 32
      %s2484 = sadd.s32 %s2482, %s2483
      %s2485 = smul.addr %s2484, 4
      %s2486 = scalar_lea.vmem %s3, %s2485
      // Predicated region
      $region41: #{basic_block_forward.10} parent=31 // pred_check
        %p2487 = pneg %p137
      $region42: #{basic_block_forward.10} parent=31 // pred_check_branch
        %2489 = sbr.rel (%p2487) target = $region44
      $region43: #{basic_block_forward.10} parent=31 // pred_region
        %s2490 = smul.u32 32, %s20
      $region44: #{basic_block_forward.10} parent=31 // pred_fallthru
        _
    $region32: #{basic_block_forward.10} parent=5 // pred_fallthru
      _
    %p2491 = scmp.le.s32.totalorder 2, %s9
    // Predicated region
    $region45: #{basic_block_forward.10} parent=5 // pred_check
      %p2492 = pneg %p2491
    $region46: #{basic_block_forward.10} parent=5 // pred_check_branch
      %2494 = sbr.rel (%p2492) target = $region48
    $region47: #{basic_block_forward.10} parent=5 // pred_region
      %s2495 = ssub.s32 %s9, 2
      // Predicated region
      $region49: #{basic_block_forward.10} parent=47 // pred_check
        %p2496 = pneg %p143
      $region50: #{basic_block_forward.10} parent=47 // pred_check_branch
        %2498 = sbr.rel (%p2496) target = $region52
      $region51: #{basic_block_forward.10} parent=47 // pred_region
        %s2499 = smul.u32 32, %s23
        %p2500 = scmp.lt.s32.totalorder %s22, 1
        %s2501 = scalar_select %p2500, %s22, 1
        %p2502 = scmp.lt.s32.totalorder %s2499, 31
        %s2503 = scalar_select %p2502, %s2499, 31
        %s2504 = smul.addr %s2501, 32
        %s2505 = sadd.s32 %s2503, %s2504
        %s2506 = smul.addr %s2505, 4
        %s2507 = scalar_lea.vmem %s3, %s2506
      $region52: #{basic_block_forward.10} parent=47 // pred_fallthru
        _
    $region48: #{basic_block_forward.10} parent=5 // pred_fallthru
      _
  $region6: #{basic_block_forward.10} parent=0 // loop_footer
    %s13 = sadd.s32 1, %s9
  $region7: #{basic_block_forward.10} parent=0 // loop_footer_branch
    %8 = sbr.rel target = $region3
  $region8: #{basic_block_forward.10} parent=0 // loop_exit
    _

// kernel: basic_block_forward.11
$region0: #{basic_block_forward.11}
  #allocation0 [shape = 'u32[]', space=smem, size = 0x4, offset = 0x4, fixed_abs, tag = 'smem constant byte address 0x4 - core index']
  #allocation1 [shape = 'u32[144,128]{1,0:T(1,128)}', space=vmem, size = 0x12000, scoped, tag = 'internal scratch']
  %s0 = inlined_call_operand.vmem [shape: bf16[512,128], index: 0, kind: input, shape index: {}]
  %s1 = inlined_call_operand.vmem [shape: bf16[128,128], index: 1, kind: input, shape index: {}]
  %s2 = inlined_call_operand.vmem [shape: f32[1,128], index: 2, kind: input, shape index: {}]
  %s3 = inlined_call_operand.vmem [shape: f32[1,128], index: 3, kind: input, shape index: {}]
  %s4 = inlined_call_operand.vmem [shape: bf16[512,128], index: 4, kind: input, shape index: {}]
  %s5 = inlined_call_operand.vmem [shape: bf16[512,128], index: 5, kind: input, shape index: {}]
  %s6 = inlined_call_operand.vmem [shape: bf16[512,128], index: 6, kind: output, shape index: {}]
  %s7 = sld [smem:[#allocation0]]
  $region57: #{basic_block_forward.11} parent=0
    _
  %s9 = ssub.s32 1, %s7
  %s10 = scalar_select 0, %s9, %s7
  loop: start=0, step=1, limit=4
  $region2: #{basic_block_forward.11} parent=0 // loop_pre_header
    _
  $region3: #{basic_block_forward.11} parent=0 // loop_header
    %s12 = sphi 0, %s16
    %p13 = scmp.ge.s32.totalorder %s12, 4
    %s22 = sphi 0, %s24
    %s25 = sphi 0, %s22
    %s26 = sphi 0, %s25
    %s42 = sphi 0, %s26
    %s46 = sphi 0, %s46
    %s48 = sphi 0, %s46
    %s49 = sphi 0, %s48
    %s63 = sphi 0, %s49
    %s67 = sphi 0, %s67
    %s69 = sphi 0, %s67
    %s70 = sphi 0, %s69
    %s84 = sphi 0, %s70
    %s88 = sphi 0, %s88
    %s90 = sphi 0, %s88
    %s91 = sphi 0, %s90
    %s105 = sphi 0, %s91
    %s111 = sphi 0, %s113
    %s114 = sphi 0, %s111
    %s115 = sphi 0, %s114
    %s131 = sphi 0, %s115
    %s137 = sphi 0, %s139
    %s140 = sphi 0, %s137
    %s141 = sphi 0, %s140
    %s157 = sphi 0, %s141
    %s163 = sphi 0, %s165
    %s166 = sphi 0, %s163
    %s167 = sphi 0, %s166
    %s183 = sphi 0, %s167
  $region4: #{basic_block_forward.11} parent=0 // loop_header_branch
    %15 = sbr.rel (%p13) target = $region8
  $region5: #{basic_block_forward.11} parent=0 // loop_body
    %s17 = ssub.s32 %s12, 1
    %s18 = ssub.s32 %s12, 2
    %s19 = sadd.s32 %s12, 1
    %s20 = ssub.s32 %s12, %s19
    %p21 = scmp.eq.s32.totalorder %s20, 0
    %s23 = sadd.s32 %s22, 1
    %s24 = scalar_select %p21, %s22, %s23
    %p27 = pneg %p21
    %p28 = scmp.eq.s32.totalorder %s12, 1
    %p29 = por %p27, %p28
    %p30 = scmp.ne.s32.totalorder %s22, %s25
    %p31 = scmp.eq.s32.totalorder %s12, 0
    %p32 = por %p30, %p31
    %p33 = scmp.ne.s32.totalorder %s22, %s25
    %p34 = scmp.eq.s32.totalorder %s17, 1
    %p35 = por %p33, %p34
    %p36 = scmp.ne.s32.totalorder %s25, %s26
    %p37 = scmp.eq.s32.totalorder %s17, 0
    %p38 = por %p36, %p37
    %p39 = scmp.ne.s32.totalorder %s25, %s26
    %p40 = scmp.eq.s32.totalorder %s18, 1
    %p41 = por %p39, %p40
    %p43 = scmp.ne.s32.totalorder %s26, %s42
    %p44 = scmp.eq.s32.totalorder %s18, 0
    %p45 = por %p43, %p44
    %s47 = sadd.s32 %s46, 1
    %p50 = scmp.eq.s32.totalorder %s12, 1
    %p51 = scmp.ne.s32.totalorder %s46, %s48
    %p52 = scmp.eq.s32.totalorder %s12, 0
    %p53 = por %p51, %p52
    %p54 = scmp.ne.s32.totalorder %s46, %s48
    %p55 = scmp.eq.s32.totalorder %s17, 1
    %p56 = por %p54, %p55
    %p57 = scmp.ne.s32.totalorder %s48, %s49
    %p58 = scmp.eq.s32.totalorder %s17, 0
    %p59 = por %p57, %p58
    %p60 = scmp.ne.s32.totalorder %s48, %s49
    %p61 = scmp.eq.s32.totalorder %s18, 1
    %p62 = por %p60, %p61
    %p64 = scmp.ne.s32.totalorder %s49, %s63
    %p65 = scmp.eq.s32.totalorder %s18, 0
    %p66 = por %p64, %p65
    %s68 = sadd.s32 %s67, 1
    %p71 = scmp.eq.s32.totalorder %s12, 1
    %p72 = scmp.ne.s32.totalorder %s67, %s69
    %p73 = scmp.eq.s32.totalorder %s12, 0
    %p74 = por %p72, %p73
    %p75 = scmp.ne.s32.totalorder %s67, %s69
    %p76 = scmp.eq.s32.totalorder %s17, 1
    %p77 = por %p75, %p76
    %p78 = scmp.ne.s32.totalorder %s69, %s70
    %p79 = scmp.eq.s32.totalorder %s17, 0
    %p80 = por %p78, %p79
    %p81 = scmp.ne.s32.totalorder %s69, %s70
    %p82 = scmp.eq.s32.totalorder %s18, 1
    %p83 = por %p81, %p82
    %p85 = scmp.ne.s32.totalorder %s70, %s84
    %p86 = scmp.eq.s32.totalorder %s18, 0
    %p87 = por %p85, %p86
    %s89 = sadd.s32 %s88, 1
    %p92 = scmp.eq.s32.totalorder %s12, 1
    %p93 = scmp.ne.s32.totalorder %s88, %s90
    %p94 = scmp.eq.s32.totalorder %s12, 0
    %p95 = por %p93, %p94
    %p96 = scmp.ne.s32.totalorder %s88, %s90
    %p97 = scmp.eq.s32.totalorder %s17, 1
    %p98 = por %p96, %p97
    %p99 = scmp.ne.s32.totalorder %s90, %s91
    %p100 = scmp.eq.s32.totalorder %s17, 0
    %p101 = por %p99, %p100
    %p102 = scmp.ne.s32.totalorder %s90, %s91
    %p103 = scmp.eq.s32.totalorder %s18, 1
    %p104 = por %p102, %p103
    %p106 = scmp.ne.s32.totalorder %s91, %s105
    %p107 = scmp.eq.s32.totalorder %s18, 0
    %p108 = por %p106, %p107
    %s109 = ssub.s32 %s12, %s19
    %p110 = scmp.eq.s32.totalorder %s109, 0
    %s112 = sadd.s32 %s111, 1
    %s113 = scalar_select %p110, %s111, %s112
    %p116 = pneg %p110
    %p117 = scmp.eq.s32.totalorder %s12, 1
    %p118 = por %p116, %p117
    %p119 = scmp.ne.s32.totalorder %s111, %s114
    %p120 = scmp.eq.s32.totalorder %s12, 0
    %p121 = por %p119, %p120
    %p122 = scmp.ne.s32.totalorder %s111, %s114
    %p123 = scmp.eq.s32.totalorder %s17, 1
    %p124 = por %p122, %p123
    %p125 = scmp.ne.s32.totalorder %s114, %s115
    %p126 = scmp.eq.s32.totalorder %s17, 0
    %p127 = por %p125, %p126
    %p128 = scmp.ne.s32.totalorder %s114, %s115
    %p129 = scmp.eq.s32.totalorder %s18, 1
    %p130 = por %p128, %p129
    %p132 = scmp.ne.s32.totalorder %s115, %s131
    %p133 = scmp.eq.s32.totalorder %s18, 0
    %p134 = por %p132, %p133
    %s135 = ssub.s32 %s12, %s19
    %p136 = scmp.eq.s32.totalorder %s135, 0
    %s138 = sadd.s32 %s137, 1
    %s139 = scalar_select %p136, %s137, %s138
    %p142 = pneg %p136
    %p143 = scmp.eq.s32.totalorder %s12, 1
    %p144 = por %p142, %p143
    %p145 = scmp.ne.s32.totalorder %s137, %s140
    %p146 = scmp.eq.s32.totalorder %s12, 0
    %p147 = por %p145, %p146
    %p148 = scmp.ne.s32.totalorder %s137, %s140
    %p149 = scmp.eq.s32.totalorder %s17, 1
    %p150 = por %p148, %p149
    %p151 = scmp.ne.s32.totalorder %s140, %s141
    %p152 = scmp.eq.s32.totalorder %s17, 0
    %p153 = por %p151, %p152
    %p154 = scmp.ne.s32.totalorder %s140, %s141
    %p155 = scmp.eq.s32.totalorder %s18, 1
    %p156 = por %p154, %p155
    %p158 = scmp.ne.s32.totalorder %s141, %s157
    %p159 = scmp.eq.s32.totalorder %s18, 0
    %p160 = por %p158, %p159
    %s161 = ssub.s32 %s12, %s19
    %p162 = scmp.eq.s32.totalorder %s161, 0
    %s164 = sadd.s32 %s163, 1
    %s165 = scalar_select %p162, %s163, %s164
    %p168 = pneg %p162
    %p169 = scmp.eq.s32.totalorder %s12, 1
    %p170 = por %p168, %p169
    %p171 = scmp.ne.s32.totalorder %s163, %s166
    %p172 = scmp.eq.s32.totalorder %s12, 0
    %p173 = por %p171, %p172
    %p174 = scmp.ne.s32.totalorder %s163, %s166
    %p175 = scmp.eq.s32.totalorder %s17, 1
    %p176 = por %p174, %p175
    %p177 = scmp.ne.s32.totalorder %s166, %s167
    %p178 = scmp.eq.s32.totalorder %s17, 0
    %p179 = por %p177, %p178
    %p180 = scmp.ne.s32.totalorder %s166, %s167
    %p181 = scmp.eq.s32.totalorder %s18, 1
    %p182 = por %p180, %p181
    %p184 = scmp.ne.s32.totalorder %s167, %s183
    %p185 = scmp.eq.s32.totalorder %s18, 0
    %p186 = por %p184, %p185
    %p187 = scmp.le.s32.totalorder 1, %s12
    %p188 = scmp.lt.s32.totalorder %s12, 3
    %p189 = pnand %p187, %p188
    %p190 = pneg %p189
    // Predicated region
    $region9: #{basic_block_forward.11} parent=5 // pred_check
      _
    $region10: #{basic_block_forward.11} parent=5 // pred_check_branch
      %192 = sbr.rel (%p189) target = $region12
    $region11: #{basic_block_forward.11} parent=5 // pred_region
      %s193 = ssub.s32 %s12, 1
      // Predicated region
      $region13: #{basic_block_forward.11} parent=11 // pred_check
        %p194 = pneg %p59
      $region14: #{basic_block_forward.11} parent=11 // pred_check_branch
        %196 = sbr.rel (%p194) target = $region16
      $region15: #{basic_block_forward.11} parent=11 // pred_region
        _
      $region16: #{basic_block_forward.11} parent=11 // pred_fallthru
        _
      // Predicated region
      $region17: #{basic_block_forward.11} parent=11 // pred_check
        %p197 = pneg %p80
      $region18: #{basic_block_forward.11} parent=11 // pred_check_branch
        %199 = sbr.rel (%p197) target = $region20
      $region19: #{basic_block_forward.11} parent=11 // pred_region
        _
      $region20: #{basic_block_forward.11} parent=11 // pred_fallthru
        _
      // Predicated region
      $region21: #{basic_block_forward.11} parent=11 // pred_check
        %p200 = pneg %p101
      $region22: #{basic_block_forward.11} parent=11 // pred_check_branch
        %202 = sbr.rel (%p200) target = $region24
      $region23: #{basic_block_forward.11} parent=11 // pred_region
        _
      $region24: #{basic_block_forward.11} parent=11 // pred_fallthru
        _
    $region12: #{basic_block_forward.11} parent=5 // pred_fallthru
      _
    %p203 = scmp.lt.s32.totalorder %s12, 2
    // Predicated region
    $region25: #{basic_block_forward.11} parent=5 // pred_check
      %p204 = pneg %p203
    $region26: #{basic_block_forward.11} parent=5 // pred_check_branch
      %206 = sbr.rel (%p204) target = $region28
    $region27: #{basic_block_forward.11} parent=5 // pred_region
      // Predicated region
      $region29: #{basic_block_forward.11} parent=27 // pred_check
        %p207 = pneg %p32
      $region30: #{basic_block_forward.11} parent=27 // pred_check_branch
        %209 = sbr.rel (%p207) target = $region32
      $region31: #{basic_block_forward.11} parent=27 // pred_region
        %s210 = smul.u32 32, %s12
        %p211 = scmp.lt.s32.totalorder %s210, 63
        %s212 = scalar_select %p211, %s210, 63
        %s213 = smul.addr %s212, 4
        %s214 = scalar_lea.vmem %s0, %s213
        %s215 = smul.u32 32, %s12
      $region32: #{basic_block_forward.11} parent=27 // pred_fallthru
        _
      // Predicated region
      $region33: #{basic_block_forward.11} parent=27 // pred_check
        %p216 = pneg %p121
      $region34: #{basic_block_forward.11} parent=27 // pred_check_branch
        %218 = sbr.rel (%p216) target = $region36
      $region35: #{basic_block_forward.11} parent=27 // pred_region
        %s219 = smul.u32 32, %s12
        %p220 = scmp.lt.s32.totalorder %s219, 63
        %s221 = scalar_select %p220, %s219, 63
        %s222 = smul.addr %s221, 4
        %s223 = scalar_lea.vmem %s4, %s222
        %s224 = smul.u32 32, %s12
      $region36: #{basic_block_forward.11} parent=27 // pred_fallthru
        _
      // Predicated region
      $region37: #{basic_block_forward.11} parent=27 // pred_check
        %p225 = pneg %p147
      $region38: #{basic_block_forward.11} parent=27 // pred_check_branch
        %227 = sbr.rel (%p225) target = $region40
      $region39: #{basic_block_forward.11} parent=27 // pred_region
        %s228 = smul.u32 32, %s12
        %p229 = scmp.lt.s32.totalorder %s228, 63
        %s230 = scalar_select %p229, %s228, 63
        %s231 = smul.addr %s230, 4
        %s232 = scalar_lea.vmem %s5, %s231
        %s233 = smul.u32 32, %s12
      $region40: #{basic_block_forward.11} parent=27 // pred_fallthru
        _
    $region28: #{basic_block_forward.11} parent=5 // pred_fallthru
      _
    %p234 = scmp.le.s32.totalorder 1, %s12
    %p235 = scmp.lt.s32.totalorder %s12, 3
    %p236 = pnand %p234, %p235
    %p237 = pneg %p236
    // Predicated region
    $region41: #{basic_block_forward.11} parent=5 // pred_check
      _
    $region42: #{basic_block_forward.11} parent=5 // pred_check_branch
      %239 = sbr.rel (%p236) target = $region44
    $region43: #{basic_block_forward.11} parent=5 // pred_region
      %s240 = ssub.s32 %s12, 1
      %s241 = smul.u32 32, %s17
      %p242 = scmp.lt.s32.totalorder %s241, 63
      %s243 = scalar_select %p242, %s241, 63
      %s244 = smul.addr %s243, 4
      %s245 = scalar_lea.vmem %s0, %s244
      %p246 = pneg %p38
      %p247 = pneg %p35
      %p248 = pneg %p59
      %p249 = pneg %p56
      %p250 = pneg %p80
      %p251 = pneg %p77
      %p252 = pneg %p101
      %p253 = pneg %p98
      %s254 = smul.u32 32, %s17
      %p255 = scmp.lt.s32.totalorder %s254, 63
      %s256 = scalar_select %p255, %s254, 63
      %s257 = smul.addr %s256, 4
      %s258 = scalar_lea.vmem %s4, %s257
      %p259 = pneg %p127
      %p260 = pneg %p124
      %s261 = smul.u32 32, %s17
      %p262 = scmp.lt.s32.totalorder %s261, 63
      %s263 = scalar_select %p262, %s261, 63
      %s264 = smul.addr %s263, 4
      %s265 = scalar_lea.vmem %s5, %s264
      %p266 = pneg %p153
      %p267 = pneg %p150
      %p268 = pneg %p179
      %p269 = pneg %p176
      %s270 = smul.u32 32, %s17
      %p271 = scmp.lt.s32.totalorder %s270, 63
      %s272 = scalar_select %p271, %s270, 63
      %s273 = smul.addr %s272, 4
      %s274 = scalar_lea.vmem %s6, %s273
      %s275 = smul.u32 32, %s17
      %p276 = scmp.lt.s32.totalorder %s275, 63
      %s277 = scalar_select %p276, %s275, 63
      %s278 = smul.addr %s277, 4
      %s279 = scalar_lea.vmem %s0, %s278
      %s280 = smul.u32 32, %s17
      %s281 = smul.u32 32, %s17
      %p282 = scmp.lt.s32.totalorder %s281, 63
      %s283 = scalar_select %p282, %s281, 63
      %s284 = smul.addr %s283, 4
      %s285 = scalar_lea.vmem %s4, %s284
      %s286 = smul.u32 32, %s17
      %s287 = smul.u32 32, %s17
      %p288 = scmp.lt.s32.totalorder %s287, 63
      %s289 = scalar_select %p288, %s287, 63
      %s290 = smul.addr %s289, 4
      %s291 = scalar_lea.vmem %s5, %s290
      %s292 = smul.u32 32, %s17
      %s293 = smul.u32 32, %s17
      %p294 = scmp.lt.s32.totalorder %s293, 63
      %s295 = scalar_select %p294, %s293, 63
      %s296 = smul.addr %s295, 4
      %s297 = scalar_lea.vmem %s6, %s296
      %s298 = smul.u32 32, %s17
      %v300 = vld [vmem:[%s279] sm:$0xf]
      %v301 = vld [vmem:[%s279 + $0x4] sm:$0xf]
      %v302 = vld [vmem:[%s279 + $0x8] sm:$0xf]
      %v303 = vld [vmem:[%s279 + $0xc] sm:$0xf]
      %v304 = vld [vmem:[%s279 + $0x10] sm:$0xf]
      %v305 = vld [vmem:[%s279 + $0x14] sm:$0xf]
      %v306 = vld [vmem:[%s279 + $0x18] sm:$0xf]
      %v307 = vld [vmem:[%s279 + $0x1c] sm:$0xf]
      %v308 = vld [vmem:[%s279 + $0x20] sm:$0xf]
      %v309 = vld [vmem:[%s279 + $0x24] sm:$0xf]
      %v310 = vld [vmem:[%s279 + $0x28] sm:$0xf]
      %v311 = vld [vmem:[%s279 + $0x2c] sm:$0xf]
      %v312 = vld [vmem:[%s279 + $0x30] sm:$0xf]
      %v313 = vld [vmem:[%s279 + $0x34] sm:$0xf]
      %v314 = vld [vmem:[%s279 + $0x38] sm:$0xf]
      %v315 = vld [vmem:[%s279 + $0x3c] sm:$0xf]
      %v316 = vld [vmem:[%s279 + $0x40] sm:$0xf]
      %v317 = vld [vmem:[%s279 + $0x44] sm:$0xf]
      %v318 = vld [vmem:[%s279 + $0x48] sm:$0xf]
      %v319 = vld [vmem:[%s279 + $0x4c] sm:$0xf]
      %v320 = vld [vmem:[%s279 + $0x50] sm:$0xf]
      %v321 = vld [vmem:[%s279 + $0x54] sm:$0xf]
      %v322 = vld [vmem:[%s279 + $0x58] sm:$0xf]
      %v323 = vld [vmem:[%s279 + $0x5c] sm:$0xf]
      %v324 = vld [vmem:[%s279 + $0x60] sm:$0xf]
      %v325 = vld [vmem:[%s279 + $0x64] sm:$0xf]
      %v326 = vld [vmem:[%s279 + $0x68] sm:$0xf]
      %v327 = vld [vmem:[%s279 + $0x6c] sm:$0xf]
      %v328 = vld [vmem:[%s279 + $0x70] sm:$0xf]
      %v329 = vld [vmem:[%s279 + $0x74] sm:$0xf]
      %v330 = vld [vmem:[%s279 + $0x78] sm:$0xf]
      %v331 = vld [vmem:[%s279 + $0x7c] sm:$0xf]
      %v332 = vld [vmem:[%s1] sm:$0xf]
      %v333 = vld [vmem:[%s1 + $0x4] sm:$0xf]
      %v334 = vld [vmem:[%s1 + $0x8] sm:$0xf]
      %v335 = vld [vmem:[%s1 + $0xc] sm:$0xf]
      %v336 = vld [vmem:[%s1 + $0x10] sm:$0xf]
      %v337 = vld [vmem:[%s1 + $0x14] sm:$0xf]
      %v338 = vld [vmem:[%s1 + $0x18] sm:$0xf]
      %v339 = vld [vmem:[%s1 + $0x1c] sm:$0xf]
      %v340 = vld [vmem:[%s1 + $0x20] sm:$0xf]
      %v341 = vld [vmem:[%s1 + $0x24] sm:$0xf]
      %v342 = vld [vmem:[%s1 + $0x28] sm:$0xf]
      %v343 = vld [vmem:[%s1 + $0x2c] sm:$0xf]
      %v344 = vld [vmem:[%s1 + $0x30] sm:$0xf]
      %v345 = vld [vmem:[%s1 + $0x34] sm:$0xf]
      %v346 = vld [vmem:[%s1 + $0x38] sm:$0xf]
      %v347 = vld [vmem:[%s1 + $0x3c] sm:$0xf]
      %v380 = vunpack.c.l.b16 %v300
      %v381 = vunpack.c.l.b16 %v301
      %v382 = vunpack.c.l.b16 %v302
      %v383 = vunpack.c.l.b16 %v303
      %v384 = vunpack.c.l.b16 %v304
      %v385 = vunpack.c.l.b16 %v305
      %v386 = vunpack.c.l.b16 %v306
      %v387 = vunpack.c.l.b16 %v307
      %v388 = vunpack.c.l.b16 %v308
      %v389 = vunpack.c.l.b16 %v309
      %v390 = vunpack.c.l.b16 %v310
      %v391 = vunpack.c.l.b16 %v311
      %v392 = vunpack.c.l.b16 %v312
      %v393 = vunpack.c.l.b16 %v313
      %v394 = vunpack.c.l.b16 %v314
      %v395 = vunpack.c.l.b16 %v315
      %v396 = vunpack.c.l.b16 %v316
      %v397 = vunpack.c.l.b16 %v317
      %v398 = vunpack.c.l.b16 %v318
      %v399 = vunpack.c.l.b16 %v319
      %v400 = vunpack.c.l.b16 %v320
      %v401 = vunpack.c.l.b16 %v321
      %v402 = vunpack.c.l.b16 %v322
      %v403 = vunpack.c.l.b16 %v323
      %v404 = vunpack.c.l.b16 %v324
      %v405 = vunpack.c.l.b16 %v325
      %v406 = vunpack.c.l.b16 %v326
      %v407 = vunpack.c.l.b16 %v327
      %v408 = vunpack.c.l.b16 %v328
      %v409 = vunpack.c.l.b16 %v329
      %v410 = vunpack.c.l.b16 %v330
      %v411 = vunpack.c.l.b16 %v331
      %v412 = vpack.c.b16 %v381, %v380
      %v413 = vpack.c.b16 %v383, %v382
      %v414 = vpack.c.b16 %v385, %v384
      %v415 = vpack.c.b16 %v387, %v386
      %v416 = vpack.c.b16 %v389, %v388
      %v417 = vpack.c.b16 %v391, %v390
      %v418 = vpack.c.b16 %v393, %v392
      %v419 = vpack.c.b16 %v395, %v394
      %v420 = vpack.c.b16 %v397, %v396
      %v421 = vpack.c.b16 %v399, %v398
      %v422 = vpack.c.b16 %v401, %v400
      %v423 = vpack.c.b16 %v403, %v402
      %v424 = vpack.c.b16 %v405, %v404
      %v425 = vpack.c.b16 %v407, %v406
      %v426 = vpack.c.b16 %v409, %v408
      %v427 = vpack.c.b16 %v411, %v410
      %v460 = vunpack.c.l.b16 %v332
      %v461 = vunpack.c.l.b16 %v333
      %v462 = vunpack.c.l.b16 %v334
      %v463 = vunpack.c.l.b16 %v335
      %v464 = vunpack.c.l.b16 %v336
      %v465 = vunpack.c.l.b16 %v337
      %v466 = vunpack.c.l.b16 %v338
      %v467 = vunpack.c.l.b16 %v339
      %v468 = vunpack.c.l.b16 %v340
      %v469 = vunpack.c.l.b16 %v341
      %v470 = vunpack.c.l.b16 %v342
      %v471 = vunpack.c.l.b16 %v343
      %v472 = vunpack.c.l.b16 %v344
      %v473 = vunpack.c.l.b16 %v345
      %v474 = vunpack.c.l.b16 %v346
      %v475 = vunpack.c.l.b16 %v347
      %v476 = vpack.c.b16 %v461, %v460
      %v477 = vpack.c.b16 %v463, %v462
      %v478 = vpack.c.b16 %v465, %v464
      %v479 = vpack.c.b16 %v467, %v466
      %v480 = vpack.c.b16 %v469, %v468
      %v481 = vpack.c.b16 %v471, %v470
      %v482 = vpack.c.b16 %v473, %v472
      %v483 = vpack.c.b16 %v475, %v474
      %492 = vmatprep.subr.bf16.mxu0 0
      %493 = vmatpush1.bf16.msra.mxu0 %v476
      %494 = vmatprep.subr.bf16.mxu0 0
      %495 = vmatpush1.bf16.msra.mxu0 %v477
      %496 = vmatprep.subr.bf16.mxu0 0
      %497 = vmatpush1.bf16.msra.mxu0 %v478
      %498 = vmatprep.subr.bf16.mxu0 0
      %499 = vmatpush1.bf16.msra.mxu0 %v479
      %500 = vmatprep.subr.bf16.mxu0 0
      %501 = vmatpush1.bf16.msra.mxu0 %v480
      %502 = vmatprep.subr.bf16.mxu0 0
      %503 = vmatpush1.bf16.msra.mxu0 %v481
      %504 = vmatprep.subr.bf16.mxu0 0
      %505 = vmatpush1.bf16.msra.mxu0 %v482
      %506 = vmatprep.subr.bf16.mxu0 0
      %507 = vmatpush1.bf16.msra.mxu0 %v483
      %508 = vmatprep.subr.bf16.mxu0 0
      %509 = vmatpush1.bf16.msra.mxu0 0
      %510 = vmatprep.subr.bf16.mxu0 0
      %511 = vmatpush1.bf16.msra.mxu0 0
      %512 = vmatprep.subr.bf16.mxu0 0
      %513 = vmatpush1.bf16.msra.mxu0 0
      %514 = vmatprep.subr.bf16.mxu0 0
      %515 = vmatpush1.bf16.msra.mxu0 0
      %516 = vmatprep.subr.bf16.mxu0 0
      %517 = vmatpush1.bf16.msra.mxu0 0
      %518 = vmatprep.subr.bf16.mxu0 0
      %519 = vmatpush1.bf16.msra.mxu0 0
      %520 = vmatprep.subr.bf16.mxu0 0
      %521 = vmatpush1.bf16.msra.mxu0 0
      %522 = vmatprep.subr.bf16.mxu0 0
      %523 = vmatpush1.bf16.msra.mxu0 0
      %524 = vmatprep.mubr.bf16.mxu0 0
      %525 = vmatmul.mubr.bf16.gmra.mrb[0].mxu0 %v412
      %v526 = vpop.f32.mrb[0].mxu0
      %v527 = vadd.f32 0.0, %v526
      %v528 = vpop.f32.mrb[0].mxu0
      %v529 = vpop.f32.mrb[0].mxu0
      %v530 = vadd.f32 0.0, %v529
      %v531 = vpop.f32.mrb[0].mxu0
      %532 = vmatprep.mubr.bf16.mxu0 0
      %533 = vmatmul.mubr.bf16.gmra.mrb[0].mxu0 %v413
      %v534 = vpop.f32.mrb[0].mxu0
      %v535 = vadd.f32 0.0, %v534
      %v536 = vpop.f32.mrb[0].mxu0
      %v537 = vpop.f32.mrb[0].mxu0
      %v538 = vadd.f32 0.0, %v537
      %v539 = vpop.f32.mrb[0].mxu0
      %540 = vmatprep.mubr.bf16.mxu0 0
      %541 = vmatmul.mubr.bf16.gmra.mrb[0].mxu0 %v414
      %v542 = vpop.f32.mrb[0].mxu0
      %v543 = vadd.f32 0.0, %v542
      %v544 = vpop.f32.mrb[0].mxu0
      %v545 = vpop.f32.mrb[0].mxu0
      %v546 = vadd.f32 0.0, %v545
      %v547 = vpop.f32.mrb[0].mxu0
      %548 = vmatprep.mubr.bf16.mxu0 0
      %549 = vmatmul.mubr.bf16.gmra.mrb[0].mxu0 %v415
      %v550 = vpop.f32.mrb[0].mxu0
      %v551 = vadd.f32 0.0, %v550
      %v552 = vpop.f32.mrb[0].mxu0
      %v553 = vpop.f32.mrb[0].mxu0
      %v554 = vadd.f32 0.0, %v553
      %v555 = vpop.f32.mrb[0].mxu0
      %556 = vmatprep.mubr.bf16.mxu0 0
      %557 = vmatmul.mubr.bf16.gmra.mrb[0].mxu0 %v416
      %v558 = vpop.f32.mrb[0].mxu0
      %v559 = vadd.f32 0.0, %v558
      %v560 = vpop.f32.mrb[0].mxu0
      %v561 = vpop.f32.mrb[0].mxu0
      %v562 = vadd.f32 0.0, %v561
      %v563 = vpop.f32.mrb[0].mxu0
      %564 = vmatprep.mubr.bf16.mxu0 0
      %565 = vmatmul.mubr.bf16.gmra.mrb[0].mxu0 %v417
      %v566 = vpop.f32.mrb[0].mxu0
      %v567 = vadd.f32 0.0, %v566
      %v568 = vpop.f32.mrb[0].mxu0
      %v569 = vpop.f32.mrb[0].mxu0
      %v570 = vadd.f32 0.0, %v569
      %v571 = vpop.f32.mrb[0].mxu0
      %572 = vmatprep.mubr.bf16.mxu0 0
      %573 = vmatmul.mubr.bf16.gmra.mrb[0].mxu0 %v418
      %v574 = vpop.f32.mrb[0].mxu0
      %v575 = vadd.f32 0.0, %v574
      %v576 = vpop.f32.mrb[0].mxu0
      %v577 = vpop.f32.mrb[0].mxu0
      %v578 = vadd.f32 0.0, %v577
      %v579 = vpop.f32.mrb[0].mxu0
      %580 = vmatprep.mubr.bf16.mxu0 0
      %581 = vmatmul.mubr.bf16.gmra.mrb[0].mxu0 %v419
      %v582 = vpop.f32.mrb[0].mxu0
      %v583 = vadd.f32 0.0, %v582
      %v584 = vpop.f32.mrb[0].mxu0
      %v585 = vpop.f32.mrb[0].mxu0
      %v586 = vadd.f32 0.0, %v585
      %v587 = vpop.f32.mrb[0].mxu0
      %588 = vmatprep.mubr.bf16.mxu0 0
      %589 = vmatmul.mubr.bf16.gmra.mrb[0].mxu0 %v420
      %v590 = vpop.f32.mrb[0].mxu0
      %v591 = vadd.f32 0.0, %v590
      %v592 = vpop.f32.mrb[0].mxu0
      %v593 = vpop.f32.mrb[0].mxu0
      %v594 = vadd.f32 0.0, %v593
      %v595 = vpop.f32.mrb[0].mxu0
      %596 = vmatprep.mubr.bf16.mxu0 0
      %597 = vmatmul.mubr.bf16.gmra.mrb[0].mxu0 %v421
      %v598 = vpop.f32.mrb[0].mxu0
      %v599 = vadd.f32 0.0, %v598
      %v600 = vpop.f32.mrb[0].mxu0
      %v601 = vpop.f32.mrb[0].mxu0
      %v602 = vadd.f32 0.0, %v601
      %v603 = vpop.f32.mrb[0].mxu0
      %604 = vmatprep.mubr.bf16.mxu0 0
      %605 = vmatmul.mubr.bf16.gmra.mrb[0].mxu0 %v422
      %v606 = vpop.f32.mrb[0].mxu0
      %v607 = vadd.f32 0.0, %v606
      %v608 = vpop.f32.mrb[0].mxu0
      %v609 = vpop.f32.mrb[0].mxu0
      %v610 = vadd.f32 0.0, %v609
      %v611 = vpop.f32.mrb[0].mxu0
      %612 = vmatprep.mubr.bf16.mxu0 0
      %613 = vmatmul.mubr.bf16.gmra.mrb[0].mxu0 %v423
      %v614 = vpop.f32.mrb[0].mxu0
      %v615 = vadd.f32 0.0, %v614
      %v616 = vpop.f32.mrb[0].mxu0
      %v617 = vpop.f32.mrb[0].mxu0
      %v618 = vadd.f32 0.0, %v617
      %v619 = vpop.f32.mrb[0].mxu0
      %620 = vmatprep.mubr.bf16.mxu0 0
      %621 = vmatmul.mubr.bf16.gmra.mrb[0].mxu0 %v424
      %v622 = vpop.f32.mrb[0].mxu0
      %v623 = vadd.f32 0.0, %v622
      %v624 = vpop.f32.mrb[0].mxu0
      %v625 = vpop.f32.mrb[0].mxu0
      %v626 = vadd.f32 0.0, %v625
      %v627 = vpop.f32.mrb[0].mxu0
      %628 = vmatprep.mubr.bf16.mxu0 0
      %629 = vmatmul.mubr.bf16.gmra.mrb[0].mxu0 %v425
      %v630 = vpop.f32.mrb[0].mxu0
      %v631 = vadd.f32 0.0, %v630
      %v632 = vpop.f32.mrb[0].mxu0
      %v633 = vpop.f32.mrb[0].mxu0
      %v634 = vadd.f32 0.0, %v633
      %v635 = vpop.f32.mrb[0].mxu0
      %636 = vmatprep.mubr.bf16.mxu0 0
      %637 = vmatmul.mubr.bf16.gmra.mrb[0].mxu0 %v426
      %v638 = vpop.f32.mrb[0].mxu0
      %v639 = vadd.f32 0.0, %v638
      %v640 = vpop.f32.mrb[0].mxu0
      %v641 = vpop.f32.mrb[0].mxu0
      %v642 = vadd.f32 0.0, %v641
      %v643 = vpop.f32.mrb[0].mxu0
      %644 = vmatprep.mubr.bf16.mxu0 0
      %645 = vmatmul.mubr.bf16.gmra.mrb[0].mxu0 %v427
      %v646 = vpop.f32.mrb[0].mxu0
      %v647 = vadd.f32 0.0, %v646
      %v648 = vpop.f32.mrb[0].mxu0
      %v649 = vpop.f32.mrb[0].mxu0
      %v650 = vadd.f32 0.0, %v649
      %v651 = vpop.f32.mrb[0].mxu0
      %652 = vdwg.mxu0
      %v653 = vld [vmem:[%s2] sm:$0x1]
      %v655 = vlaneseq
      %v656 = vshrl.u32 %v655, 7
      %v657 = vsub.s32 0, %v656
      %v658 = vrot.slane %v653, %v657
      %v660 = vmul.f32 %v527, %v658
      %v661 = vmul.f32 %v530, %v658
      %v662 = vmul.f32 %v535, %v658
      %v663 = vmul.f32 %v538, %v658
      %v664 = vmul.f32 %v543, %v658
      %v665 = vmul.f32 %v546, %v658
      %v666 = vmul.f32 %v551, %v658
      %v667 = vmul.f32 %v554, %v658
      %v668 = vmul.f32 %v559, %v658
      %v669 = vmul.f32 %v562, %v658
      %v670 = vmul.f32 %v567, %v658
      %v671 = vmul.f32 %v570, %v658
      %v672 = vmul.f32 %v575, %v658
      %v673 = vmul.f32 %v578, %v658
      %v674 = vmul.f32 %v583, %v658
      %v675 = vmul.f32 %v586, %v658
      %v676 = vmul.f32 %v591, %v658
      %v677 = vmul.f32 %v594, %v658
      %v678 = vmul.f32 %v599, %v658
      %v679 = vmul.f32 %v602, %v658
      %v680 = vmul.f32 %v607, %v658
      %v681 = vmul.f32 %v610, %v658
      %v682 = vmul.f32 %v615, %v658
      %v683 = vmul.f32 %v618, %v658
      %v684 = vmul.f32 %v623, %v658
      %v685 = vmul.f32 %v626, %v658
      %v686 = vmul.f32 %v631, %v658
      %v687 = vmul.f32 %v634, %v658
      %v688 = vmul.f32 %v639, %v658
      %v689 = vmul.f32 %v642, %v658
      %v690 = vmul.f32 %v647, %v658
      %v691 = vmul.f32 %v650, %v658
      %v692 = vld [vmem:[%s3] sm:$0x1]
      %v694 = vlaneseq
      %v695 = vshrl.u32 %v694, 7
      %v696 = vsub.s32 0, %v695
      %v697 = vrot.slane %v692, %v696
      %v699 = vadd.f32 %v660, %v697
      %v700 = vadd.f32 %v661, %v697
      %v701 = vadd.f32 %v662, %v697
      %v702 = vadd.f32 %v663, %v697
      %v703 = vadd.f32 %v664, %v697
      %v704 = vadd.f32 %v665, %v697
      %v705 = vadd.f32 %v666, %v697
      %v706 = vadd.f32 %v667, %v697
      %v707 = vadd.f32 %v668, %v697
      %v708 = vadd.f32 %v669, %v697
      %v709 = vadd.f32 %v670, %v697
      %v710 = vadd.f32 %v671, %v697
      %v711 = vadd.f32 %v672, %v697
      %v712 = vadd.f32 %v673, %v697
      %v713 = vadd.f32 %v674, %v697
      %v714 = vadd.f32 %v675, %v697
      %v715 = vadd.f32 %v676, %v697
      %v716 = vadd.f32 %v677, %v697
      %v717 = vadd.f32 %v678, %v697
      %v718 = vadd.f32 %v679, %v697
      %v719 = vadd.f32 %v680, %v697
      %v720 = vadd.f32 %v681, %v697
      %v721 = vadd.f32 %v682, %v697
      %v722 = vadd.f32 %v683, %v697
      %v723 = vadd.f32 %v684, %v697
      %v724 = vadd.f32 %v685, %v697
      %v725 = vadd.f32 %v686, %v697
      %v726 = vadd.f32 %v687, %v697
      %v727 = vadd.f32 %v688, %v697
      %v728 = vadd.f32 %v689, %v697
      %v729 = vadd.f32 %v690, %v697
      %v730 = vadd.f32 %v691, %v697
      %v731 = vld [vmem:[%s285] sm:$0xf]
      %v732 = vld [vmem:[%s285 + $0x4] sm:$0xf]
      %v733 = vld [vmem:[%s285 + $0x8] sm:$0xf]
      %v734 = vld [vmem:[%s285 + $0xc] sm:$0xf]
      %v735 = vld [vmem:[%s285 + $0x10] sm:$0xf]
      %v736 = vld [vmem:[%s285 + $0x14] sm:$0xf]
      %v737 = vld [vmem:[%s285 + $0x18] sm:$0xf]
      %v738 = vld [vmem:[%s285 + $0x1c] sm:$0xf]
      %v739 = vld [vmem:[%s285 + $0x20] sm:$0xf]
      %v740 = vld [vmem:[%s285 + $0x24] sm:$0xf]
      %v741 = vld [vmem:[%s285 + $0x28] sm:$0xf]
      %v742 = vld [vmem:[%s285 + $0x2c] sm:$0xf]
      %v743 = vld [vmem:[%s285 + $0x30] sm:$0xf]
      %v744 = vld [vmem:[%s285 + $0x34] sm:$0xf]
      %v745 = vld [vmem:[%s285 + $0x38] sm:$0xf]
      %v746 = vld [vmem:[%s285 + $0x3c] sm:$0xf]
      %v747 = vld [vmem:[%s285 + $0x40] sm:$0xf]
      %v748 = vld [vmem:[%s285 + $0x44] sm:$0xf]
      %v749 = vld [vmem:[%s285 + $0x48] sm:$0xf]
      %v750 = vld [vmem:[%s285 + $0x4c] sm:$0xf]
      %v751 = vld [vmem:[%s285 + $0x50] sm:$0xf]
      %v752 = vld [vmem:[%s285 + $0x54] sm:$0xf]
      %v753 = vld [vmem:[%s285 + $0x58] sm:$0xf]
      %v754 = vld [vmem:[%s285 + $0x5c] sm:$0xf]
      %v755 = vld [vmem:[%s285 + $0x60] sm:$0xf]
      %v756 = vld [vmem:[%s285 + $0x64] sm:$0xf]
      %v757 = vld [vmem:[%s285 + $0x68] sm:$0xf]
      %v758 = vld [vmem:[%s285 + $0x6c] sm:$0xf]
      %v759 = vld [vmem:[%s285 + $0x70] sm:$0xf]
      %v760 = vld [vmem:[%s285 + $0x74] sm:$0xf]
      %v761 = vld [vmem:[%s285 + $0x78] sm:$0xf]
      %v762 = vld [vmem:[%s285 + $0x7c] sm:$0xf]
      %v763 = vunpack.c.l.bf16 %v731
      %v764 = vunpack.c.l.bf16 %v732
      %v765 = vunpack.c.l.bf16 %v733
      %v766 = vunpack.c.l.bf16 %v734
      %v767 = vunpack.c.l.bf16 %v735
      %v768 = vunpack.c.l.bf16 %v736
      %v769 = vunpack.c.l.bf16 %v737
      %v770 = vunpack.c.l.bf16 %v738
      %v771 = vunpack.c.l.bf16 %v739
      %v772 = vunpack.c.l.bf16 %v740
      %v773 = vunpack.c.l.bf16 %v741
      %v774 = vunpack.c.l.bf16 %v742
      %v775 = vunpack.c.l.bf16 %v743
      %v776 = vunpack.c.l.bf16 %v744
      %v777 = vunpack.c.l.bf16 %v745
      %v778 = vunpack.c.l.bf16 %v746
      %v779 = vunpack.c.l.bf16 %v747
      %v780 = vunpack.c.l.bf16 %v748
      %v781 = vunpack.c.l.bf16 %v749
      %v782 = vunpack.c.l.bf16 %v750
      %v783 = vunpack.c.l.bf16 %v751
      %v784 = vunpack.c.l.bf16 %v752
      %v785 = vunpack.c.l.bf16 %v753
      %v786 = vunpack.c.l.bf16 %v754
      %v787 = vunpack.c.l.bf16 %v755
      %v788 = vunpack.c.l.bf16 %v756
      %v789 = vunpack.c.l.bf16 %v757
      %v790 = vunpack.c.l.bf16 %v758
      %v791 = vunpack.c.l.bf16 %v759
      %v792 = vunpack.c.l.bf16 %v760
      %v793 = vunpack.c.l.bf16 %v761
      %v794 = vunpack.c.l.bf16 %v762
      %v795 = vadd.f32 %v699, %v763
      %v796 = vadd.f32 %v700, %v764
      %v797 = vadd.f32 %v701, %v765
      %v798 = vadd.f32 %v702, %v766
      %v799 = vadd.f32 %v703, %v767
      %v800 = vadd.f32 %v704, %v768
      %v801 = vadd.f32 %v705, %v769
      %v802 = vadd.f32 %v706, %v770
      %v803 = vadd.f32 %v707, %v771
      %v804 = vadd.f32 %v708, %v772
      %v805 = vadd.f32 %v709, %v773
      %v806 = vadd.f32 %v710, %v774
      %v807 = vadd.f32 %v711, %v775
      %v808 = vadd.f32 %v712, %v776
      %v809 = vadd.f32 %v713, %v777
      %v810 = vadd.f32 %v714, %v778
      %v811 = vadd.f32 %v715, %v779
      %v812 = vadd.f32 %v716, %v780
      %v813 = vadd.f32 %v717, %v781
      %v814 = vadd.f32 %v718, %v782
      %v815 = vadd.f32 %v719, %v783
      %v816 = vadd.f32 %v720, %v784
      %v817 = vadd.f32 %v721, %v785
      %v818 = vadd.f32 %v722, %v786
      %v819 = vadd.f32 %v723, %v787
      %v820 = vadd.f32 %v724, %v788
      %v821 = vadd.f32 %v725, %v789
      %v822 = vadd.f32 %v726, %v790
      %v823 = vadd.f32 %v727, %v791
      %v824 = vadd.f32 %v728, %v792
      %v825 = vadd.f32 %v729, %v793
      %v826 = vadd.f32 %v730, %v794
      %v827 = vld [vmem:[%s291] sm:$0xf]
      %v828 = vld [vmem:[%s291 + $0x4] sm:$0xf]
      %v829 = vld [vmem:[%s291 + $0x8] sm:$0xf]
      %v830 = vld [vmem:[%s291 + $0xc] sm:$0xf]
      %v831 = vld [vmem:[%s291 + $0x10] sm:$0xf]
      %v832 = vld [vmem:[%s291 + $0x14] sm:$0xf]
      %v833 = vld [vmem:[%s291 + $0x18] sm:$0xf]
      %v834 = vld [vmem:[%s291 + $0x1c] sm:$0xf]
      %v835 = vld [vmem:[%s291 + $0x20] sm:$0xf]
      %v836 = vld [vmem:[%s291 + $0x24] sm:$0xf]
      %v837 = vld [vmem:[%s291 + $0x28] sm:$0xf]
      %v838 = vld [vmem:[%s291 + $0x2c] sm:$0xf]
      %v839 = vld [vmem:[%s291 + $0x30] sm:$0xf]
      %v840 = vld [vmem:[%s291 + $0x34] sm:$0xf]
      %v841 = vld [vmem:[%s291 + $0x38] sm:$0xf]
      %v842 = vld [vmem:[%s291 + $0x3c] sm:$0xf]
      %v843 = vld [vmem:[%s291 + $0x40] sm:$0xf]
      %v844 = vld [vmem:[%s291 + $0x44] sm:$0xf]
      %v845 = vld [vmem:[%s291 + $0x48] sm:$0xf]
      %v846 = vld [vmem:[%s291 + $0x4c] sm:$0xf]
      %v847 = vld [vmem:[%s291 + $0x50] sm:$0xf]
      %v848 = vld [vmem:[%s291 + $0x54] sm:$0xf]
      %v849 = vld [vmem:[%s291 + $0x58] sm:$0xf]
      %v850 = vld [vmem:[%s291 + $0x5c] sm:$0xf]
      %v851 = vld [vmem:[%s291 + $0x60] sm:$0xf]
      %v852 = vld [vmem:[%s291 + $0x64] sm:$0xf]
      %v853 = vld [vmem:[%s291 + $0x68] sm:$0xf]
      %v854 = vld [vmem:[%s291 + $0x6c] sm:$0xf]
      %v855 = vld [vmem:[%s291 + $0x70] sm:$0xf]
      %v856 = vld [vmem:[%s291 + $0x74] sm:$0xf]
      %v857 = vld [vmem:[%s291 + $0x78] sm:$0xf]
      %v858 = vld [vmem:[%s291 + $0x7c] sm:$0xf]
      %v859 = vunpack.c.l.bf16 %v827
      %v860 = vunpack.c.l.bf16 %v828
      %v861 = vunpack.c.l.bf16 %v829
      %v862 = vunpack.c.l.bf16 %v830
      %v863 = vunpack.c.l.bf16 %v831
      %v864 = vunpack.c.l.bf16 %v832
      %v865 = vunpack.c.l.bf16 %v833
      %v866 = vunpack.c.l.bf16 %v834
      %v867 = vunpack.c.l.bf16 %v835
      %v868 = vunpack.c.l.bf16 %v836
      %v869 = vunpack.c.l.bf16 %v837
      %v870 = vunpack.c.l.bf16 %v838
      %v871 = vunpack.c.l.bf16 %v839
      %v872 = vunpack.c.l.bf16 %v840
      %v873 = vunpack.c.l.bf16 %v841
      %v874 = vunpack.c.l.bf16 %v842
      %v875 = vunpack.c.l.bf16 %v843
      %v876 = vunpack.c.l.bf16 %v844
      %v877 = vunpack.c.l.bf16 %v845
      %v878 = vunpack.c.l.bf16 %v846
      %v879 = vunpack.c.l.bf16 %v847
      %v880 = vunpack.c.l.bf16 %v848
      %v881 = vunpack.c.l.bf16 %v849
      %v882 = vunpack.c.l.bf16 %v850
      %v883 = vunpack.c.l.bf16 %v851
      %v884 = vunpack.c.l.bf16 %v852
      %v885 = vunpack.c.l.bf16 %v853
      %v886 = vunpack.c.l.bf16 %v854
      %v887 = vunpack.c.l.bf16 %v855
      %v888 = vunpack.c.l.bf16 %v856
      %v889 = vunpack.c.l.bf16 %v857
      %v890 = vunpack.c.l.bf16 %v858
      %v891 = vadd.f32 %v795, %v859
      %v892 = vadd.f32 %v796, %v860
      %v893 = vadd.f32 %v797, %v861
      %v894 = vadd.f32 %v798, %v862
      %v895 = vadd.f32 %v799, %v863
      %v896 = vadd.f32 %v800, %v864
      %v897 = vadd.f32 %v801, %v865
      %v898 = vadd.f32 %v802, %v866
      %v899 = vadd.f32 %v803, %v867
      %v900 = vadd.f32 %v804, %v868
      %v901 = vadd.f32 %v805, %v869
      %v902 = vadd.f32 %v806, %v870
      %v903 = vadd.f32 %v807, %v871
      %v904 = vadd.f32 %v808, %v872
      %v905 = vadd.f32 %v809, %v873
      %v906 = vadd.f32 %v810, %v874
      %v907 = vadd.f32 %v811, %v875
      %v908 = vadd.f32 %v812, %v876
      %v909 = vadd.f32 %v813, %v877
      %v910 = vadd.f32 %v814, %v878
      %v911 = vadd.f32 %v815, %v879
      %v912 = vadd.f32 %v816, %v880
      %v913 = vadd.f32 %v817, %v881
      %v914 = vadd.f32 %v818, %v882
      %v915 = vadd.f32 %v819, %v883
      %v916 = vadd.f32 %v820, %v884
      %v917 = vadd.f32 %v821, %v885
      %v918 = vadd.f32 %v822, %v886
      %v919 = vadd.f32 %v823, %v887
      %v920 = vadd.f32 %v824, %v888
      %v921 = vadd.f32 %v825, %v889
      %v922 = vadd.f32 %v826, %v890
      %v923 = vmax.f32 %v891, 0.0
      %v924 = vmax.f32 %v892, 0.0
      %v925 = vmax.f32 %v893, 0.0
      %v926 = vmax.f32 %v894, 0.0
      %v927 = vmax.f32 %v895, 0.0
      %v928 = vmax.f32 %v896, 0.0
      %v929 = vmax.f32 %v897, 0.0
      %v930 = vmax.f32 %v898, 0.0
      %v931 = vmax.f32 %v899, 0.0
      %v932 = vmax.f32 %v900, 0.0
      %v933 = vmax.f32 %v901, 0.0
      %v934 = vmax.f32 %v902, 0.0
      %v935 = vmax.f32 %v903, 0.0
      %v936 = vmax.f32 %v904, 0.0
      %v937 = vmax.f32 %v905, 0.0
      %v938 = vmax.f32 %v906, 0.0
      %v939 = vmax.f32 %v907, 0.0
      %v940 = vmax.f32 %v908, 0.0
      %v941 = vmax.f32 %v909, 0.0
      %v942 = vmax.f32 %v910, 0.0
      %v943 = vmax.f32 %v911, 0.0
      %v944 = vmax.f32 %v912, 0.0
      %v945 = vmax.f32 %v913, 0.0
      %v946 = vmax.f32 %v914, 0.0
      %v947 = vmax.f32 %v915, 0.0
      %v948 = vmax.f32 %v916, 0.0
      %v949 = vmax.f32 %v917, 0.0
      %v950 = vmax.f32 %v918, 0.0
      %v951 = vmax.f32 %v919, 0.0
      %v952 = vmax.f32 %v920, 0.0
      %v953 = vmax.f32 %v921, 0.0
      %v954 = vmax.f32 %v922, 0.0
      %v955 = vpack.c.bf16 %v924, %v923
      %v956 = vpack.c.bf16 %v926, %v925
      %v957 = vpack.c.bf16 %v928, %v927
      %v958 = vpack.c.bf16 %v930, %v929
      %v959 = vpack.c.bf16 %v932, %v931
      %v960 = vpack.c.bf16 %v934, %v933
      %v961 = vpack.c.bf16 %v936, %v935
      %v962 = vpack.c.bf16 %v938, %v937
      %v963 = vpack.c.bf16 %v940, %v939
      %v964 = vpack.c.bf16 %v942, %v941
      %v965 = vpack.c.bf16 %v944, %v943
      %v966 = vpack.c.bf16 %v946, %v945
      %v967 = vpack.c.bf16 %v948, %v947
      %v968 = vpack.c.bf16 %v950, %v949
      %v969 = vpack.c.bf16 %v952, %v951
      %v970 = vpack.c.bf16 %v954, %v953
      %v987 = vunpack.c.l.b16 %v955
      %v988 = vunpack.c.h.b16 %v955
      %v989 = vunpack.c.l.b16 %v956
      %v990 = vunpack.c.h.b16 %v956
      %v991 = vunpack.c.l.b16 %v957
      %v992 = vunpack.c.h.b16 %v957
      %v993 = vunpack.c.l.b16 %v958
      %v994 = vunpack.c.h.b16 %v958
      %v995 = vunpack.c.l.b16 %v959
      %v996 = vunpack.c.h.b16 %v959
      %v997 = vunpack.c.l.b16 %v960
      %v998 = vunpack.c.h.b16 %v960
      %v999 = vunpack.c.l.b16 %v961
      %v1000 = vunpack.c.h.b16 %v961
      %v1001 = vunpack.c.l.b16 %v962
      %v1002 = vunpack.c.h.b16 %v962
      %v1003 = vunpack.c.l.b16 %v963
      %v1004 = vunpack.c.h.b16 %v963
      %v1005 = vunpack.c.l.b16 %v964
      %v1006 = vunpack.c.h.b16 %v964
      %v1007 = vunpack.c.l.b16 %v965
      %v1008 = vunpack.c.h.b16 %v965
      %v1009 = vunpack.c.l.b16 %v966
      %v1010 = vunpack.c.h.b16 %v966
      %v1011 = vunpack.c.l.b16 %v967
      %v1012 = vunpack.c.h.b16 %v967
      %v1013 = vunpack.c.l.b16 %v968
      %v1014 = vunpack.c.h.b16 %v968
      %v1015 = vunpack.c.l.b16 %v969
      %v1016 = vunpack.c.h.b16 %v969
      %v1017 = vunpack.c.l.b16 %v970
      %v1018 = vunpack.c.h.b16 %v970
      %v1019 = vpack.c.b16 %v987, %v987
      %v1020 = vpack.c.b16 %v988, %v988
      %v1021 = vpack.c.b16 %v989, %v989
      %v1022 = vpack.c.b16 %v990, %v990
      %v1023 = vpack.c.b16 %v991, %v991
      %v1024 = vpack.c.b16 %v992, %v992
      %v1025 = vpack.c.b16 %v993, %v993
      %v1026 = vpack.c.b16 %v994, %v994
      %v1027 = vpack.c.b16 %v995, %v995
      %v1028 = vpack.c.b16 %v996, %v996
      %v1029 = vpack.c.b16 %v997, %v997
      %v1030 = vpack.c.b16 %v998, %v998
      %v1031 = vpack.c.b16 %v999, %v999
      %v1032 = vpack.c.b16 %v1000, %v1000
      %v1033 = vpack.c.b16 %v1001, %v1001
      %v1034 = vpack.c.b16 %v1002, %v1002
      %v1035 = vpack.c.b16 %v1003, %v1003
      %v1036 = vpack.c.b16 %v1004, %v1004
      %v1037 = vpack.c.b16 %v1005, %v1005
      %v1038 = vpack.c.b16 %v1006, %v1006
      %v1039 = vpack.c.b16 %v1007, %v1007
      %v1040 = vpack.c.b16 %v1008, %v1008
      %v1041 = vpack.c.b16 %v1009, %v1009
      %v1042 = vpack.c.b16 %v1010, %v1010
      %v1043 = vpack.c.b16 %v1011, %v1011
      %v1044 = vpack.c.b16 %v1012, %v1012
      %v1045 = vpack.c.b16 %v1013, %v1013
      %v1046 = vpack.c.b16 %v1014, %v1014
      %v1047 = vpack.c.b16 %v1015, %v1015
      %v1048 = vpack.c.b16 %v1016, %v1016
      %v1049 = vpack.c.b16 %v1017, %v1017
      %v1050 = vpack.c.b16 %v1018, %v1018
      %1083 = vst [vmem:[%s297] sm:$0xf] %v1019
      %1084 = vst [vmem:[%s297 + $0x4] sm:$0xf] %v1020
      %1085 = vst [vmem:[%s297 + $0x8] sm:$0xf] %v1021
      %1086 = vst [vmem:[%s297 + $0xc] sm:$0xf] %v1022
      %1087 = vst [vmem:[%s297 + $0x10] sm:$0xf] %v1023
      %1088 = vst [vmem:[%s297 + $0x14] sm:$0xf] %v1024
      %1089 = vst [vmem:[%s297 + $0x18] sm:$0xf] %v1025
      %1090 = vst [vmem:[%s297 + $0x1c] sm:$0xf] %v1026
      %1091 = vst [vmem:[%s297 + $0x20] sm:$0xf] %v1027
      %1092 = vst [vmem:[%s297 + $0x24] sm:$0xf] %v1028
      %1093 = vst [vmem:[%s297 + $0x28] sm:$0xf] %v1029
      %1094 = vst [vmem:[%s297 + $0x2c] sm:$0xf] %v1030
      %1095 = vst [vmem:[%s297 + $0x30] sm:$0xf] %v1031
      %1096 = vst [vmem:[%s297 + $0x34] sm:$0xf] %v1032
      %1097 = vst [vmem:[%s297 + $0x38] sm:$0xf] %v1033
      %1098 = vst [vmem:[%s297 + $0x3c] sm:$0xf] %v1034
      %1099 = vst [vmem:[%s297 + $0x40] sm:$0xf] %v1035
      %1100 = vst [vmem:[%s297 + $0x44] sm:$0xf] %v1036
      %1101 = vst [vmem:[%s297 + $0x48] sm:$0xf] %v1037
      %1102 = vst [vmem:[%s297 + $0x4c] sm:$0xf] %v1038
      %1103 = vst [vmem:[%s297 + $0x50] sm:$0xf] %v1039
      %1104 = vst [vmem:[%s297 + $0x54] sm:$0xf] %v1040
      %1105 = vst [vmem:[%s297 + $0x58] sm:$0xf] %v1041
      %1106 = vst [vmem:[%s297 + $0x5c] sm:$0xf] %v1042
      %1107 = vst [vmem:[%s297 + $0x60] sm:$0xf] %v1043
      %1108 = vst [vmem:[%s297 + $0x64] sm:$0xf] %v1044
      %1109 = vst [vmem:[%s297 + $0x68] sm:$0xf] %v1045
      %1110 = vst [vmem:[%s297 + $0x6c] sm:$0xf] %v1046
      %1111 = vst [vmem:[%s297 + $0x70] sm:$0xf] %v1047
      %1112 = vst [vmem:[%s297 + $0x74] sm:$0xf] %v1048
      %1113 = vst [vmem:[%s297 + $0x78] sm:$0xf] %v1049
      %1114 = vst [vmem:[%s297 + $0x7c] sm:$0xf] %v1050
      %s1115 = smul.u32 32, %s17
      %p1116 = scmp.lt.s32.totalorder %s1115, 63
      %s1117 = scalar_select %p1116, %s1115, 63
      %s1118 = smul.addr %s1117, 4
      %s1119 = scalar_lea.vmem %s6, %s1118
      // Predicated region
      $region45: #{basic_block_forward.11} parent=43 // pred_check
        %p1120 = pneg %p176
      $region46: #{basic_block_forward.11} parent=43 // pred_check_branch
        %1122 = sbr.rel (%p1120) target = $region48
      $region47: #{basic_block_forward.11} parent=43 // pred_region
        %s1123 = smul.u32 32, %s17
      $region48: #{basic_block_forward.11} parent=43 // pred_fallthru
        _
    $region44: #{basic_block_forward.11} parent=5 // pred_fallthru
      _
    %p1124 = scmp.le.s32.totalorder 2, %s12
    // Predicated region
    $region49: #{basic_block_forward.11} parent=5 // pred_check
      %p1125 = pneg %p1124
    $region50: #{basic_block_forward.11} parent=5 // pred_check_branch
      %1127 = sbr.rel (%p1125) target = $region52
    $region51: #{basic_block_forward.11} parent=5 // pred_region
      %s1128 = ssub.s32 %s12, 2
      // Predicated region
      $region53: #{basic_block_forward.11} parent=51 // pred_check
        %p1129 = pneg %p182
      $region54: #{basic_block_forward.11} parent=51 // pred_check_branch
        %1131 = sbr.rel (%p1129) target = $region56
      $region55: #{basic_block_forward.11} parent=51 // pred_region
        %s1132 = smul.u32 32, %s18
        %p1133 = scmp.lt.s32.totalorder %s1132, 63
        %s1134 = scalar_select %p1133, %s1132, 63
        %s1135 = smul.addr %s1134, 4
        %s1136 = scalar_lea.vmem %s6, %s1135
      $region56: #{basic_block_forward.11} parent=51 // pred_fallthru
        _
    $region52: #{basic_block_forward.11} parent=5 // pred_fallthru
      _
  $region6: #{basic_block_forward.11} parent=0 // loop_footer
    %s16 = sadd.s32 1, %s12
  $region7: #{basic_block_forward.11} parent=0 // loop_footer_branch
    %11 = sbr.rel target = $region3
  $region8: #{basic_block_forward.11} parent=0 // loop_exit
    _

</llo_original>
